<compile_context>
chip_gen: v7x
topology: tpu7x:2x2x1
jax: 0.10.0
libtpu: 0.0.40
codegen_flags: <defaults>
</compile_context>

<pallas_src>
import functools
import math

import jax
import jax.numpy as jnp
from jax.experimental import pallas as pl
from jax.experimental.pallas import tpu as pltpu

# ----------------------------------------------------------------------------
# Deterministic reduced network configuration
# ----------------------------------------------------------------------------
IN_CHANNELS = 4
NUM_CLASSES = 10
WIDTH_MULT = 1.0
STEM_CHANNELS = 8           # stem conv output channels
FINAL_DIM = 64              # conv8 output width
SETTING = [                 # (t=expand_ratio, c=out_channels, n=repeats, s=stride)
    (1, 8, 1, 1),
    (6, 16, 2, 2),
    (6, 24, 2, 2),
]
BN_EPS = 1e-5
LANE = 128

_COMPILER_PARAMS = pltpu.CompilerParams(
    dimension_semantics=("parallel",),           # batch axis -> 2 TCs on v7x
    vmem_limit_bytes=32 * 1024 * 1024,           # safe on v5e/v6e/v7x
)


def _ceil_to(v, m):
    return ((v + m - 1) // m) * m


def _pad2(w, rows, cols):
    return jnp.pad(w, ((0, rows - w.shape[0]), (0, cols - w.shape[1])))


# ----------------------------------------------------------------------------
# Pallas kernels
# ----------------------------------------------------------------------------
def _stem_kernel(p_ref, w_ref, b_ref, o_ref):
    """conv1 (3x3 s2, pre-gathered taps) + BN (folded) + ReLU6, one image."""
    _, Ho, Wo, K = p_ref.shape
    x2d = p_ref[0].reshape(Ho * Wo, K)
    y = jnp.dot(x2d, w_ref[...], preferred_element_type=jnp.float32)
    y = jnp.minimum(jnp.maximum(y + b_ref[...], 0.0), 6.0)
    o_ref[0] = y.reshape(Ho, Wo, -1).astype(o_ref.dtype)


def _block_kernel(x_ref, w1_ref, b1_ref, w2_ref, b2_ref, w3_ref, b3_ref,
                  o_ref, y1_scr, *, stride, use_res):
    """Fused inverted-residual block for one image.

    x_ref : [1, H, W, Cinp]  bf16
    w1    : [Cinp, Hidp]     bf16 (BN1 scale folded)     b1: [1, Hidp] f32
    w2    : [9, Hidp]        f32  (BN2 scale folded)     b2: [1, Hidp] f32
    w3    : [Hidp, Coutp]    bf16 (BN3 scale folded)     b3: [1, Coutp] f32
    o_ref : [1, Ho, Wo, Coutp] bf16
    y1_scr: [H+2, W+2, Hidp] bf16 VMEM scratch (halo-padded expanded activation)
    """
    _, H, W, cinp = x_ref.shape
    hidp = w1_ref.shape[1]
    coutp = w3_ref.shape[1]
    Ho, Wo = H // stride, W // stride

    x2d = x_ref[0].reshape(H * W, cinp)

    # ---- conv1 (1x1 expand) + BN + ReLU6 -> VMEM scratch with zero halo ----
    y1 = jnp.dot(x2d, w1_ref[...], preferred_element_type=jnp.float32)
    y1 = jnp.minimum(jnp.maximum(y1 + b1_ref[...], 0.0), 6.0)
    y1_scr[...] = jnp.zeros_like(y1_scr)               # zero the halo border
    y1_scr[1:H + 1, 1:W + 1, :] = y1.reshape(H, W, hidp).astype(y1_scr.dtype)

    # ---- conv2 (channelwise 3x3) + BN + ReLU6, in-kernel im2col from VMEM ----
    w2 = w2_ref[...]                                    # [9, hidp] f32
    acc = None
    for kh in range(3):
        for kw in range(3):
            tap = y1_scr[kh:kh + H, kw:kw + W, :].astype(jnp.float32)
            term = tap * w2[3 * kh + kw]
            acc = term if acc is None else acc + term
    z = jnp.minimum(jnp.maximum(acc + b2_ref[...], 0.0), 6.0)   # [H, W, hidp]
    if stride > 1:
        # stride handled by subsampling the stride-1 result (stride-1 slices only)
        z = z.reshape(Ho, stride, W, hidp)[:, 0]                # rows
        z = z.reshape(Ho, Wo, stride, hidp)[:, :, 0, :]         # cols

    # ---- conv3 (1x1 project) + BN (+ residual) ----
    z2d = z.reshape(Ho * Wo, hidp).astype(jnp.bfloat16)
    out = jnp.dot(z2d, w3_ref[...], preferred_element_type=jnp.float32)
    out = out + b3_ref[...]
    if use_res:
        out = out + x2d.astype(jnp.float32)
    o_ref[0] = out.reshape(Ho, Wo, coutp).astype(o_ref.dtype)


def _head_kernel(x_ref, w8_ref, b8_ref, wfc_ref, bfc_ref, o_ref, *, inv_psp):
    """conv8 (1x1) + BN + ReLU6 + global average pooling + fc, one image."""
    _, H, W, cinp = x_ref.shape
    x2d = x_ref[0].reshape(H * W, cinp)
    h = jnp.dot(x2d, w8_ref[...], preferred_element_type=jnp.float32)
    h = jnp.minimum(jnp.maximum(h + b8_ref[...], 0.0), 6.0)      # [Psp, Fp]
    pooled = jnp.sum(h, axis=0, keepdims=True) * inv_psp          # [1, Fp] (XLU)
    logits = jnp.dot(pooled.astype(jnp.bfloat16), wfc_ref[...],
                     preferred_element_type=jnp.float32) + bfc_ref[...]
    o_ref[0] = jnp.broadcast_to(logits, o_ref.shape[1:])          # lane-dense slab


# ----------------------------------------------------------------------------
# pallas_call wrappers (grid over batch, "parallel")
# ----------------------------------------------------------------------------
def _stem_call(pat, w, b):
    N, Ho, Wo, K = pat.shape
    coutp = w.shape[1]
    return pl.pallas_call(
        _stem_kernel,
        out_shape=jax.ShapeDtypeStruct((N, Ho, Wo, coutp), jnp.bfloat16),
        grid=(N,),
        in_specs=[
            pl.BlockSpec((1, Ho, Wo, K), lambda n: (n, 0, 0, 0)),
            pl.BlockSpec((K, coutp), lambda n: (0, 0)),
            pl.BlockSpec((1, coutp), lambda n: (0, 0)),
        ],
        out_specs=pl.BlockSpec((1, Ho, Wo, coutp), lambda n: (n, 0, 0, 0)),
        compiler_params=_COMPILER_PARAMS,
    )(pat, w, b)


def _block_call(x, bp):
    N, H, W, cinp = x.shape
    stride = bp["stride"]
    assert H % stride == 0 and W % stride == 0
    hidp = bp["w1"].shape[1]
    coutp = bp["w3"].shape[1]
    Ho, Wo = H // stride, W // stride
    kern = functools.partial(_block_kernel, stride=stride, use_res=bp["use_res"])
    return pl.pallas_call(
        kern,
        out_shape=jax.ShapeDtypeStruct((N, Ho, Wo, coutp), jnp.bfloat16),
        grid=(N,),
        in_specs=[
            pl.BlockSpec((1, H, W, cinp), lambda n: (n, 0, 0, 0)),
            pl.BlockSpec((cinp, hidp), lambda n: (0, 0)),
            pl.BlockSpec((1, hidp), lambda n: (0, 0)),
            pl.BlockSpec((9, hidp), lambda n: (0, 0)),
            pl.BlockSpec((1, hidp), lambda n: (0, 0)),
            pl.BlockSpec((hidp, coutp), lambda n: (0, 0)),
            pl.BlockSpec((1, coutp), lambda n: (0, 0)),
        ],
        out_specs=pl.BlockSpec((1, Ho, Wo, coutp), lambda n: (n, 0, 0, 0)),
        scratch_shapes=[pltpu.VMEM((H + 2, W + 2, hidp), jnp.bfloat16)],
        compiler_params=_COMPILER_PARAMS,
    )(x, bp["w1"], bp["b1"], bp["w2"], bp["b2"], bp["w3"], bp["b3"])


def _head_call(x, w8, b8, wfc, bfc):
    N, H, W, cinp = x.shape
    fp = w8.shape[1]
    kp = wfc.shape[1]
    kern = functools.partial(_head_kernel, inv_psp=1.0 / float(H * W))
    return pl.pallas_call(
        kern,
        out_shape=jax.ShapeDtypeStruct((N, 8, kp), jnp.float32),
        grid=(N,),
        in_specs=[
            pl.BlockSpec((1, H, W, cinp), lambda n: (n, 0, 0, 0)),
            pl.BlockSpec((cinp, fp), lambda n: (0, 0)),
            pl.BlockSpec((1, fp), lambda n: (0, 0)),
            pl.BlockSpec((fp, kp), lambda n: (0, 0)),
            pl.BlockSpec((1, kp), lambda n: (0, 0)),
        ],
        out_specs=pl.BlockSpec((1, 8, kp), lambda n: (n, 0, 0)),
        compiler_params=_COMPILER_PARAMS,
    )(x, w8, b8, wfc, bfc)


# ----------------------------------------------------------------------------
# Parameter initialization: kaiming fan_out weights, eval-form BN (gamma=1,
# beta=0, running stats 0/1) with the scale folded into the weights, and all
# channel dims zero-padded to multiples of 128 (lane-dense).
# ----------------------------------------------------------------------------
def _kaiming(key, shape, fan_out):
    std = math.sqrt(2.0 / float(fan_out))
    return std * jax.random.normal(key, shape, jnp.float32)


def init_params(key):
    keys = iter(jax.random.split(key, 64))
    bn_scale = 1.0 / math.sqrt(1.0 + BN_EPS)
    params = {}

    stem_out = int(STEM_CHANNELS * WIDTH_MULT)
    stem_outp = _ceil_to(stem_out, LANE)
    w = _kaiming(next(keys), (3, 3, IN_CHANNELS, stem_out), fan_out=9 * stem_out)
    w = (w * bn_scale).reshape(9 * IN_CHANNELS, stem_out)
    params["stem_w"] = _pad2(w, 9 * IN_CHANNELS, stem_outp).astype(jnp.bfloat16)
    params["stem_b"] = jnp.zeros((1, stem_outp), jnp.float32)

    blocks = []
    cin = stem_out
    for t, c, n, s in SETTING:
        cout = int(c * WIDTH_MULT)
        for i in range(n):
            stride = s if i == 0 else 1
            hidden = int(round(cin * t))
            cinp = _ceil_to(cin, LANE)
            hidp = _ceil_to(hidden, LANE)
            coutp = _ceil_to(cout, LANE)
            w1 = _kaiming(next(keys), (cin, hidden), fan_out=hidden) * bn_scale
            w2 = _kaiming(next(keys), (9, hidden), fan_out=9) * bn_scale
            w3 = _kaiming(next(keys), (hidden, cout), fan_out=cout) * bn_scale
            blocks.append({
                "stride": stride,
                "use_res": (cin == cout and stride == 1),
                "w1": _pad2(w1, cinp, hidp).astype(jnp.bfloat16),
                "b1": jnp.zeros((1, hidp), jnp.float32),
                "w2": _pad2(w2, 9, hidp).astype(jnp.float32),
                "b2": jnp.zeros((1, hidp), jnp.float32),
                "w3": _pad2(w3, hidp, coutp).astype(jnp.bfloat16),
                "b3": jnp.zeros((1, coutp), jnp.float32),
            })
            cin = cout
    params["blocks"] = blocks

    final_dim = int(FINAL_DIM * WIDTH_MULT)
    cinp = _ceil_to(cin, LANE)
    fp = _ceil_to(final_dim, LANE)
    kp = _ceil_to(NUM_CLASSES, LANE)
    w8 = _kaiming(next(keys), (cin, final_dim), fan_out=final_dim) * bn_scale
    params["conv8_w"] = _pad2(w8, cinp, fp).astype(jnp.bfloat16)
    params["conv8_b"] = jnp.zeros((1, fp), jnp.float32)
    bound = 1.0 / math.sqrt(final_dim)
    wfc = jax.random.uniform(next(keys), (final_dim, NUM_CLASSES),
                             jnp.float32, -bound, bound)
    params["fc_w"] = _pad2(wfc, fp, kp).astype(jnp.bfloat16)
    params["fc_b"] = jnp.zeros((1, kp), jnp.float32)
    return params


# ----------------------------------------------------------------------------
# Forward pass
# ----------------------------------------------------------------------------
def mobilenetv2_forward(params, x_nchw):
    x = jnp.transpose(x_nchw, (0, 2, 3, 1)).astype(jnp.bfloat16)  # NCHW -> NHWC
    N, H, W, _ = x.shape

    # conv1 (3x3 stride 2) + bn1 + relu1: build [N, Ho, Wo, 9*Cin] patches
    # directly (no transposed im2col round-trip), fused matmul kernel.
    xp = jnp.pad(x, ((0, 0), (1, 1), (1, 1), (0, 0)))
    Ho, Wo = (H - 1) // 2 + 1, (W - 1) // 2 + 1
    taps = [xp[:, kh:kh + 2 * (Ho - 1) + 1:2, kw:kw + 2 * (Wo - 1) + 1:2, :]
            for kh in range(3) for kw in range(3)]
    pat = jnp.concatenate(taps, axis=-1)                 # [N, Ho, Wo, 9*Cin]
    x = _stem_call(pat, params["stem_w"], params["stem_b"])

    # fused inverted-residual blocks (one pallas_call per block)
    for bp in params["blocks"]:
        x = _block_call(x, bp)

    # conv8 + bn8 + relu8 + global average pooling + fc (single fused kernel)
    out = _head_call(x, params["conv8_w"], params["conv8_b"],
                     params["fc_w"], params["fc_b"])
    return out[:, 0, :NUM_CLASSES]                        # x.F -> [N, classes]


# ----------------------------------------------------------------------------
if __name__ == "__main__":
    key = jax.random.PRNGKey(0)
    kparam, kx = jax.random.split(key)

    params = init_params(kparam)
    x = jax.random.normal(kx, (2, IN_CHANNELS, 16, 16), jnp.float32)  # NCHW input

    fwd = jax.jit(lambda inp: mobilenetv2_forward(params, inp))
    out = jax.block_until_ready(fwd(x))

    assert out.shape == (2, NUM_CLASSES), out.shape
    assert bool(jnp.all(jnp.isfinite(out)))
    print("KERNEL_OK")
</pallas_src>

<mosaic_0001>
module attributes {stable_mosaic.version = 11 : i64} {
  func.func @_stem_kernel(%arg0: i32, %arg1: memref<1x8x8x36xbf16, #tpu.memory_space<vmem>>, %arg2: memref<36x128xbf16, #tpu.memory_space<vmem>>, %arg3: memref<1x128xf32, #tpu.memory_space<vmem>>, %arg4: memref<1x8x8x128xbf16, #tpu.memory_space<vmem>>) attributes {dimension_semantics = [#tpu.dimension_semantics<parallel>], iteration_bounds = array<i64: 2>, scalar_prefetch = 0 : i64, scratch_operands = 0 : i64, tpu.core_type = #tpu.core_type<tc>, window_params = [{transform_indices = @transform_0, window_bounds = array<i64: 1, 8, 8, 36>}, {pipeline_mode = #tpu.pipeline_mode<synchronous>, transform_indices = @transform_1, window_bounds = array<i64: 36, 128>}, {pipeline_mode = #tpu.pipeline_mode<synchronous>, transform_indices = @transform_2, window_bounds = array<i64: 1, 128>}, {transform_indices = @transform_3, window_bounds = array<i64: 1, 8, 8, 128>}]} {
    %c0 = arith.constant 0 : index
    %c0_0 = arith.constant 0 : index
    %c0_1 = arith.constant 0 : index
    %c0_2 = arith.constant 0 : index
    %0 = vector.load %arg1[%c0, %c0_0, %c0_1, %c0_2] : memref<1x8x8x36xbf16, #tpu.memory_space<vmem>>, vector<1x8x8x36xbf16>
    %1 = vector.shape_cast %0 : vector<1x8x8x36xbf16> to vector<8x8x36xbf16>
    %2 = vector.shape_cast %1 : vector<8x8x36xbf16> to vector<64x36xbf16>
    %c0_3 = arith.constant 0 : index
    %c0_4 = arith.constant 0 : index
    %3 = vector.load %arg2[%c0_3, %c0_4] : memref<36x128xbf16, #tpu.memory_space<vmem>>, vector<36x128xbf16>
    %cst = arith.constant dense<0.000000e+00> : vector<64x128xf32>
    %4 = tpu.matmul %2, %3, %cst {dimension_numbers = #tpu.dot_dimension_numbers<[1], [0], [0], [1], [0, 0, 1, 1], [], []>} : vector<64x36xbf16>, vector<36x128xbf16>, vector<64x128xf32> -> vector<64x128xf32>
    %c0_5 = arith.constant 0 : index
    %c0_6 = arith.constant 0 : index
    %5 = vector.load %arg3[%c0_5, %c0_6] : memref<1x128xf32, #tpu.memory_space<vmem>>, vector<1x128xf32>
    %6 = vector.broadcast %5 : vector<1x128xf32> to vector<64x128xf32>
    %7 = arith.addf %4, %6 : vector<64x128xf32>
    %cst_7 = arith.constant 0.000000e+00 : f32
    %8 = vector.broadcast %cst_7 : f32 to vector<64x128xf32>
    %9 = arith.maximumf %7, %8 : vector<64x128xf32>
    %cst_8 = arith.constant 6.000000e+00 : f32
    %10 = vector.broadcast %cst_8 : f32 to vector<64x128xf32>
    %11 = arith.minimumf %9, %10 : vector<64x128xf32>
    %12 = vector.shape_cast %11 : vector<64x128xf32> to vector<8x8x128xf32>
    %13 = arith.truncf %12 : vector<8x8x128xf32> to vector<8x8x128xbf16>
    %c0_9 = arith.constant 0 : index
    %c0_10 = arith.constant 0 : index
    %c0_11 = arith.constant 0 : index
    %c0_12 = arith.constant 0 : index
    %14 = vector.load %arg4[%c0_9, %c0_10, %c0_11, %c0_12] : memref<1x8x8x128xbf16, #tpu.memory_space<vmem>>, vector<1x8x8x128xbf16>
    %15 = vector.shape_cast %14 : vector<1x8x8x128xbf16> to vector<8x8x128xbf16>
    %16 = vector.shape_cast %13 : vector<8x8x128xbf16> to vector<1x8x8x128xbf16>
    tpu.vector_store %arg4[%c0_9, %c0_10, %c0_11, %c0_12], %16 {strides = array<i32>} : memref<1x8x8x128xbf16, #tpu.memory_space<vmem>>, vector<1x8x8x128xbf16>,
    return
  }
  func.func @transform_0(%arg0: i32) -> (i32, i32, i32, i32) {
    %c0_i32 = arith.constant 0 : i32
    %c0_i32_0 = arith.constant 0 : i32
    %c0_i32_1 = arith.constant 0 : i32
    %c0_i32_2 = arith.constant 0 : i32
    return %arg0, %c0_i32, %c0_i32_0, %c0_i32_1 : i32, i32, i32, i32
  }
  func.func @transform_1(%arg0: i32) -> (i32, i32) {
    %c0_i32 = arith.constant 0 : i32
    %c0_i32_0 = arith.constant 0 : i32
    %c0_i32_1 = arith.constant 0 : i32
    return %c0_i32, %c0_i32_0 : i32, i32
  }
  func.func @transform_2(%arg0: i32) -> (i32, i32) {
    %c0_i32 = arith.constant 0 : i32
    %c0_i32_0 = arith.constant 0 : i32
    %c0_i32_1 = arith.constant 0 : i32
    return %c0_i32, %c0_i32_0 : i32, i32
  }
  func.func @transform_3(%arg0: i32) -> (i32, i32, i32, i32) {
    %c0_i32 = arith.constant 0 : i32
    %c0_i32_0 = arith.constant 0 : i32
    %c0_i32_1 = arith.constant 0 : i32
    %c0_i32_2 = arith.constant 0 : i32
    return %arg0, %c0_i32, %c0_i32_0, %c0_i32_1 : i32, i32, i32, i32
  }
}

module attributes {stable_mosaic.version = 11 : i64} {
  func.func @_block_kernel(%arg0: i32, %arg1: memref<1x8x8x128xbf16, #tpu.memory_space<vmem>>, %arg2: memref<128x128xbf16, #tpu.memory_space<vmem>>, %arg3: memref<1x128xf32, #tpu.memory_space<vmem>>, %arg4: memref<9x128xf32, #tpu.memory_space<vmem>>, %arg5: memref<1x128xf32, #tpu.memory_space<vmem>>, %arg6: memref<128x128xbf16, #tpu.memory_space<vmem>>, %arg7: memref<1x128xf32, #tpu.memory_space<vmem>>, %arg8: memref<1x4x4x128xbf16, #tpu.memory_space<vmem>>, %arg9: memref<10x10x128xbf16, #tpu.memory_space<vmem>>) attributes {dimension_semantics = [#tpu.dimension_semantics<parallel>], iteration_bounds = array<i64: 2>, scalar_prefetch = 0 : i64, scratch_operands = 1 : i64, tpu.core_type = #tpu.core_type<tc>, window_params = [{transform_indices = @transform_0, window_bounds = array<i64: 1, 8, 8, 128>}, {pipeline_mode = #tpu.pipeline_mode<synchronous>, transform_indices = @transform_1, window_bounds = array<i64: 128, 128>}, {pipeline_mode = #tpu.pipeline_mode<synchronous>, transform_indices = @transform_2, window_bounds = array<i64: 1, 128>}, {pipeline_mode = #tpu.pipeline_mode<synchronous>, transform_indices = @transform_3, window_bounds = array<i64: 9, 128>}, {pipeline_mode = #tpu.pipeline_mode<synchronous>, transform_indices = @transform_4, window_bounds = array<i64: 1, 128>}, {pipeline_mode = #tpu.pipeline_mode<synchronous>, transform_indices = @transform_5, window_bounds = array<i64: 128, 128>}, {pipeline_mode = #tpu.pipeline_mode<synchronous>, transform_indices = @transform_6, window_bounds = array<i64: 1, 128>}, {transform_indices = @transform_7, window_bounds = array<i64: 1, 4, 4, 128>}]} {
    %c0 = arith.constant 0 : index
    %c0_0 = arith.constant 0 : index
    %c0_1 = arith.constant 0 : index
    %c0_2 = arith.constant 0 : index
    %0 = vector.load %arg1[%c0, %c0_0, %c0_1, %c0_2] : memref<1x8x8x128xbf16, #tpu.memory_space<vmem>>, vector<1x8x8x128xbf16>
    %1 = vector.shape_cast %0 : vector<1x8x8x128xbf16> to vector<8x8x128xbf16>
    %2 = vector.shape_cast %1 : vector<8x8x128xbf16> to vector<64x128xbf16>
    %c0_3 = arith.constant 0 : index
    %c0_4 = arith.constant 0 : index
    %3 = vector.load %arg2[%c0_3, %c0_4] : memref<128x128xbf16, #tpu.memory_space<vmem>>, vector<128x128xbf16>
    %cst = arith.constant dense<0.000000e+00> : vector<64x128xf32>
    %4 = tpu.matmul %2, %3, %cst {dimension_numbers = #tpu.dot_dimension_numbers<[1], [0], [0], [1], [0, 0, 1, 1], [], []>} : vector<64x128xbf16>, vector<128x128xbf16>, vector<64x128xf32> -> vector<64x128xf32>
    %c0_5 = arith.constant 0 : index
    %c0_6 = arith.constant 0 : index
    %5 = vector.load %arg3[%c0_5, %c0_6] : memref<1x128xf32, #tpu.memory_space<vmem>>, vector<1x128xf32>
    %6 = vector.broadcast %5 : vector<1x128xf32> to vector<64x128xf32>
    %7 = arith.addf %4, %6 : vector<64x128xf32>
    %cst_7 = arith.constant 0.000000e+00 : f32
    %8 = vector.broadcast %cst_7 : f32 to vector<64x128xf32>
    %9 = arith.maximumf %7, %8 : vector<64x128xf32>
    %cst_8 = arith.constant 6.000000e+00 : f32
    %10 = vector.broadcast %cst_8 : f32 to vector<64x128xf32>
    %11 = arith.minimumf %9, %10 : vector<64x128xf32>
    %cst_9 = arith.constant 0.000000e+00 : bf16
    %12 = vector.broadcast %cst_9 : bf16 to vector<10x10x128xbf16>
    %c0_10 = arith.constant 0 : index
    %c0_11 = arith.constant 0 : index
    %c0_12 = arith.constant 0 : index
    %13 = vector.load %arg9[%c0_10, %c0_11, %c0_12] : memref<10x10x128xbf16, #tpu.memory_space<vmem>>, vector<10x10x128xbf16>
    tpu.vector_store %arg9[%c0_10, %c0_11, %c0_12], %12 {strides = array<i32>} : memref<10x10x128xbf16, #tpu.memory_space<vmem>>, vector<10x10x128xbf16>,
    %14 = vector.shape_cast %11 : vector<64x128xf32> to vector<8x8x128xf32>
    %15 = arith.truncf %14 : vector<8x8x128xf32> to vector<8x8x128xbf16>
    %c1 = arith.constant 1 : index
    %c1_13 = arith.constant 1 : index
    %c0_14 = arith.constant 0 : index
    %16 = vector.load %arg9[%c1, %c1_13, %c0_14] : memref<10x10x128xbf16, #tpu.memory_space<vmem>>, vector<8x8x128xbf16>
    tpu.vector_store %arg9[%c1, %c1_13, %c0_14], %15 {strides = array<i32>} : memref<10x10x128xbf16, #tpu.memory_space<vmem>>, vector<8x8x128xbf16>,
    %c0_15 = arith.constant 0 : index
    %c0_16 = arith.constant 0 : index
    %17 = vector.load %arg4[%c0_15, %c0_16] : memref<9x128xf32, #tpu.memory_space<vmem>>, vector<9x128xf32>
    %c0_17 = arith.constant 0 : index
    %c0_18 = arith.constant 0 : index
    %c0_19 = arith.constant 0 : index
    %18 = vector.load %arg9[%c0_17, %c0_18, %c0_19] : memref<10x10x128xbf16, #tpu.memory_space<vmem>>, vector<8x8x128xbf16>
    %19 = arith.extf %18 : vector<8x8x128xbf16> to vector<8x8x128xf32>
    %20 = vector.extract_strided_slice %17 {offsets = [0, 0], sizes = [1, 128], strides = [1, 1]} : vector<9x128xf32> to vector<1x128xf32>
    %21 = vector.shape_cast %20 : vector<1x128xf32> to vector<128xf32>
    %22 = vector.shape_cast %21 : vector<128xf32> to vector<1x1x128xf32>
    %23 = vector.broadcast %22 : vector<1x1x128xf32> to vector<8x8x128xf32>
    %24 = arith.mulf %19, %23 : vector<8x8x128xf32>
    %c0_20 = arith.constant 0 : index
    %c1_21 = arith.constant 1 : index
    %c0_22 = arith.constant 0 : index
    %25 = vector.load %arg9[%c0_20, %c1_21, %c0_22] : memref<10x10x128xbf16, #tpu.memory_space<vmem>>, vector<8x8x128xbf16>
    %26 = arith.extf %25 : vector<8x8x128xbf16> to vector<8x8x128xf32>
    %27 = vector.extract_strided_slice %17 {offsets = [1, 0], sizes = [1, 128], strides = [1, 1]} : vector<9x128xf32> to vector<1x128xf32>
    %28 = vector.shape_cast %27 : vector<1x128xf32> to vector<128xf32>
    %29 = vector.shape_cast %28 : vector<128xf32> to vector<1x1x128xf32>
    %30 = vector.broadcast %29 : vector<1x1x128xf32> to vector<8x8x128xf32>
    %31 = arith.mulf %26, %30 : vector<8x8x128xf32>
    %32 = arith.addf %24, %31 : vector<8x8x128xf32>
    %c0_23 = arith.constant 0 : index
    %c2 = arith.constant 2 : index
    %c0_24 = arith.constant 0 : index
    %33 = vector.load %arg9[%c0_23, %c2, %c0_24] : memref<10x10x128xbf16, #tpu.memory_space<vmem>>, vector<8x8x128xbf16>
    %34 = arith.extf %33 : vector<8x8x128xbf16> to vector<8x8x128xf32>
    %35 = vector.extract_strided_slice %17 {offsets = [2, 0], sizes = [1, 128], strides = [1, 1]} : vector<9x128xf32> to vector<1x128xf32>
    %36 = vector.shape_cast %35 : vector<1x128xf32> to vector<128xf32>
    %37 = vector.shape_cast %36 : vector<128xf32> to vector<1x1x128xf32>
    %38 = vector.broadcast %37 : vector<1x1x128xf32> to vector<8x8x128xf32>
    %39 = arith.mulf %34, %38 : vector<8x8x128xf32>
    %40 = arith.addf %32, %39 : vector<8x8x128xf32>
    %c1_25 = arith.constant 1 : index
    %c0_26 = arith.constant 0 : index
    %c0_27 = arith.constant 0 : index
    %41 = vector.load %arg9[%c1_25, %c0_26, %c0_27] : memref<10x10x128xbf16, #tpu.memory_space<vmem>>, vector<8x8x128xbf16>
    %42 = arith.extf %41 : vector<8x8x128xbf16> to vector<8x8x128xf32>
    %43 = vector.extract_strided_slice %17 {offsets = [3, 0], sizes = [1, 128], strides = [1, 1]} : vector<9x128xf32> to vector<1x128xf32>
    %44 = vector.shape_cast %43 : vector<1x128xf32> to vector<128xf32>
    %45 = vector.shape_cast %44 : vector<128xf32> to vector<1x1x128xf32>
    %46 = vector.broadcast %45 : vector<1x1x128xf32> to vector<8x8x128xf32>
    %47 = arith.mulf %42, %46 : vector<8x8x128xf32>
    %48 = arith.addf %40, %47 : vector<8x8x128xf32>
    %c1_28 = arith.constant 1 : index
    %c1_29 = arith.constant 1 : index
    %c0_30 = arith.constant 0 : index
    %49 = vector.load %arg9[%c1_28, %c1_29, %c0_30] : memref<10x10x128xbf16, #tpu.memory_space<vmem>>, vector<8x8x128xbf16>
    %50 = arith.extf %49 : vector<8x8x128xbf16> to vector<8x8x128xf32>
    %51 = vector.extract_strided_slice %17 {offsets = [4, 0], sizes = [1, 128], strides = [1, 1]} : vector<9x128xf32> to vector<1x128xf32>
    %52 = vector.shape_cast %51 : vector<1x128xf32> to vector<128xf32>
    %53 = vector.shape_cast %52 : vector<128xf32> to vector<1x1x128xf32>
    %54 = vector.broadcast %53 : vector<1x1x128xf32> to vector<8x8x128xf32>
    %55 = arith.mulf %50, %54 : vector<8x8x128xf32>
    %56 = arith.addf %48, %55 : vector<8x8x128xf32>
    %c1_31 = arith.constant 1 : index
    %c2_32 = arith.constant 2 : index
    %c0_33 = arith.constant 0 : index
    %57 = vector.load %arg9[%c1_31, %c2_32, %c0_33] : memref<10x10x128xbf16, #tpu.memory_space<vmem>>, vector<8x8x128xbf16>
    %58 = arith.extf %57 : vector<8x8x128xbf16> to vector<8x8x128xf32>
    %59 = vector.extract_strided_slice %17 {offsets = [5, 0], sizes = [1, 128], strides = [1, 1]} : vector<9x128xf32> to vector<1x128xf32>
    %60 = vector.shape_cast %59 : vector<1x128xf32> to vector<128xf32>
    %61 = vector.shape_cast %60 : vector<128xf32> to vector<1x1x128xf32>
    %62 = vector.broadcast %61 : vector<1x1x128xf32> to vector<8x8x128xf32>
    %63 = arith.mulf %58, %62 : vector<8x8x128xf32>
    %64 = arith.addf %56, %63 : vector<8x8x128xf32>
    %c2_34 = arith.constant 2 : index
    %c0_35 = arith.constant 0 : index
    %c0_36 = arith.constant 0 : index
    %65 = vector.load %arg9[%c2_34, %c0_35, %c0_36] : memref<10x10x128xbf16, #tpu.memory_space<vmem>>, vector<8x8x128xbf16>
    %66 = arith.extf %65 : vector<8x8x128xbf16> to vector<8x8x128xf32>
    %67 = vector.extract_strided_slice %17 {offsets = [6, 0], sizes = [1, 128], strides = [1, 1]} : vector<9x128xf32> to vector<1x128xf32>
    %68 = vector.shape_cast %67 : vector<1x128xf32> to vector<128xf32>
    %69 = vector.shape_cast %68 : vector<128xf32> to vector<1x1x128xf32>
    %70 = vector.broadcast %69 : vector<1x1x128xf32> to vector<8x8x128xf32>
    %71 = arith.mulf %66, %70 : vector<8x8x128xf32>
    %72 = arith.addf %64, %71 : vector<8x8x128xf32>
    %c2_37 = arith.constant 2 : index
    %c1_38 = arith.constant 1 : index
    %c0_39 = arith.constant 0 : index
    %73 = vector.load %arg9[%c2_37, %c1_38, %c0_39] : memref<10x10x128xbf16, #tpu.memory_space<vmem>>, vector<8x8x128xbf16>
    %74 = arith.extf %73 : vector<8x8x128xbf16> to vector<8x8x128xf32>
    %75 = vector.extract_strided_slice %17 {offsets = [7, 0], sizes = [1, 128], strides = [1, 1]} : vector<9x128xf32> to vector<1x128xf32>
    %76 = vector.shape_cast %75 : vector<1x128xf32> to vector<128xf32>
    %77 = vector.shape_cast %76 : vector<128xf32> to vector<1x1x128xf32>
    %78 = vector.broadcast %77 : vector<1x1x128xf32> to vector<8x8x128xf32>
    %79 = arith.mulf %74, %78 : vector<8x8x128xf32>
    %80 = arith.addf %72, %79 : vector<8x8x128xf32>
    %c2_40 = arith.constant 2 : index
    %c2_41 = arith.constant 2 : index
    %c0_42 = arith.constant 0 : index
    %81 = vector.load %arg9[%c2_40, %c2_41, %c0_42] : memref<10x10x128xbf16, #tpu.memory_space<vmem>>, vector<8x8x128xbf16>
    %82 = arith.extf %81 : vector<8x8x128xbf16> to vector<8x8x128xf32>
    %83 = vector.extract_strided_slice %17 {offsets = [8, 0], sizes = [1, 128], strides = [1, 1]} : vector<9x128xf32> to vector<1x128xf32>
    %84 = vector.shape_cast %83 : vector<1x128xf32> to vector<128xf32>
    %85 = vector.shape_cast %84 : vector<128xf32> to vector<1x1x128xf32>
    %86 = vector.broadcast %85 : vector<1x1x128xf32> to vector<8x8x128xf32>
    %87 = arith.mulf %82, %86 : vector<8x8x128xf32>
    %88 = arith.addf %80, %87 : vector<8x8x128xf32>
    %c0_43 = arith.constant 0 : index
    %c0_44 = arith.constant 0 : index
    %89 = vector.load %arg5[%c0_43, %c0_44] : memref<1x128xf32, #tpu.memory_space<vmem>>, vector<1x128xf32>
    %90 = vector.shape_cast %89 : vector<1x128xf32> to vector<1x1x128xf32>
    %91 = vector.broadcast %90 : vector<1x1x128xf32> to vector<8x8x128xf32>
    %92 = arith.addf %88, %91 : vector<8x8x128xf32>
    %cst_45 = arith.constant 0.000000e+00 : f32
    %93 = vector.broadcast %cst_45 : f32 to vector<8x8x128xf32>
    %94 = arith.maximumf %92, %93 : vector<8x8x128xf32>
    %cst_46 = arith.constant 6.000000e+00 : f32
    %95 = vector.broadcast %cst_46 : f32 to vector<8x8x128xf32>
    %96 = arith.minimumf %94, %95 : vector<8x8x128xf32>
    %97 = vector.shape_cast %96 : vector<8x8x128xf32> to vector<4x2x8x128xf32>
    %98 = vector.extract_strided_slice %97 {offsets = [0, 0, 0, 0], sizes = [4, 1, 8, 128], strides = [1, 1, 1, 1]} : vector<4x2x8x128xf32> to vector<4x1x8x128xf32>
    %99 = vector.shape_cast %98 : vector<4x1x8x128xf32> to vector<4x8x128xf32>
    %100 = vector.shape_cast %99 : vector<4x8x128xf32> to vector<4x4x2x128xf32>
    %101 = vector.extract_strided_slice %100 {offsets = [0, 0, 0, 0], sizes = [4, 4, 1, 128], strides = [1, 1, 1, 1]} : vector<4x4x2x128xf32> to vector<4x4x1x128xf32>
    %102 = vector.shape_cast %101 : vector<4x4x1x128xf32> to vector<4x4x128xf32>
    %103 = vector.shape_cast %102 : vector<4x4x128xf32> to vector<16x128xf32>
    %104 = arith.truncf %103 : vector<16x128xf32> to vector<16x128xbf16>
    %c0_47 = arith.constant 0 : index
    %c0_48 = arith.constant 0 : index
    %105 = vector.load %arg6[%c0_47, %c0_48] : memref<128x128xbf16, #tpu.memory_space<vmem>>, vector<128x128xbf16>
    %cst_49 = arith.constant dense<0.000000e+00> : vector<16x128xf32>
    %106 = tpu.matmul %104, %105, %cst_49 {dimension_numbers = #tpu.dot_dimension_numbers<[1], [0], [0], [1], [0, 0, 1, 1], [], []>} : vector<16x128xbf16>, vector<128x128xbf16>, vector<16x128xf32> -> vector<16x128xf32>
    %c0_50 = arith.constant 0 : index
    %c0_51 = arith.constant 0 : index
    %107 = vector.load %arg7[%c0_50, %c0_51] : memref<1x128xf32, #tpu.memory_space<vmem>>, vector<1x128xf32>
    %108 = vector.broadcast %107 : vector<1x128xf32> to vector<16x128xf32>
    %109 = arith.addf %106, %108 : vector<16x128xf32>
    %110 = vector.shape_cast %109 : vector<16x128xf32> to vector<4x4x128xf32>
    %111 = arith.truncf %110 : vector<4x4x128xf32> to vector<4x4x128xbf16>
    %c0_52 = arith.constant 0 : index
    %c0_53 = arith.constant 0 : index
    %c0_54 = arith.constant 0 : index
    %c0_55 = arith.constant 0 : index
    %112 = vector.load %arg8[%c0_52, %c0_53, %c0_54, %c0_55] : memref<1x4x4x128xbf16, #tpu.memory_space<vmem>>, vector<1x4x4x128xbf16>
    %113 = vector.shape_cast %112 : vector<1x4x4x128xbf16> to vector<4x4x128xbf16>
    %114 = vector.shape_cast %111 : vector<4x4x128xbf16> to vector<1x4x4x128xbf16>
    tpu.vector_store %arg8[%c0_52, %c0_53, %c0_54, %c0_55], %114 {strides = array<i32>} : memref<1x4x4x128xbf16, #tpu.memory_space<vmem>>, vector<1x4x4x128xbf16>,
    return
  }
  func.func @transform_0(%arg0: i32) -> (i32, i32, i32, i32) {
    %c0_i32 = arith.constant 0 : i32
    %c0_i32_0 = arith.constant 0 : i32
    %c0_i32_1 = arith.constant 0 : i32
    %c0_i32_2 = arith.constant 0 : i32
    return %arg0, %c0_i32, %c0_i32_0, %c0_i32_1 : i32, i32, i32, i32
  }
  func.func @transform_1(%arg0: i32) -> (i32, i32) {
    %c0_i32 = arith.constant 0 : i32
    %c0_i32_0 = arith.constant 0 : i32
    %c0_i32_1 = arith.constant 0 : i32
    return %c0_i32, %c0_i32_0 : i32, i32
  }
  func.func @transform_2(%arg0: i32) -> (i32, i32) {
    %c0_i32 = arith.constant 0 : i32
    %c0_i32_0 = arith.constant 0 : i32
    %c0_i32_1 = arith.constant 0 : i32
    return %c0_i32, %c0_i32_0 : i32, i32
  }
  func.func @transform_3(%arg0: i32) -> (i32, i32) {
    %c0_i32 = arith.constant 0 : i32
    %c0_i32_0 = arith.constant 0 : i32
    %c0_i32_1 = arith.constant 0 : i32
    return %c0_i32, %c0_i32_0 : i32, i32
  }
  func.func @transform_4(%arg0: i32) -> (i32, i32) {
    %c0_i32 = arith.constant 0 : i32
    %c0_i32_0 = arith.constant 0 : i32
    %c0_i32_1 = arith.constant 0 : i32
    return %c0_i32, %c0_i32_0 : i32, i32
  }
  func.func @transform_5(%arg0: i32) -> (i32, i32) {
    %c0_i32 = arith.constant 0 : i32
    %c0_i32_0 = arith.constant 0 : i32
    %c0_i32_1 = arith.constant 0 : i32
    return %c0_i32, %c0_i32_0 : i32, i32
  }
  func.func @transform_6(%arg0: i32) -> (i32, i32) {
    %c0_i32 = arith.constant 0 : i32
    %c0_i32_0 = arith.constant 0 : i32
    %c0_i32_1 = arith.constant 0 : i32
    return %c0_i32, %c0_i32_0 : i32, i32
  }
  func.func @transform_7(%arg0: i32) -> (i32, i32, i32, i32) {
    %c0_i32 = arith.constant 0 : i32
    %c0_i32_0 = arith.constant 0 : i32
    %c0_i32_1 = arith.constant 0 : i32
    %c0_i32_2 = arith.constant 0 : i32
    return %arg0, %c0_i32, %c0_i32_0, %c0_i32_1 : i32, i32, i32, i32
  }
}

module attributes {stable_mosaic.version = 11 : i64} {
  func.func @_block_kernel(%arg0: i32, %arg1: memref<1x8x8x128xbf16, #tpu.memory_space<vmem>>, %arg2: memref<128x128xbf16, #tpu.memory_space<vmem>>, %arg3: memref<1x128xf32, #tpu.memory_space<vmem>>, %arg4: memref<9x128xf32, #tpu.memory_space<vmem>>, %arg5: memref<1x128xf32, #tpu.memory_space<vmem>>, %arg6: memref<128x128xbf16, #tpu.memory_space<vmem>>, %arg7: memref<1x128xf32, #tpu.memory_space<vmem>>, %arg8: memref<1x8x8x128xbf16, #tpu.memory_space<vmem>>, %arg9: memref<10x10x128xbf16, #tpu.memory_space<vmem>>) attributes {dimension_semantics = [#tpu.dimension_semantics<parallel>], iteration_bounds = array<i64: 2>, scalar_prefetch = 0 : i64, scratch_operands = 1 : i64, tpu.core_type = #tpu.core_type<tc>, window_params = [{transform_indices = @transform_0, window_bounds = array<i64: 1, 8, 8, 128>}, {pipeline_mode = #tpu.pipeline_mode<synchronous>, transform_indices = @transform_1, window_bounds = array<i64: 128, 128>}, {pipeline_mode = #tpu.pipeline_mode<synchronous>, transform_indices = @transform_2, window_bounds = array<i64: 1, 128>}, {pipeline_mode = #tpu.pipeline_mode<synchronous>, transform_indices = @transform_3, window_bounds = array<i64: 9, 128>}, {pipeline_mode = #tpu.pipeline_mode<synchronous>, transform_indices = @transform_4, window_bounds = array<i64: 1, 128>}, {pipeline_mode = #tpu.pipeline_mode<synchronous>, transform_indices = @transform_5, window_bounds = array<i64: 128, 128>}, {pipeline_mode = #tpu.pipeline_mode<synchronous>, transform_indices = @transform_6, window_bounds = array<i64: 1, 128>}, {transform_indices = @transform_7, window_bounds = array<i64: 1, 8, 8, 128>}]} {
    %c0 = arith.constant 0 : index
    %c0_0 = arith.constant 0 : index
    %c0_1 = arith.constant 0 : index
    %c0_2 = arith.constant 0 : index
    %0 = vector.load %arg1[%c0, %c0_0, %c0_1, %c0_2] : memref<1x8x8x128xbf16, #tpu.memory_space<vmem>>, vector<1x8x8x128xbf16>
    %1 = vector.shape_cast %0 : vector<1x8x8x128xbf16> to vector<8x8x128xbf16>
    %2 = vector.shape_cast %1 : vector<8x8x128xbf16> to vector<64x128xbf16>
    %c0_3 = arith.constant 0 : index
    %c0_4 = arith.constant 0 : index
    %3 = vector.load %arg2[%c0_3, %c0_4] : memref<128x128xbf16, #tpu.memory_space<vmem>>, vector<128x128xbf16>
    %cst = arith.constant dense<0.000000e+00> : vector<64x128xf32>
    %4 = tpu.matmul %2, %3, %cst {dimension_numbers = #tpu.dot_dimension_numbers<[1], [0], [0], [1], [0, 0, 1, 1], [], []>} : vector<64x128xbf16>, vector<128x128xbf16>, vector<64x128xf32> -> vector<64x128xf32>
    %c0_5 = arith.constant 0 : index
    %c0_6 = arith.constant 0 : index
    %5 = vector.load %arg3[%c0_5, %c0_6] : memref<1x128xf32, #tpu.memory_space<vmem>>, vector<1x128xf32>
    %6 = vector.broadcast %5 : vector<1x128xf32> to vector<64x128xf32>
    %7 = arith.addf %4, %6 : vector<64x128xf32>
    %cst_7 = arith.constant 0.000000e+00 : f32
    %8 = vector.broadcast %cst_7 : f32 to vector<64x128xf32>
    %9 = arith.maximumf %7, %8 : vector<64x128xf32>
    %cst_8 = arith.constant 6.000000e+00 : f32
    %10 = vector.broadcast %cst_8 : f32 to vector<64x128xf32>
    %11 = arith.minimumf %9, %10 : vector<64x128xf32>
    %cst_9 = arith.constant 0.000000e+00 : bf16
    %12 = vector.broadcast %cst_9 : bf16 to vector<10x10x128xbf16>
    %c0_10 = arith.constant 0 : index
    %c0_11 = arith.constant 0 : index
    %c0_12 = arith.constant 0 : index
    %13 = vector.load %arg9[%c0_10, %c0_11, %c0_12] : memref<10x10x128xbf16, #tpu.memory_space<vmem>>, vector<10x10x128xbf16>
    tpu.vector_store %arg9[%c0_10, %c0_11, %c0_12], %12 {strides = array<i32>} : memref<10x10x128xbf16, #tpu.memory_space<vmem>>, vector<10x10x128xbf16>,
    %14 = vector.shape_cast %11 : vector<64x128xf32> to vector<8x8x128xf32>
    %15 = arith.truncf %14 : vector<8x8x128xf32> to vector<8x8x128xbf16>
    %c1 = arith.constant 1 : index
    %c1_13 = arith.constant 1 : index
    %c0_14 = arith.constant 0 : index
    %16 = vector.load %arg9[%c1, %c1_13, %c0_14] : memref<10x10x128xbf16, #tpu.memory_space<vmem>>, vector<8x8x128xbf16>
    tpu.vector_store %arg9[%c1, %c1_13, %c0_14], %15 {strides = array<i32>} : memref<10x10x128xbf16, #tpu.memory_space<vmem>>, vector<8x8x128xbf16>,
    %c0_15 = arith.constant 0 : index
    %c0_16 = arith.constant 0 : index
    %17 = vector.load %arg4[%c0_15, %c0_16] : memref<9x128xf32, #tpu.memory_space<vmem>>, vector<9x128xf32>
    %c0_17 = arith.constant 0 : index
    %c0_18 = arith.constant 0 : index
    %c0_19 = arith.constant 0 : index
    %18 = vector.load %arg9[%c0_17, %c0_18, %c0_19] : memref<10x10x128xbf16, #tpu.memory_space<vmem>>, vector<8x8x128xbf16>
    %19 = arith.extf %18 : vector<8x8x128xbf16> to vector<8x8x128xf32>
    %20 = vector.extract_strided_slice %17 {offsets = [0, 0], sizes = [1, 128], strides = [1, 1]} : vector<9x128xf32> to vector<1x128xf32>
    %21 = vector.shape_cast %20 : vector<1x128xf32> to vector<128xf32>
    %22 = vector.shape_cast %21 : vector<128xf32> to vector<1x1x128xf32>
    %23 = vector.broadcast %22 : vector<1x1x128xf32> to vector<8x8x128xf32>
    %24 = arith.mulf %19, %23 : vector<8x8x128xf32>
    %c0_20 = arith.constant 0 : index
    %c1_21 = arith.constant 1 : index
    %c0_22 = arith.constant 0 : index
    %25 = vector.load %arg9[%c0_20, %c1_21, %c0_22] : memref<10x10x128xbf16, #tpu.memory_space<vmem>>, vector<8x8x128xbf16>
    %26 = arith.extf %25 : vector<8x8x128xbf16> to vector<8x8x128xf32>
    %27 = vector.extract_strided_slice %17 {offsets = [1, 0], sizes = [1, 128], strides = [1, 1]} : vector<9x128xf32> to vector<1x128xf32>
    %28 = vector.shape_cast %27 : vector<1x128xf32> to vector<128xf32>
    %29 = vector.shape_cast %28 : vector<128xf32> to vector<1x1x128xf32>
    %30 = vector.broadcast %29 : vector<1x1x128xf32> to vector<8x8x128xf32>
    %31 = arith.mulf %26, %30 : vector<8x8x128xf32>
    %32 = arith.addf %24, %31 : vector<8x8x128xf32>
    %c0_23 = arith.constant 0 : index
    %c2 = arith.constant 2 : index
    %c0_24 = arith.constant 0 : index
    %33 = vector.load %arg9[%c0_23, %c2, %c0_24] : memref<10x10x128xbf16, #tpu.memory_space<vmem>>, vector<8x8x128xbf16>
    %34 = arith.extf %33 : vector<8x8x128xbf16> to vector<8x8x128xf32>
    %35 = vector.extract_strided_slice %17 {offsets = [2, 0], sizes = [1, 128], strides = [1, 1]} : vector<9x128xf32> to vector<1x128xf32>
    %36 = vector.shape_cast %35 : vector<1x128xf32> to vector<128xf32>
    %37 = vector.shape_cast %36 : vector<128xf32> to vector<1x1x128xf32>
    %38 = vector.broadcast %37 : vector<1x1x128xf32> to vector<8x8x128xf32>
    %39 = arith.mulf %34, %38 : vector<8x8x128xf32>
    %40 = arith.addf %32, %39 : vector<8x8x128xf32>
    %c1_25 = arith.constant 1 : index
    %c0_26 = arith.constant 0 : index
    %c0_27 = arith.constant 0 : index
    %41 = vector.load %arg9[%c1_25, %c0_26, %c0_27] : memref<10x10x128xbf16, #tpu.memory_space<vmem>>, vector<8x8x128xbf16>
    %42 = arith.extf %41 : vector<8x8x128xbf16> to vector<8x8x128xf32>
    %43 = vector.extract_strided_slice %17 {offsets = [3, 0], sizes = [1, 128], strides = [1, 1]} : vector<9x128xf32> to vector<1x128xf32>
    %44 = vector.shape_cast %43 : vector<1x128xf32> to vector<128xf32>
    %45 = vector.shape_cast %44 : vector<128xf32> to vector<1x1x128xf32>
    %46 = vector.broadcast %45 : vector<1x1x128xf32> to vector<8x8x128xf32>
    %47 = arith.mulf %42, %46 : vector<8x8x128xf32>
    %48 = arith.addf %40, %47 : vector<8x8x128xf32>
    %c1_28 = arith.constant 1 : index
    %c1_29 = arith.constant 1 : index
    %c0_30 = arith.constant 0 : index
    %49 = vector.load %arg9[%c1_28, %c1_29, %c0_30] : memref<10x10x128xbf16, #tpu.memory_space<vmem>>, vector<8x8x128xbf16>
    %50 = arith.extf %49 : vector<8x8x128xbf16> to vector<8x8x128xf32>
    %51 = vector.extract_strided_slice %17 {offsets = [4, 0], sizes = [1, 128], strides = [1, 1]} : vector<9x128xf32> to vector<1x128xf32>
    %52 = vector.shape_cast %51 : vector<1x128xf32> to vector<128xf32>
    %53 = vector.shape_cast %52 : vector<128xf32> to vector<1x1x128xf32>
    %54 = vector.broadcast %53 : vector<1x1x128xf32> to vector<8x8x128xf32>
    %55 = arith.mulf %50, %54 : vector<8x8x128xf32>
    %56 = arith.addf %48, %55 : vector<8x8x128xf32>
    %c1_31 = arith.constant 1 : index
    %c2_32 = arith.constant 2 : index
    %c0_33 = arith.constant 0 : index
    %57 = vector.load %arg9[%c1_31, %c2_32, %c0_33] : memref<10x10x128xbf16, #tpu.memory_space<vmem>>, vector<8x8x128xbf16>
    %58 = arith.extf %57 : vector<8x8x128xbf16> to vector<8x8x128xf32>
    %59 = vector.extract_strided_slice %17 {offsets = [5, 0], sizes = [1, 128], strides = [1, 1]} : vector<9x128xf32> to vector<1x128xf32>
    %60 = vector.shape_cast %59 : vector<1x128xf32> to vector<128xf32>
    %61 = vector.shape_cast %60 : vector<128xf32> to vector<1x1x128xf32>
    %62 = vector.broadcast %61 : vector<1x1x128xf32> to vector<8x8x128xf32>
    %63 = arith.mulf %58, %62 : vector<8x8x128xf32>
    %64 = arith.addf %56, %63 : vector<8x8x128xf32>
    %c2_34 = arith.constant 2 : index
    %c0_35 = arith.constant 0 : index
    %c0_36 = arith.constant 0 : index
    %65 = vector.load %arg9[%c2_34, %c0_35, %c0_36] : memref<10x10x128xbf16, #tpu.memory_space<vmem>>, vector<8x8x128xbf16>
    %66 = arith.extf %65 : vector<8x8x128xbf16> to vector<8x8x128xf32>
    %67 = vector.extract_strided_slice %17 {offsets = [6, 0], sizes = [1, 128], strides = [1, 1]} : vector<9x128xf32> to vector<1x128xf32>
    %68 = vector.shape_cast %67 : vector<1x128xf32> to vector<128xf32>
    %69 = vector.shape_cast %68 : vector<128xf32> to vector<1x1x128xf32>
    %70 = vector.broadcast %69 : vector<1x1x128xf32> to vector<8x8x128xf32>
    %71 = arith.mulf %66, %70 : vector<8x8x128xf32>
    %72 = arith.addf %64, %71 : vector<8x8x128xf32>
    %c2_37 = arith.constant 2 : index
    %c1_38 = arith.constant 1 : index
    %c0_39 = arith.constant 0 : index
    %73 = vector.load %arg9[%c2_37, %c1_38, %c0_39] : memref<10x10x128xbf16, #tpu.memory_space<vmem>>, vector<8x8x128xbf16>
    %74 = arith.extf %73 : vector<8x8x128xbf16> to vector<8x8x128xf32>
    %75 = vector.extract_strided_slice %17 {offsets = [7, 0], sizes = [1, 128], strides = [1, 1]} : vector<9x128xf32> to vector<1x128xf32>
    %76 = vector.shape_cast %75 : vector<1x128xf32> to vector<128xf32>
    %77 = vector.shape_cast %76 : vector<128xf32> to vector<1x1x128xf32>
    %78 = vector.broadcast %77 : vector<1x1x128xf32> to vector<8x8x128xf32>
    %79 = arith.mulf %74, %78 : vector<8x8x128xf32>
    %80 = arith.addf %72, %79 : vector<8x8x128xf32>
    %c2_40 = arith.constant 2 : index
    %c2_41 = arith.constant 2 : index
    %c0_42 = arith.constant 0 : index
    %81 = vector.load %arg9[%c2_40, %c2_41, %c0_42] : memref<10x10x128xbf16, #tpu.memory_space<vmem>>, vector<8x8x128xbf16>
    %82 = arith.extf %81 : vector<8x8x128xbf16> to vector<8x8x128xf32>
    %83 = vector.extract_strided_slice %17 {offsets = [8, 0], sizes = [1, 128], strides = [1, 1]} : vector<9x128xf32> to vector<1x128xf32>
    %84 = vector.shape_cast %83 : vector<1x128xf32> to vector<128xf32>
    %85 = vector.shape_cast %84 : vector<128xf32> to vector<1x1x128xf32>
    %86 = vector.broadcast %85 : vector<1x1x128xf32> to vector<8x8x128xf32>
    %87 = arith.mulf %82, %86 : vector<8x8x128xf32>
    %88 = arith.addf %80, %87 : vector<8x8x128xf32>
    %c0_43 = arith.constant 0 : index
    %c0_44 = arith.constant 0 : index
    %89 = vector.load %arg5[%c0_43, %c0_44] : memref<1x128xf32, #tpu.memory_space<vmem>>, vector<1x128xf32>
    %90 = vector.shape_cast %89 : vector<1x128xf32> to vector<1x1x128xf32>
    %91 = vector.broadcast %90 : vector<1x1x128xf32> to vector<8x8x128xf32>
    %92 = arith.addf %88, %91 : vector<8x8x128xf32>
    %cst_45 = arith.constant 0.000000e+00 : f32
    %93 = vector.broadcast %cst_45 : f32 to vector<8x8x128xf32>
    %94 = arith.maximumf %92, %93 : vector<8x8x128xf32>
    %cst_46 = arith.constant 6.000000e+00 : f32
    %95 = vector.broadcast %cst_46 : f32 to vector<8x8x128xf32>
    %96 = arith.minimumf %94, %95 : vector<8x8x128xf32>
    %97 = vector.shape_cast %96 : vector<8x8x128xf32> to vector<64x128xf32>
    %98 = arith.truncf %97 : vector<64x128xf32> to vector<64x128xbf16>
    %c0_47 = arith.constant 0 : index
    %c0_48 = arith.constant 0 : index
    %99 = vector.load %arg6[%c0_47, %c0_48] : memref<128x128xbf16, #tpu.memory_space<vmem>>, vector<128x128xbf16>
    %cst_49 = arith.constant dense<0.000000e+00> : vector<64x128xf32>
    %100 = tpu.matmul %98, %99, %cst_49 {dimension_numbers = #tpu.dot_dimension_numbers<[1], [0], [0], [1], [0, 0, 1, 1], [], []>} : vector<64x128xbf16>, vector<128x128xbf16>, vector<64x128xf32> -> vector<64x128xf32>
    %c0_50 = arith.constant 0 : index
    %c0_51 = arith.constant 0 : index
    %101 = vector.load %arg7[%c0_50, %c0_51] : memref<1x128xf32, #tpu.memory_space<vmem>>, vector<1x128xf32>
    %102 = vector.broadcast %101 : vector<1x128xf32> to vector<64x128xf32>
    %103 = arith.addf %100, %102 : vector<64x128xf32>
    %104 = arith.extf %2 : vector<64x128xbf16> to vector<64x128xf32>
    %105 = arith.addf %103, %104 : vector<64x128xf32>
    %106 = vector.shape_cast %105 : vector<64x128xf32> to vector<8x8x128xf32>
    %107 = arith.truncf %106 : vector<8x8x128xf32> to vector<8x8x128xbf16>
    %c0_52 = arith.constant 0 : index
    %c0_53 = arith.constant 0 : index
    %c0_54 = arith.constant 0 : index
    %c0_55 = arith.constant 0 : index
    %108 = vector.load %arg8[%c0_52, %c0_53, %c0_54, %c0_55] : memref<1x8x8x128xbf16, #tpu.memory_space<vmem>>, vector<1x8x8x128xbf16>
    %109 = vector.shape_cast %108 : vector<1x8x8x128xbf16> to vector<8x8x128xbf16>
    %110 = vector.shape_cast %107 : vector<8x8x128xbf16> to vector<1x8x8x128xbf16>
    tpu.vector_store %arg8[%c0_52, %c0_53, %c0_54, %c0_55], %110 {strides = array<i32>} : memref<1x8x8x128xbf16, #tpu.memory_space<vmem>>, vector<1x8x8x128xbf16>,
    return
  }
  func.func @transform_0(%arg0: i32) -> (i32, i32, i32, i32) {
    %c0_i32 = arith.constant 0 : i32
    %c0_i32_0 = arith.constant 0 : i32
    %c0_i32_1 = arith.constant 0 : i32
    %c0_i32_2 = arith.constant 0 : i32
    return %arg0, %c0_i32, %c0_i32_0, %c0_i32_1 : i32, i32, i32, i32
  }
  func.func @transform_1(%arg0: i32) -> (i32, i32) {
    %c0_i32 = arith.constant 0 : i32
    %c0_i32_0 = arith.constant 0 : i32
    %c0_i32_1 = arith.constant 0 : i32
    return %c0_i32, %c0_i32_0 : i32, i32
  }
  func.func @transform_2(%arg0: i32) -> (i32, i32) {
    %c0_i32 = arith.constant 0 : i32
    %c0_i32_0 = arith.constant 0 : i32
    %c0_i32_1 = arith.constant 0 : i32
    return %c0_i32, %c0_i32_0 : i32, i32
  }
  func.func @transform_3(%arg0: i32) -> (i32, i32) {
    %c0_i32 = arith.constant 0 : i32
    %c0_i32_0 = arith.constant 0 : i32
    %c0_i32_1 = arith.constant 0 : i32
    return %c0_i32, %c0_i32_0 : i32, i32
  }
  func.func @transform_4(%arg0: i32) -> (i32, i32) {
    %c0_i32 = arith.constant 0 : i32
    %c0_i32_0 = arith.constant 0 : i32
    %c0_i32_1 = arith.constant 0 : i32
    return %c0_i32, %c0_i32_0 : i32, i32
  }
  func.func @transform_5(%arg0: i32) -> (i32, i32) {
    %c0_i32 = arith.constant 0 : i32
    %c0_i32_0 = arith.constant 0 : i32
    %c0_i32_1 = arith.constant 0 : i32
    return %c0_i32, %c0_i32_0 : i32, i32
  }
  func.func @transform_6(%arg0: i32) -> (i32, i32) {
    %c0_i32 = arith.constant 0 : i32
    %c0_i32_0 = arith.constant 0 : i32
    %c0_i32_1 = arith.constant 0 : i32
    return %c0_i32, %c0_i32_0 : i32, i32
  }
  func.func @transform_7(%arg0: i32) -> (i32, i32, i32, i32) {
    %c0_i32 = arith.constant 0 : i32
    %c0_i32_0 = arith.constant 0 : i32
    %c0_i32_1 = arith.constant 0 : i32
    %c0_i32_2 = arith.constant 0 : i32
    return %arg0, %c0_i32, %c0_i32_0, %c0_i32_1 : i32, i32, i32, i32
  }
}

module attributes {stable_mosaic.version = 11 : i64} {
  func.func @_block_kernel(%arg0: i32, %arg1: memref<1x4x4x128xbf16, #tpu.memory_space<vmem>>, %arg2: memref<128x128xbf16, #tpu.memory_space<vmem>>, %arg3: memref<1x128xf32, #tpu.memory_space<vmem>>, %arg4: memref<9x128xf32, #tpu.memory_space<vmem>>, %arg5: memref<1x128xf32, #tpu.memory_space<vmem>>, %arg6: memref<128x128xbf16, #tpu.memory_space<vmem>>, %arg7: memref<1x128xf32, #tpu.memory_space<vmem>>, %arg8: memref<1x4x4x128xbf16, #tpu.memory_space<vmem>>, %arg9: memref<6x6x128xbf16, #tpu.memory_space<vmem>>) attributes {dimension_semantics = [#tpu.dimension_semantics<parallel>], iteration_bounds = array<i64: 2>, scalar_prefetch = 0 : i64, scratch_operands = 1 : i64, tpu.core_type = #tpu.core_type<tc>, window_params = [{transform_indices = @transform_0, window_bounds = array<i64: 1, 4, 4, 128>}, {pipeline_mode = #tpu.pipeline_mode<synchronous>, transform_indices = @transform_1, window_bounds = array<i64: 128, 128>}, {pipeline_mode = #tpu.pipeline_mode<synchronous>, transform_indices = @transform_2, window_bounds = array<i64: 1, 128>}, {pipeline_mode = #tpu.pipeline_mode<synchronous>, transform_indices = @transform_3, window_bounds = array<i64: 9, 128>}, {pipeline_mode = #tpu.pipeline_mode<synchronous>, transform_indices = @transform_4, window_bounds = array<i64: 1, 128>}, {pipeline_mode = #tpu.pipeline_mode<synchronous>, transform_indices = @transform_5, window_bounds = array<i64: 128, 128>}, {pipeline_mode = #tpu.pipeline_mode<synchronous>, transform_indices = @transform_6, window_bounds = array<i64: 1, 128>}, {transform_indices = @transform_7, window_bounds = array<i64: 1, 4, 4, 128>}]} {
    %c0 = arith.constant 0 : index
    %c0_0 = arith.constant 0 : index
    %c0_1 = arith.constant 0 : index
    %c0_2 = arith.constant 0 : index
    %0 = vector.load %arg1[%c0, %c0_0, %c0_1, %c0_2] : memref<1x4x4x128xbf16, #tpu.memory_space<vmem>>, vector<1x4x4x128xbf16>
    %1 = vector.shape_cast %0 : vector<1x4x4x128xbf16> to vector<4x4x128xbf16>
    %2 = vector.shape_cast %1 : vector<4x4x128xbf16> to vector<16x128xbf16>
    %c0_3 = arith.constant 0 : index
    %c0_4 = arith.constant 0 : index
    %3 = vector.load %arg2[%c0_3, %c0_4] : memref<128x128xbf16, #tpu.memory_space<vmem>>, vector<128x128xbf16>
    %cst = arith.constant dense<0.000000e+00> : vector<16x128xf32>
    %4 = tpu.matmul %2, %3, %cst {dimension_numbers = #tpu.dot_dimension_numbers<[1], [0], [0], [1], [0, 0, 1, 1], [], []>} : vector<16x128xbf16>, vector<128x128xbf16>, vector<16x128xf32> -> vector<16x128xf32>
    %c0_5 = arith.constant 0 : index
    %c0_6 = arith.constant 0 : index
    %5 = vector.load %arg3[%c0_5, %c0_6] : memref<1x128xf32, #tpu.memory_space<vmem>>, vector<1x128xf32>
    %6 = vector.broadcast %5 : vector<1x128xf32> to vector<16x128xf32>
    %7 = arith.addf %4, %6 : vector<16x128xf32>
    %cst_7 = arith.constant 0.000000e+00 : f32
    %8 = vector.broadcast %cst_7 : f32 to vector<16x128xf32>
    %9 = arith.maximumf %7, %8 : vector<16x128xf32>
    %cst_8 = arith.constant 6.000000e+00 : f32
    %10 = vector.broadcast %cst_8 : f32 to vector<16x128xf32>
    %11 = arith.minimumf %9, %10 : vector<16x128xf32>
    %cst_9 = arith.constant 0.000000e+00 : bf16
    %12 = vector.broadcast %cst_9 : bf16 to vector<6x6x128xbf16>
    %c0_10 = arith.constant 0 : index
    %c0_11 = arith.constant 0 : index
    %c0_12 = arith.constant 0 : index
    %13 = vector.load %arg9[%c0_10, %c0_11, %c0_12] : memref<6x6x128xbf16, #tpu.memory_space<vmem>>, vector<6x6x128xbf16>
    tpu.vector_store %arg9[%c0_10, %c0_11, %c0_12], %12 {strides = array<i32>} : memref<6x6x128xbf16, #tpu.memory_space<vmem>>, vector<6x6x128xbf16>,
    %14 = vector.shape_cast %11 : vector<16x128xf32> to vector<4x4x128xf32>
    %15 = arith.truncf %14 : vector<4x4x128xf32> to vector<4x4x128xbf16>
    %c1 = arith.constant 1 : index
    %c1_13 = arith.constant 1 : index
    %c0_14 = arith.constant 0 : index
    %16 = vector.load %arg9[%c1, %c1_13, %c0_14] : memref<6x6x128xbf16, #tpu.memory_space<vmem>>, vector<4x4x128xbf16>
    tpu.vector_store %arg9[%c1, %c1_13, %c0_14], %15 {strides = array<i32>} : memref<6x6x128xbf16, #tpu.memory_space<vmem>>, vector<4x4x128xbf16>,
    %c0_15 = arith.constant 0 : index
    %c0_16 = arith.constant 0 : index
    %17 = vector.load %arg4[%c0_15, %c0_16] : memref<9x128xf32, #tpu.memory_space<vmem>>, vector<9x128xf32>
    %c0_17 = arith.constant 0 : index
    %c0_18 = arith.constant 0 : index
    %c0_19 = arith.constant 0 : index
    %18 = vector.load %arg9[%c0_17, %c0_18, %c0_19] : memref<6x6x128xbf16, #tpu.memory_space<vmem>>, vector<4x4x128xbf16>
    %19 = arith.extf %18 : vector<4x4x128xbf16> to vector<4x4x128xf32>
    %20 = vector.extract_strided_slice %17 {offsets = [0, 0], sizes = [1, 128], strides = [1, 1]} : vector<9x128xf32> to vector<1x128xf32>
    %21 = vector.shape_cast %20 : vector<1x128xf32> to vector<128xf32>
    %22 = vector.shape_cast %21 : vector<128xf32> to vector<1x1x128xf32>
    %23 = vector.broadcast %22 : vector<1x1x128xf32> to vector<4x4x128xf32>
    %24 = arith.mulf %19, %23 : vector<4x4x128xf32>
    %c0_20 = arith.constant 0 : index
    %c1_21 = arith.constant 1 : index
    %c0_22 = arith.constant 0 : index
    %25 = vector.load %arg9[%c0_20, %c1_21, %c0_22] : memref<6x6x128xbf16, #tpu.memory_space<vmem>>, vector<4x4x128xbf16>
    %26 = arith.extf %25 : vector<4x4x128xbf16> to vector<4x4x128xf32>
    %27 = vector.extract_strided_slice %17 {offsets = [1, 0], sizes = [1, 128], strides = [1, 1]} : vector<9x128xf32> to vector<1x128xf32>
    %28 = vector.shape_cast %27 : vector<1x128xf32> to vector<128xf32>
    %29 = vector.shape_cast %28 : vector<128xf32> to vector<1x1x128xf32>
    %30 = vector.broadcast %29 : vector<1x1x128xf32> to vector<4x4x128xf32>
    %31 = arith.mulf %26, %30 : vector<4x4x128xf32>
    %32 = arith.addf %24, %31 : vector<4x4x128xf32>
    %c0_23 = arith.constant 0 : index
    %c2 = arith.constant 2 : index
    %c0_24 = arith.constant 0 : index
    %33 = vector.load %arg9[%c0_23, %c2, %c0_24] : memref<6x6x128xbf16, #tpu.memory_space<vmem>>, vector<4x4x128xbf16>
    %34 = arith.extf %33 : vector<4x4x128xbf16> to vector<4x4x128xf32>
    %35 = vector.extract_strided_slice %17 {offsets = [2, 0], sizes = [1, 128], strides = [1, 1]} : vector<9x128xf32> to vector<1x128xf32>
    %36 = vector.shape_cast %35 : vector<1x128xf32> to vector<128xf32>
    %37 = vector.shape_cast %36 : vector<128xf32> to vector<1x1x128xf32>
    %38 = vector.broadcast %37 : vector<1x1x128xf32> to vector<4x4x128xf32>
    %39 = arith.mulf %34, %38 : vector<4x4x128xf32>
    %40 = arith.addf %32, %39 : vector<4x4x128xf32>
    %c1_25 = arith.constant 1 : index
    %c0_26 = arith.constant 0 : index
    %c0_27 = arith.constant 0 : index
    %41 = vector.load %arg9[%c1_25, %c0_26, %c0_27] : memref<6x6x128xbf16, #tpu.memory_space<vmem>>, vector<4x4x128xbf16>
    %42 = arith.extf %41 : vector<4x4x128xbf16> to vector<4x4x128xf32>
    %43 = vector.extract_strided_slice %17 {offsets = [3, 0], sizes = [1, 128], strides = [1, 1]} : vector<9x128xf32> to vector<1x128xf32>
    %44 = vector.shape_cast %43 : vector<1x128xf32> to vector<128xf32>
    %45 = vector.shape_cast %44 : vector<128xf32> to vector<1x1x128xf32>
    %46 = vector.broadcast %45 : vector<1x1x128xf32> to vector<4x4x128xf32>
    %47 = arith.mulf %42, %46 : vector<4x4x128xf32>
    %48 = arith.addf %40, %47 : vector<4x4x128xf32>
    %c1_28 = arith.constant 1 : index
    %c1_29 = arith.constant 1 : index
    %c0_30 = arith.constant 0 : index
    %49 = vector.load %arg9[%c1_28, %c1_29, %c0_30] : memref<6x6x128xbf16, #tpu.memory_space<vmem>>, vector<4x4x128xbf16>
    %50 = arith.extf %49 : vector<4x4x128xbf16> to vector<4x4x128xf32>
    %51 = vector.extract_strided_slice %17 {offsets = [4, 0], sizes = [1, 128], strides = [1, 1]} : vector<9x128xf32> to vector<1x128xf32>
    %52 = vector.shape_cast %51 : vector<1x128xf32> to vector<128xf32>
    %53 = vector.shape_cast %52 : vector<128xf32> to vector<1x1x128xf32>
    %54 = vector.broadcast %53 : vector<1x1x128xf32> to vector<4x4x128xf32>
    %55 = arith.mulf %50, %54 : vector<4x4x128xf32>
    %56 = arith.addf %48, %55 : vector<4x4x128xf32>
    %c1_31 = arith.constant 1 : index
    %c2_32 = arith.constant 2 : index
    %c0_33 = arith.constant 0 : index
    %57 = vector.load %arg9[%c1_31, %c2_32, %c0_33] : memref<6x6x128xbf16, #tpu.memory_space<vmem>>, vector<4x4x128xbf16>
    %58 = arith.extf %57 : vector<4x4x128xbf16> to vector<4x4x128xf32>
    %59 = vector.extract_strided_slice %17 {offsets = [5, 0], sizes = [1, 128], strides = [1, 1]} : vector<9x128xf32> to vector<1x128xf32>
    %60 = vector.shape_cast %59 : vector<1x128xf32> to vector<128xf32>
    %61 = vector.shape_cast %60 : vector<128xf32> to vector<1x1x128xf32>
    %62 = vector.broadcast %61 : vector<1x1x128xf32> to vector<4x4x128xf32>
    %63 = arith.mulf %58, %62 : vector<4x4x128xf32>
    %64 = arith.addf %56, %63 : vector<4x4x128xf32>
    %c2_34 = arith.constant 2 : index
    %c0_35 = arith.constant 0 : index
    %c0_36 = arith.constant 0 : index
    %65 = vector.load %arg9[%c2_34, %c0_35, %c0_36] : memref<6x6x128xbf16, #tpu.memory_space<vmem>>, vector<4x4x128xbf16>
    %66 = arith.extf %65 : vector<4x4x128xbf16> to vector<4x4x128xf32>
    %67 = vector.extract_strided_slice %17 {offsets = [6, 0], sizes = [1, 128], strides = [1, 1]} : vector<9x128xf32> to vector<1x128xf32>
    %68 = vector.shape_cast %67 : vector<1x128xf32> to vector<128xf32>
    %69 = vector.shape_cast %68 : vector<128xf32> to vector<1x1x128xf32>
    %70 = vector.broadcast %69 : vector<1x1x128xf32> to vector<4x4x128xf32>
    %71 = arith.mulf %66, %70 : vector<4x4x128xf32>
    %72 = arith.addf %64, %71 : vector<4x4x128xf32>
    %c2_37 = arith.constant 2 : index
    %c1_38 = arith.constant 1 : index
    %c0_39 = arith.constant 0 : index
    %73 = vector.load %arg9[%c2_37, %c1_38, %c0_39] : memref<6x6x128xbf16, #tpu.memory_space<vmem>>, vector<4x4x128xbf16>
    %74 = arith.extf %73 : vector<4x4x128xbf16> to vector<4x4x128xf32>
    %75 = vector.extract_strided_slice %17 {offsets = [7, 0], sizes = [1, 128], strides = [1, 1]} : vector<9x128xf32> to vector<1x128xf32>
    %76 = vector.shape_cast %75 : vector<1x128xf32> to vector<128xf32>
    %77 = vector.shape_cast %76 : vector<128xf32> to vector<1x1x128xf32>
    %78 = vector.broadcast %77 : vector<1x1x128xf32> to vector<4x4x128xf32>
    %79 = arith.mulf %74, %78 : vector<4x4x128xf32>
    %80 = arith.addf %72, %79 : vector<4x4x128xf32>
    %c2_40 = arith.constant 2 : index
    %c2_41 = arith.constant 2 : index
    %c0_42 = arith.constant 0 : index
    %81 = vector.load %arg9[%c2_40, %c2_41, %c0_42] : memref<6x6x128xbf16, #tpu.memory_space<vmem>>, vector<4x4x128xbf16>
    %82 = arith.extf %81 : vector<4x4x128xbf16> to vector<4x4x128xf32>
    %83 = vector.extract_strided_slice %17 {offsets = [8, 0], sizes = [1, 128], strides = [1, 1]} : vector<9x128xf32> to vector<1x128xf32>
    %84 = vector.shape_cast %83 : vector<1x128xf32> to vector<128xf32>
    %85 = vector.shape_cast %84 : vector<128xf32> to vector<1x1x128xf32>
    %86 = vector.broadcast %85 : vector<1x1x128xf32> to vector<4x4x128xf32>
    %87 = arith.mulf %82, %86 : vector<4x4x128xf32>
    %88 = arith.addf %80, %87 : vector<4x4x128xf32>
    %c0_43 = arith.constant 0 : index
    %c0_44 = arith.constant 0 : index
    %89 = vector.load %arg5[%c0_43, %c0_44] : memref<1x128xf32, #tpu.memory_space<vmem>>, vector<1x128xf32>
    %90 = vector.shape_cast %89 : vector<1x128xf32> to vector<1x1x128xf32>
    %91 = vector.broadcast %90 : vector<1x1x128xf32> to vector<4x4x128xf32>
    %92 = arith.addf %88, %91 : vector<4x4x128xf32>
    %cst_45 = arith.constant 0.000000e+00 : f32
    %93 = vector.broadcast %cst_45 : f32 to vector<4x4x128xf32>
    %94 = arith.maximumf %92, %93 : vector<4x4x128xf32>
    %cst_46 = arith.constant 6.000000e+00 : f32
    %95 = vector.broadcast %cst_46 : f32 to vector<4x4x128xf32>
    %96 = arith.minimumf %94, %95 : vector<4x4x128xf32>
    %97 = vector.shape_cast %96 : vector<4x4x128xf32> to vector<16x128xf32>
    %98 = arith.truncf %97 : vector<16x128xf32> to vector<16x128xbf16>
    %c0_47 = arith.constant 0 : index
    %c0_48 = arith.constant 0 : index
    %99 = vector.load %arg6[%c0_47, %c0_48] : memref<128x128xbf16, #tpu.memory_space<vmem>>, vector<128x128xbf16>
    %cst_49 = arith.constant dense<0.000000e+00> : vector<16x128xf32>
    %100 = tpu.matmul %98, %99, %cst_49 {dimension_numbers = #tpu.dot_dimension_numbers<[1], [0], [0], [1], [0, 0, 1, 1], [], []>} : vector<16x128xbf16>, vector<128x128xbf16>, vector<16x128xf32> -> vector<16x128xf32>
    %c0_50 = arith.constant 0 : index
    %c0_51 = arith.constant 0 : index
    %101 = vector.load %arg7[%c0_50, %c0_51] : memref<1x128xf32, #tpu.memory_space<vmem>>, vector<1x128xf32>
    %102 = vector.broadcast %101 : vector<1x128xf32> to vector<16x128xf32>
    %103 = arith.addf %100, %102 : vector<16x128xf32>
    %104 = arith.extf %2 : vector<16x128xbf16> to vector<16x128xf32>
    %105 = arith.addf %103, %104 : vector<16x128xf32>
    %106 = vector.shape_cast %105 : vector<16x128xf32> to vector<4x4x128xf32>
    %107 = arith.truncf %106 : vector<4x4x128xf32> to vector<4x4x128xbf16>
    %c0_52 = arith.constant 0 : index
    %c0_53 = arith.constant 0 : index
    %c0_54 = arith.constant 0 : index
    %c0_55 = arith.constant 0 : index
    %108 = vector.load %arg8[%c0_52, %c0_53, %c0_54, %c0_55] : memref<1x4x4x128xbf16, #tpu.memory_space<vmem>>, vector<1x4x4x128xbf16>
    %109 = vector.shape_cast %108 : vector<1x4x4x128xbf16> to vector<4x4x128xbf16>
    %110 = vector.shape_cast %107 : vector<4x4x128xbf16> to vector<1x4x4x128xbf16>
    tpu.vector_store %arg8[%c0_52, %c0_53, %c0_54, %c0_55], %110 {strides = array<i32>} : memref<1x4x4x128xbf16, #tpu.memory_space<vmem>>, vector<1x4x4x128xbf16>,
    return
  }
  func.func @transform_0(%arg0: i32) -> (i32, i32, i32, i32) {
    %c0_i32 = arith.constant 0 : i32
    %c0_i32_0 = arith.constant 0 : i32
    %c0_i32_1 = arith.constant 0 : i32
    %c0_i32_2 = arith.constant 0 : i32
    return %arg0, %c0_i32, %c0_i32_0, %c0_i32_1 : i32, i32, i32, i32
  }
  func.func @transform_1(%arg0: i32) -> (i32, i32) {
    %c0_i32 = arith.constant 0 : i32
    %c0_i32_0 = arith.constant 0 : i32
    %c0_i32_1 = arith.constant 0 : i32
    return %c0_i32, %c0_i32_0 : i32, i32
  }
  func.func @transform_2(%arg0: i32) -> (i32, i32) {
    %c0_i32 = arith.constant 0 : i32
    %c0_i32_0 = arith.constant 0 : i32
    %c0_i32_1 = arith.constant 0 : i32
    return %c0_i32, %c0_i32_0 : i32, i32
  }
  func.func @transform_3(%arg0: i32) -> (i32, i32) {
    %c0_i32 = arith.constant 0 : i32
    %c0_i32_0 = arith.constant 0 : i32
    %c0_i32_1 = arith.constant 0 : i32
    return %c0_i32, %c0_i32_0 : i32, i32
  }
  func.func @transform_4(%arg0: i32) -> (i32, i32) {
    %c0_i32 = arith.constant 0 : i32
    %c0_i32_0 = arith.constant 0 : i32
    %c0_i32_1 = arith.constant 0 : i32
    return %c0_i32, %c0_i32_0 : i32, i32
  }
  func.func @transform_5(%arg0: i32) -> (i32, i32) {
    %c0_i32 = arith.constant 0 : i32
    %c0_i32_0 = arith.constant 0 : i32
    %c0_i32_1 = arith.constant 0 : i32
    return %c0_i32, %c0_i32_0 : i32, i32
  }
  func.func @transform_6(%arg0: i32) -> (i32, i32) {
    %c0_i32 = arith.constant 0 : i32
    %c0_i32_0 = arith.constant 0 : i32
    %c0_i32_1 = arith.constant 0 : i32
    return %c0_i32, %c0_i32_0 : i32, i32
  }
  func.func @transform_7(%arg0: i32) -> (i32, i32, i32, i32) {
    %c0_i32 = arith.constant 0 : i32
    %c0_i32_0 = arith.constant 0 : i32
    %c0_i32_1 = arith.constant 0 : i32
    %c0_i32_2 = arith.constant 0 : i32
    return %arg0, %c0_i32, %c0_i32_0, %c0_i32_1 : i32, i32, i32, i32
  }
}

module attributes {stable_mosaic.version = 11 : i64} {
  func.func @_block_kernel(%arg0: i32, %arg1: memref<1x4x4x128xbf16, #tpu.memory_space<vmem>>, %arg2: memref<128x128xbf16, #tpu.memory_space<vmem>>, %arg3: memref<1x128xf32, #tpu.memory_space<vmem>>, %arg4: memref<9x128xf32, #tpu.memory_space<vmem>>, %arg5: memref<1x128xf32, #tpu.memory_space<vmem>>, %arg6: memref<128x128xbf16, #tpu.memory_space<vmem>>, %arg7: memref<1x128xf32, #tpu.memory_space<vmem>>, %arg8: memref<1x2x2x128xbf16, #tpu.memory_space<vmem>>, %arg9: memref<6x6x128xbf16, #tpu.memory_space<vmem>>) attributes {dimension_semantics = [#tpu.dimension_semantics<parallel>], iteration_bounds = array<i64: 2>, scalar_prefetch = 0 : i64, scratch_operands = 1 : i64, tpu.core_type = #tpu.core_type<tc>, window_params = [{transform_indices = @transform_0, window_bounds = array<i64: 1, 4, 4, 128>}, {pipeline_mode = #tpu.pipeline_mode<synchronous>, transform_indices = @transform_1, window_bounds = array<i64: 128, 128>}, {pipeline_mode = #tpu.pipeline_mode<synchronous>, transform_indices = @transform_2, window_bounds = array<i64: 1, 128>}, {pipeline_mode = #tpu.pipeline_mode<synchronous>, transform_indices = @transform_3, window_bounds = array<i64: 9, 128>}, {pipeline_mode = #tpu.pipeline_mode<synchronous>, transform_indices = @transform_4, window_bounds = array<i64: 1, 128>}, {pipeline_mode = #tpu.pipeline_mode<synchronous>, transform_indices = @transform_5, window_bounds = array<i64: 128, 128>}, {pipeline_mode = #tpu.pipeline_mode<synchronous>, transform_indices = @transform_6, window_bounds = array<i64: 1, 128>}, {transform_indices = @transform_7, window_bounds = array<i64: 1, 2, 2, 128>}]} {
    %c0 = arith.constant 0 : index
    %c0_0 = arith.constant 0 : index
    %c0_1 = arith.constant 0 : index
    %c0_2 = arith.constant 0 : index
    %0 = vector.load %arg1[%c0, %c0_0, %c0_1, %c0_2] : memref<1x4x4x128xbf16, #tpu.memory_space<vmem>>, vector<1x4x4x128xbf16>
    %1 = vector.shape_cast %0 : vector<1x4x4x128xbf16> to vector<4x4x128xbf16>
    %2 = vector.shape_cast %1 : vector<4x4x128xbf16> to vector<16x128xbf16>
    %c0_3 = arith.constant 0 : index
    %c0_4 = arith.constant 0 : index
    %3 = vector.load %arg2[%c0_3, %c0_4] : memref<128x128xbf16, #tpu.memory_space<vmem>>, vector<128x128xbf16>
    %cst = arith.constant dense<0.000000e+00> : vector<16x128xf32>
    %4 = tpu.matmul %2, %3, %cst {dimension_numbers = #tpu.dot_dimension_numbers<[1], [0], [0], [1], [0, 0, 1, 1], [], []>} : vector<16x128xbf16>, vector<128x128xbf16>, vector<16x128xf32> -> vector<16x128xf32>
    %c0_5 = arith.constant 0 : index
    %c0_6 = arith.constant 0 : index
    %5 = vector.load %arg3[%c0_5, %c0_6] : memref<1x128xf32, #tpu.memory_space<vmem>>, vector<1x128xf32>
    %6 = vector.broadcast %5 : vector<1x128xf32> to vector<16x128xf32>
    %7 = arith.addf %4, %6 : vector<16x128xf32>
    %cst_7 = arith.constant 0.000000e+00 : f32
    %8 = vector.broadcast %cst_7 : f32 to vector<16x128xf32>
    %9 = arith.maximumf %7, %8 : vector<16x128xf32>
    %cst_8 = arith.constant 6.000000e+00 : f32
    %10 = vector.broadcast %cst_8 : f32 to vector<16x128xf32>
    %11 = arith.minimumf %9, %10 : vector<16x128xf32>
    %cst_9 = arith.constant 0.000000e+00 : bf16
    %12 = vector.broadcast %cst_9 : bf16 to vector<6x6x128xbf16>
    %c0_10 = arith.constant 0 : index
    %c0_11 = arith.constant 0 : index
    %c0_12 = arith.constant 0 : index
    %13 = vector.load %arg9[%c0_10, %c0_11, %c0_12] : memref<6x6x128xbf16, #tpu.memory_space<vmem>>, vector<6x6x128xbf16>
    tpu.vector_store %arg9[%c0_10, %c0_11, %c0_12], %12 {strides = array<i32>} : memref<6x6x128xbf16, #tpu.memory_space<vmem>>, vector<6x6x128xbf16>,
    %14 = vector.shape_cast %11 : vector<16x128xf32> to vector<4x4x128xf32>
    %15 = arith.truncf %14 : vector<4x4x128xf32> to vector<4x4x128xbf16>
    %c1 = arith.constant 1 : index
    %c1_13 = arith.constant 1 : index
    %c0_14 = arith.constant 0 : index
    %16 = vector.load %arg9[%c1, %c1_13, %c0_14] : memref<6x6x128xbf16, #tpu.memory_space<vmem>>, vector<4x4x128xbf16>
    tpu.vector_store %arg9[%c1, %c1_13, %c0_14], %15 {strides = array<i32>} : memref<6x6x128xbf16, #tpu.memory_space<vmem>>, vector<4x4x128xbf16>,
    %c0_15 = arith.constant 0 : index
    %c0_16 = arith.constant 0 : index
    %17 = vector.load %arg4[%c0_15, %c0_16] : memref<9x128xf32, #tpu.memory_space<vmem>>, vector<9x128xf32>
    %c0_17 = arith.constant 0 : index
    %c0_18 = arith.constant 0 : index
    %c0_19 = arith.constant 0 : index
    %18 = vector.load %arg9[%c0_17, %c0_18, %c0_19] : memref<6x6x128xbf16, #tpu.memory_space<vmem>>, vector<4x4x128xbf16>
    %19 = arith.extf %18 : vector<4x4x128xbf16> to vector<4x4x128xf32>
    %20 = vector.extract_strided_slice %17 {offsets = [0, 0], sizes = [1, 128], strides = [1, 1]} : vector<9x128xf32> to vector<1x128xf32>
    %21 = vector.shape_cast %20 : vector<1x128xf32> to vector<128xf32>
    %22 = vector.shape_cast %21 : vector<128xf32> to vector<1x1x128xf32>
    %23 = vector.broadcast %22 : vector<1x1x128xf32> to vector<4x4x128xf32>
    %24 = arith.mulf %19, %23 : vector<4x4x128xf32>
    %c0_20 = arith.constant 0 : index
    %c1_21 = arith.constant 1 : index
    %c0_22 = arith.constant 0 : index
    %25 = vector.load %arg9[%c0_20, %c1_21, %c0_22] : memref<6x6x128xbf16, #tpu.memory_space<vmem>>, vector<4x4x128xbf16>
    %26 = arith.extf %25 : vector<4x4x128xbf16> to vector<4x4x128xf32>
    %27 = vector.extract_strided_slice %17 {offsets = [1, 0], sizes = [1, 128], strides = [1, 1]} : vector<9x128xf32> to vector<1x128xf32>
    %28 = vector.shape_cast %27 : vector<1x128xf32> to vector<128xf32>
    %29 = vector.shape_cast %28 : vector<128xf32> to vector<1x1x128xf32>
    %30 = vector.broadcast %29 : vector<1x1x128xf32> to vector<4x4x128xf32>
    %31 = arith.mulf %26, %30 : vector<4x4x128xf32>
    %32 = arith.addf %24, %31 : vector<4x4x128xf32>
    %c0_23 = arith.constant 0 : index
    %c2 = arith.constant 2 : index
    %c0_24 = arith.constant 0 : index
    %33 = vector.load %arg9[%c0_23, %c2, %c0_24] : memref<6x6x128xbf16, #tpu.memory_space<vmem>>, vector<4x4x128xbf16>
    %34 = arith.extf %33 : vector<4x4x128xbf16> to vector<4x4x128xf32>
    %35 = vector.extract_strided_slice %17 {offsets = [2, 0], sizes = [1, 128], strides = [1, 1]} : vector<9x128xf32> to vector<1x128xf32>
    %36 = vector.shape_cast %35 : vector<1x128xf32> to vector<128xf32>
    %37 = vector.shape_cast %36 : vector<128xf32> to vector<1x1x128xf32>
    %38 = vector.broadcast %37 : vector<1x1x128xf32> to vector<4x4x128xf32>
    %39 = arith.mulf %34, %38 : vector<4x4x128xf32>
    %40 = arith.addf %32, %39 : vector<4x4x128xf32>
    %c1_25 = arith.constant 1 : index
    %c0_26 = arith.constant 0 : index
    %c0_27 = arith.constant 0 : index
    %41 = vector.load %arg9[%c1_25, %c0_26, %c0_27] : memref<6x6x128xbf16, #tpu.memory_space<vmem>>, vector<4x4x128xbf16>
    %42 = arith.extf %41 : vector<4x4x128xbf16> to vector<4x4x128xf32>
    %43 = vector.extract_strided_slice %17 {offsets = [3, 0], sizes = [1, 128], strides = [1, 1]} : vector<9x128xf32> to vector<1x128xf32>
    %44 = vector.shape_cast %43 : vector<1x128xf32> to vector<128xf32>
    %45 = vector.shape_cast %44 : vector<128xf32> to vector<1x1x128xf32>
    %46 = vector.broadcast %45 : vector<1x1x128xf32> to vector<4x4x128xf32>
    %47 = arith.mulf %42, %46 : vector<4x4x128xf32>
    %48 = arith.addf %40, %47 : vector<4x4x128xf32>
    %c1_28 = arith.constant 1 : index
    %c1_29 = arith.constant 1 : index
    %c0_30 = arith.constant 0 : index
    %49 = vector.load %arg9[%c1_28, %c1_29, %c0_30] : memref<6x6x128xbf16, #tpu.memory_space<vmem>>, vector<4x4x128xbf16>
    %50 = arith.extf %49 : vector<4x4x128xbf16> to vector<4x4x128xf32>
    %51 = vector.extract_strided_slice %17 {offsets = [4, 0], sizes = [1, 128], strides = [1, 1]} : vector<9x128xf32> to vector<1x128xf32>
    %52 = vector.shape_cast %51 : vector<1x128xf32> to vector<128xf32>
    %53 = vector.shape_cast %52 : vector<128xf32> to vector<1x1x128xf32>
    %54 = vector.broadcast %53 : vector<1x1x128xf32> to vector<4x4x128xf32>
    %55 = arith.mulf %50, %54 : vector<4x4x128xf32>
    %56 = arith.addf %48, %55 : vector<4x4x128xf32>
    %c1_31 = arith.constant 1 : index
    %c2_32 = arith.constant 2 : index
    %c0_33 = arith.constant 0 : index
    %57 = vector.load %arg9[%c1_31, %c2_32, %c0_33] : memref<6x6x128xbf16, #tpu.memory_space<vmem>>, vector<4x4x128xbf16>
    %58 = arith.extf %57 : vector<4x4x128xbf16> to vector<4x4x128xf32>
    %59 = vector.extract_strided_slice %17 {offsets = [5, 0], sizes = [1, 128], strides = [1, 1]} : vector<9x128xf32> to vector<1x128xf32>
    %60 = vector.shape_cast %59 : vector<1x128xf32> to vector<128xf32>
    %61 = vector.shape_cast %60 : vector<128xf32> to vector<1x1x128xf32>
    %62 = vector.broadcast %61 : vector<1x1x128xf32> to vector<4x4x128xf32>
    %63 = arith.mulf %58, %62 : vector<4x4x128xf32>
    %64 = arith.addf %56, %63 : vector<4x4x128xf32>
    %c2_34 = arith.constant 2 : index
    %c0_35 = arith.constant 0 : index
    %c0_36 = arith.constant 0 : index
    %65 = vector.load %arg9[%c2_34, %c0_35, %c0_36] : memref<6x6x128xbf16, #tpu.memory_space<vmem>>, vector<4x4x128xbf16>
    %66 = arith.extf %65 : vector<4x4x128xbf16> to vector<4x4x128xf32>
    %67 = vector.extract_strided_slice %17 {offsets = [6, 0], sizes = [1, 128], strides = [1, 1]} : vector<9x128xf32> to vector<1x128xf32>
    %68 = vector.shape_cast %67 : vector<1x128xf32> to vector<128xf32>
    %69 = vector.shape_cast %68 : vector<128xf32> to vector<1x1x128xf32>
    %70 = vector.broadcast %69 : vector<1x1x128xf32> to vector<4x4x128xf32>
    %71 = arith.mulf %66, %70 : vector<4x4x128xf32>
    %72 = arith.addf %64, %71 : vector<4x4x128xf32>
    %c2_37 = arith.constant 2 : index
    %c1_38 = arith.constant 1 : index
    %c0_39 = arith.constant 0 : index
    %73 = vector.load %arg9[%c2_37, %c1_38, %c0_39] : memref<6x6x128xbf16, #tpu.memory_space<vmem>>, vector<4x4x128xbf16>
    %74 = arith.extf %73 : vector<4x4x128xbf16> to vector<4x4x128xf32>
    %75 = vector.extract_strided_slice %17 {offsets = [7, 0], sizes = [1, 128], strides = [1, 1]} : vector<9x128xf32> to vector<1x128xf32>
    %76 = vector.shape_cast %75 : vector<1x128xf32> to vector<128xf32>
    %77 = vector.shape_cast %76 : vector<128xf32> to vector<1x1x128xf32>
    %78 = vector.broadcast %77 : vector<1x1x128xf32> to vector<4x4x128xf32>
    %79 = arith.mulf %74, %78 : vector<4x4x128xf32>
    %80 = arith.addf %72, %79 : vector<4x4x128xf32>
    %c2_40 = arith.constant 2 : index
    %c2_41 = arith.constant 2 : index
    %c0_42 = arith.constant 0 : index
    %81 = vector.load %arg9[%c2_40, %c2_41, %c0_42] : memref<6x6x128xbf16, #tpu.memory_space<vmem>>, vector<4x4x128xbf16>
    %82 = arith.extf %81 : vector<4x4x128xbf16> to vector<4x4x128xf32>
    %83 = vector.extract_strided_slice %17 {offsets = [8, 0], sizes = [1, 128], strides = [1, 1]} : vector<9x128xf32> to vector<1x128xf32>
    %84 = vector.shape_cast %83 : vector<1x128xf32> to vector<128xf32>
    %85 = vector.shape_cast %84 : vector<128xf32> to vector<1x1x128xf32>
    %86 = vector.broadcast %85 : vector<1x1x128xf32> to vector<4x4x128xf32>
    %87 = arith.mulf %82, %86 : vector<4x4x128xf32>
    %88 = arith.addf %80, %87 : vector<4x4x128xf32>
    %c0_43 = arith.constant 0 : index
    %c0_44 = arith.constant 0 : index
    %89 = vector.load %arg5[%c0_43, %c0_44] : memref<1x128xf32, #tpu.memory_space<vmem>>, vector<1x128xf32>
    %90 = vector.shape_cast %89 : vector<1x128xf32> to vector<1x1x128xf32>
    %91 = vector.broadcast %90 : vector<1x1x128xf32> to vector<4x4x128xf32>
    %92 = arith.addf %88, %91 : vector<4x4x128xf32>
    %cst_45 = arith.constant 0.000000e+00 : f32
    %93 = vector.broadcast %cst_45 : f32 to vector<4x4x128xf32>
    %94 = arith.maximumf %92, %93 : vector<4x4x128xf32>
    %cst_46 = arith.constant 6.000000e+00 : f32
    %95 = vector.broadcast %cst_46 : f32 to vector<4x4x128xf32>
    %96 = arith.minimumf %94, %95 : vector<4x4x128xf32>
    %97 = vector.shape_cast %96 : vector<4x4x128xf32> to vector<2x2x4x128xf32>
    %98 = vector.extract_strided_slice %97 {offsets = [0, 0, 0, 0], sizes = [2, 1, 4, 128], strides = [1, 1, 1, 1]} : vector<2x2x4x128xf32> to vector<2x1x4x128xf32>
    %99 = vector.shape_cast %98 : vector<2x1x4x128xf32> to vector<2x4x128xf32>
    %100 = vector.shape_cast %99 : vector<2x4x128xf32> to vector<2x2x2x128xf32>
    %101 = vector.extract_strided_slice %100 {offsets = [0, 0, 0, 0], sizes = [2, 2, 1, 128], strides = [1, 1, 1, 1]} : vector<2x2x2x128xf32> to vector<2x2x1x128xf32>
    %102 = vector.shape_cast %101 : vector<2x2x1x128xf32> to vector<2x2x128xf32>
    %103 = vector.shape_cast %102 : vector<2x2x128xf32> to vector<4x128xf32>
    %104 = arith.truncf %103 : vector<4x128xf32> to vector<4x128xbf16>
    %c0_47 = arith.constant 0 : index
    %c0_48 = arith.constant 0 : index
    %105 = vector.load %arg6[%c0_47, %c0_48] : memref<128x128xbf16, #tpu.memory_space<vmem>>, vector<128x128xbf16>
    %cst_49 = arith.constant dense<0.000000e+00> : vector<4x128xf32>
    %106 = tpu.matmul %104, %105, %cst_49 {dimension_numbers = #tpu.dot_dimension_numbers<[1], [0], [0], [1], [0, 0, 1, 1], [], []>} : vector<4x128xbf16>, vector<128x128xbf16>, vector<4x128xf32> -> vector<4x128xf32>
    %c0_50 = arith.constant 0 : index
    %c0_51 = arith.constant 0 : index
    %107 = vector.load %arg7[%c0_50, %c0_51] : memref<1x128xf32, #tpu.memory_space<vmem>>, vector<1x128xf32>
    %108 = vector.broadcast %107 : vector<1x128xf32> to vector<4x128xf32>
    %109 = arith.addf %106, %108 : vector<4x128xf32>
    %110 = vector.shape_cast %109 : vector<4x128xf32> to vector<2x2x128xf32>
    %111 = arith.truncf %110 : vector<2x2x128xf32> to vector<2x2x128xbf16>
    %c0_52 = arith.constant 0 : index
    %c0_53 = arith.constant 0 : index
    %c0_54 = arith.constant 0 : index
    %c0_55 = arith.constant 0 : index
    %112 = vector.load %arg8[%c0_52, %c0_53, %c0_54, %c0_55] : memref<1x2x2x128xbf16, #tpu.memory_space<vmem>>, vector<1x2x2x128xbf16>
    %113 = vector.shape_cast %112 : vector<1x2x2x128xbf16> to vector<2x2x128xbf16>
    %114 = vector.shape_cast %111 : vector<2x2x128xbf16> to vector<1x2x2x128xbf16>
    tpu.vector_store %arg8[%c0_52, %c0_53, %c0_54, %c0_55], %114 {strides = array<i32>} : memref<1x2x2x128xbf16, #tpu.memory_space<vmem>>, vector<1x2x2x128xbf16>,
    return
  }
  func.func @transform_0(%arg0: i32) -> (i32, i32, i32, i32) {
    %c0_i32 = arith.constant 0 : i32
    %c0_i32_0 = arith.constant 0 : i32
    %c0_i32_1 = arith.constant 0 : i32
    %c0_i32_2 = arith.constant 0 : i32
    return %arg0, %c0_i32, %c0_i32_0, %c0_i32_1 : i32, i32, i32, i32
  }
  func.func @transform_1(%arg0: i32) -> (i32, i32) {
    %c0_i32 = arith.constant 0 : i32
    %c0_i32_0 = arith.constant 0 : i32
    %c0_i32_1 = arith.constant 0 : i32
    return %c0_i32, %c0_i32_0 : i32, i32
  }
  func.func @transform_2(%arg0: i32) -> (i32, i32) {
    %c0_i32 = arith.constant 0 : i32
    %c0_i32_0 = arith.constant 0 : i32
    %c0_i32_1 = arith.constant 0 : i32
    return %c0_i32, %c0_i32_0 : i32, i32
  }
  func.func @transform_3(%arg0: i32) -> (i32, i32) {
    %c0_i32 = arith.constant 0 : i32
    %c0_i32_0 = arith.constant 0 : i32
    %c0_i32_1 = arith.constant 0 : i32
    return %c0_i32, %c0_i32_0 : i32, i32
  }
  func.func @transform_4(%arg0: i32) -> (i32, i32) {
    %c0_i32 = arith.constant 0 : i32
    %c0_i32_0 = arith.constant 0 : i32
    %c0_i32_1 = arith.constant 0 : i32
    return %c0_i32, %c0_i32_0 : i32, i32
  }
  func.func @transform_5(%arg0: i32) -> (i32, i32) {
    %c0_i32 = arith.constant 0 : i32
    %c0_i32_0 = arith.constant 0 : i32
    %c0_i32_1 = arith.constant 0 : i32
    return %c0_i32, %c0_i32_0 : i32, i32
  }
  func.func @transform_6(%arg0: i32) -> (i32, i32) {
    %c0_i32 = arith.constant 0 : i32
    %c0_i32_0 = arith.constant 0 : i32
    %c0_i32_1 = arith.constant 0 : i32
    return %c0_i32, %c0_i32_0 : i32, i32
  }
  func.func @transform_7(%arg0: i32) -> (i32, i32, i32, i32) {
    %c0_i32 = arith.constant 0 : i32
    %c0_i32_0 = arith.constant 0 : i32
    %c0_i32_1 = arith.constant 0 : i32
    %c0_i32_2 = arith.constant 0 : i32
    return %arg0, %c0_i32, %c0_i32_0, %c0_i32_1 : i32, i32, i32, i32
  }
}

module attributes {stable_mosaic.version = 11 : i64} {
  func.func @_block_kernel(%arg0: i32, %arg1: memref<1x2x2x128xbf16, #tpu.memory_space<vmem>>, %arg2: memref<128x256xbf16, #tpu.memory_space<vmem>>, %arg3: memref<1x256xf32, #tpu.memory_space<vmem>>, %arg4: memref<9x256xf32, #tpu.memory_space<vmem>>, %arg5: memref<1x256xf32, #tpu.memory_space<vmem>>, %arg6: memref<256x128xbf16, #tpu.memory_space<vmem>>, %arg7: memref<1x128xf32, #tpu.memory_space<vmem>>, %arg8: memref<1x2x2x128xbf16, #tpu.memory_space<vmem>>, %arg9: memref<4x4x256xbf16, #tpu.memory_space<vmem>>) attributes {dimension_semantics = [#tpu.dimension_semantics<parallel>], iteration_bounds = array<i64: 2>, scalar_prefetch = 0 : i64, scratch_operands = 1 : i64, tpu.core_type = #tpu.core_type<tc>, window_params = [{transform_indices = @transform_0, window_bounds = array<i64: 1, 2, 2, 128>}, {pipeline_mode = #tpu.pipeline_mode<synchronous>, transform_indices = @transform_1, window_bounds = array<i64: 128, 256>}, {pipeline_mode = #tpu.pipeline_mode<synchronous>, transform_indices = @transform_2, window_bounds = array<i64: 1, 256>}, {pipeline_mode = #tpu.pipeline_mode<synchronous>, transform_indices = @transform_3, window_bounds = array<i64: 9, 256>}, {pipeline_mode = #tpu.pipeline_mode<synchronous>, transform_indices = @transform_4, window_bounds = array<i64: 1, 256>}, {pipeline_mode = #tpu.pipeline_mode<synchronous>, transform_indices = @transform_5, window_bounds = array<i64: 256, 128>}, {pipeline_mode = #tpu.pipeline_mode<synchronous>, transform_indices = @transform_6, window_bounds = array<i64: 1, 128>}, {transform_indices = @transform_7, window_bounds = array<i64: 1, 2, 2, 128>}]} {
    %c0 = arith.constant 0 : index
    %c0_0 = arith.constant 0 : index
    %c0_1 = arith.constant 0 : index
    %c0_2 = arith.constant 0 : index
    %0 = vector.load %arg1[%c0, %c0_0, %c0_1, %c0_2] : memref<1x2x2x128xbf16, #tpu.memory_space<vmem>>, vector<1x2x2x128xbf16>
    %1 = vector.shape_cast %0 : vector<1x2x2x128xbf16> to vector<2x2x128xbf16>
    %2 = vector.shape_cast %1 : vector<2x2x128xbf16> to vector<4x128xbf16>
    %c0_3 = arith.constant 0 : index
    %c0_4 = arith.constant 0 : index
    %3 = vector.load %arg2[%c0_3, %c0_4] : memref<128x256xbf16, #tpu.memory_space<vmem>>, vector<128x256xbf16>
    %cst = arith.constant dense<0.000000e+00> : vector<4x256xf32>
    %4 = tpu.matmul %2, %3, %cst {dimension_numbers = #tpu.dot_dimension_numbers<[1], [0], [0], [1], [0, 0, 1, 1], [], []>} : vector<4x128xbf16>, vector<128x256xbf16>, vector<4x256xf32> -> vector<4x256xf32>
    %c0_5 = arith.constant 0 : index
    %c0_6 = arith.constant 0 : index
    %5 = vector.load %arg3[%c0_5, %c0_6] : memref<1x256xf32, #tpu.memory_space<vmem>>, vector<1x256xf32>
    %6 = vector.broadcast %5 : vector<1x256xf32> to vector<4x256xf32>
    %7 = arith.addf %4, %6 : vector<4x256xf32>
    %cst_7 = arith.constant 0.000000e+00 : f32
    %8 = vector.broadcast %cst_7 : f32 to vector<4x256xf32>
    %9 = arith.maximumf %7, %8 : vector<4x256xf32>
    %cst_8 = arith.constant 6.000000e+00 : f32
    %10 = vector.broadcast %cst_8 : f32 to vector<4x256xf32>
    %11 = arith.minimumf %9, %10 : vector<4x256xf32>
    %cst_9 = arith.constant 0.000000e+00 : bf16
    %12 = vector.broadcast %cst_9 : bf16 to vector<4x4x256xbf16>
    %c0_10 = arith.constant 0 : index
    %c0_11 = arith.constant 0 : index
    %c0_12 = arith.constant 0 : index
    %13 = vector.load %arg9[%c0_10, %c0_11, %c0_12] : memref<4x4x256xbf16, #tpu.memory_space<vmem>>, vector<4x4x256xbf16>
    tpu.vector_store %arg9[%c0_10, %c0_11, %c0_12], %12 {strides = array<i32>} : memref<4x4x256xbf16, #tpu.memory_space<vmem>>, vector<4x4x256xbf16>,
    %14 = vector.shape_cast %11 : vector<4x256xf32> to vector<2x2x256xf32>
    %15 = arith.truncf %14 : vector<2x2x256xf32> to vector<2x2x256xbf16>
    %c1 = arith.constant 1 : index
    %c1_13 = arith.constant 1 : index
    %c0_14 = arith.constant 0 : index
    %16 = vector.load %arg9[%c1, %c1_13, %c0_14] : memref<4x4x256xbf16, #tpu.memory_space<vmem>>, vector<2x2x256xbf16>
    tpu.vector_store %arg9[%c1, %c1_13, %c0_14], %15 {strides = array<i32>} : memref<4x4x256xbf16, #tpu.memory_space<vmem>>, vector<2x2x256xbf16>,
    %c0_15 = arith.constant 0 : index
    %c0_16 = arith.constant 0 : index
    %17 = vector.load %arg4[%c0_15, %c0_16] : memref<9x256xf32, #tpu.memory_space<vmem>>, vector<9x256xf32>
    %c0_17 = arith.constant 0 : index
    %c0_18 = arith.constant 0 : index
    %c0_19 = arith.constant 0 : index
    %18 = vector.load %arg9[%c0_17, %c0_18, %c0_19] : memref<4x4x256xbf16, #tpu.memory_space<vmem>>, vector<2x2x256xbf16>
    %19 = arith.extf %18 : vector<2x2x256xbf16> to vector<2x2x256xf32>
    %20 = vector.extract_strided_slice %17 {offsets = [0, 0], sizes = [1, 256], strides = [1, 1]} : vector<9x256xf32> to vector<1x256xf32>
    %21 = vector.shape_cast %20 : vector<1x256xf32> to vector<256xf32>
    %22 = vector.shape_cast %21 : vector<256xf32> to vector<1x1x256xf32>
    %23 = vector.broadcast %22 : vector<1x1x256xf32> to vector<2x2x256xf32>
    %24 = arith.mulf %19, %23 : vector<2x2x256xf32>
    %c0_20 = arith.constant 0 : index
    %c1_21 = arith.constant 1 : index
    %c0_22 = arith.constant 0 : index
    %25 = vector.load %arg9[%c0_20, %c1_21, %c0_22] : memref<4x4x256xbf16, #tpu.memory_space<vmem>>, vector<2x2x256xbf16>
    %26 = arith.extf %25 : vector<2x2x256xbf16> to vector<2x2x256xf32>
    %27 = vector.extract_strided_slice %17 {offsets = [1, 0], sizes = [1, 256], strides = [1, 1]} : vector<9x256xf32> to vector<1x256xf32>
    %28 = vector.shape_cast %27 : vector<1x256xf32> to vector<256xf32>
    %29 = vector.shape_cast %28 : vector<256xf32> to vector<1x1x256xf32>
    %30 = vector.broadcast %29 : vector<1x1x256xf32> to vector<2x2x256xf32>
    %31 = arith.mulf %26, %30 : vector<2x2x256xf32>
    %32 = arith.addf %24, %31 : vector<2x2x256xf32>
    %c0_23 = arith.constant 0 : index
    %c2 = arith.constant 2 : index
    %c0_24 = arith.constant 0 : index
    %33 = vector.load %arg9[%c0_23, %c2, %c0_24] : memref<4x4x256xbf16, #tpu.memory_space<vmem>>, vector<2x2x256xbf16>
    %34 = arith.extf %33 : vector<2x2x256xbf16> to vector<2x2x256xf32>
    %35 = vector.extract_strided_slice %17 {offsets = [2, 0], sizes = [1, 256], strides = [1, 1]} : vector<9x256xf32> to vector<1x256xf32>
    %36 = vector.shape_cast %35 : vector<1x256xf32> to vector<256xf32>
    %37 = vector.shape_cast %36 : vector<256xf32> to vector<1x1x256xf32>
    %38 = vector.broadcast %37 : vector<1x1x256xf32> to vector<2x2x256xf32>
    %39 = arith.mulf %34, %38 : vector<2x2x256xf32>
    %40 = arith.addf %32, %39 : vector<2x2x256xf32>
    %c1_25 = arith.constant 1 : index
    %c0_26 = arith.constant 0 : index
    %c0_27 = arith.constant 0 : index
    %41 = vector.load %arg9[%c1_25, %c0_26, %c0_27] : memref<4x4x256xbf16, #tpu.memory_space<vmem>>, vector<2x2x256xbf16>
    %42 = arith.extf %41 : vector<2x2x256xbf16> to vector<2x2x256xf32>
    %43 = vector.extract_strided_slice %17 {offsets = [3, 0], sizes = [1, 256], strides = [1, 1]} : vector<9x256xf32> to vector<1x256xf32>
    %44 = vector.shape_cast %43 : vector<1x256xf32> to vector<256xf32>
    %45 = vector.shape_cast %44 : vector<256xf32> to vector<1x1x256xf32>
    %46 = vector.broadcast %45 : vector<1x1x256xf32> to vector<2x2x256xf32>
    %47 = arith.mulf %42, %46 : vector<2x2x256xf32>
    %48 = arith.addf %40, %47 : vector<2x2x256xf32>
    %c1_28 = arith.constant 1 : index
    %c1_29 = arith.constant 1 : index
    %c0_30 = arith.constant 0 : index
    %49 = vector.load %arg9[%c1_28, %c1_29, %c0_30] : memref<4x4x256xbf16, #tpu.memory_space<vmem>>, vector<2x2x256xbf16>
    %50 = arith.extf %49 : vector<2x2x256xbf16> to vector<2x2x256xf32>
    %51 = vector.extract_strided_slice %17 {offsets = [4, 0], sizes = [1, 256], strides = [1, 1]} : vector<9x256xf32> to vector<1x256xf32>
    %52 = vector.shape_cast %51 : vector<1x256xf32> to vector<256xf32>
    %53 = vector.shape_cast %52 : vector<256xf32> to vector<1x1x256xf32>
    %54 = vector.broadcast %53 : vector<1x1x256xf32> to vector<2x2x256xf32>
    %55 = arith.mulf %50, %54 : vector<2x2x256xf32>
    %56 = arith.addf %48, %55 : vector<2x2x256xf32>
    %c1_31 = arith.constant 1 : index
    %c2_32 = arith.constant 2 : index
    %c0_33 = arith.constant 0 : index
    %57 = vector.load %arg9[%c1_31, %c2_32, %c0_33] : memref<4x4x256xbf16, #tpu.memory_space<vmem>>, vector<2x2x256xbf16>
    %58 = arith.extf %57 : vector<2x2x256xbf16> to vector<2x2x256xf32>
    %59 = vector.extract_strided_slice %17 {offsets = [5, 0], sizes = [1, 256], strides = [1, 1]} : vector<9x256xf32> to vector<1x256xf32>
    %60 = vector.shape_cast %59 : vector<1x256xf32> to vector<256xf32>
    %61 = vector.shape_cast %60 : vector<256xf32> to vector<1x1x256xf32>
    %62 = vector.broadcast %61 : vector<1x1x256xf32> to vector<2x2x256xf32>
    %63 = arith.mulf %58, %62 : vector<2x2x256xf32>
    %64 = arith.addf %56, %63 : vector<2x2x256xf32>
    %c2_34 = arith.constant 2 : index
    %c0_35 = arith.constant 0 : index
    %c0_36 = arith.constant 0 : index
    %65 = vector.load %arg9[%c2_34, %c0_35, %c0_36] : memref<4x4x256xbf16, #tpu.memory_space<vmem>>, vector<2x2x256xbf16>
    %66 = arith.extf %65 : vector<2x2x256xbf16> to vector<2x2x256xf32>
    %67 = vector.extract_strided_slice %17 {offsets = [6, 0], sizes = [1, 256], strides = [1, 1]} : vector<9x256xf32> to vector<1x256xf32>
    %68 = vector.shape_cast %67 : vector<1x256xf32> to vector<256xf32>
    %69 = vector.shape_cast %68 : vector<256xf32> to vector<1x1x256xf32>
    %70 = vector.broadcast %69 : vector<1x1x256xf32> to vector<2x2x256xf32>
    %71 = arith.mulf %66, %70 : vector<2x2x256xf32>
    %72 = arith.addf %64, %71 : vector<2x2x256xf32>
    %c2_37 = arith.constant 2 : index
    %c1_38 = arith.constant 1 : index
    %c0_39 = arith.constant 0 : index
    %73 = vector.load %arg9[%c2_37, %c1_38, %c0_39] : memref<4x4x256xbf16, #tpu.memory_space<vmem>>, vector<2x2x256xbf16>
    %74 = arith.extf %73 : vector<2x2x256xbf16> to vector<2x2x256xf32>
    %75 = vector.extract_strided_slice %17 {offsets = [7, 0], sizes = [1, 256], strides = [1, 1]} : vector<9x256xf32> to vector<1x256xf32>
    %76 = vector.shape_cast %75 : vector<1x256xf32> to vector<256xf32>
    %77 = vector.shape_cast %76 : vector<256xf32> to vector<1x1x256xf32>
    %78 = vector.broadcast %77 : vector<1x1x256xf32> to vector<2x2x256xf32>
    %79 = arith.mulf %74, %78 : vector<2x2x256xf32>
    %80 = arith.addf %72, %79 : vector<2x2x256xf32>
    %c2_40 = arith.constant 2 : index
    %c2_41 = arith.constant 2 : index
    %c0_42 = arith.constant 0 : index
    %81 = vector.load %arg9[%c2_40, %c2_41, %c0_42] : memref<4x4x256xbf16, #tpu.memory_space<vmem>>, vector<2x2x256xbf16>
    %82 = arith.extf %81 : vector<2x2x256xbf16> to vector<2x2x256xf32>
    %83 = vector.extract_strided_slice %17 {offsets = [8, 0], sizes = [1, 256], strides = [1, 1]} : vector<9x256xf32> to vector<1x256xf32>
    %84 = vector.shape_cast %83 : vector<1x256xf32> to vector<256xf32>
    %85 = vector.shape_cast %84 : vector<256xf32> to vector<1x1x256xf32>
    %86 = vector.broadcast %85 : vector<1x1x256xf32> to vector<2x2x256xf32>
    %87 = arith.mulf %82, %86 : vector<2x2x256xf32>
    %88 = arith.addf %80, %87 : vector<2x2x256xf32>
    %c0_43 = arith.constant 0 : index
    %c0_44 = arith.constant 0 : index
    %89 = vector.load %arg5[%c0_43, %c0_44] : memref<1x256xf32, #tpu.memory_space<vmem>>, vector<1x256xf32>
    %90 = vector.shape_cast %89 : vector<1x256xf32> to vector<1x1x256xf32>
    %91 = vector.broadcast %90 : vector<1x1x256xf32> to vector<2x2x256xf32>
    %92 = arith.addf %88, %91 : vector<2x2x256xf32>
    %cst_45 = arith.constant 0.000000e+00 : f32
    %93 = vector.broadcast %cst_45 : f32 to vector<2x2x256xf32>
    %94 = arith.maximumf %92, %93 : vector<2x2x256xf32>
    %cst_46 = arith.constant 6.000000e+00 : f32
    %95 = vector.broadcast %cst_46 : f32 to vector<2x2x256xf32>
    %96 = arith.minimumf %94, %95 : vector<2x2x256xf32>
    %97 = vector.shape_cast %96 : vector<2x2x256xf32> to vector<4x256xf32>
    %98 = arith.truncf %97 : vector<4x256xf32> to vector<4x256xbf16>
    %c0_47 = arith.constant 0 : index
    %c0_48 = arith.constant 0 : index
    %99 = vector.load %arg6[%c0_47, %c0_48] : memref<256x128xbf16, #tpu.memory_space<vmem>>, vector<256x128xbf16>
    %cst_49 = arith.constant dense<0.000000e+00> : vector<4x128xf32>
    %100 = tpu.matmul %98, %99, %cst_49 {dimension_numbers = #tpu.dot_dimension_numbers<[1], [0], [0], [1], [0, 0, 1, 1], [], []>} : vector<4x256xbf16>, vector<256x128xbf16>, vector<4x128xf32> -> vector<4x128xf32>
    %c0_50 = arith.constant 0 : index
    %c0_51 = arith.constant 0 : index
    %101 = vector.load %arg7[%c0_50, %c0_51] : memref<1x128xf32, #tpu.memory_space<vmem>>, vector<1x128xf32>
    %102 = vector.broadcast %101 : vector<1x128xf32> to vector<4x128xf32>
    %103 = arith.addf %100, %102 : vector<4x128xf32>
    %104 = arith.extf %2 : vector<4x128xbf16> to vector<4x128xf32>
    %105 = arith.addf %103, %104 : vector<4x128xf32>
    %106 = vector.shape_cast %105 : vector<4x128xf32> to vector<2x2x128xf32>
    %107 = arith.truncf %106 : vector<2x2x128xf32> to vector<2x2x128xbf16>
    %c0_52 = arith.constant 0 : index
    %c0_53 = arith.constant 0 : index
    %c0_54 = arith.constant 0 : index
    %c0_55 = arith.constant 0 : index
    %108 = vector.load %arg8[%c0_52, %c0_53, %c0_54, %c0_55] : memref<1x2x2x128xbf16, #tpu.memory_space<vmem>>, vector<1x2x2x128xbf16>
    %109 = vector.shape_cast %108 : vector<1x2x2x128xbf16> to vector<2x2x128xbf16>
    %110 = vector.shape_cast %107 : vector<2x2x128xbf16> to vector<1x2x2x128xbf16>
    tpu.vector_store %arg8[%c0_52, %c0_53, %c0_54, %c0_55], %110 {strides = array<i32>} : memref<1x2x2x128xbf16, #tpu.memory_space<vmem>>, vector<1x2x2x128xbf16>,
    return
  }
  func.func @transform_0(%arg0: i32) -> (i32, i32, i32, i32) {
    %c0_i32 = arith.constant 0 : i32
    %c0_i32_0 = arith.constant 0 : i32
    %c0_i32_1 = arith.constant 0 : i32
    %c0_i32_2 = arith.constant 0 : i32
    return %arg0, %c0_i32, %c0_i32_0, %c0_i32_1 : i32, i32, i32, i32
  }
  func.func @transform_1(%arg0: i32) -> (i32, i32) {
    %c0_i32 = arith.constant 0 : i32
    %c0_i32_0 = arith.constant 0 : i32
    %c0_i32_1 = arith.constant 0 : i32
    return %c0_i32, %c0_i32_0 : i32, i32
  }
  func.func @transform_2(%arg0: i32) -> (i32, i32) {
    %c0_i32 = arith.constant 0 : i32
    %c0_i32_0 = arith.constant 0 : i32
    %c0_i32_1 = arith.constant 0 : i32
    return %c0_i32, %c0_i32_0 : i32, i32
  }
  func.func @transform_3(%arg0: i32) -> (i32, i32) {
    %c0_i32 = arith.constant 0 : i32
    %c0_i32_0 = arith.constant 0 : i32
    %c0_i32_1 = arith.constant 0 : i32
    return %c0_i32, %c0_i32_0 : i32, i32
  }
  func.func @transform_4(%arg0: i32) -> (i32, i32) {
    %c0_i32 = arith.constant 0 : i32
    %c0_i32_0 = arith.constant 0 : i32
    %c0_i32_1 = arith.constant 0 : i32
    return %c0_i32, %c0_i32_0 : i32, i32
  }
  func.func @transform_5(%arg0: i32) -> (i32, i32) {
    %c0_i32 = arith.constant 0 : i32
    %c0_i32_0 = arith.constant 0 : i32
    %c0_i32_1 = arith.constant 0 : i32
    return %c0_i32, %c0_i32_0 : i32, i32
  }
  func.func @transform_6(%arg0: i32) -> (i32, i32) {
    %c0_i32 = arith.constant 0 : i32
    %c0_i32_0 = arith.constant 0 : i32
    %c0_i32_1 = arith.constant 0 : i32
    return %c0_i32, %c0_i32_0 : i32, i32
  }
  func.func @transform_7(%arg0: i32) -> (i32, i32, i32, i32) {
    %c0_i32 = arith.constant 0 : i32
    %c0_i32_0 = arith.constant 0 : i32
    %c0_i32_1 = arith.constant 0 : i32
    %c0_i32_2 = arith.constant 0 : i32
    return %arg0, %c0_i32, %c0_i32_0, %c0_i32_1 : i32, i32, i32, i32
  }
}

module attributes {stable_mosaic.version = 11 : i64} {
  func.func @_head_kernel(%arg0: i32, %arg1: memref<1x2x2x128xbf16, #tpu.memory_space<vmem>>, %arg2: memref<128x128xbf16, #tpu.memory_space<vmem>>, %arg3: memref<1x128xf32, #tpu.memory_space<vmem>>, %arg4: memref<128x128xbf16, #tpu.memory_space<vmem>>, %arg5: memref<1x128xf32, #tpu.memory_space<vmem>>, %arg6: memref<1x8x128xf32, #tpu.memory_space<vmem>>) attributes {dimension_semantics = [#tpu.dimension_semantics<parallel>], iteration_bounds = array<i64: 2>, scalar_prefetch = 0 : i64, scratch_operands = 0 : i64, tpu.core_type = #tpu.core_type<tc>, window_params = [{transform_indices = @transform_0, window_bounds = array<i64: 1, 2, 2, 128>}, {pipeline_mode = #tpu.pipeline_mode<synchronous>, transform_indices = @transform_1, window_bounds = array<i64: 128, 128>}, {pipeline_mode = #tpu.pipeline_mode<synchronous>, transform_indices = @transform_2, window_bounds = array<i64: 1, 128>}, {pipeline_mode = #tpu.pipeline_mode<synchronous>, transform_indices = @transform_3, window_bounds = array<i64: 128, 128>}, {pipeline_mode = #tpu.pipeline_mode<synchronous>, transform_indices = @transform_4, window_bounds = array<i64: 1, 128>}, {transform_indices = @transform_5, window_bounds = array<i64: 1, 8, 128>}]} {
    %c0 = arith.constant 0 : index
    %c0_0 = arith.constant 0 : index
    %c0_1 = arith.constant 0 : index
    %c0_2 = arith.constant 0 : index
    %0 = vector.load %arg1[%c0, %c0_0, %c0_1, %c0_2] : memref<1x2x2x128xbf16, #tpu.memory_space<vmem>>, vector<1x2x2x128xbf16>
    %1 = vector.shape_cast %0 : vector<1x2x2x128xbf16> to vector<2x2x128xbf16>
    %2 = vector.shape_cast %1 : vector<2x2x128xbf16> to vector<4x128xbf16>
    %c0_3 = arith.constant 0 : index
    %c0_4 = arith.constant 0 : index
    %3 = vector.load %arg2[%c0_3, %c0_4] : memref<128x128xbf16, #tpu.memory_space<vmem>>, vector<128x128xbf16>
    %cst = arith.constant dense<0.000000e+00> : vector<4x128xf32>
    %4 = tpu.matmul %2, %3, %cst {dimension_numbers = #tpu.dot_dimension_numbers<[1], [0], [0], [1], [0, 0, 1, 1], [], []>} : vector<4x128xbf16>, vector<128x128xbf16>, vector<4x128xf32> -> vector<4x128xf32>
    %c0_5 = arith.constant 0 : index
    %c0_6 = arith.constant 0 : index
    %5 = vector.load %arg3[%c0_5, %c0_6] : memref<1x128xf32, #tpu.memory_space<vmem>>, vector<1x128xf32>
    %6 = vector.broadcast %5 : vector<1x128xf32> to vector<4x128xf32>
    %7 = arith.addf %4, %6 : vector<4x128xf32>
    %cst_7 = arith.constant 0.000000e+00 : f32
    %8 = vector.broadcast %cst_7 : f32 to vector<4x128xf32>
    %9 = arith.maximumf %7, %8 : vector<4x128xf32>
    %cst_8 = arith.constant 6.000000e+00 : f32
    %10 = vector.broadcast %cst_8 : f32 to vector<4x128xf32>
    %11 = arith.minimumf %9, %10 : vector<4x128xf32>
    %cst_9 = arith.constant dense<0.000000e+00> : vector<128xf32>
    %12 = vector.multi_reduction <add>, %11, %cst_9 [0] : vector<4x128xf32> to vector<128xf32>
    %13 = vector.shape_cast %12 : vector<128xf32> to vector<1x128xf32>
    %cst_10 = arith.constant 2.500000e-01 : f32
    %14 = vector.broadcast %cst_10 : f32 to vector<1x128xf32>
    %15 = arith.mulf %13, %14 : vector<1x128xf32>
    %16 = arith.truncf %15 : vector<1x128xf32> to vector<1x128xbf16>
    %c0_11 = arith.constant 0 : index
    %c0_12 = arith.constant 0 : index
    %17 = vector.load %arg4[%c0_11, %c0_12] : memref<128x128xbf16, #tpu.memory_space<vmem>>, vector<128x128xbf16>
    %cst_13 = arith.constant dense<0.000000e+00> : vector<1x128xf32>
    %18 = tpu.matmul %16, %17, %cst_13 {dimension_numbers = #tpu.dot_dimension_numbers<[1], [0], [0], [1], [0, 0, 1, 1], [], []>} : vector<1x128xbf16>, vector<128x128xbf16>, vector<1x128xf32> -> vector<1x128xf32>
    %c0_14 = arith.constant 0 : index
    %c0_15 = arith.constant 0 : index
    %19 = vector.load %arg5[%c0_14, %c0_15] : memref<1x128xf32, #tpu.memory_space<vmem>>, vector<1x128xf32>
    %20 = arith.addf %18, %19 : vector<1x128xf32>
    %21 = vector.shape_cast %20 : vector<1x128xf32> to vector<1x128xf32>
    %22 = vector.broadcast %21 : vector<1x128xf32> to vector<8x128xf32>
    %c0_16 = arith.constant 0 : index
    %c0_17 = arith.constant 0 : index
    %c0_18 = arith.constant 0 : index
    %23 = vector.load %arg6[%c0_16, %c0_17, %c0_18] : memref<1x8x128xf32, #tpu.memory_space<vmem>>, vector<1x8x128xf32>
    %24 = vector.shape_cast %23 : vector<1x8x128xf32> to vector<8x128xf32>
    %25 = vector.shape_cast %22 : vector<8x128xf32> to vector<1x8x128xf32>
    tpu.vector_store %arg6[%c0_16, %c0_17, %c0_18], %25 {strides = array<i32>} : memref<1x8x128xf32, #tpu.memory_space<vmem>>, vector<1x8x128xf32>,
    return
  }
  func.func @transform_0(%arg0: i32) -> (i32, i32, i32, i32) {
    %c0_i32 = arith.constant 0 : i32
    %c0_i32_0 = arith.constant 0 : i32
    %c0_i32_1 = arith.constant 0 : i32
    %c0_i32_2 = arith.constant 0 : i32
    return %arg0, %c0_i32, %c0_i32_0, %c0_i32_1 : i32, i32, i32, i32
  }
  func.func @transform_1(%arg0: i32) -> (i32, i32) {
    %c0_i32 = arith.constant 0 : i32
    %c0_i32_0 = arith.constant 0 : i32
    %c0_i32_1 = arith.constant 0 : i32
    return %c0_i32, %c0_i32_0 : i32, i32
  }
  func.func @transform_2(%arg0: i32) -> (i32, i32) {
    %c0_i32 = arith.constant 0 : i32
    %c0_i32_0 = arith.constant 0 : i32
    %c0_i32_1 = arith.constant 0 : i32
    return %c0_i32, %c0_i32_0 : i32, i32
  }
  func.func @transform_3(%arg0: i32) -> (i32, i32) {
    %c0_i32 = arith.constant 0 : i32
    %c0_i32_0 = arith.constant 0 : i32
    %c0_i32_1 = arith.constant 0 : i32
    return %c0_i32, %c0_i32_0 : i32, i32
  }
  func.func @transform_4(%arg0: i32) -> (i32, i32) {
    %c0_i32 = arith.constant 0 : i32
    %c0_i32_0 = arith.constant 0 : i32
    %c0_i32_1 = arith.constant 0 : i32
    return %c0_i32, %c0_i32_0 : i32, i32
  }
  func.func @transform_5(%arg0: i32) -> (i32, i32, i32) {
    %c0_i32 = arith.constant 0 : i32
    %c0_i32_0 = arith.constant 0 : i32
    %c0_i32_1 = arith.constant 0 : i32
    return %arg0, %c0_i32, %c0_i32_0 : i32, i32, i32
  }
}

</mosaic_0001>

<llo_original>
// kernel: _lambda_.7
$region0: #{_lambda_.7}
  #allocation0 [shape = 'u32[]', space=smem, size = 0x4, offset = 0x4, fixed_abs, tag = 'smem constant byte address 0x4 - core index']
  #allocation1 [shape = 'u32[144,128]{1,0:T(1,128)}', space=vmem, size = 0x12000, scoped, tag = 'internal scratch']
  %s0 = inlined_call_operand.vmem [shape: bf16[2,8,8,36], index: 0, kind: input, shape index: {}]
  %s1 = inlined_call_operand.vmem [shape: bf16[36,128], index: 1, kind: input, shape index: {}]
  %s2 = inlined_call_operand.vmem [shape: f32[1,128], index: 2, kind: input, shape index: {}]
  %s3 = inlined_call_operand.vmem [shape: bf16[2,8,8,128], index: 3, kind: output, shape index: {}]
  %s4 = sld [smem:[#allocation0]]
  $region45: #{_lambda_.7} parent=0
    _
  %s6 = ssub.s32 1, %s4
  %s7 = scalar_select 0, %s6, %s4
  loop: start=0, step=1, limit=4
  $region2: #{_lambda_.7} parent=0 // loop_pre_header
    _
  $region3: #{_lambda_.7} parent=0 // loop_header
    %s9 = sphi 0, %s13
    %p10 = scmp.ge.s32.totalorder %s9, 4
    %s19 = sphi 0, %s21
    %s22 = sphi 0, %s19
    %s23 = sphi 0, %s22
    %s39 = sphi 0, %s23
    %s43 = sphi 0, %s43
    %s45 = sphi 0, %s43
    %s46 = sphi 0, %s45
    %s60 = sphi 0, %s46
    %s64 = sphi 0, %s64
    %s66 = sphi 0, %s64
    %s67 = sphi 0, %s66
    %s81 = sphi 0, %s67
    %s87 = sphi 0, %s89
    %s90 = sphi 0, %s87
    %s91 = sphi 0, %s90
    %s107 = sphi 0, %s91
  $region4: #{_lambda_.7} parent=0 // loop_header_branch
    %12 = sbr.rel (%p10) target = $region8
  $region5: #{_lambda_.7} parent=0 // loop_body
    %s14 = ssub.s32 %s9, 1
    %s15 = ssub.s32 %s9, 2
    %s16 = sadd.s32 %s9, 1
    %s17 = ssub.s32 %s9, %s16
    %p18 = scmp.eq.s32.totalorder %s17, 0
    %s20 = sadd.s32 %s19, 1
    %s21 = scalar_select %p18, %s19, %s20
    %p24 = pneg %p18
    %p25 = scmp.eq.s32.totalorder %s9, 1
    %p26 = por %p24, %p25
    %p27 = scmp.ne.s32.totalorder %s19, %s22
    %p28 = scmp.eq.s32.totalorder %s9, 0
    %p29 = por %p27, %p28
    %p30 = scmp.ne.s32.totalorder %s19, %s22
    %p31 = scmp.eq.s32.totalorder %s14, 1
    %p32 = por %p30, %p31
    %p33 = scmp.ne.s32.totalorder %s22, %s23
    %p34 = scmp.eq.s32.totalorder %s14, 0
    %p35 = por %p33, %p34
    %p36 = scmp.ne.s32.totalorder %s22, %s23
    %p37 = scmp.eq.s32.totalorder %s15, 1
    %p38 = por %p36, %p37
    %p40 = scmp.ne.s32.totalorder %s23, %s39
    %p41 = scmp.eq.s32.totalorder %s15, 0
    %p42 = por %p40, %p41
    %s44 = sadd.s32 %s43, 1
    %p47 = scmp.eq.s32.totalorder %s9, 1
    %p48 = scmp.ne.s32.totalorder %s43, %s45
    %p49 = scmp.eq.s32.totalorder %s9, 0
    %p50 = por %p48, %p49
    %p51 = scmp.ne.s32.totalorder %s43, %s45
    %p52 = scmp.eq.s32.totalorder %s14, 1
    %p53 = por %p51, %p52
    %p54 = scmp.ne.s32.totalorder %s45, %s46
    %p55 = scmp.eq.s32.totalorder %s14, 0
    %p56 = por %p54, %p55
    %p57 = scmp.ne.s32.totalorder %s45, %s46
    %p58 = scmp.eq.s32.totalorder %s15, 1
    %p59 = por %p57, %p58
    %p61 = scmp.ne.s32.totalorder %s46, %s60
    %p62 = scmp.eq.s32.totalorder %s15, 0
    %p63 = por %p61, %p62
    %s65 = sadd.s32 %s64, 1
    %p68 = scmp.eq.s32.totalorder %s9, 1
    %p69 = scmp.ne.s32.totalorder %s64, %s66
    %p70 = scmp.eq.s32.totalorder %s9, 0
    %p71 = por %p69, %p70
    %p72 = scmp.ne.s32.totalorder %s64, %s66
    %p73 = scmp.eq.s32.totalorder %s14, 1
    %p74 = por %p72, %p73
    %p75 = scmp.ne.s32.totalorder %s66, %s67
    %p76 = scmp.eq.s32.totalorder %s14, 0
    %p77 = por %p75, %p76
    %p78 = scmp.ne.s32.totalorder %s66, %s67
    %p79 = scmp.eq.s32.totalorder %s15, 1
    %p80 = por %p78, %p79
    %p82 = scmp.ne.s32.totalorder %s67, %s81
    %p83 = scmp.eq.s32.totalorder %s15, 0
    %p84 = por %p82, %p83
    %s85 = ssub.s32 %s9, %s16
    %p86 = scmp.eq.s32.totalorder %s85, 0
    %s88 = sadd.s32 %s87, 1
    %s89 = scalar_select %p86, %s87, %s88
    %p92 = pneg %p86
    %p93 = scmp.eq.s32.totalorder %s9, 1
    %p94 = por %p92, %p93
    %p95 = scmp.ne.s32.totalorder %s87, %s90
    %p96 = scmp.eq.s32.totalorder %s9, 0
    %p97 = por %p95, %p96
    %p98 = scmp.ne.s32.totalorder %s87, %s90
    %p99 = scmp.eq.s32.totalorder %s14, 1
    %p100 = por %p98, %p99
    %p101 = scmp.ne.s32.totalorder %s90, %s91
    %p102 = scmp.eq.s32.totalorder %s14, 0
    %p103 = por %p101, %p102
    %p104 = scmp.ne.s32.totalorder %s90, %s91
    %p105 = scmp.eq.s32.totalorder %s15, 1
    %p106 = por %p104, %p105
    %p108 = scmp.ne.s32.totalorder %s91, %s107
    %p109 = scmp.eq.s32.totalorder %s15, 0
    %p110 = por %p108, %p109
    %p111 = scmp.le.s32.totalorder 1, %s9
    %p112 = scmp.lt.s32.totalorder %s9, 3
    %p113 = pnand %p111, %p112
    %p114 = pneg %p113
    // Predicated region
    $region9: #{_lambda_.7} parent=5 // pred_check
      _
    $region10: #{_lambda_.7} parent=5 // pred_check_branch
      %116 = sbr.rel (%p113) target = $region12
    $region11: #{_lambda_.7} parent=5 // pred_region
      %s117 = ssub.s32 %s9, 1
      // Predicated region
      $region13: #{_lambda_.7} parent=11 // pred_check
        %p118 = pneg %p56
      $region14: #{_lambda_.7} parent=11 // pred_check_branch
        %120 = sbr.rel (%p118) target = $region16
      $region15: #{_lambda_.7} parent=11 // pred_region
        _
      $region16: #{_lambda_.7} parent=11 // pred_fallthru
        _
      // Predicated region
      $region17: #{_lambda_.7} parent=11 // pred_check
        %p121 = pneg %p77
      $region18: #{_lambda_.7} parent=11 // pred_check_branch
        %123 = sbr.rel (%p121) target = $region20
      $region19: #{_lambda_.7} parent=11 // pred_region
        _
      $region20: #{_lambda_.7} parent=11 // pred_fallthru
        _
    $region12: #{_lambda_.7} parent=5 // pred_fallthru
      _
    %p124 = scmp.lt.s32.totalorder %s9, 2
    // Predicated region
    $region21: #{_lambda_.7} parent=5 // pred_check
      %p125 = pneg %p124
    $region22: #{_lambda_.7} parent=5 // pred_check_branch
      %127 = sbr.rel (%p125) target = $region24
    $region23: #{_lambda_.7} parent=5 // pred_region
      // Predicated region
      $region25: #{_lambda_.7} parent=23 // pred_check
        %p128 = pneg %p29
      $region26: #{_lambda_.7} parent=23 // pred_check_branch
        %130 = sbr.rel (%p128) target = $region28
      $region27: #{_lambda_.7} parent=23 // pred_region
        %p131 = scmp.lt.s32.totalorder %s9, 1
        %s132 = scalar_select %p131, %s9, 1
        %s133 = smul.addr %s132, 8
        %s134 = smul.addr %s133, 4
        %s135 = scalar_lea.vmem %s0, %s134
      $region28: #{_lambda_.7} parent=23 // pred_fallthru
        _
    $region24: #{_lambda_.7} parent=5 // pred_fallthru
      _
    %p136 = scmp.le.s32.totalorder 1, %s9
    %p137 = scmp.lt.s32.totalorder %s9, 3
    %p138 = pnand %p136, %p137
    %p139 = pneg %p138
    // Predicated region
    $region29: #{_lambda_.7} parent=5 // pred_check
      _
    $region30: #{_lambda_.7} parent=5 // pred_check_branch
      %141 = sbr.rel (%p138) target = $region32
    $region31: #{_lambda_.7} parent=5 // pred_region
      %s142 = ssub.s32 %s9, 1
      %p143 = scmp.lt.s32.totalorder %s14, 1
      %s144 = scalar_select %p143, %s14, 1
      %s145 = smul.addr %s144, 8
      %s146 = smul.addr %s145, 4
      %s147 = scalar_lea.vmem %s0, %s146
      %p148 = pneg %p35
      %p149 = pneg %p32
      %p150 = pneg %p56
      %p151 = pneg %p53
      %p152 = pneg %p77
      %p153 = pneg %p74
      %p154 = pneg %p103
      %p155 = pneg %p100
      %p156 = scmp.lt.s32.totalorder %s14, 1
      %s157 = scalar_select %p156, %s14, 1
      %s158 = smul.addr %s157, 8
      %s159 = smul.addr %s158, 4
      %s160 = scalar_lea.vmem %s3, %s159
      %p161 = scmp.lt.s32.totalorder %s14, 1
      %s162 = scalar_select %p161, %s14, 1
      %s163 = smul.addr %s162, 8
      %s164 = smul.addr %s163, 4
      %s165 = scalar_lea.vmem %s0, %s164
      %p166 = scmp.lt.s32.totalorder %s14, 1
      %s167 = scalar_select %p166, %s14, 1
      %s168 = smul.addr %s167, 8
      %s169 = smul.addr %s168, 4
      %s170 = scalar_lea.vmem %s3, %s169
      %v172 = vld [vmem:[%s165] sm:$0xf]
      %v173 = vld [vmem:[%s165 + $0x4] sm:$0xf]
      %v174 = vld [vmem:[%s165 + $0x8] sm:$0xf]
      %v175 = vld [vmem:[%s165 + $0xc] sm:$0xf]
      %v176 = vld [vmem:[%s165 + $0x10] sm:$0xf]
      %v177 = vld [vmem:[%s165 + $0x14] sm:$0xf]
      %v178 = vld [vmem:[%s165 + $0x18] sm:$0xf]
      %v179 = vld [vmem:[%s165 + $0x1c] sm:$0xf]
      %v180 = vld [vmem:[%s1] sm:$0xf]
      %v181 = vld [vmem:[%s1 + $0x4] sm:$0xf]
      %v182 = vld [vmem:[%s1 + $0x8] sm:$0xf]
      %v183 = vld [vmem:[%s1 + $0xc] sm:$0xf]
      %v184 = vld [vmem:[%s1 + $0x10] sm:$0x3]
      %v185 = vld [vmem:[%s2] sm:$0x1]
      %v187 = vlaneseq
      %v188 = vshrl.u32 %v187, 7
      %v189 = vsub.s32 0, %v188
      %v190 = vrot.slane %v185, %v189
      %v200 = vunpack.c.l.b16 %v172
      %v201 = vunpack.c.l.b16 %v173
      %v202 = vunpack.c.l.b16 %v174
      %v203 = vunpack.c.l.b16 %v175
      %v204 = vunpack.c.l.b16 %v176
      %v205 = vunpack.c.l.b16 %v177
      %v206 = vunpack.c.l.b16 %v178
      %v207 = vunpack.c.l.b16 %v179
      %v208 = vpack.c.b16 %v201, %v200
      %v209 = vpack.c.b16 %v203, %v202
      %v210 = vpack.c.b16 %v205, %v204
      %v211 = vpack.c.b16 %v207, %v206
      %v217 = vunpack.c.l.b16 %v180
      %v218 = vunpack.c.l.b16 %v181
      %v219 = vunpack.c.l.b16 %v182
      %v220 = vunpack.c.l.b16 %v183
      %v221 = vunpack.c.l.b16 %v184
      %v222 = vpack.c.b16 %v218, %v217
      %v223 = vpack.c.b16 %v220, %v219
      %v224 = vpack.c.b16 %v221, %v221
      %vm227 = vcmask 293888
      %v229 = vsel %vm227, %v208, 0
      %v232 = vsel %vm227, %v209, 0
      %v235 = vsel %vm227, %v210, 0
      %v238 = vsel %vm227, %v211, 0
      %vm240 = vcmask 1041408
      %v242 = vsel %vm240, %v224, 0
      %244 = vmatprep.subr.bf16.mxu0 0
      %245 = vmatpush1.bf16.msra.mxu0 %v222
      %246 = vmatprep.subr.bf16.mxu0 0
      %247 = vmatpush1.bf16.msra.mxu0 %v223
      %248 = vmatprep.subr.bf16.mxu0 0
      %249 = vmatpush1.bf16.msra.mxu0 %v242
      %250 = vmatprep.subr.bf16.mxu0 0
      %251 = vmatpush1.bf16.msra.mxu0 0
      %252 = vmatprep.subr.bf16.mxu0 0
      %253 = vmatpush1.bf16.msra.mxu0 0
      %254 = vmatprep.subr.bf16.mxu0 0
      %255 = vmatpush1.bf16.msra.mxu0 0
      %256 = vmatprep.subr.bf16.mxu0 0
      %257 = vmatpush1.bf16.msra.mxu0 0
      %258 = vmatprep.subr.bf16.mxu0 0
      %259 = vmatpush1.bf16.msra.mxu0 0
      %260 = vmatprep.subr.bf16.mxu0 0
      %261 = vmatpush1.bf16.msra.mxu0 0
      %262 = vmatprep.subr.bf16.mxu0 0
      %263 = vmatpush1.bf16.msra.mxu0 0
      %264 = vmatprep.subr.bf16.mxu0 0
      %265 = vmatpush1.bf16.msra.mxu0 0
      %266 = vmatprep.subr.bf16.mxu0 0
      %267 = vmatpush1.bf16.msra.mxu0 0
      %268 = vmatprep.subr.bf16.mxu0 0
      %269 = vmatpush1.bf16.msra.mxu0 0
      %270 = vmatprep.subr.bf16.mxu0 0
      %271 = vmatpush1.bf16.msra.mxu0 0
      %272 = vmatprep.subr.bf16.mxu0 0
      %273 = vmatpush1.bf16.msra.mxu0 0
      %274 = vmatprep.subr.bf16.mxu0 0
      %275 = vmatpush1.bf16.msra.mxu0 0
      %276 = vmatprep.mubr.bf16.mxu0 0
      %277 = vmatmul.mubr.bf16.gmra.mrb[0].mxu0 %v229
      %v278 = vpop.f32.mrb[0].mxu0
      %v279 = vadd.f32 %v190, %v278
      %v280 = vpop.f32.mrb[0].mxu0
      %v281 = vpop.f32.mrb[0].mxu0
      %v282 = vadd.f32 %v190, %v281
      %v283 = vpop.f32.mrb[0].mxu0
      %284 = vmatprep.mubr.bf16.mxu0 0
      %285 = vmatmul.mubr.bf16.gmra.mrb[0].mxu0 %v232
      %v286 = vpop.f32.mrb[0].mxu0
      %v287 = vadd.f32 %v190, %v286
      %v288 = vpop.f32.mrb[0].mxu0
      %v289 = vpop.f32.mrb[0].mxu0
      %v290 = vadd.f32 %v190, %v289
      %v291 = vpop.f32.mrb[0].mxu0
      %292 = vmatprep.mubr.bf16.mxu0 0
      %293 = vmatmul.mubr.bf16.gmra.mrb[0].mxu0 %v235
      %v294 = vpop.f32.mrb[0].mxu0
      %v295 = vadd.f32 %v190, %v294
      %v296 = vpop.f32.mrb[0].mxu0
      %v297 = vpop.f32.mrb[0].mxu0
      %v298 = vadd.f32 %v190, %v297
      %v299 = vpop.f32.mrb[0].mxu0
      %300 = vmatprep.mubr.bf16.mxu0 0
      %301 = vmatmul.mubr.bf16.gmra.mrb[0].mxu0 %v238
      %v302 = vpop.f32.mrb[0].mxu0
      %v303 = vadd.f32 %v190, %v302
      %v304 = vpop.f32.mrb[0].mxu0
      %v305 = vpop.f32.mrb[0].mxu0
      %v306 = vadd.f32 %v190, %v305
      %v307 = vpop.f32.mrb[0].mxu0
      %308 = vdwg.mxu0
      %v309 = vmax.f32 %v279, 0.0
      %v310 = vmax.f32 %v282, 0.0
      %v311 = vmax.f32 %v287, 0.0
      %v312 = vmax.f32 %v290, 0.0
      %v313 = vmax.f32 %v295, 0.0
      %v314 = vmax.f32 %v298, 0.0
      %v315 = vmax.f32 %v303, 0.0
      %v316 = vmax.f32 %v306, 0.0
      %v317 = vmin.f32 %v309, 6.0
      %v318 = vmin.f32 %v310, 6.0
      %v319 = vmin.f32 %v311, 6.0
      %v320 = vmin.f32 %v312, 6.0
      %v321 = vmin.f32 %v313, 6.0
      %v322 = vmin.f32 %v314, 6.0
      %v323 = vmin.f32 %v315, 6.0
      %v324 = vmin.f32 %v316, 6.0
      %v325 = vpack.c.bf16 %v317, %v317
      %v326 = vpack.c.bf16 %v318, %v318
      %v327 = vpack.c.bf16 %v319, %v319
      %v328 = vpack.c.bf16 %v320, %v320
      %v329 = vpack.c.bf16 %v321, %v321
      %v330 = vpack.c.bf16 %v322, %v322
      %v331 = vpack.c.bf16 %v323, %v323
      %v332 = vpack.c.bf16 %v324, %v324
      %333 = vst [vmem:[%s170] sm:$0xf] %v325
      %334 = vst [vmem:[%s170 + $0x4] sm:$0xf] %v326
      %335 = vst [vmem:[%s170 + $0x8] sm:$0xf] %v327
      %336 = vst [vmem:[%s170 + $0xc] sm:$0xf] %v328
      %337 = vst [vmem:[%s170 + $0x10] sm:$0xf] %v329
      %338 = vst [vmem:[%s170 + $0x14] sm:$0xf] %v330
      %339 = vst [vmem:[%s170 + $0x18] sm:$0xf] %v331
      %340 = vst [vmem:[%s170 + $0x1c] sm:$0xf] %v332
      %p341 = scmp.lt.s32.totalorder %s14, 1
      %s342 = scalar_select %p341, %s14, 1
      %s343 = smul.addr %s342, 8
      %s344 = smul.addr %s343, 4
      %s345 = scalar_lea.vmem %s3, %s344
      // Predicated region
      $region33: #{_lambda_.7} parent=31 // pred_check
        %p346 = pneg %p100
      $region34: #{_lambda_.7} parent=31 // pred_check_branch
        %348 = sbr.rel (%p346) target = $region36
      $region35: #{_lambda_.7} parent=31 // pred_region
        _
      $region36: #{_lambda_.7} parent=31 // pred_fallthru
        _
    $region32: #{_lambda_.7} parent=5 // pred_fallthru
      _
    %p349 = scmp.le.s32.totalorder 2, %s9
    // Predicated region
    $region37: #{_lambda_.7} parent=5 // pred_check
      %p350 = pneg %p349
    $region38: #{_lambda_.7} parent=5 // pred_check_branch
      %352 = sbr.rel (%p350) target = $region40
    $region39: #{_lambda_.7} parent=5 // pred_region
      %s353 = ssub.s32 %s9, 2
      // Predicated region
      $region41: #{_lambda_.7} parent=39 // pred_check
        %p354 = pneg %p106
      $region42: #{_lambda_.7} parent=39 // pred_check_branch
        %356 = sbr.rel (%p354) target = $region44
      $region43: #{_lambda_.7} parent=39 // pred_region
        %p357 = scmp.lt.s32.totalorder %s15, 1
        %s358 = scalar_select %p357, %s15, 1
        %s359 = smul.addr %s358, 8
        %s360 = smul.addr %s359, 4
        %s361 = scalar_lea.vmem %s3, %s360
      $region44: #{_lambda_.7} parent=39 // pred_fallthru
        _
    $region40: #{_lambda_.7} parent=5 // pred_fallthru
      _
  $region6: #{_lambda_.7} parent=0 // loop_footer
    %s13 = sadd.s32 1, %s9
  $region7: #{_lambda_.7} parent=0 // loop_footer_branch
    %8 = sbr.rel target = $region3
  $region8: #{_lambda_.7} parent=0 // loop_exit
    _

// kernel: _lambda_.9
$region0: #{_lambda_.9}
  #allocation0 [shape = 'u32[]', space=smem, size = 0x4, offset = 0x4, fixed_abs, tag = 'smem constant byte address 0x4 - core index']
  #allocation1 [shape = 'u32[144,128]{1,0:T(1,128)}', space=vmem, size = 0x12000, scoped, tag = 'internal scratch']
  #allocation2 [shape = 'bf16[10,10,128]{2,1,0:T(8,128)(2,1)}', space=vmem, size = 0xa000, scoped, tag = 'scratch operand']
  %s0 = inlined_call_operand.vmem [shape: bf16[2,8,8,128], index: 0, kind: input, shape index: {}]
  %s1 = inlined_call_operand.vmem [shape: bf16[128,128], index: 1, kind: input, shape index: {}]
  %s2 = inlined_call_operand.vmem [shape: f32[1,128], index: 2, kind: input, shape index: {}, may-alias: {2,4,6}]
  %s3 = inlined_call_operand.vmem [shape: f32[9,128], index: 3, kind: input, shape index: {}]
  %s4 = inlined_call_operand.vmem [shape: f32[1,128], index: 4, kind: input, shape index: {}, may-alias: {2,4,6}]
  %s5 = inlined_call_operand.vmem [shape: bf16[128,128], index: 5, kind: input, shape index: {}]
  %s6 = inlined_call_operand.vmem [shape: f32[1,128], index: 6, kind: input, shape index: {}, may-alias: {2,4,6}]
  %s7 = inlined_call_operand.vmem [shape: bf16[2,4,4,128], index: 7, kind: output, shape index: {}]
  %s8 = sld [smem:[#allocation0]]
  $region61: #{_lambda_.9} parent=0
    _
  %s10 = ssub.s32 1, %s8
  %s11 = scalar_select 0, %s10, %s8
  loop: start=0, step=1, limit=4
  $region2: #{_lambda_.9} parent=0 // loop_pre_header
    _
  $region3: #{_lambda_.9} parent=0 // loop_header
    %s13 = sphi 0, %s17
    %p14 = scmp.ge.s32.totalorder %s13, 4
    %s23 = sphi 0, %s25
    %s26 = sphi 0, %s23
    %s27 = sphi 0, %s26
    %s43 = sphi 0, %s27
    %s47 = sphi 0, %s47
    %s49 = sphi 0, %s47
    %s50 = sphi 0, %s49
    %s64 = sphi 0, %s50
    %s68 = sphi 0, %s68
    %s70 = sphi 0, %s68
    %s71 = sphi 0, %s70
    %s85 = sphi 0, %s71
    %s89 = sphi 0, %s89
    %s91 = sphi 0, %s89
    %s92 = sphi 0, %s91
    %s106 = sphi 0, %s92
    %s110 = sphi 0, %s110
    %s112 = sphi 0, %s110
    %s113 = sphi 0, %s112
    %s127 = sphi 0, %s113
    %s131 = sphi 0, %s131
    %s133 = sphi 0, %s131
    %s134 = sphi 0, %s133
    %s148 = sphi 0, %s134
    %s152 = sphi 0, %s152
    %s154 = sphi 0, %s152
    %s155 = sphi 0, %s154
    %s169 = sphi 0, %s155
    %s175 = sphi 0, %s177
    %s178 = sphi 0, %s175
    %s179 = sphi 0, %s178
    %s195 = sphi 0, %s179
  $region4: #{_lambda_.9} parent=0 // loop_header_branch
    %16 = sbr.rel (%p14) target = $region8
  $region5: #{_lambda_.9} parent=0 // loop_body
    %s18 = ssub.s32 %s13, 1
    %s19 = ssub.s32 %s13, 2
    %s20 = sadd.s32 %s13, 1
    %s21 = ssub.s32 %s13, %s20
    %p22 = scmp.eq.s32.totalorder %s21, 0
    %s24 = sadd.s32 %s23, 1
    %s25 = scalar_select %p22, %s23, %s24
    %p28 = pneg %p22
    %p29 = scmp.eq.s32.totalorder %s13, 1
    %p30 = por %p28, %p29
    %p31 = scmp.ne.s32.totalorder %s23, %s26
    %p32 = scmp.eq.s32.totalorder %s13, 0
    %p33 = por %p31, %p32
    %p34 = scmp.ne.s32.totalorder %s23, %s26
    %p35 = scmp.eq.s32.totalorder %s18, 1
    %p36 = por %p34, %p35
    %p37 = scmp.ne.s32.totalorder %s26, %s27
    %p38 = scmp.eq.s32.totalorder %s18, 0
    %p39 = por %p37, %p38
    %p40 = scmp.ne.s32.totalorder %s26, %s27
    %p41 = scmp.eq.s32.totalorder %s19, 1
    %p42 = por %p40, %p41
    %p44 = scmp.ne.s32.totalorder %s27, %s43
    %p45 = scmp.eq.s32.totalorder %s19, 0
    %p46 = por %p44, %p45
    %s48 = sadd.s32 %s47, 1
    %p51 = scmp.eq.s32.totalorder %s13, 1
    %p52 = scmp.ne.s32.totalorder %s47, %s49
    %p53 = scmp.eq.s32.totalorder %s13, 0
    %p54 = por %p52, %p53
    %p55 = scmp.ne.s32.totalorder %s47, %s49
    %p56 = scmp.eq.s32.totalorder %s18, 1
    %p57 = por %p55, %p56
    %p58 = scmp.ne.s32.totalorder %s49, %s50
    %p59 = scmp.eq.s32.totalorder %s18, 0
    %p60 = por %p58, %p59
    %p61 = scmp.ne.s32.totalorder %s49, %s50
    %p62 = scmp.eq.s32.totalorder %s19, 1
    %p63 = por %p61, %p62
    %p65 = scmp.ne.s32.totalorder %s50, %s64
    %p66 = scmp.eq.s32.totalorder %s19, 0
    %p67 = por %p65, %p66
    %s69 = sadd.s32 %s68, 1
    %p72 = scmp.eq.s32.totalorder %s13, 1
    %p73 = scmp.ne.s32.totalorder %s68, %s70
    %p74 = scmp.eq.s32.totalorder %s13, 0
    %p75 = por %p73, %p74
    %p76 = scmp.ne.s32.totalorder %s68, %s70
    %p77 = scmp.eq.s32.totalorder %s18, 1
    %p78 = por %p76, %p77
    %p79 = scmp.ne.s32.totalorder %s70, %s71
    %p80 = scmp.eq.s32.totalorder %s18, 0
    %p81 = por %p79, %p80
    %p82 = scmp.ne.s32.totalorder %s70, %s71
    %p83 = scmp.eq.s32.totalorder %s19, 1
    %p84 = por %p82, %p83
    %p86 = scmp.ne.s32.totalorder %s71, %s85
    %p87 = scmp.eq.s32.totalorder %s19, 0
    %p88 = por %p86, %p87
    %s90 = sadd.s32 %s89, 1
    %p93 = scmp.eq.s32.totalorder %s13, 1
    %p94 = scmp.ne.s32.totalorder %s89, %s91
    %p95 = scmp.eq.s32.totalorder %s13, 0
    %p96 = por %p94, %p95
    %p97 = scmp.ne.s32.totalorder %s89, %s91
    %p98 = scmp.eq.s32.totalorder %s18, 1
    %p99 = por %p97, %p98
    %p100 = scmp.ne.s32.totalorder %s91, %s92
    %p101 = scmp.eq.s32.totalorder %s18, 0
    %p102 = por %p100, %p101
    %p103 = scmp.ne.s32.totalorder %s91, %s92
    %p104 = scmp.eq.s32.totalorder %s19, 1
    %p105 = por %p103, %p104
    %p107 = scmp.ne.s32.totalorder %s92, %s106
    %p108 = scmp.eq.s32.totalorder %s19, 0
    %p109 = por %p107, %p108
    %s111 = sadd.s32 %s110, 1
    %p114 = scmp.eq.s32.totalorder %s13, 1
    %p115 = scmp.ne.s32.totalorder %s110, %s112
    %p116 = scmp.eq.s32.totalorder %s13, 0
    %p117 = por %p115, %p116
    %p118 = scmp.ne.s32.totalorder %s110, %s112
    %p119 = scmp.eq.s32.totalorder %s18, 1
    %p120 = por %p118, %p119
    %p121 = scmp.ne.s32.totalorder %s112, %s113
    %p122 = scmp.eq.s32.totalorder %s18, 0
    %p123 = por %p121, %p122
    %p124 = scmp.ne.s32.totalorder %s112, %s113
    %p125 = scmp.eq.s32.totalorder %s19, 1
    %p126 = por %p124, %p125
    %p128 = scmp.ne.s32.totalorder %s113, %s127
    %p129 = scmp.eq.s32.totalorder %s19, 0
    %p130 = por %p128, %p129
    %s132 = sadd.s32 %s131, 1
    %p135 = scmp.eq.s32.totalorder %s13, 1
    %p136 = scmp.ne.s32.totalorder %s131, %s133
    %p137 = scmp.eq.s32.totalorder %s13, 0
    %p138 = por %p136, %p137
    %p139 = scmp.ne.s32.totalorder %s131, %s133
    %p140 = scmp.eq.s32.totalorder %s18, 1
    %p141 = por %p139, %p140
    %p142 = scmp.ne.s32.totalorder %s133, %s134
    %p143 = scmp.eq.s32.totalorder %s18, 0
    %p144 = por %p142, %p143
    %p145 = scmp.ne.s32.totalorder %s133, %s134
    %p146 = scmp.eq.s32.totalorder %s19, 1
    %p147 = por %p145, %p146
    %p149 = scmp.ne.s32.totalorder %s134, %s148
    %p150 = scmp.eq.s32.totalorder %s19, 0
    %p151 = por %p149, %p150
    %s153 = sadd.s32 %s152, 1
    %p156 = scmp.eq.s32.totalorder %s13, 1
    %p157 = scmp.ne.s32.totalorder %s152, %s154
    %p158 = scmp.eq.s32.totalorder %s13, 0
    %p159 = por %p157, %p158
    %p160 = scmp.ne.s32.totalorder %s152, %s154
    %p161 = scmp.eq.s32.totalorder %s18, 1
    %p162 = por %p160, %p161
    %p163 = scmp.ne.s32.totalorder %s154, %s155
    %p164 = scmp.eq.s32.totalorder %s18, 0
    %p165 = por %p163, %p164
    %p166 = scmp.ne.s32.totalorder %s154, %s155
    %p167 = scmp.eq.s32.totalorder %s19, 1
    %p168 = por %p166, %p167
    %p170 = scmp.ne.s32.totalorder %s155, %s169
    %p171 = scmp.eq.s32.totalorder %s19, 0
    %p172 = por %p170, %p171
    %s173 = ssub.s32 %s13, %s20
    %p174 = scmp.eq.s32.totalorder %s173, 0
    %s176 = sadd.s32 %s175, 1
    %s177 = scalar_select %p174, %s175, %s176
    %p180 = pneg %p174
    %p181 = scmp.eq.s32.totalorder %s13, 1
    %p182 = por %p180, %p181
    %p183 = scmp.ne.s32.totalorder %s175, %s178
    %p184 = scmp.eq.s32.totalorder %s13, 0
    %p185 = por %p183, %p184
    %p186 = scmp.ne.s32.totalorder %s175, %s178
    %p187 = scmp.eq.s32.totalorder %s18, 1
    %p188 = por %p186, %p187
    %p189 = scmp.ne.s32.totalorder %s178, %s179
    %p190 = scmp.eq.s32.totalorder %s18, 0
    %p191 = por %p189, %p190
    %p192 = scmp.ne.s32.totalorder %s178, %s179
    %p193 = scmp.eq.s32.totalorder %s19, 1
    %p194 = por %p192, %p193
    %p196 = scmp.ne.s32.totalorder %s179, %s195
    %p197 = scmp.eq.s32.totalorder %s19, 0
    %p198 = por %p196, %p197
    %p199 = scmp.le.s32.totalorder 1, %s13
    %p200 = scmp.lt.s32.totalorder %s13, 3
    %p201 = pnand %p199, %p200
    %p202 = pneg %p201
    // Predicated region
    $region9: #{_lambda_.9} parent=5 // pred_check
      _
    $region10: #{_lambda_.9} parent=5 // pred_check_branch
      %204 = sbr.rel (%p201) target = $region12
    $region11: #{_lambda_.9} parent=5 // pred_region
      %s205 = ssub.s32 %s13, 1
      // Predicated region
      $region13: #{_lambda_.9} parent=11 // pred_check
        %p206 = pneg %p60
      $region14: #{_lambda_.9} parent=11 // pred_check_branch
        %208 = sbr.rel (%p206) target = $region16
      $region15: #{_lambda_.9} parent=11 // pred_region
        _
      $region16: #{_lambda_.9} parent=11 // pred_fallthru
        _
      // Predicated region
      $region17: #{_lambda_.9} parent=11 // pred_check
        %p209 = pneg %p81
      $region18: #{_lambda_.9} parent=11 // pred_check_branch
        %211 = sbr.rel (%p209) target = $region20
      $region19: #{_lambda_.9} parent=11 // pred_region
        _
      $region20: #{_lambda_.9} parent=11 // pred_fallthru
        _
      // Predicated region
      $region21: #{_lambda_.9} parent=11 // pred_check
        %p212 = pneg %p102
      $region22: #{_lambda_.9} parent=11 // pred_check_branch
        %214 = sbr.rel (%p212) target = $region24
      $region23: #{_lambda_.9} parent=11 // pred_region
        _
      $region24: #{_lambda_.9} parent=11 // pred_fallthru
        _
      // Predicated region
      $region25: #{_lambda_.9} parent=11 // pred_check
        %p215 = pneg %p123
      $region26: #{_lambda_.9} parent=11 // pred_check_branch
        %217 = sbr.rel (%p215) target = $region28
      $region27: #{_lambda_.9} parent=11 // pred_region
        _
      $region28: #{_lambda_.9} parent=11 // pred_fallthru
        _
      // Predicated region
      $region29: #{_lambda_.9} parent=11 // pred_check
        %p218 = pneg %p144
      $region30: #{_lambda_.9} parent=11 // pred_check_branch
        %220 = sbr.rel (%p218) target = $region32
      $region31: #{_lambda_.9} parent=11 // pred_region
        _
      $region32: #{_lambda_.9} parent=11 // pred_fallthru
        _
      // Predicated region
      $region33: #{_lambda_.9} parent=11 // pred_check
        %p221 = pneg %p165
      $region34: #{_lambda_.9} parent=11 // pred_check_branch
        %223 = sbr.rel (%p221) target = $region36
      $region35: #{_lambda_.9} parent=11 // pred_region
        _
      $region36: #{_lambda_.9} parent=11 // pred_fallthru
        _
    $region12: #{_lambda_.9} parent=5 // pred_fallthru
      _
    %p224 = scmp.lt.s32.totalorder %s13, 2
    // Predicated region
    $region37: #{_lambda_.9} parent=5 // pred_check
      %p225 = pneg %p224
    $region38: #{_lambda_.9} parent=5 // pred_check_branch
      %227 = sbr.rel (%p225) target = $region40
    $region39: #{_lambda_.9} parent=5 // pred_region
      // Predicated region
      $region41: #{_lambda_.9} parent=39 // pred_check
        %p228 = pneg %p33
      $region42: #{_lambda_.9} parent=39 // pred_check_branch
        %230 = sbr.rel (%p228) target = $region44
      $region43: #{_lambda_.9} parent=39 // pred_region
        %p231 = scmp.lt.s32.totalorder %s13, 1
        %s232 = scalar_select %p231, %s13, 1
        %s233 = smul.addr %s232, 8
        %s234 = smul.addr %s233, 4
        %s235 = scalar_lea.vmem %s0, %s234
      $region44: #{_lambda_.9} parent=39 // pred_fallthru
        _
    $region40: #{_lambda_.9} parent=5 // pred_fallthru
      _
    %p236 = scmp.le.s32.totalorder 1, %s13
    %p237 = scmp.lt.s32.totalorder %s13, 3
    %p238 = pnand %p236, %p237
    %p239 = pneg %p238
    // Predicated region
    $region45: #{_lambda_.9} parent=5 // pred_check
      _
    $region46: #{_lambda_.9} parent=5 // pred_check_branch
      %241 = sbr.rel (%p238) target = $region48
    $region47: #{_lambda_.9} parent=5 // pred_region
      %s242 = ssub.s32 %s13, 1
      %p243 = scmp.lt.s32.totalorder %s18, 1
      %s244 = scalar_select %p243, %s18, 1
      %s245 = smul.addr %s244, 8
      %s246 = smul.addr %s245, 4
      %s247 = scalar_lea.vmem %s0, %s246
      %p248 = pneg %p39
      %p249 = pneg %p36
      %p250 = pneg %p60
      %p251 = pneg %p57
      %p252 = pneg %p81
      %p253 = pneg %p78
      %p254 = pneg %p102
      %p255 = pneg %p99
      %p256 = pneg %p123
      %p257 = pneg %p120
      %p258 = pneg %p144
      %p259 = pneg %p141
      %p260 = pneg %p165
      %p261 = pneg %p162
      %p262 = pneg %p191
      %p263 = pneg %p188
      %p264 = scmp.lt.s32.totalorder %s18, 1
      %s265 = scalar_select %p264, %s18, 1
      %s266 = smul.addr %s265, 4
      %s267 = smul.addr %s266, 2
      %s268 = scalar_lea.vmem %s7, %s267
      %p269 = scmp.lt.s32.totalorder %s18, 1
      %s270 = scalar_select %p269, %s18, 1
      %s271 = smul.addr %s270, 8
      %s272 = smul.addr %s271, 4
      %s273 = scalar_lea.vmem %s0, %s272
      %p274 = scmp.lt.s32.totalorder %s18, 1
      %s275 = scalar_select %p274, %s18, 1
      %s276 = smul.addr %s275, 4
      %s277 = smul.addr %s276, 2
      %s278 = scalar_lea.vmem %s7, %s277
      %v280 = vld [vmem:[%s273] sm:$0xf]
      %v281 = vld [vmem:[%s273 + $0x4] sm:$0xf]
      %v282 = vld [vmem:[%s273 + $0x8] sm:$0xf]
      %v283 = vld [vmem:[%s273 + $0xc] sm:$0xf]
      %v284 = vld [vmem:[%s273 + $0x10] sm:$0xf]
      %v285 = vld [vmem:[%s273 + $0x14] sm:$0xf]
      %v286 = vld [vmem:[%s273 + $0x18] sm:$0xf]
      %v287 = vld [vmem:[%s273 + $0x1c] sm:$0xf]
      %v288 = vld [vmem:[%s1] sm:$0xf]
      %v289 = vld [vmem:[%s1 + $0x4] sm:$0xf]
      %v290 = vld [vmem:[%s1 + $0x8] sm:$0xf]
      %v291 = vld [vmem:[%s1 + $0xc] sm:$0xf]
      %v292 = vld [vmem:[%s1 + $0x10] sm:$0xf]
      %v293 = vld [vmem:[%s1 + $0x14] sm:$0xf]
      %v294 = vld [vmem:[%s1 + $0x18] sm:$0xf]
      %v295 = vld [vmem:[%s1 + $0x1c] sm:$0xf]
      %v296 = vld [vmem:[%s1 + $0x20] sm:$0xf]
      %v297 = vld [vmem:[%s1 + $0x24] sm:$0xf]
      %v298 = vld [vmem:[%s1 + $0x28] sm:$0xf]
      %v299 = vld [vmem:[%s1 + $0x2c] sm:$0xf]
      %v300 = vld [vmem:[%s1 + $0x30] sm:$0xf]
      %v301 = vld [vmem:[%s1 + $0x34] sm:$0xf]
      %v302 = vld [vmem:[%s1 + $0x38] sm:$0xf]
      %v303 = vld [vmem:[%s1 + $0x3c] sm:$0xf]
      %v304 = vld [vmem:[%s2] sm:$0x1]
      %v306 = vlaneseq
      %v307 = vshrl.u32 %v306, 7
      %v308 = vsub.s32 0, %v307
      %v309 = vrot.slane %v304, %v308
      %v319 = vunpack.c.l.b16 %v280
      %v320 = vunpack.c.l.b16 %v281
      %v321 = vunpack.c.l.b16 %v282
      %v322 = vunpack.c.l.b16 %v283
      %v323 = vunpack.c.l.b16 %v284
      %v324 = vunpack.c.l.b16 %v285
      %v325 = vunpack.c.l.b16 %v286
      %v326 = vunpack.c.l.b16 %v287
      %v327 = vpack.c.b16 %v320, %v319
      %v328 = vpack.c.b16 %v322, %v321
      %v329 = vpack.c.b16 %v324, %v323
      %v330 = vpack.c.b16 %v326, %v325
      %v351 = vunpack.c.l.b16 %v288
      %v352 = vunpack.c.l.b16 %v289
      %v353 = vunpack.c.l.b16 %v290
      %v354 = vunpack.c.l.b16 %v291
      %v355 = vunpack.c.l.b16 %v292
      %v356 = vunpack.c.l.b16 %v293
      %v357 = vunpack.c.l.b16 %v294
      %v358 = vunpack.c.l.b16 %v295
      %v359 = vunpack.c.l.b16 %v296
      %v360 = vunpack.c.l.b16 %v297
      %v361 = vunpack.c.l.b16 %v298
      %v362 = vunpack.c.l.b16 %v299
      %v363 = vunpack.c.l.b16 %v300
      %v364 = vunpack.c.l.b16 %v301
      %v365 = vunpack.c.l.b16 %v302
      %v366 = vunpack.c.l.b16 %v303
      %v367 = vpack.c.b16 %v352, %v351
      %v368 = vpack.c.b16 %v354, %v353
      %v369 = vpack.c.b16 %v356, %v355
      %v370 = vpack.c.b16 %v358, %v357
      %v371 = vpack.c.b16 %v360, %v359
      %v372 = vpack.c.b16 %v362, %v361
      %v373 = vpack.c.b16 %v364, %v363
      %v374 = vpack.c.b16 %v366, %v365
      %383 = vmatprep.subr.bf16.mxu0 0
      %384 = vmatpush1.bf16.msra.mxu0 %v367
      %385 = vmatprep.subr.bf16.mxu0 0
      %386 = vmatpush1.bf16.msra.mxu0 %v368
      %387 = vmatprep.subr.bf16.mxu0 0
      %388 = vmatpush1.bf16.msra.mxu0 %v369
      %389 = vmatprep.subr.bf16.mxu0 0
      %390 = vmatpush1.bf16.msra.mxu0 %v370
      %391 = vmatprep.subr.bf16.mxu0 0
      %392 = vmatpush1.bf16.msra.mxu0 %v371
      %393 = vmatprep.subr.bf16.mxu0 0
      %394 = vmatpush1.bf16.msra.mxu0 %v372
      %395 = vmatprep.subr.bf16.mxu0 0
      %396 = vmatpush1.bf16.msra.mxu0 %v373
      %397 = vmatprep.subr.bf16.mxu0 0
      %398 = vmatpush1.bf16.msra.mxu0 %v374
      %399 = vmatprep.subr.bf16.mxu0 0
      %400 = vmatpush1.bf16.msra.mxu0 0
      %401 = vmatprep.subr.bf16.mxu0 0
      %402 = vmatpush1.bf16.msra.mxu0 0
      %403 = vmatprep.subr.bf16.mxu0 0
      %404 = vmatpush1.bf16.msra.mxu0 0
      %405 = vmatprep.subr.bf16.mxu0 0
      %406 = vmatpush1.bf16.msra.mxu0 0
      %407 = vmatprep.subr.bf16.mxu0 0
      %408 = vmatpush1.bf16.msra.mxu0 0
      %409 = vmatprep.subr.bf16.mxu0 0
      %410 = vmatpush1.bf16.msra.mxu0 0
      %411 = vmatprep.subr.bf16.mxu0 0
      %412 = vmatpush1.bf16.msra.mxu0 0
      %413 = vmatprep.subr.bf16.mxu0 0
      %414 = vmatpush1.bf16.msra.mxu0 0
      %415 = vmatprep.mubr.bf16.mxu0 0
      %416 = vmatmul.mubr.bf16.gmra.mrb[0].mxu0 %v327
      %v417 = vpop.f32.mrb[0].mxu0
      %v418 = vadd.f32 %v309, %v417
      %v419 = vpop.f32.mrb[0].mxu0
      %v420 = vpop.f32.mrb[0].mxu0
      %v421 = vadd.f32 %v309, %v420
      %v422 = vpop.f32.mrb[0].mxu0
      %423 = vmatprep.mubr.bf16.mxu0 0
      %424 = vmatmul.mubr.bf16.gmra.mrb[0].mxu0 %v328
      %v425 = vpop.f32.mrb[0].mxu0
      %v426 = vadd.f32 %v309, %v425
      %v427 = vpop.f32.mrb[0].mxu0
      %v428 = vpop.f32.mrb[0].mxu0
      %v429 = vadd.f32 %v309, %v428
      %v430 = vpop.f32.mrb[0].mxu0
      %431 = vmatprep.mubr.bf16.mxu0 0
      %432 = vmatmul.mubr.bf16.gmra.mrb[0].mxu0 %v329
      %v433 = vpop.f32.mrb[0].mxu0
      %v434 = vadd.f32 %v309, %v433
      %v435 = vpop.f32.mrb[0].mxu0
      %v436 = vpop.f32.mrb[0].mxu0
      %v437 = vadd.f32 %v309, %v436
      %v438 = vpop.f32.mrb[0].mxu0
      %439 = vmatprep.mubr.bf16.mxu0 0
      %440 = vmatmul.mubr.bf16.gmra.mrb[0].mxu0 %v330
      %v441 = vpop.f32.mrb[0].mxu0
      %v442 = vadd.f32 %v309, %v441
      %v443 = vpop.f32.mrb[0].mxu0
      %v444 = vpop.f32.mrb[0].mxu0
      %v445 = vadd.f32 %v309, %v444
      %v446 = vpop.f32.mrb[0].mxu0
      %447 = vdwg.mxu0
      %v448 = vmax.f32 %v418, 0.0
      %v449 = vmax.f32 %v421, 0.0
      %v450 = vmax.f32 %v426, 0.0
      %v451 = vmax.f32 %v429, 0.0
      %v452 = vmax.f32 %v434, 0.0
      %v453 = vmax.f32 %v437, 0.0
      %v454 = vmax.f32 %v442, 0.0
      %v455 = vmax.f32 %v445, 0.0
      %v456 = vmin.f32 %v448, 6.0
      %v457 = vmin.f32 %v449, 6.0
      %v458 = vmin.f32 %v450, 6.0
      %v459 = vmin.f32 %v451, 6.0
      %v460 = vmin.f32 %v452, 6.0
      %v461 = vmin.f32 %v453, 6.0
      %v462 = vmin.f32 %v454, 6.0
      %v463 = vmin.f32 %v455, 6.0
      %464 = vst [vmem:[#allocation2] sm:$0xf] 0
      %465 = vst [vmem:[#allocation2 + $0x4] sm:$0x1] 0
      %466 = vst [vmem:[#allocation2 + $0x8] sm:$0xf] 0
      %467 = vst [vmem:[#allocation2 + $0xc] sm:$0x1] 0
      %468 = vst [vmem:[#allocation2 + $0x10] sm:$0xf] 0
      %469 = vst [vmem:[#allocation2 + $0x14] sm:$0x1] 0
      %470 = vst [vmem:[#allocation2 + $0x18] sm:$0xf] 0
      %471 = vst [vmem:[#allocation2 + $0x1c] sm:$0x1] 0
      %472 = vst [vmem:[#allocation2 + $0x20] sm:$0xf] 0
      %473 = vst [vmem:[#allocation2 + $0x24] sm:$0x1] 0
      %474 = vst [vmem:[#allocation2 + $0x28] sm:$0xf] 0
      %475 = vst [vmem:[#allocation2 + $0x2c] sm:$0x1] 0
      %476 = vst [vmem:[#allocation2 + $0x30] sm:$0xf] 0
      %477 = vst [vmem:[#allocation2 + $0x34] sm:$0x1] 0
      %478 = vst [vmem:[#allocation2 + $0x38] sm:$0xf] 0
      %479 = vst [vmem:[#allocation2 + $0x3c] sm:$0x1] 0
      %480 = vst [vmem:[#allocation2 + $0x40] sm:$0xf] 0
      %481 = vst [vmem:[#allocation2 + $0x44] sm:$0x1] 0
      %482 = vst [vmem:[#allocation2 + $0x48] sm:$0xf] 0
      %483 = vst [vmem:[#allocation2 + $0x4c] sm:$0x1] 0
      %v484 = vpack.c.bf16 %v456, %v456
      %v485 = vpack.c.bf16 %v457, %v457
      %v486 = vpack.c.bf16 %v458, %v458
      %v487 = vpack.c.bf16 %v459, %v459
      %v488 = vpack.c.bf16 %v460, %v460
      %v489 = vpack.c.bf16 %v461, %v461
      %v490 = vpack.c.bf16 %v462, %v462
      %v491 = vpack.c.bf16 %v463, %v463
      %v500 = vunpack.c.l.b16 %v484
      %v501 = vunpack.c.l.b16 %v485
      %v502 = vunpack.c.l.b16 %v486
      %v503 = vunpack.c.l.b16 %v487
      %v504 = vunpack.c.l.b16 %v488
      %v505 = vunpack.c.l.b16 %v489
      %v506 = vunpack.c.l.b16 %v490
      %v507 = vunpack.c.l.b16 %v491
      %v508 = vpack.c.b16 %v500, %v500
      %v509 = vpack.c.b16 %v501, %v501
      %v510 = vpack.c.b16 %v502, %v502
      %v511 = vpack.c.b16 %v503, %v503
      %v512 = vpack.c.b16 %v504, %v504
      %v513 = vpack.c.b16 %v505, %v505
      %v514 = vpack.c.b16 %v506, %v506
      %v515 = vpack.c.b16 %v507, %v507
      %v517 = vshrl.u32 %v508, 16
      %v519 = vrot.slane %v517, 7
      %v520 = vshll.u32 %v508, 16
      %v522 = vor.u32 %v519, %v520
      %v523 = vrot.slane %v519, 4
      %v525 = vshrl.u32 %v509, 16
      %v527 = vrot.slane %v525, 7
      %v528 = vshll.u32 %v509, 16
      %v530 = vor.u32 %v527, %v528
      %v531 = vrot.slane %v527, 4
      %v533 = vshrl.u32 %v510, 16
      %v535 = vrot.slane %v533, 7
      %v536 = vshll.u32 %v510, 16
      %v538 = vor.u32 %v535, %v536
      %v539 = vrot.slane %v535, 4
      %v541 = vshrl.u32 %v511, 16
      %v543 = vrot.slane %v541, 7
      %v544 = vshll.u32 %v511, 16
      %v546 = vor.u32 %v543, %v544
      %v547 = vrot.slane %v543, 4
      %v549 = vshrl.u32 %v512, 16
      %v551 = vrot.slane %v549, 7
      %v552 = vshll.u32 %v512, 16
      %v554 = vor.u32 %v551, %v552
      %v555 = vrot.slane %v551, 4
      %v557 = vshrl.u32 %v513, 16
      %v559 = vrot.slane %v557, 7
      %v560 = vshll.u32 %v513, 16
      %v562 = vor.u32 %v559, %v560
      %v563 = vrot.slane %v559, 4
      %v565 = vshrl.u32 %v514, 16
      %v567 = vrot.slane %v565, 7
      %v568 = vshll.u32 %v514, 16
      %v570 = vor.u32 %v567, %v568
      %v571 = vrot.slane %v567, 4
      %v573 = vshrl.u32 %v515, 16
      %v575 = vrot.slane %v573, 7
      %v576 = vshll.u32 %v515, 16
      %v578 = vor.u32 %v575, %v576
      %v579 = vrot.slane %v575, 4
      %s596 = scalar_lea.vmem [#allocation2], 8
      %vm597 = vcmask 1043456
      %vm598 = vsmask.f32 7938
      %vm599 = vmand %vm597, %vm598
      %v600 = vld [vmem:[%s596] sm:$0xf]
      %v601 = vsel %vm599, %v522, %v600
      %602 = vst [vmem:[%s596] sm:$0xf] %v601
      %vm603 = vcmask 1040384
      %vm604 = vsmask.f32 256
      %vm605 = vmand %vm603, %vm604
      %v606 = vld [vmem:[%s596 + $0x4] sm:$0x1]
      %v607 = vsel %vm605, %v523, %v606
      %608 = vst [vmem:[%s596 + $0x4] sm:$0x1] %v607
      %v609 = vld [vmem:[%s596 + $0x8] sm:$0xf]
      %v610 = vsel %vm599, %v530, %v609
      %611 = vst [vmem:[%s596 + $0x8] sm:$0xf] %v610
      %v612 = vld [vmem:[%s596 + $0xc] sm:$0x1]
      %v613 = vsel %vm605, %v531, %v612
      %614 = vst [vmem:[%s596 + $0xc] sm:$0x1] %v613
      %v615 = vld [vmem:[%s596 + $0x10] sm:$0xf]
      %v616 = vsel %vm599, %v538, %v615
      %617 = vst [vmem:[%s596 + $0x10] sm:$0xf] %v616
      %v618 = vld [vmem:[%s596 + $0x14] sm:$0x1]
      %v619 = vsel %vm605, %v539, %v618
      %620 = vst [vmem:[%s596 + $0x14] sm:$0x1] %v619
      %v621 = vld [vmem:[%s596 + $0x18] sm:$0xf]
      %v622 = vsel %vm599, %v546, %v621
      %623 = vst [vmem:[%s596 + $0x18] sm:$0xf] %v622
      %v624 = vld [vmem:[%s596 + $0x1c] sm:$0x1]
      %v625 = vsel %vm605, %v547, %v624
      %626 = vst [vmem:[%s596 + $0x1c] sm:$0x1] %v625
      %v627 = vld [vmem:[%s596 + $0x20] sm:$0xf]
      %v628 = vsel %vm599, %v554, %v627
      %629 = vst [vmem:[%s596 + $0x20] sm:$0xf] %v628
      %v630 = vld [vmem:[%s596 + $0x24] sm:$0x1]
      %v631 = vsel %vm605, %v555, %v630
      %632 = vst [vmem:[%s596 + $0x24] sm:$0x1] %v631
      %v633 = vld [vmem:[%s596 + $0x28] sm:$0xf]
      %v634 = vsel %vm599, %v562, %v633
      %635 = vst [vmem:[%s596 + $0x28] sm:$0xf] %v634
      %v636 = vld [vmem:[%s596 + $0x2c] sm:$0x1]
      %v637 = vsel %vm605, %v563, %v636
      %638 = vst [vmem:[%s596 + $0x2c] sm:$0x1] %v637
      %v639 = vld [vmem:[%s596 + $0x30] sm:$0xf]
      %v640 = vsel %vm599, %v570, %v639
      %641 = vst [vmem:[%s596 + $0x30] sm:$0xf] %v640
      %v642 = vld [vmem:[%s596 + $0x34] sm:$0x1]
      %v643 = vsel %vm605, %v571, %v642
      %644 = vst [vmem:[%s596 + $0x34] sm:$0x1] %v643
      %v645 = vld [vmem:[%s596 + $0x38] sm:$0xf]
      %v646 = vsel %vm599, %v578, %v645
      %647 = vst [vmem:[%s596 + $0x38] sm:$0xf] %v646
      %v648 = vld [vmem:[%s596 + $0x3c] sm:$0x1]
      %v649 = vsel %vm605, %v579, %v648
      %650 = vst [vmem:[%s596 + $0x3c] sm:$0x1] %v649
      %v651 = vld [vmem:[%s3] sm:$0xff]
      %v652 = vld [vmem:[%s3 + $0x8] sm:$0x1]
      %v653 = vld [vmem:[#allocation2] sm:$0xf]
      %v654 = vld [vmem:[#allocation2 + $0x10] sm:$0xf]
      %v655 = vld [vmem:[#allocation2 + $0x20] sm:$0xf]
      %v656 = vld [vmem:[#allocation2 + $0x30] sm:$0xf]
      %v657 = vunpack.c.l.bf16 %v653
      %v658 = vunpack.c.l.bf16 %v654
      %v659 = vunpack.c.l.bf16 %v655
      %v660 = vunpack.c.l.bf16 %v656
      %v661 = vlaneseq
      %v662 = vshrl.u32 %v661, 7
      %v663 = vsub.s32 0, %v662
      %v664 = vrot.slane %v651, %v663
      %v665 = vmul.f32 %v657, %v664
      %v666 = vmul.f32 %v658, %v664
      %v667 = vmul.f32 %v659, %v664
      %v668 = vmul.f32 %v660, %v664
      %v669 = vld [vmem:[#allocation2 + $0x4] sm:$0x1]
      %v670 = vld [vmem:[#allocation2 + $0x14] sm:$0x1]
      %v671 = vld [vmem:[#allocation2 + $0x24] sm:$0x1]
      %v672 = vld [vmem:[#allocation2 + $0x34] sm:$0x1]
      %v673 = vunpack.c.l.bf16 %v669
      %v674 = vunpack.c.l.bf16 %v670
      %v675 = vunpack.c.l.bf16 %v671
      %v676 = vunpack.c.l.bf16 %v672
      %v677 = vlaneseq
      %v678 = vshrl.u32 %v677, 7
      %v679 = vsub.s32 1, %v678
      %v680 = vrot.slane %v651, %v679
      %v681 = vmul.f32 %v657, %v680
      %v682 = vmul.f32 %v673, %v680
      %v683 = vmul.f32 %v658, %v680
      %v684 = vmul.f32 %v674, %v680
      %v685 = vmul.f32 %v659, %v680
      %v686 = vmul.f32 %v675, %v680
      %v687 = vmul.f32 %v660, %v680
      %v688 = vmul.f32 %v676, %v680
      %vm697 = vcmask 1046528
      %v698 = vrot.slane %v681, 1
      %v699 = vrot.slane %v682, 1
      %v700 = vsel %vm697, %v698, %v699
      %v701 = vrot.slane %v683, 1
      %v702 = vrot.slane %v684, 1
      %v703 = vsel %vm697, %v701, %v702
      %v704 = vrot.slane %v685, 1
      %v705 = vrot.slane %v686, 1
      %v706 = vsel %vm697, %v704, %v705
      %v707 = vrot.slane %v687, 1
      %v708 = vrot.slane %v688, 1
      %v709 = vsel %vm697, %v707, %v708
      %v714 = vadd.f32 %v665, %v700
      %v715 = vadd.f32 %v666, %v703
      %v716 = vadd.f32 %v667, %v706
      %v717 = vadd.f32 %v668, %v709
      %v718 = vld [vmem:[#allocation2] sm:$0xe]
      %v719 = vld [vmem:[#allocation2 + $0x10] sm:$0xe]
      %v720 = vld [vmem:[#allocation2 + $0x20] sm:$0xe]
      %v721 = vld [vmem:[#allocation2 + $0x30] sm:$0xe]
      %v722 = vunpack.c.l.bf16 %v718
      %v723 = vunpack.c.l.bf16 %v719
      %v724 = vunpack.c.l.bf16 %v720
      %v725 = vunpack.c.l.bf16 %v721
      %v726 = vlaneseq
      %v727 = vshrl.u32 %v726, 7
      %v728 = vsub.s32 2, %v727
      %v729 = vrot.slane %v651, %v728
      %v730 = vmul.f32 %v722, %v729
      %v731 = vmul.f32 %v673, %v729
      %v732 = vmul.f32 %v723, %v729
      %v733 = vmul.f32 %v674, %v729
      %v734 = vmul.f32 %v724, %v729
      %v735 = vmul.f32 %v675, %v729
      %v736 = vmul.f32 %v725, %v729
      %v737 = vmul.f32 %v676, %v729
      %vm746 = vcmask 1045504
      %v747 = vrot.slane %v730, 2
      %v748 = vrot.slane %v731, 2
      %v749 = vsel %vm746, %v747, %v748
      %v750 = vrot.slane %v732, 2
      %v751 = vrot.slane %v733, 2
      %v752 = vsel %vm746, %v750, %v751
      %v753 = vrot.slane %v734, 2
      %v754 = vrot.slane %v735, 2
      %v755 = vsel %vm746, %v753, %v754
      %v756 = vrot.slane %v736, 2
      %v757 = vrot.slane %v737, 2
      %v758 = vsel %vm746, %v756, %v757
      %v763 = vadd.f32 %v714, %v749
      %v764 = vadd.f32 %v715, %v752
      %v765 = vadd.f32 %v716, %v755
      %v766 = vadd.f32 %v717, %v758
      %v767 = vld [vmem:[%s596] sm:$0xf]
      %v768 = vld [vmem:[%s596 + $0x10] sm:$0xf]
      %v769 = vld [vmem:[%s596 + $0x20] sm:$0xf]
      %v770 = vld [vmem:[%s596 + $0x30] sm:$0xf]
      %v771 = vunpack.c.l.bf16 %v767
      %v772 = vunpack.c.l.bf16 %v768
      %v773 = vunpack.c.l.bf16 %v769
      %v774 = vunpack.c.l.bf16 %v770
      %v775 = vlaneseq
      %v776 = vshrl.u32 %v775, 7
      %v777 = vsub.s32 3, %v776
      %v778 = vrot.slane %v651, %v777
      %v779 = vmul.f32 %v771, %v778
      %v780 = vmul.f32 %v772, %v778
      %v781 = vmul.f32 %v773, %v778
      %v782 = vmul.f32 %v774, %v778
      %v783 = vadd.f32 %v763, %v779
      %v784 = vadd.f32 %v764, %v780
      %v785 = vadd.f32 %v765, %v781
      %v786 = vadd.f32 %v766, %v782
      %v787 = vld [vmem:[%s596 + $0x4] sm:$0x1]
      %v788 = vld [vmem:[%s596 + $0x14] sm:$0x1]
      %v789 = vld [vmem:[%s596 + $0x24] sm:$0x1]
      %v790 = vld [vmem:[%s596 + $0x34] sm:$0x1]
      %v791 = vunpack.c.l.bf16 %v787
      %v792 = vunpack.c.l.bf16 %v788
      %v793 = vunpack.c.l.bf16 %v789
      %v794 = vunpack.c.l.bf16 %v790
      %v795 = vlaneseq
      %v796 = vshrl.u32 %v795, 7
      %v797 = vsub.s32 4, %v796
      %v798 = vrot.slane %v651, %v797
      %v799 = vmul.f32 %v771, %v798
      %v800 = vmul.f32 %v791, %v798
      %v801 = vmul.f32 %v772, %v798
      %v802 = vmul.f32 %v792, %v798
      %v803 = vmul.f32 %v773, %v798
      %v804 = vmul.f32 %v793, %v798
      %v805 = vmul.f32 %v774, %v798
      %v806 = vmul.f32 %v794, %v798
      %v815 = vrot.slane %v799, 1
      %v816 = vrot.slane %v800, 1
      %v817 = vsel %vm697, %v815, %v816
      %v818 = vrot.slane %v801, 1
      %v819 = vrot.slane %v802, 1
      %v820 = vsel %vm697, %v818, %v819
      %v821 = vrot.slane %v803, 1
      %v822 = vrot.slane %v804, 1
      %v823 = vsel %vm697, %v821, %v822
      %v824 = vrot.slane %v805, 1
      %v825 = vrot.slane %v806, 1
      %v826 = vsel %vm697, %v824, %v825
      %v831 = vadd.f32 %v783, %v817
      %v832 = vadd.f32 %v784, %v820
      %v833 = vadd.f32 %v785, %v823
      %v834 = vadd.f32 %v786, %v826
      %v835 = vld [vmem:[%s596] sm:$0xe]
      %v836 = vld [vmem:[%s596 + $0x10] sm:$0xe]
      %v837 = vld [vmem:[%s596 + $0x20] sm:$0xe]
      %v838 = vld [vmem:[%s596 + $0x30] sm:$0xe]
      %v839 = vunpack.c.l.bf16 %v835
      %v840 = vunpack.c.l.bf16 %v836
      %v841 = vunpack.c.l.bf16 %v837
      %v842 = vunpack.c.l.bf16 %v838
      %v843 = vlaneseq
      %v844 = vshrl.u32 %v843, 7
      %v845 = vsub.s32 5, %v844
      %v846 = vrot.slane %v651, %v845
      %v847 = vmul.f32 %v839, %v846
      %v848 = vmul.f32 %v791, %v846
      %v849 = vmul.f32 %v840, %v846
      %v850 = vmul.f32 %v792, %v846
      %v851 = vmul.f32 %v841, %v846
      %v852 = vmul.f32 %v793, %v846
      %v853 = vmul.f32 %v842, %v846
      %v854 = vmul.f32 %v794, %v846
      %v863 = vrot.slane %v847, 2
      %v864 = vrot.slane %v848, 2
      %v865 = vsel %vm746, %v863, %v864
      %v866 = vrot.slane %v849, 2
      %v867 = vrot.slane %v850, 2
      %v868 = vsel %vm746, %v866, %v867
      %v869 = vrot.slane %v851, 2
      %v870 = vrot.slane %v852, 2
      %v871 = vsel %vm746, %v869, %v870
      %v872 = vrot.slane %v853, 2
      %v873 = vrot.slane %v854, 2
      %v874 = vsel %vm746, %v872, %v873
      %v879 = vadd.f32 %v831, %v865
      %v880 = vadd.f32 %v832, %v868
      %v881 = vadd.f32 %v833, %v871
      %v882 = vadd.f32 %v834, %v874
      %s883 = scalar_lea.vmem [#allocation2], 16
      %v884 = vld [vmem:[%s883] sm:$0xf]
      %v885 = vld [vmem:[%s883 + $0x10] sm:$0xf]
      %v886 = vld [vmem:[%s883 + $0x20] sm:$0xf]
      %v887 = vld [vmem:[%s883 + $0x30] sm:$0xf]
      %v888 = vunpack.c.l.bf16 %v884
      %v889 = vunpack.c.l.bf16 %v885
      %v890 = vunpack.c.l.bf16 %v886
      %v891 = vunpack.c.l.bf16 %v887
      %v892 = vlaneseq
      %v893 = vshrl.u32 %v892, 7
      %v894 = vsub.s32 6, %v893
      %v895 = vrot.slane %v651, %v894
      %v896 = vmul.f32 %v888, %v895
      %v897 = vmul.f32 %v889, %v895
      %v898 = vmul.f32 %v890, %v895
      %v899 = vmul.f32 %v891, %v895
      %v900 = vadd.f32 %v879, %v896
      %v901 = vadd.f32 %v880, %v897
      %v902 = vadd.f32 %v881, %v898
      %v903 = vadd.f32 %v882, %v899
      %v904 = vld [vmem:[%s883 + $0x4] sm:$0x1]
      %v905 = vld [vmem:[%s883 + $0x14] sm:$0x1]
      %v906 = vld [vmem:[%s883 + $0x24] sm:$0x1]
      %v907 = vld [vmem:[%s883 + $0x34] sm:$0x1]
      %v908 = vunpack.c.l.bf16 %v904
      %v909 = vunpack.c.l.bf16 %v905
      %v910 = vunpack.c.l.bf16 %v906
      %v911 = vunpack.c.l.bf16 %v907
      %v912 = vlaneseq
      %v913 = vshrl.u32 %v912, 7
      %v914 = vsub.s32 7, %v913
      %v915 = vrot.slane %v651, %v914
      %v916 = vmul.f32 %v888, %v915
      %v917 = vmul.f32 %v908, %v915
      %v918 = vmul.f32 %v889, %v915
      %v919 = vmul.f32 %v909, %v915
      %v920 = vmul.f32 %v890, %v915
      %v921 = vmul.f32 %v910, %v915
      %v922 = vmul.f32 %v891, %v915
      %v923 = vmul.f32 %v911, %v915
      %v932 = vrot.slane %v916, 1
      %v933 = vrot.slane %v917, 1
      %v934 = vsel %vm697, %v932, %v933
      %v935 = vrot.slane %v918, 1
      %v936 = vrot.slane %v919, 1
      %v937 = vsel %vm697, %v935, %v936
      %v938 = vrot.slane %v920, 1
      %v939 = vrot.slane %v921, 1
      %v940 = vsel %vm697, %v938, %v939
      %v941 = vrot.slane %v922, 1
      %v942 = vrot.slane %v923, 1
      %v943 = vsel %vm697, %v941, %v942
      %v948 = vadd.f32 %v900, %v934
      %v949 = vadd.f32 %v901, %v937
      %v950 = vadd.f32 %v902, %v940
      %v951 = vadd.f32 %v903, %v943
      %v952 = vld [vmem:[%s883] sm:$0xe]
      %v953 = vld [vmem:[%s883 + $0x10] sm:$0xe]
      %v954 = vld [vmem:[%s883 + $0x20] sm:$0xe]
      %v955 = vld [vmem:[%s883 + $0x30] sm:$0xe]
      %v956 = vunpack.c.l.bf16 %v952
      %v957 = vunpack.c.l.bf16 %v953
      %v958 = vunpack.c.l.bf16 %v954
      %v959 = vunpack.c.l.bf16 %v955
      %v960 = vlaneseq
      %v961 = vshrl.u32 %v960, 7
      %v962 = vsub.s32 0, %v961
      %v963 = vrot.slane %v652, %v962
      %v964 = vmul.f32 %v956, %v963
      %v965 = vmul.f32 %v908, %v963
      %v966 = vmul.f32 %v957, %v963
      %v967 = vmul.f32 %v909, %v963
      %v968 = vmul.f32 %v958, %v963
      %v969 = vmul.f32 %v910, %v963
      %v970 = vmul.f32 %v959, %v963
      %v971 = vmul.f32 %v911, %v963
      %v980 = vrot.slane %v964, 2
      %v981 = vrot.slane %v965, 2
      %v982 = vsel %vm746, %v980, %v981
      %v983 = vrot.slane %v966, 2
      %v984 = vrot.slane %v967, 2
      %v985 = vsel %vm746, %v983, %v984
      %v986 = vrot.slane %v968, 2
      %v987 = vrot.slane %v969, 2
      %v988 = vsel %vm746, %v986, %v987
      %v989 = vrot.slane %v970, 2
      %v990 = vrot.slane %v971, 2
      %v991 = vsel %vm746, %v989, %v990
      %v996 = vadd.f32 %v948, %v982
      %v997 = vadd.f32 %v949, %v985
      %v998 = vadd.f32 %v950, %v988
      %v999 = vadd.f32 %v951, %v991
      %v1000 = vld [vmem:[%s4] sm:$0x1]
      %v1002 = vlaneseq
      %v1003 = vshrl.u32 %v1002, 7
      %v1004 = vsub.s32 0, %v1003
      %v1005 = vrot.slane %v1000, %v1004
      %v1007 = vadd.f32 %v996, %v1005
      %v1008 = vadd.f32 %v997, %v1005
      %v1009 = vadd.f32 %v998, %v1005
      %v1010 = vadd.f32 %v999, %v1005
      %v1011 = vmax.f32 %v1007, 0.0
      %v1012 = vmax.f32 %v1008, 0.0
      %v1013 = vmax.f32 %v1009, 0.0
      %v1014 = vmax.f32 %v1010, 0.0
      %v1015 = vmin.f32 %v1011, 6.0
      %v1016 = vmin.f32 %v1012, 6.0
      %v1017 = vmin.f32 %v1013, 6.0
      %v1018 = vmin.f32 %v1014, 6.0
      %v1023 = vcombine.high %v1015, %v1015
      %v1025 = vunpack.c.l.s4 1983009808
      %v1026 = vunpack.c.0.s8 %v1025
      %v1027 = vlaneseq
      %v1028 = vshrl.u32 %v1027, 7
      %v1029 = vsub.s32 %v1026, %v1028
      %v1030 = vrot.slane %v1015, %v1029
      %v1032 = vunpack.c.l.s4 1983009808
      %v1033 = vunpack.c.0.s8 %v1032
      %v1034 = vlaneseq
      %v1035 = vshrl.u32 %v1034, 7
      %v1036 = vsub.s32 %v1033, %v1035
      %v1037 = vrot.slane %v1023, %v1036
      %v1038 = vcombine.high %v1030, %v1030
      %v1039 = vcombine.high %v1037, %v1037
      %v1040 = vcombine.high %v1016, %v1016
      %v1042 = vunpack.c.l.s4 1983009808
      %v1043 = vunpack.c.0.s8 %v1042
      %v1044 = vlaneseq
      %v1045 = vshrl.u32 %v1044, 7
      %v1046 = vsub.s32 %v1043, %v1045
      %v1047 = vrot.slane %v1016, %v1046
      %v1049 = vunpack.c.l.s4 1983009808
      %v1050 = vunpack.c.0.s8 %v1049
      %v1051 = vlaneseq
      %v1052 = vshrl.u32 %v1051, 7
      %v1053 = vsub.s32 %v1050, %v1052
      %v1054 = vrot.slane %v1040, %v1053
      %v1055 = vcombine.high %v1047, %v1047
      %v1056 = vcombine.high %v1054, %v1054
      %v1057 = vcombine.high %v1017, %v1017
      %v1059 = vunpack.c.l.s4 1983009808
      %v1060 = vunpack.c.0.s8 %v1059
      %v1061 = vlaneseq
      %v1062 = vshrl.u32 %v1061, 7
      %v1063 = vsub.s32 %v1060, %v1062
      %v1064 = vrot.slane %v1017, %v1063
      %v1066 = vunpack.c.l.s4 1983009808
      %v1067 = vunpack.c.0.s8 %v1066
      %v1068 = vlaneseq
      %v1069 = vshrl.u32 %v1068, 7
      %v1070 = vsub.s32 %v1067, %v1069
      %v1071 = vrot.slane %v1057, %v1070
      %v1072 = vcombine.high %v1064, %v1064
      %v1073 = vcombine.high %v1071, %v1071
      %v1074 = vcombine.high %v1018, %v1018
      %v1076 = vunpack.c.l.s4 1983009808
      %v1077 = vunpack.c.0.s8 %v1076
      %v1078 = vlaneseq
      %v1079 = vshrl.u32 %v1078, 7
      %v1080 = vsub.s32 %v1077, %v1079
      %v1081 = vrot.slane %v1018, %v1080
      %v1083 = vunpack.c.l.s4 1983009808
      %v1084 = vunpack.c.0.s8 %v1083
      %v1085 = vlaneseq
      %v1086 = vshrl.u32 %v1085, 7
      %v1087 = vsub.s32 %v1084, %v1086
      %v1088 = vrot.slane %v1074, %v1087
      %v1089 = vcombine.high %v1081, %v1081
      %v1090 = vcombine.high %v1088, %v1088
      %v1107 = vpack.c.bf16 %v1030, %v1030
      %v1108 = vpack.c.bf16 %v1038, %v1038
      %v1109 = vpack.c.bf16 %v1037, %v1037
      %v1110 = vpack.c.bf16 %v1039, %v1039
      %v1111 = vpack.c.bf16 %v1047, %v1047
      %v1112 = vpack.c.bf16 %v1055, %v1055
      %v1113 = vpack.c.bf16 %v1054, %v1054
      %v1114 = vpack.c.bf16 %v1056, %v1056
      %v1115 = vpack.c.bf16 %v1064, %v1064
      %v1116 = vpack.c.bf16 %v1072, %v1072
      %v1117 = vpack.c.bf16 %v1071, %v1071
      %v1118 = vpack.c.bf16 %v1073, %v1073
      %v1119 = vpack.c.bf16 %v1081, %v1081
      %v1120 = vpack.c.bf16 %v1089, %v1089
      %v1121 = vpack.c.bf16 %v1088, %v1088
      %v1122 = vpack.c.bf16 %v1090, %v1090
      %v1123 = vld [vmem:[%s5] sm:$0xf]
      %v1124 = vld [vmem:[%s5 + $0x4] sm:$0xf]
      %v1125 = vld [vmem:[%s5 + $0x8] sm:$0xf]
      %v1126 = vld [vmem:[%s5 + $0xc] sm:$0xf]
      %v1127 = vld [vmem:[%s5 + $0x10] sm:$0xf]
      %v1128 = vld [vmem:[%s5 + $0x14] sm:$0xf]
      %v1129 = vld [vmem:[%s5 + $0x18] sm:$0xf]
      %v1130 = vld [vmem:[%s5 + $0x1c] sm:$0xf]
      %v1131 = vld [vmem:[%s5 + $0x20] sm:$0xf]
      %v1132 = vld [vmem:[%s5 + $0x24] sm:$0xf]
      %v1133 = vld [vmem:[%s5 + $0x28] sm:$0xf]
      %v1134 = vld [vmem:[%s5 + $0x2c] sm:$0xf]
      %v1135 = vld [vmem:[%s5 + $0x30] sm:$0xf]
      %v1136 = vld [vmem:[%s5 + $0x34] sm:$0xf]
      %v1137 = vld [vmem:[%s5 + $0x38] sm:$0xf]
      %v1138 = vld [vmem:[%s5 + $0x3c] sm:$0xf]
      %v1139 = vld [vmem:[%s6] sm:$0x1]
      %v1141 = vlaneseq
      %v1142 = vshrl.u32 %v1141, 7
      %v1143 = vsub.s32 0, %v1142
      %v1144 = vrot.slane %v1139, %v1143
      %v1162 = vunpack.c.l.b16 %v1107
      %v1163 = vunpack.c.l.b16 %v1108
      %v1164 = vunpack.c.l.b16 %v1109
      %v1165 = vunpack.c.l.b16 %v1110
      %v1166 = vunpack.c.l.b16 %v1111
      %v1167 = vunpack.c.l.b16 %v1112
      %v1168 = vunpack.c.l.b16 %v1113
      %v1169 = vunpack.c.l.b16 %v1114
      %v1170 = vunpack.c.l.b16 %v1115
      %v1171 = vunpack.c.l.b16 %v1116
      %v1172 = vunpack.c.l.b16 %v1117
      %v1173 = vunpack.c.l.b16 %v1118
      %v1174 = vunpack.c.l.b16 %v1119
      %v1175 = vunpack.c.l.b16 %v1120
      %v1176 = vunpack.c.l.b16 %v1121
      %v1177 = vunpack.c.l.b16 %v1122
      %v1178 = vrot.slane %v1163, 7
      %vm1179 = vcmask 1041409
      %v1180 = vsel %vm1179, %v1178, %v1162
      %v1181 = vrot.slane %v1164, 6
      %vm1182 = vcmask 1042434
      %v1183 = vsel %vm1182, %v1181, %v1180
      %v1184 = vrot.slane %v1165, 5
      %vm1185 = vcmask 1043459
      %v1186 = vsel %vm1185, %v1184, %v1183
      %v1187 = vrot.slane %v1166, 4
      %vm1188 = vcmask 1044484
      %v1189 = vsel %vm1188, %v1187, %v1186
      %v1190 = vrot.slane %v1167, 3
      %vm1191 = vcmask 1045509
      %v1192 = vsel %vm1191, %v1190, %v1189
      %v1193 = vrot.slane %v1168, 2
      %vm1194 = vcmask 1046534
      %v1195 = vsel %vm1194, %v1193, %v1192
      %v1196 = vrot.slane %v1169, 1
      %vm1197 = vcmask 1047559
      %v1198 = vsel %vm1197, %v1196, %v1195
      %v1199 = vrot.slane %v1171, 7
      %v1200 = vsel %vm1179, %v1199, %v1170
      %v1201 = vrot.slane %v1172, 6
      %v1202 = vsel %vm1182, %v1201, %v1200
      %v1203 = vrot.slane %v1173, 5
      %v1204 = vsel %vm1185, %v1203, %v1202
      %v1205 = vrot.slane %v1174, 4
      %v1206 = vsel %vm1188, %v1205, %v1204
      %v1207 = vrot.slane %v1175, 3
      %v1208 = vsel %vm1191, %v1207, %v1206
      %v1209 = vrot.slane %v1176, 2
      %v1210 = vsel %vm1194, %v1209, %v1208
      %v1211 = vrot.slane %v1177, 1
      %v1212 = vsel %vm1197, %v1211, %v1210
      %v1213 = vpack.c.b16 %v1212, %v1198
      %v1231 = vunpack.c.l.b16 %v1123
      %v1232 = vunpack.c.l.b16 %v1124
      %v1233 = vunpack.c.l.b16 %v1125
      %v1234 = vunpack.c.l.b16 %v1126
      %v1235 = vunpack.c.l.b16 %v1127
      %v1236 = vunpack.c.l.b16 %v1128
      %v1237 = vunpack.c.l.b16 %v1129
      %v1238 = vunpack.c.l.b16 %v1130
      %v1239 = vunpack.c.l.b16 %v1131
      %v1240 = vunpack.c.l.b16 %v1132
      %v1241 = vunpack.c.l.b16 %v1133
      %v1242 = vunpack.c.l.b16 %v1134
      %v1243 = vunpack.c.l.b16 %v1135
      %v1244 = vunpack.c.l.b16 %v1136
      %v1245 = vunpack.c.l.b16 %v1137
      %v1246 = vunpack.c.l.b16 %v1138
      %v1247 = vpack.c.b16 %v1232, %v1231
      %v1248 = vpack.c.b16 %v1234, %v1233
      %v1249 = vpack.c.b16 %v1236, %v1235
      %v1250 = vpack.c.b16 %v1238, %v1237
      %v1251 = vpack.c.b16 %v1240, %v1239
      %v1252 = vpack.c.b16 %v1242, %v1241
      %v1253 = vpack.c.b16 %v1244, %v1243
      %v1254 = vpack.c.b16 %v1246, %v1245
      %1263 = vmatprep.subr.bf16.mxu0 0
      %1264 = vmatpush1.bf16.msra.mxu0 %v1247
      %1265 = vmatprep.subr.bf16.mxu0 0
      %1266 = vmatpush1.bf16.msra.mxu0 %v1248
      %1267 = vmatprep.subr.bf16.mxu0 0
      %1268 = vmatpush1.bf16.msra.mxu0 %v1249
      %1269 = vmatprep.subr.bf16.mxu0 0
      %1270 = vmatpush1.bf16.msra.mxu0 %v1250
      %1271 = vmatprep.subr.bf16.mxu0 0
      %1272 = vmatpush1.bf16.msra.mxu0 %v1251
      %1273 = vmatprep.subr.bf16.mxu0 0
      %1274 = vmatpush1.bf16.msra.mxu0 %v1252
      %1275 = vmatprep.subr.bf16.mxu0 0
      %1276 = vmatpush1.bf16.msra.mxu0 %v1253
      %1277 = vmatprep.subr.bf16.mxu0 0
      %1278 = vmatpush1.bf16.msra.mxu0 %v1254
      %1279 = vmatprep.subr.bf16.mxu0 0
      %1280 = vmatpush1.bf16.msra.mxu0 0
      %1281 = vmatprep.subr.bf16.mxu0 0
      %1282 = vmatpush1.bf16.msra.mxu0 0
      %1283 = vmatprep.subr.bf16.mxu0 0
      %1284 = vmatpush1.bf16.msra.mxu0 0
      %1285 = vmatprep.subr.bf16.mxu0 0
      %1286 = vmatpush1.bf16.msra.mxu0 0
      %1287 = vmatprep.subr.bf16.mxu0 0
      %1288 = vmatpush1.bf16.msra.mxu0 0
      %1289 = vmatprep.subr.bf16.mxu0 0
      %1290 = vmatpush1.bf16.msra.mxu0 0
      %1291 = vmatprep.subr.bf16.mxu0 0
      %1292 = vmatpush1.bf16.msra.mxu0 0
      %1293 = vmatprep.subr.bf16.mxu0 0
      %1294 = vmatpush1.bf16.msra.mxu0 0
      %1295 = vmatprep.mubr.bf16.mxu0 0
      %1296 = vmatmul.mubr.bf16.gmra.mrb[0].mxu0 %v1213
      %v1297 = vpop.f32.mrb[0].mxu0
      %v1298 = vadd.f32 %v1144, %v1297
      %v1299 = vpop.f32.mrb[0].mxu0
      %v1300 = vpop.f32.mrb[0].mxu0
      %v1301 = vadd.f32 %v1144, %v1300
      %v1302 = vpop.f32.mrb[0].mxu0
      %1303 = vdwg.mxu0
      %v1306 = vcombine.high %v1298, %v1298
      %v1307 = vcombine.high %v1301, %v1301
      %v1310 = vpack.c.bf16 %v1298, %v1298
      %v1311 = vpack.c.bf16 %v1306, %v1306
      %v1312 = vpack.c.bf16 %v1301, %v1301
      %v1313 = vpack.c.bf16 %v1307, %v1307
      %1314 = vst [vmem:[%s278] sm:$0x3] %v1310
      %1315 = vst [vmem:[%s278 + $0x2] sm:$0x3] %v1311
      %1316 = vst [vmem:[%s278 + $0x4] sm:$0x3] %v1312
      %1317 = vst [vmem:[%s278 + $0x6] sm:$0x3] %v1313
      %p1318 = scmp.lt.s32.totalorder %s18, 1
      %s1319 = scalar_select %p1318, %s18, 1
      %s1320 = smul.addr %s1319, 4
      %s1321 = smul.addr %s1320, 2
      %s1322 = scalar_lea.vmem %s7, %s1321
      // Predicated region
      $region49: #{_lambda_.9} parent=47 // pred_check
        %p1323 = pneg %p188
      $region50: #{_lambda_.9} parent=47 // pred_check_branch
        %1325 = sbr.rel (%p1323) target = $region52
      $region51: #{_lambda_.9} parent=47 // pred_region
        _
      $region52: #{_lambda_.9} parent=47 // pred_fallthru
        _
    $region48: #{_lambda_.9} parent=5 // pred_fallthru
      _
    %p1326 = scmp.le.s32.totalorder 2, %s13
    // Predicated region
    $region53: #{_lambda_.9} parent=5 // pred_check
      %p1327 = pneg %p1326
    $region54: #{_lambda_.9} parent=5 // pred_check_branch
      %1329 = sbr.rel (%p1327) target = $region56
    $region55: #{_lambda_.9} parent=5 // pred_region
      %s1330 = ssub.s32 %s13, 2
      // Predicated region
      $region57: #{_lambda_.9} parent=55 // pred_check
        %p1331 = pneg %p194
      $region58: #{_lambda_.9} parent=55 // pred_check_branch
        %1333 = sbr.rel (%p1331) target = $region60
      $region59: #{_lambda_.9} parent=55 // pred_region
        %p1334 = scmp.lt.s32.totalorder %s19, 1
        %s1335 = scalar_select %p1334, %s19, 1
        %s1336 = smul.addr %s1335, 4
        %s1337 = smul.addr %s1336, 2
        %s1338 = scalar_lea.vmem %s7, %s1337
      $region60: #{_lambda_.9} parent=55 // pred_fallthru
        _
    $region56: #{_lambda_.9} parent=5 // pred_fallthru
      _
  $region6: #{_lambda_.9} parent=0 // loop_footer
    %s17 = sadd.s32 1, %s13
  $region7: #{_lambda_.9} parent=0 // loop_footer_branch
    %12 = sbr.rel target = $region3
  $region8: #{_lambda_.9} parent=0 // loop_exit
    _

// kernel: _lambda_.10
$region0: #{_lambda_.10}
  #allocation0 [shape = 'u32[]', space=smem, size = 0x4, offset = 0x4, fixed_abs, tag = 'smem constant byte address 0x4 - core index']
  #allocation1 [shape = 'u32[144,128]{1,0:T(1,128)}', space=vmem, size = 0x12000, scoped, tag = 'internal scratch']
  #allocation2 [shape = 'bf16[6,6,128]{2,1,0:T(8,128)(2,1)}', space=vmem, size = 0x3000, scoped, tag = 'scratch operand']
  %s0 = inlined_call_operand.vmem [shape: bf16[2,4,4,128], index: 0, kind: input, shape index: {}]
  %s1 = inlined_call_operand.vmem [shape: bf16[128,128], index: 1, kind: input, shape index: {}]
  %s2 = inlined_call_operand.vmem [shape: f32[1,128], index: 2, kind: input, shape index: {}, may-alias: {2,4,6}]
  %s3 = inlined_call_operand.vmem [shape: f32[9,128], index: 3, kind: input, shape index: {}]
  %s4 = inlined_call_operand.vmem [shape: f32[1,128], index: 4, kind: input, shape index: {}, may-alias: {2,4,6}]
  %s5 = inlined_call_operand.vmem [shape: bf16[128,128], index: 5, kind: input, shape index: {}]
  %s6 = inlined_call_operand.vmem [shape: f32[1,128], index: 6, kind: input, shape index: {}, may-alias: {2,4,6}]
  %s7 = inlined_call_operand.vmem [shape: bf16[2,4,4,128], index: 7, kind: output, shape index: {}]
  %s8 = sld [smem:[#allocation0]]
  $region61: #{_lambda_.10} parent=0
    _
  %s10 = ssub.s32 1, %s8
  %s11 = scalar_select 0, %s10, %s8
  loop: start=0, step=1, limit=4
  $region2: #{_lambda_.10} parent=0 // loop_pre_header
    _
  $region3: #{_lambda_.10} parent=0 // loop_header
    %s13 = sphi 0, %s17
    %p14 = scmp.ge.s32.totalorder %s13, 4
    %s23 = sphi 0, %s25
    %s26 = sphi 0, %s23
    %s27 = sphi 0, %s26
    %s43 = sphi 0, %s27
    %s47 = sphi 0, %s47
    %s49 = sphi 0, %s47
    %s50 = sphi 0, %s49
    %s64 = sphi 0, %s50
    %s68 = sphi 0, %s68
    %s70 = sphi 0, %s68
    %s71 = sphi 0, %s70
    %s85 = sphi 0, %s71
    %s89 = sphi 0, %s89
    %s91 = sphi 0, %s89
    %s92 = sphi 0, %s91
    %s106 = sphi 0, %s92
    %s110 = sphi 0, %s110
    %s112 = sphi 0, %s110
    %s113 = sphi 0, %s112
    %s127 = sphi 0, %s113
    %s131 = sphi 0, %s131
    %s133 = sphi 0, %s131
    %s134 = sphi 0, %s133
    %s148 = sphi 0, %s134
    %s152 = sphi 0, %s152
    %s154 = sphi 0, %s152
    %s155 = sphi 0, %s154
    %s169 = sphi 0, %s155
    %s175 = sphi 0, %s177
    %s178 = sphi 0, %s175
    %s179 = sphi 0, %s178
    %s195 = sphi 0, %s179
  $region4: #{_lambda_.10} parent=0 // loop_header_branch
    %16 = sbr.rel (%p14) target = $region8
  $region5: #{_lambda_.10} parent=0 // loop_body
    %s18 = ssub.s32 %s13, 1
    %s19 = ssub.s32 %s13, 2
    %s20 = sadd.s32 %s13, 1
    %s21 = ssub.s32 %s13, %s20
    %p22 = scmp.eq.s32.totalorder %s21, 0
    %s24 = sadd.s32 %s23, 1
    %s25 = scalar_select %p22, %s23, %s24
    %p28 = pneg %p22
    %p29 = scmp.eq.s32.totalorder %s13, 1
    %p30 = por %p28, %p29
    %p31 = scmp.ne.s32.totalorder %s23, %s26
    %p32 = scmp.eq.s32.totalorder %s13, 0
    %p33 = por %p31, %p32
    %p34 = scmp.ne.s32.totalorder %s23, %s26
    %p35 = scmp.eq.s32.totalorder %s18, 1
    %p36 = por %p34, %p35
    %p37 = scmp.ne.s32.totalorder %s26, %s27
    %p38 = scmp.eq.s32.totalorder %s18, 0
    %p39 = por %p37, %p38
    %p40 = scmp.ne.s32.totalorder %s26, %s27
    %p41 = scmp.eq.s32.totalorder %s19, 1
    %p42 = por %p40, %p41
    %p44 = scmp.ne.s32.totalorder %s27, %s43
    %p45 = scmp.eq.s32.totalorder %s19, 0
    %p46 = por %p44, %p45
    %s48 = sadd.s32 %s47, 1
    %p51 = scmp.eq.s32.totalorder %s13, 1
    %p52 = scmp.ne.s32.totalorder %s47, %s49
    %p53 = scmp.eq.s32.totalorder %s13, 0
    %p54 = por %p52, %p53
    %p55 = scmp.ne.s32.totalorder %s47, %s49
    %p56 = scmp.eq.s32.totalorder %s18, 1
    %p57 = por %p55, %p56
    %p58 = scmp.ne.s32.totalorder %s49, %s50
    %p59 = scmp.eq.s32.totalorder %s18, 0
    %p60 = por %p58, %p59
    %p61 = scmp.ne.s32.totalorder %s49, %s50
    %p62 = scmp.eq.s32.totalorder %s19, 1
    %p63 = por %p61, %p62
    %p65 = scmp.ne.s32.totalorder %s50, %s64
    %p66 = scmp.eq.s32.totalorder %s19, 0
    %p67 = por %p65, %p66
    %s69 = sadd.s32 %s68, 1
    %p72 = scmp.eq.s32.totalorder %s13, 1
    %p73 = scmp.ne.s32.totalorder %s68, %s70
    %p74 = scmp.eq.s32.totalorder %s13, 0
    %p75 = por %p73, %p74
    %p76 = scmp.ne.s32.totalorder %s68, %s70
    %p77 = scmp.eq.s32.totalorder %s18, 1
    %p78 = por %p76, %p77
    %p79 = scmp.ne.s32.totalorder %s70, %s71
    %p80 = scmp.eq.s32.totalorder %s18, 0
    %p81 = por %p79, %p80
    %p82 = scmp.ne.s32.totalorder %s70, %s71
    %p83 = scmp.eq.s32.totalorder %s19, 1
    %p84 = por %p82, %p83
    %p86 = scmp.ne.s32.totalorder %s71, %s85
    %p87 = scmp.eq.s32.totalorder %s19, 0
    %p88 = por %p86, %p87
    %s90 = sadd.s32 %s89, 1
    %p93 = scmp.eq.s32.totalorder %s13, 1
    %p94 = scmp.ne.s32.totalorder %s89, %s91
    %p95 = scmp.eq.s32.totalorder %s13, 0
    %p96 = por %p94, %p95
    %p97 = scmp.ne.s32.totalorder %s89, %s91
    %p98 = scmp.eq.s32.totalorder %s18, 1
    %p99 = por %p97, %p98
    %p100 = scmp.ne.s32.totalorder %s91, %s92
    %p101 = scmp.eq.s32.totalorder %s18, 0
    %p102 = por %p100, %p101
    %p103 = scmp.ne.s32.totalorder %s91, %s92
    %p104 = scmp.eq.s32.totalorder %s19, 1
    %p105 = por %p103, %p104
    %p107 = scmp.ne.s32.totalorder %s92, %s106
    %p108 = scmp.eq.s32.totalorder %s19, 0
    %p109 = por %p107, %p108
    %s111 = sadd.s32 %s110, 1
    %p114 = scmp.eq.s32.totalorder %s13, 1
    %p115 = scmp.ne.s32.totalorder %s110, %s112
    %p116 = scmp.eq.s32.totalorder %s13, 0
    %p117 = por %p115, %p116
    %p118 = scmp.ne.s32.totalorder %s110, %s112
    %p119 = scmp.eq.s32.totalorder %s18, 1
    %p120 = por %p118, %p119
    %p121 = scmp.ne.s32.totalorder %s112, %s113
    %p122 = scmp.eq.s32.totalorder %s18, 0
    %p123 = por %p121, %p122
    %p124 = scmp.ne.s32.totalorder %s112, %s113
    %p125 = scmp.eq.s32.totalorder %s19, 1
    %p126 = por %p124, %p125
    %p128 = scmp.ne.s32.totalorder %s113, %s127
    %p129 = scmp.eq.s32.totalorder %s19, 0
    %p130 = por %p128, %p129
    %s132 = sadd.s32 %s131, 1
    %p135 = scmp.eq.s32.totalorder %s13, 1
    %p136 = scmp.ne.s32.totalorder %s131, %s133
    %p137 = scmp.eq.s32.totalorder %s13, 0
    %p138 = por %p136, %p137
    %p139 = scmp.ne.s32.totalorder %s131, %s133
    %p140 = scmp.eq.s32.totalorder %s18, 1
    %p141 = por %p139, %p140
    %p142 = scmp.ne.s32.totalorder %s133, %s134
    %p143 = scmp.eq.s32.totalorder %s18, 0
    %p144 = por %p142, %p143
    %p145 = scmp.ne.s32.totalorder %s133, %s134
    %p146 = scmp.eq.s32.totalorder %s19, 1
    %p147 = por %p145, %p146
    %p149 = scmp.ne.s32.totalorder %s134, %s148
    %p150 = scmp.eq.s32.totalorder %s19, 0
    %p151 = por %p149, %p150
    %s153 = sadd.s32 %s152, 1
    %p156 = scmp.eq.s32.totalorder %s13, 1
    %p157 = scmp.ne.s32.totalorder %s152, %s154
    %p158 = scmp.eq.s32.totalorder %s13, 0
    %p159 = por %p157, %p158
    %p160 = scmp.ne.s32.totalorder %s152, %s154
    %p161 = scmp.eq.s32.totalorder %s18, 1
    %p162 = por %p160, %p161
    %p163 = scmp.ne.s32.totalorder %s154, %s155
    %p164 = scmp.eq.s32.totalorder %s18, 0
    %p165 = por %p163, %p164
    %p166 = scmp.ne.s32.totalorder %s154, %s155
    %p167 = scmp.eq.s32.totalorder %s19, 1
    %p168 = por %p166, %p167
    %p170 = scmp.ne.s32.totalorder %s155, %s169
    %p171 = scmp.eq.s32.totalorder %s19, 0
    %p172 = por %p170, %p171
    %s173 = ssub.s32 %s13, %s20
    %p174 = scmp.eq.s32.totalorder %s173, 0
    %s176 = sadd.s32 %s175, 1
    %s177 = scalar_select %p174, %s175, %s176
    %p180 = pneg %p174
    %p181 = scmp.eq.s32.totalorder %s13, 1
    %p182 = por %p180, %p181
    %p183 = scmp.ne.s32.totalorder %s175, %s178
    %p184 = scmp.eq.s32.totalorder %s13, 0
    %p185 = por %p183, %p184
    %p186 = scmp.ne.s32.totalorder %s175, %s178
    %p187 = scmp.eq.s32.totalorder %s18, 1
    %p188 = por %p186, %p187
    %p189 = scmp.ne.s32.totalorder %s178, %s179
    %p190 = scmp.eq.s32.totalorder %s18, 0
    %p191 = por %p189, %p190
    %p192 = scmp.ne.s32.totalorder %s178, %s179
    %p193 = scmp.eq.s32.totalorder %s19, 1
    %p194 = por %p192, %p193
    %p196 = scmp.ne.s32.totalorder %s179, %s195
    %p197 = scmp.eq.s32.totalorder %s19, 0
    %p198 = por %p196, %p197
    %p199 = scmp.le.s32.totalorder 1, %s13
    %p200 = scmp.lt.s32.totalorder %s13, 3
    %p201 = pnand %p199, %p200
    %p202 = pneg %p201
    // Predicated region
    $region9: #{_lambda_.10} parent=5 // pred_check
      _
    $region10: #{_lambda_.10} parent=5 // pred_check_branch
      %204 = sbr.rel (%p201) target = $region12
    $region11: #{_lambda_.10} parent=5 // pred_region
      %s205 = ssub.s32 %s13, 1
      // Predicated region
      $region13: #{_lambda_.10} parent=11 // pred_check
        %p206 = pneg %p60
      $region14: #{_lambda_.10} parent=11 // pred_check_branch
        %208 = sbr.rel (%p206) target = $region16
      $region15: #{_lambda_.10} parent=11 // pred_region
        _
      $region16: #{_lambda_.10} parent=11 // pred_fallthru
        _
      // Predicated region
      $region17: #{_lambda_.10} parent=11 // pred_check
        %p209 = pneg %p81
      $region18: #{_lambda_.10} parent=11 // pred_check_branch
        %211 = sbr.rel (%p209) target = $region20
      $region19: #{_lambda_.10} parent=11 // pred_region
        _
      $region20: #{_lambda_.10} parent=11 // pred_fallthru
        _
      // Predicated region
      $region21: #{_lambda_.10} parent=11 // pred_check
        %p212 = pneg %p102
      $region22: #{_lambda_.10} parent=11 // pred_check_branch
        %214 = sbr.rel (%p212) target = $region24
      $region23: #{_lambda_.10} parent=11 // pred_region
        _
      $region24: #{_lambda_.10} parent=11 // pred_fallthru
        _
      // Predicated region
      $region25: #{_lambda_.10} parent=11 // pred_check
        %p215 = pneg %p123
      $region26: #{_lambda_.10} parent=11 // pred_check_branch
        %217 = sbr.rel (%p215) target = $region28
      $region27: #{_lambda_.10} parent=11 // pred_region
        _
      $region28: #{_lambda_.10} parent=11 // pred_fallthru
        _
      // Predicated region
      $region29: #{_lambda_.10} parent=11 // pred_check
        %p218 = pneg %p144
      $region30: #{_lambda_.10} parent=11 // pred_check_branch
        %220 = sbr.rel (%p218) target = $region32
      $region31: #{_lambda_.10} parent=11 // pred_region
        _
      $region32: #{_lambda_.10} parent=11 // pred_fallthru
        _
      // Predicated region
      $region33: #{_lambda_.10} parent=11 // pred_check
        %p221 = pneg %p165
      $region34: #{_lambda_.10} parent=11 // pred_check_branch
        %223 = sbr.rel (%p221) target = $region36
      $region35: #{_lambda_.10} parent=11 // pred_region
        _
      $region36: #{_lambda_.10} parent=11 // pred_fallthru
        _
    $region12: #{_lambda_.10} parent=5 // pred_fallthru
      _
    %p224 = scmp.lt.s32.totalorder %s13, 2
    // Predicated region
    $region37: #{_lambda_.10} parent=5 // pred_check
      %p225 = pneg %p224
    $region38: #{_lambda_.10} parent=5 // pred_check_branch
      %227 = sbr.rel (%p225) target = $region40
    $region39: #{_lambda_.10} parent=5 // pred_region
      // Predicated region
      $region41: #{_lambda_.10} parent=39 // pred_check
        %p228 = pneg %p33
      $region42: #{_lambda_.10} parent=39 // pred_check_branch
        %230 = sbr.rel (%p228) target = $region44
      $region43: #{_lambda_.10} parent=39 // pred_region
        %p231 = scmp.lt.s32.totalorder %s13, 1
        %s232 = scalar_select %p231, %s13, 1
        %s233 = smul.addr %s232, 4
        %s234 = smul.addr %s233, 2
        %s235 = scalar_lea.vmem %s0, %s234
      $region44: #{_lambda_.10} parent=39 // pred_fallthru
        _
    $region40: #{_lambda_.10} parent=5 // pred_fallthru
      _
    %p236 = scmp.le.s32.totalorder 1, %s13
    %p237 = scmp.lt.s32.totalorder %s13, 3
    %p238 = pnand %p236, %p237
    %p239 = pneg %p238
    // Predicated region
    $region45: #{_lambda_.10} parent=5 // pred_check
      _
    $region46: #{_lambda_.10} parent=5 // pred_check_branch
      %241 = sbr.rel (%p238) target = $region48
    $region47: #{_lambda_.10} parent=5 // pred_region
      %s242 = ssub.s32 %s13, 1
      %p243 = scmp.lt.s32.totalorder %s18, 1
      %s244 = scalar_select %p243, %s18, 1
      %s245 = smul.addr %s244, 4
      %s246 = smul.addr %s245, 2
      %s247 = scalar_lea.vmem %s0, %s246
      %p248 = pneg %p39
      %p249 = pneg %p36
      %p250 = pneg %p60
      %p251 = pneg %p57
      %p252 = pneg %p81
      %p253 = pneg %p78
      %p254 = pneg %p102
      %p255 = pneg %p99
      %p256 = pneg %p123
      %p257 = pneg %p120
      %p258 = pneg %p144
      %p259 = pneg %p141
      %p260 = pneg %p165
      %p261 = pneg %p162
      %p262 = pneg %p191
      %p263 = pneg %p188
      %p264 = scmp.lt.s32.totalorder %s18, 1
      %s265 = scalar_select %p264, %s18, 1
      %s266 = smul.addr %s265, 4
      %s267 = smul.addr %s266, 2
      %s268 = scalar_lea.vmem %s7, %s267
      %p269 = scmp.lt.s32.totalorder %s18, 1
      %s270 = scalar_select %p269, %s18, 1
      %s271 = smul.addr %s270, 4
      %s272 = smul.addr %s271, 2
      %s273 = scalar_lea.vmem %s0, %s272
      %p274 = scmp.lt.s32.totalorder %s18, 1
      %s275 = scalar_select %p274, %s18, 1
      %s276 = smul.addr %s275, 4
      %s277 = smul.addr %s276, 2
      %s278 = scalar_lea.vmem %s7, %s277
      %v280 = vld [vmem:[%s273] sm:$0x3]
      %v281 = vld [vmem:[%s273 + $0x2] sm:$0x3]
      %v282 = vld [vmem:[%s273 + $0x4] sm:$0x3]
      %v283 = vld [vmem:[%s273 + $0x6] sm:$0x3]
      %v284 = vld [vmem:[%s1] sm:$0xf]
      %v285 = vld [vmem:[%s1 + $0x4] sm:$0xf]
      %v286 = vld [vmem:[%s1 + $0x8] sm:$0xf]
      %v287 = vld [vmem:[%s1 + $0xc] sm:$0xf]
      %v288 = vld [vmem:[%s1 + $0x10] sm:$0xf]
      %v289 = vld [vmem:[%s1 + $0x14] sm:$0xf]
      %v290 = vld [vmem:[%s1 + $0x18] sm:$0xf]
      %v291 = vld [vmem:[%s1 + $0x1c] sm:$0xf]
      %v292 = vld [vmem:[%s1 + $0x20] sm:$0xf]
      %v293 = vld [vmem:[%s1 + $0x24] sm:$0xf]
      %v294 = vld [vmem:[%s1 + $0x28] sm:$0xf]
      %v295 = vld [vmem:[%s1 + $0x2c] sm:$0xf]
      %v296 = vld [vmem:[%s1 + $0x30] sm:$0xf]
      %v297 = vld [vmem:[%s1 + $0x34] sm:$0xf]
      %v298 = vld [vmem:[%s1 + $0x38] sm:$0xf]
      %v299 = vld [vmem:[%s1 + $0x3c] sm:$0xf]
      %v300 = vld [vmem:[%s2] sm:$0x1]
      %v302 = vlaneseq
      %v303 = vshrl.u32 %v302, 7
      %v304 = vsub.s32 0, %v303
      %v305 = vrot.slane %v300, %v304
      %v311 = vcombine.low %v280, %v281
      %v312 = vcombine.low %v282, %v283
      %v314 = vunpack.c.l.s4 1983009808
      %v315 = vunpack.c.0.s8 %v314
      %v316 = vlaneseq
      %v317 = vshrl.u32 %v316, 7
      %v318 = vsub.s32 %v315, %v317
      %v319 = vrot.slane %v311, %v318
      %v321 = vunpack.c.l.s4 1983009808
      %v322 = vunpack.c.0.s8 %v321
      %v323 = vlaneseq
      %v324 = vshrl.u32 %v323, 7
      %v325 = vsub.s32 %v322, %v324
      %v326 = vrot.slane %v312, %v325
      %v327 = vcombine.low %v319, %v326
      %v345 = vunpack.c.l.b16 %v284
      %v346 = vunpack.c.l.b16 %v285
      %v347 = vunpack.c.l.b16 %v286
      %v348 = vunpack.c.l.b16 %v287
      %v349 = vunpack.c.l.b16 %v288
      %v350 = vunpack.c.l.b16 %v289
      %v351 = vunpack.c.l.b16 %v290
      %v352 = vunpack.c.l.b16 %v291
      %v353 = vunpack.c.l.b16 %v292
      %v354 = vunpack.c.l.b16 %v293
      %v355 = vunpack.c.l.b16 %v294
      %v356 = vunpack.c.l.b16 %v295
      %v357 = vunpack.c.l.b16 %v296
      %v358 = vunpack.c.l.b16 %v297
      %v359 = vunpack.c.l.b16 %v298
      %v360 = vunpack.c.l.b16 %v299
      %v361 = vpack.c.b16 %v346, %v345
      %v362 = vpack.c.b16 %v348, %v347
      %v363 = vpack.c.b16 %v350, %v349
      %v364 = vpack.c.b16 %v352, %v351
      %v365 = vpack.c.b16 %v354, %v353
      %v366 = vpack.c.b16 %v356, %v355
      %v367 = vpack.c.b16 %v358, %v357
      %v368 = vpack.c.b16 %v360, %v359
      %377 = vmatprep.subr.bf16.mxu0 0
      %378 = vmatpush1.bf16.msra.mxu0 %v361
      %379 = vmatprep.subr.bf16.mxu0 0
      %380 = vmatpush1.bf16.msra.mxu0 %v362
      %381 = vmatprep.subr.bf16.mxu0 0
      %382 = vmatpush1.bf16.msra.mxu0 %v363
      %383 = vmatprep.subr.bf16.mxu0 0
      %384 = vmatpush1.bf16.msra.mxu0 %v364
      %385 = vmatprep.subr.bf16.mxu0 0
      %386 = vmatpush1.bf16.msra.mxu0 %v365
      %387 = vmatprep.subr.bf16.mxu0 0
      %388 = vmatpush1.bf16.msra.mxu0 %v366
      %389 = vmatprep.subr.bf16.mxu0 0
      %390 = vmatpush1.bf16.msra.mxu0 %v367
      %391 = vmatprep.subr.bf16.mxu0 0
      %392 = vmatpush1.bf16.msra.mxu0 %v368
      %393 = vmatprep.subr.bf16.mxu0 0
      %394 = vmatpush1.bf16.msra.mxu0 0
      %395 = vmatprep.subr.bf16.mxu0 0
      %396 = vmatpush1.bf16.msra.mxu0 0
      %397 = vmatprep.subr.bf16.mxu0 0
      %398 = vmatpush1.bf16.msra.mxu0 0
      %399 = vmatprep.subr.bf16.mxu0 0
      %400 = vmatpush1.bf16.msra.mxu0 0
      %401 = vmatprep.subr.bf16.mxu0 0
      %402 = vmatpush1.bf16.msra.mxu0 0
      %403 = vmatprep.subr.bf16.mxu0 0
      %404 = vmatpush1.bf16.msra.mxu0 0
      %405 = vmatprep.subr.bf16.mxu0 0
      %406 = vmatpush1.bf16.msra.mxu0 0
      %407 = vmatprep.subr.bf16.mxu0 0
      %408 = vmatpush1.bf16.msra.mxu0 0
      %409 = vmatprep.mubr.bf16.mxu0 0
      %410 = vmatmul.mubr.bf16.gmra.mrb[0].mxu0 %v327
      %v411 = vpop.f32.mrb[0].mxu0
      %v412 = vadd.f32 %v305, %v411
      %v413 = vpop.f32.mrb[0].mxu0
      %v414 = vpop.f32.mrb[0].mxu0
      %v415 = vadd.f32 %v305, %v414
      %v416 = vpop.f32.mrb[0].mxu0
      %417 = vdwg.mxu0
      %v418 = vmax.f32 %v412, 0.0
      %v419 = vmax.f32 %v415, 0.0
      %v420 = vmin.f32 %v418, 6.0
      %v421 = vmin.f32 %v419, 6.0
      %422 = vst [vmem:[#allocation2] sm:$0x7] 0
      %423 = vst [vmem:[#allocation2 + $0x4] sm:$0x7] 0
      %424 = vst [vmem:[#allocation2 + $0x8] sm:$0x7] 0
      %425 = vst [vmem:[#allocation2 + $0xc] sm:$0x7] 0
      %426 = vst [vmem:[#allocation2 + $0x10] sm:$0x7] 0
      %427 = vst [vmem:[#allocation2 + $0x14] sm:$0x7] 0
      %v430 = vcombine.high %v420, %v420
      %v431 = vcombine.high %v421, %v421
      %v434 = vpack.c.bf16 %v420, %v420
      %v435 = vpack.c.bf16 %v430, %v430
      %v436 = vpack.c.bf16 %v421, %v421
      %v437 = vpack.c.bf16 %v431, %v431
      %v442 = vunpack.c.l.b16 %v434
      %v443 = vunpack.c.l.b16 %v435
      %v444 = vunpack.c.l.b16 %v436
      %v445 = vunpack.c.l.b16 %v437
      %v446 = vpack.c.b16 %v442, %v442
      %v447 = vpack.c.b16 %v443, %v443
      %v448 = vpack.c.b16 %v444, %v444
      %v449 = vpack.c.b16 %v445, %v445
      %v451 = vshrl.u32 %v446, 16
      %v453 = vrot.slane %v451, 7
      %v454 = vshll.u32 %v446, 16
      %v456 = vor.u32 %v453, %v454
      %v458 = vshrl.u32 %v447, 16
      %v460 = vrot.slane %v458, 7
      %v461 = vshll.u32 %v447, 16
      %v463 = vor.u32 %v460, %v461
      %v465 = vshrl.u32 %v448, 16
      %v467 = vrot.slane %v465, 7
      %v468 = vshll.u32 %v448, 16
      %v470 = vor.u32 %v467, %v468
      %v472 = vshrl.u32 %v449, 16
      %v474 = vrot.slane %v472, 7
      %v475 = vshll.u32 %v449, 16
      %v477 = vor.u32 %v474, %v475
      %s482 = scalar_lea.vmem [#allocation2], 4
      %vm483 = vcmask 1042432
      %vm484 = vsmask.f32 2306
      %vm485 = vmand %vm483, %vm484
      %v486 = vld [vmem:[%s482] sm:$0x7]
      %v487 = vsel %vm485, %v456, %v486
      %488 = vst [vmem:[%s482] sm:$0x7] %v487
      %v489 = vld [vmem:[%s482 + $0x4] sm:$0x7]
      %v490 = vsel %vm485, %v463, %v489
      %491 = vst [vmem:[%s482 + $0x4] sm:$0x7] %v490
      %v492 = vld [vmem:[%s482 + $0x8] sm:$0x7]
      %v493 = vsel %vm485, %v470, %v492
      %494 = vst [vmem:[%s482 + $0x8] sm:$0x7] %v493
      %v495 = vld [vmem:[%s482 + $0xc] sm:$0x7]
      %v496 = vsel %vm485, %v477, %v495
      %497 = vst [vmem:[%s482 + $0xc] sm:$0x7] %v496
      %v498 = vld [vmem:[%s3] sm:$0xff]
      %v499 = vld [vmem:[%s3 + $0x8] sm:$0x1]
      %v500 = vld [vmem:[#allocation2] sm:$0x3]
      %v501 = vld [vmem:[#allocation2 + $0x4] sm:$0x3]
      %v502 = vld [vmem:[#allocation2 + $0x8] sm:$0x3]
      %v503 = vld [vmem:[#allocation2 + $0xc] sm:$0x3]
      %v504 = vunpack.c.l.bf16 %v500
      %v505 = vunpack.c.l.bf16 %v501
      %v506 = vunpack.c.l.bf16 %v502
      %v507 = vunpack.c.l.bf16 %v503
      %v508 = vlaneseq
      %v509 = vshrl.u32 %v508, 7
      %v510 = vsub.s32 0, %v509
      %v511 = vrot.slane %v498, %v510
      %v512 = vmul.f32 %v504, %v511
      %v513 = vmul.f32 %v505, %v511
      %v514 = vmul.f32 %v506, %v511
      %v515 = vmul.f32 %v507, %v511
      %v516 = vld [vmem:[#allocation2] sm:$0x7]
      %v517 = vld [vmem:[#allocation2 + $0x4] sm:$0x7]
      %v518 = vld [vmem:[#allocation2 + $0x8] sm:$0x7]
      %v519 = vld [vmem:[#allocation2 + $0xc] sm:$0x7]
      %v520 = vunpack.c.l.bf16 %v516
      %v521 = vunpack.c.l.bf16 %v517
      %v522 = vunpack.c.l.bf16 %v518
      %v523 = vunpack.c.l.bf16 %v519
      %v524 = vlaneseq
      %v525 = vshrl.u32 %v524, 7
      %v526 = vsub.s32 1, %v525
      %v527 = vrot.slane %v498, %v526
      %v528 = vmul.f32 %v520, %v527
      %v529 = vmul.f32 %v521, %v527
      %v530 = vmul.f32 %v522, %v527
      %v531 = vmul.f32 %v523, %v527
      %v536 = vrot.slane %v528, 1
      %v537 = vrot.slane %v529, 1
      %v538 = vrot.slane %v530, 1
      %v539 = vrot.slane %v531, 1
      %v544 = vadd.f32 %v512, %v536
      %v545 = vadd.f32 %v513, %v537
      %v546 = vadd.f32 %v514, %v538
      %v547 = vadd.f32 %v515, %v539
      %v548 = vld [vmem:[#allocation2] sm:$0x6]
      %v549 = vld [vmem:[#allocation2 + $0x4] sm:$0x6]
      %v550 = vld [vmem:[#allocation2 + $0x8] sm:$0x6]
      %v551 = vld [vmem:[#allocation2 + $0xc] sm:$0x6]
      %v552 = vunpack.c.l.bf16 %v548
      %v553 = vunpack.c.l.bf16 %v549
      %v554 = vunpack.c.l.bf16 %v550
      %v555 = vunpack.c.l.bf16 %v551
      %v556 = vlaneseq
      %v557 = vshrl.u32 %v556, 7
      %v558 = vsub.s32 2, %v557
      %v559 = vrot.slane %v498, %v558
      %v560 = vmul.f32 %v552, %v559
      %v561 = vmul.f32 %v553, %v559
      %v562 = vmul.f32 %v554, %v559
      %v563 = vmul.f32 %v555, %v559
      %v568 = vrot.slane %v560, 2
      %v569 = vrot.slane %v561, 2
      %v570 = vrot.slane %v562, 2
      %v571 = vrot.slane %v563, 2
      %v576 = vadd.f32 %v544, %v568
      %v577 = vadd.f32 %v545, %v569
      %v578 = vadd.f32 %v546, %v570
      %v579 = vadd.f32 %v547, %v571
      %v580 = vld [vmem:[%s482] sm:$0x3]
      %v581 = vld [vmem:[%s482 + $0x4] sm:$0x3]
      %v582 = vld [vmem:[%s482 + $0x8] sm:$0x3]
      %v583 = vld [vmem:[%s482 + $0xc] sm:$0x3]
      %v584 = vunpack.c.l.bf16 %v580
      %v585 = vunpack.c.l.bf16 %v581
      %v586 = vunpack.c.l.bf16 %v582
      %v587 = vunpack.c.l.bf16 %v583
      %v588 = vlaneseq
      %v589 = vshrl.u32 %v588, 7
      %v590 = vsub.s32 3, %v589
      %v591 = vrot.slane %v498, %v590
      %v592 = vmul.f32 %v584, %v591
      %v593 = vmul.f32 %v585, %v591
      %v594 = vmul.f32 %v586, %v591
      %v595 = vmul.f32 %v587, %v591
      %v596 = vadd.f32 %v576, %v592
      %v597 = vadd.f32 %v577, %v593
      %v598 = vadd.f32 %v578, %v594
      %v599 = vadd.f32 %v579, %v595
      %v600 = vld [vmem:[%s482] sm:$0x7]
      %v601 = vld [vmem:[%s482 + $0x4] sm:$0x7]
      %v602 = vld [vmem:[%s482 + $0x8] sm:$0x7]
      %v603 = vld [vmem:[%s482 + $0xc] sm:$0x7]
      %v604 = vunpack.c.l.bf16 %v600
      %v605 = vunpack.c.l.bf16 %v601
      %v606 = vunpack.c.l.bf16 %v602
      %v607 = vunpack.c.l.bf16 %v603
      %v608 = vlaneseq
      %v609 = vshrl.u32 %v608, 7
      %v610 = vsub.s32 4, %v609
      %v611 = vrot.slane %v498, %v610
      %v612 = vmul.f32 %v604, %v611
      %v613 = vmul.f32 %v605, %v611
      %v614 = vmul.f32 %v606, %v611
      %v615 = vmul.f32 %v607, %v611
      %v620 = vrot.slane %v612, 1
      %v621 = vrot.slane %v613, 1
      %v622 = vrot.slane %v614, 1
      %v623 = vrot.slane %v615, 1
      %v628 = vadd.f32 %v596, %v620
      %v629 = vadd.f32 %v597, %v621
      %v630 = vadd.f32 %v598, %v622
      %v631 = vadd.f32 %v599, %v623
      %v632 = vld [vmem:[%s482] sm:$0x6]
      %v633 = vld [vmem:[%s482 + $0x4] sm:$0x6]
      %v634 = vld [vmem:[%s482 + $0x8] sm:$0x6]
      %v635 = vld [vmem:[%s482 + $0xc] sm:$0x6]
      %v636 = vunpack.c.l.bf16 %v632
      %v637 = vunpack.c.l.bf16 %v633
      %v638 = vunpack.c.l.bf16 %v634
      %v639 = vunpack.c.l.bf16 %v635
      %v640 = vlaneseq
      %v641 = vshrl.u32 %v640, 7
      %v642 = vsub.s32 5, %v641
      %v643 = vrot.slane %v498, %v642
      %v644 = vmul.f32 %v636, %v643
      %v645 = vmul.f32 %v637, %v643
      %v646 = vmul.f32 %v638, %v643
      %v647 = vmul.f32 %v639, %v643
      %v652 = vrot.slane %v644, 2
      %v653 = vrot.slane %v645, 2
      %v654 = vrot.slane %v646, 2
      %v655 = vrot.slane %v647, 2
      %v660 = vadd.f32 %v628, %v652
      %v661 = vadd.f32 %v629, %v653
      %v662 = vadd.f32 %v630, %v654
      %v663 = vadd.f32 %v631, %v655
      %s664 = scalar_lea.vmem [#allocation2], 8
      %v665 = vld [vmem:[%s664] sm:$0x3]
      %v666 = vld [vmem:[%s664 + $0x4] sm:$0x3]
      %v667 = vld [vmem:[%s664 + $0x8] sm:$0x3]
      %v668 = vld [vmem:[%s664 + $0xc] sm:$0x3]
      %v669 = vunpack.c.l.bf16 %v665
      %v670 = vunpack.c.l.bf16 %v666
      %v671 = vunpack.c.l.bf16 %v667
      %v672 = vunpack.c.l.bf16 %v668
      %v673 = vlaneseq
      %v674 = vshrl.u32 %v673, 7
      %v675 = vsub.s32 6, %v674
      %v676 = vrot.slane %v498, %v675
      %v677 = vmul.f32 %v669, %v676
      %v678 = vmul.f32 %v670, %v676
      %v679 = vmul.f32 %v671, %v676
      %v680 = vmul.f32 %v672, %v676
      %v681 = vadd.f32 %v660, %v677
      %v682 = vadd.f32 %v661, %v678
      %v683 = vadd.f32 %v662, %v679
      %v684 = vadd.f32 %v663, %v680
      %v685 = vld [vmem:[%s664] sm:$0x7]
      %v686 = vld [vmem:[%s664 + $0x4] sm:$0x7]
      %v687 = vld [vmem:[%s664 + $0x8] sm:$0x7]
      %v688 = vld [vmem:[%s664 + $0xc] sm:$0x7]
      %v689 = vunpack.c.l.bf16 %v685
      %v690 = vunpack.c.l.bf16 %v686
      %v691 = vunpack.c.l.bf16 %v687
      %v692 = vunpack.c.l.bf16 %v688
      %v693 = vlaneseq
      %v694 = vshrl.u32 %v693, 7
      %v695 = vsub.s32 7, %v694
      %v696 = vrot.slane %v498, %v695
      %v697 = vmul.f32 %v689, %v696
      %v698 = vmul.f32 %v690, %v696
      %v699 = vmul.f32 %v691, %v696
      %v700 = vmul.f32 %v692, %v696
      %v705 = vrot.slane %v697, 1
      %v706 = vrot.slane %v698, 1
      %v707 = vrot.slane %v699, 1
      %v708 = vrot.slane %v700, 1
      %v713 = vadd.f32 %v681, %v705
      %v714 = vadd.f32 %v682, %v706
      %v715 = vadd.f32 %v683, %v707
      %v716 = vadd.f32 %v684, %v708
      %v717 = vld [vmem:[%s664] sm:$0x6]
      %v718 = vld [vmem:[%s664 + $0x4] sm:$0x6]
      %v719 = vld [vmem:[%s664 + $0x8] sm:$0x6]
      %v720 = vld [vmem:[%s664 + $0xc] sm:$0x6]
      %v721 = vunpack.c.l.bf16 %v717
      %v722 = vunpack.c.l.bf16 %v718
      %v723 = vunpack.c.l.bf16 %v719
      %v724 = vunpack.c.l.bf16 %v720
      %v725 = vlaneseq
      %v726 = vshrl.u32 %v725, 7
      %v727 = vsub.s32 0, %v726
      %v728 = vrot.slane %v499, %v727
      %v729 = vmul.f32 %v721, %v728
      %v730 = vmul.f32 %v722, %v728
      %v731 = vmul.f32 %v723, %v728
      %v732 = vmul.f32 %v724, %v728
      %v737 = vrot.slane %v729, 2
      %v738 = vrot.slane %v730, 2
      %v739 = vrot.slane %v731, 2
      %v740 = vrot.slane %v732, 2
      %v745 = vadd.f32 %v713, %v737
      %v746 = vadd.f32 %v714, %v738
      %v747 = vadd.f32 %v715, %v739
      %v748 = vadd.f32 %v716, %v740
      %v749 = vld [vmem:[%s4] sm:$0x1]
      %v751 = vlaneseq
      %v752 = vshrl.u32 %v751, 7
      %v753 = vsub.s32 0, %v752
      %v754 = vrot.slane %v749, %v753
      %v756 = vadd.f32 %v745, %v754
      %v757 = vadd.f32 %v746, %v754
      %v758 = vadd.f32 %v747, %v754
      %v759 = vadd.f32 %v748, %v754
      %v760 = vmax.f32 %v756, 0.0
      %v761 = vmax.f32 %v757, 0.0
      %v762 = vmax.f32 %v758, 0.0
      %v763 = vmax.f32 %v759, 0.0
      %v764 = vmin.f32 %v760, 6.0
      %v765 = vmin.f32 %v761, 6.0
      %v766 = vmin.f32 %v762, 6.0
      %v767 = vmin.f32 %v763, 6.0
      %v772 = vcombine.low %v764, %v765
      %v773 = vcombine.low %v766, %v767
      %v776 = vpack.c.bf16 %v773, %v772
      %v777 = vld [vmem:[%s5] sm:$0xf]
      %v778 = vld [vmem:[%s5 + $0x4] sm:$0xf]
      %v779 = vld [vmem:[%s5 + $0x8] sm:$0xf]
      %v780 = vld [vmem:[%s5 + $0xc] sm:$0xf]
      %v781 = vld [vmem:[%s5 + $0x10] sm:$0xf]
      %v782 = vld [vmem:[%s5 + $0x14] sm:$0xf]
      %v783 = vld [vmem:[%s5 + $0x18] sm:$0xf]
      %v784 = vld [vmem:[%s5 + $0x1c] sm:$0xf]
      %v785 = vld [vmem:[%s5 + $0x20] sm:$0xf]
      %v786 = vld [vmem:[%s5 + $0x24] sm:$0xf]
      %v787 = vld [vmem:[%s5 + $0x28] sm:$0xf]
      %v788 = vld [vmem:[%s5 + $0x2c] sm:$0xf]
      %v789 = vld [vmem:[%s5 + $0x30] sm:$0xf]
      %v790 = vld [vmem:[%s5 + $0x34] sm:$0xf]
      %v791 = vld [vmem:[%s5 + $0x38] sm:$0xf]
      %v792 = vld [vmem:[%s5 + $0x3c] sm:$0xf]
      %v793 = vld [vmem:[%s6] sm:$0x1]
      %v795 = vlaneseq
      %v796 = vshrl.u32 %v795, 7
      %v797 = vsub.s32 0, %v796
      %v798 = vrot.slane %v793, %v797
      %v816 = vunpack.c.l.b16 %v777
      %v817 = vunpack.c.l.b16 %v778
      %v818 = vunpack.c.l.b16 %v779
      %v819 = vunpack.c.l.b16 %v780
      %v820 = vunpack.c.l.b16 %v781
      %v821 = vunpack.c.l.b16 %v782
      %v822 = vunpack.c.l.b16 %v783
      %v823 = vunpack.c.l.b16 %v784
      %v824 = vunpack.c.l.b16 %v785
      %v825 = vunpack.c.l.b16 %v786
      %v826 = vunpack.c.l.b16 %v787
      %v827 = vunpack.c.l.b16 %v788
      %v828 = vunpack.c.l.b16 %v789
      %v829 = vunpack.c.l.b16 %v790
      %v830 = vunpack.c.l.b16 %v791
      %v831 = vunpack.c.l.b16 %v792
      %v832 = vpack.c.b16 %v817, %v816
      %v833 = vpack.c.b16 %v819, %v818
      %v834 = vpack.c.b16 %v821, %v820
      %v835 = vpack.c.b16 %v823, %v822
      %v836 = vpack.c.b16 %v825, %v824
      %v837 = vpack.c.b16 %v827, %v826
      %v838 = vpack.c.b16 %v829, %v828
      %v839 = vpack.c.b16 %v831, %v830
      %848 = vmatprep.subr.bf16.mxu0 0
      %849 = vmatpush1.bf16.msra.mxu0 %v832
      %850 = vmatprep.subr.bf16.mxu0 0
      %851 = vmatpush1.bf16.msra.mxu0 %v833
      %852 = vmatprep.subr.bf16.mxu0 0
      %853 = vmatpush1.bf16.msra.mxu0 %v834
      %854 = vmatprep.subr.bf16.mxu0 0
      %855 = vmatpush1.bf16.msra.mxu0 %v835
      %856 = vmatprep.subr.bf16.mxu0 0
      %857 = vmatpush1.bf16.msra.mxu0 %v836
      %858 = vmatprep.subr.bf16.mxu0 0
      %859 = vmatpush1.bf16.msra.mxu0 %v837
      %860 = vmatprep.subr.bf16.mxu0 0
      %861 = vmatpush1.bf16.msra.mxu0 %v838
      %862 = vmatprep.subr.bf16.mxu0 0
      %863 = vmatpush1.bf16.msra.mxu0 %v839
      %864 = vmatprep.subr.bf16.mxu0 0
      %865 = vmatpush1.bf16.msra.mxu0 0
      %866 = vmatprep.subr.bf16.mxu0 0
      %867 = vmatpush1.bf16.msra.mxu0 0
      %868 = vmatprep.subr.bf16.mxu0 0
      %869 = vmatpush1.bf16.msra.mxu0 0
      %870 = vmatprep.subr.bf16.mxu0 0
      %871 = vmatpush1.bf16.msra.mxu0 0
      %872 = vmatprep.subr.bf16.mxu0 0
      %873 = vmatpush1.bf16.msra.mxu0 0
      %874 = vmatprep.subr.bf16.mxu0 0
      %875 = vmatpush1.bf16.msra.mxu0 0
      %876 = vmatprep.subr.bf16.mxu0 0
      %877 = vmatpush1.bf16.msra.mxu0 0
      %878 = vmatprep.subr.bf16.mxu0 0
      %879 = vmatpush1.bf16.msra.mxu0 0
      %880 = vmatprep.mubr.bf16.mxu0 0
      %881 = vmatmul.mubr.bf16.gmra.mrb[0].mxu0 %v776
      %v882 = vpop.f32.mrb[0].mxu0
      %v883 = vadd.f32 %v798, %v882
      %v884 = vpop.f32.mrb[0].mxu0
      %v885 = vpop.f32.mrb[0].mxu0
      %v886 = vadd.f32 %v798, %v885
      %v887 = vpop.f32.mrb[0].mxu0
      %888 = vdwg.mxu0
      %v889 = vunpack.c.l.bf16 %v280
      %v890 = vunpack.c.l.bf16 %v281
      %v891 = vunpack.c.l.bf16 %v282
      %v892 = vunpack.c.l.bf16 %v283
      %v897 = vcombine.low %v889, %v890
      %v898 = vcombine.low %v891, %v892
      %v901 = vadd.f32 %v883, %v897
      %v902 = vadd.f32 %v886, %v898
      %v905 = vcombine.high %v901, %v901
      %v906 = vcombine.high %v902, %v902
      %v909 = vpack.c.bf16 %v901, %v901
      %v910 = vpack.c.bf16 %v905, %v905
      %v911 = vpack.c.bf16 %v902, %v902
      %v912 = vpack.c.bf16 %v906, %v906
      %913 = vst [vmem:[%s278] sm:$0x3] %v909
      %914 = vst [vmem:[%s278 + $0x2] sm:$0x3] %v910
      %915 = vst [vmem:[%s278 + $0x4] sm:$0x3] %v911
      %916 = vst [vmem:[%s278 + $0x6] sm:$0x3] %v912
      %p917 = scmp.lt.s32.totalorder %s18, 1
      %s918 = scalar_select %p917, %s18, 1
      %s919 = smul.addr %s918, 4
      %s920 = smul.addr %s919, 2
      %s921 = scalar_lea.vmem %s7, %s920
      // Predicated region
      $region49: #{_lambda_.10} parent=47 // pred_check
        %p922 = pneg %p188
      $region50: #{_lambda_.10} parent=47 // pred_check_branch
        %924 = sbr.rel (%p922) target = $region52
      $region51: #{_lambda_.10} parent=47 // pred_region
        _
      $region52: #{_lambda_.10} parent=47 // pred_fallthru
        _
    $region48: #{_lambda_.10} parent=5 // pred_fallthru
      _
    %p925 = scmp.le.s32.totalorder 2, %s13
    // Predicated region
    $region53: #{_lambda_.10} parent=5 // pred_check
      %p926 = pneg %p925
    $region54: #{_lambda_.10} parent=5 // pred_check_branch
      %928 = sbr.rel (%p926) target = $region56
    $region55: #{_lambda_.10} parent=5 // pred_region
      %s929 = ssub.s32 %s13, 2
      // Predicated region
      $region57: #{_lambda_.10} parent=55 // pred_check
        %p930 = pneg %p194
      $region58: #{_lambda_.10} parent=55 // pred_check_branch
        %932 = sbr.rel (%p930) target = $region60
      $region59: #{_lambda_.10} parent=55 // pred_region
        %p933 = scmp.lt.s32.totalorder %s19, 1
        %s934 = scalar_select %p933, %s19, 1
        %s935 = smul.addr %s934, 4
        %s936 = smul.addr %s935, 2
        %s937 = scalar_lea.vmem %s7, %s936
      $region60: #{_lambda_.10} parent=55 // pred_fallthru
        _
    $region56: #{_lambda_.10} parent=5 // pred_fallthru
      _
  $region6: #{_lambda_.10} parent=0 // loop_footer
    %s17 = sadd.s32 1, %s13
  $region7: #{_lambda_.10} parent=0 // loop_footer_branch
    %12 = sbr.rel target = $region3
  $region8: #{_lambda_.10} parent=0 // loop_exit
    _

// kernel: _lambda_.8
$region0: #{_lambda_.8}
  #allocation0 [shape = 'u32[]', space=smem, size = 0x4, offset = 0x4, fixed_abs, tag = 'smem constant byte address 0x4 - core index']
  #allocation1 [shape = 'u32[144,128]{1,0:T(1,128)}', space=vmem, size = 0x12000, scoped, tag = 'internal scratch']
  #allocation2 [shape = 'bf16[10,10,128]{2,1,0:T(8,128)(2,1)}', space=vmem, size = 0xa000, scoped, tag = 'scratch operand']
  %s0 = inlined_call_operand.vmem [shape: bf16[2,8,8,128], index: 0, kind: input, shape index: {}]
  %s1 = inlined_call_operand.vmem [shape: bf16[128,128], index: 1, kind: input, shape index: {}]
  %s2 = inlined_call_operand.vmem [shape: f32[1,128], index: 2, kind: input, shape index: {}, may-alias: {2,4,6}]
  %s3 = inlined_call_operand.vmem [shape: f32[9,128], index: 3, kind: input, shape index: {}]
  %s4 = inlined_call_operand.vmem [shape: f32[1,128], index: 4, kind: input, shape index: {}, may-alias: {2,4,6}]
  %s5 = inlined_call_operand.vmem [shape: bf16[128,128], index: 5, kind: input, shape index: {}]
  %s6 = inlined_call_operand.vmem [shape: f32[1,128], index: 6, kind: input, shape index: {}, may-alias: {2,4,6}]
  %s7 = inlined_call_operand.vmem [shape: bf16[2,8,8,128], index: 7, kind: output, shape index: {}]
  %s8 = sld [smem:[#allocation0]]
  $region61: #{_lambda_.8} parent=0
    _
  %s10 = ssub.s32 1, %s8
  %s11 = scalar_select 0, %s10, %s8
  loop: start=0, step=1, limit=4
  $region2: #{_lambda_.8} parent=0 // loop_pre_header
    _
  $region3: #{_lambda_.8} parent=0 // loop_header
    %s13 = sphi 0, %s17
    %p14 = scmp.ge.s32.totalorder %s13, 4
    %s23 = sphi 0, %s25
    %s26 = sphi 0, %s23
    %s27 = sphi 0, %s26
    %s43 = sphi 0, %s27
    %s47 = sphi 0, %s47
    %s49 = sphi 0, %s47
    %s50 = sphi 0, %s49
    %s64 = sphi 0, %s50
    %s68 = sphi 0, %s68
    %s70 = sphi 0, %s68
    %s71 = sphi 0, %s70
    %s85 = sphi 0, %s71
    %s89 = sphi 0, %s89
    %s91 = sphi 0, %s89
    %s92 = sphi 0, %s91
    %s106 = sphi 0, %s92
    %s110 = sphi 0, %s110
    %s112 = sphi 0, %s110
    %s113 = sphi 0, %s112
    %s127 = sphi 0, %s113
    %s131 = sphi 0, %s131
    %s133 = sphi 0, %s131
    %s134 = sphi 0, %s133
    %s148 = sphi 0, %s134
    %s152 = sphi 0, %s152
    %s154 = sphi 0, %s152
    %s155 = sphi 0, %s154
    %s169 = sphi 0, %s155
    %s175 = sphi 0, %s177
    %s178 = sphi 0, %s175
    %s179 = sphi 0, %s178
    %s195 = sphi 0, %s179
  $region4: #{_lambda_.8} parent=0 // loop_header_branch
    %16 = sbr.rel (%p14) target = $region8
  $region5: #{_lambda_.8} parent=0 // loop_body
    %s18 = ssub.s32 %s13, 1
    %s19 = ssub.s32 %s13, 2
    %s20 = sadd.s32 %s13, 1
    %s21 = ssub.s32 %s13, %s20
    %p22 = scmp.eq.s32.totalorder %s21, 0
    %s24 = sadd.s32 %s23, 1
    %s25 = scalar_select %p22, %s23, %s24
    %p28 = pneg %p22
    %p29 = scmp.eq.s32.totalorder %s13, 1
    %p30 = por %p28, %p29
    %p31 = scmp.ne.s32.totalorder %s23, %s26
    %p32 = scmp.eq.s32.totalorder %s13, 0
    %p33 = por %p31, %p32
    %p34 = scmp.ne.s32.totalorder %s23, %s26
    %p35 = scmp.eq.s32.totalorder %s18, 1
    %p36 = por %p34, %p35
    %p37 = scmp.ne.s32.totalorder %s26, %s27
    %p38 = scmp.eq.s32.totalorder %s18, 0
    %p39 = por %p37, %p38
    %p40 = scmp.ne.s32.totalorder %s26, %s27
    %p41 = scmp.eq.s32.totalorder %s19, 1
    %p42 = por %p40, %p41
    %p44 = scmp.ne.s32.totalorder %s27, %s43
    %p45 = scmp.eq.s32.totalorder %s19, 0
    %p46 = por %p44, %p45
    %s48 = sadd.s32 %s47, 1
    %p51 = scmp.eq.s32.totalorder %s13, 1
    %p52 = scmp.ne.s32.totalorder %s47, %s49
    %p53 = scmp.eq.s32.totalorder %s13, 0
    %p54 = por %p52, %p53
    %p55 = scmp.ne.s32.totalorder %s47, %s49
    %p56 = scmp.eq.s32.totalorder %s18, 1
    %p57 = por %p55, %p56
    %p58 = scmp.ne.s32.totalorder %s49, %s50
    %p59 = scmp.eq.s32.totalorder %s18, 0
    %p60 = por %p58, %p59
    %p61 = scmp.ne.s32.totalorder %s49, %s50
    %p62 = scmp.eq.s32.totalorder %s19, 1
    %p63 = por %p61, %p62
    %p65 = scmp.ne.s32.totalorder %s50, %s64
    %p66 = scmp.eq.s32.totalorder %s19, 0
    %p67 = por %p65, %p66
    %s69 = sadd.s32 %s68, 1
    %p72 = scmp.eq.s32.totalorder %s13, 1
    %p73 = scmp.ne.s32.totalorder %s68, %s70
    %p74 = scmp.eq.s32.totalorder %s13, 0
    %p75 = por %p73, %p74
    %p76 = scmp.ne.s32.totalorder %s68, %s70
    %p77 = scmp.eq.s32.totalorder %s18, 1
    %p78 = por %p76, %p77
    %p79 = scmp.ne.s32.totalorder %s70, %s71
    %p80 = scmp.eq.s32.totalorder %s18, 0
    %p81 = por %p79, %p80
    %p82 = scmp.ne.s32.totalorder %s70, %s71
    %p83 = scmp.eq.s32.totalorder %s19, 1
    %p84 = por %p82, %p83
    %p86 = scmp.ne.s32.totalorder %s71, %s85
    %p87 = scmp.eq.s32.totalorder %s19, 0
    %p88 = por %p86, %p87
    %s90 = sadd.s32 %s89, 1
    %p93 = scmp.eq.s32.totalorder %s13, 1
    %p94 = scmp.ne.s32.totalorder %s89, %s91
    %p95 = scmp.eq.s32.totalorder %s13, 0
    %p96 = por %p94, %p95
    %p97 = scmp.ne.s32.totalorder %s89, %s91
    %p98 = scmp.eq.s32.totalorder %s18, 1
    %p99 = por %p97, %p98
    %p100 = scmp.ne.s32.totalorder %s91, %s92
    %p101 = scmp.eq.s32.totalorder %s18, 0
    %p102 = por %p100, %p101
    %p103 = scmp.ne.s32.totalorder %s91, %s92
    %p104 = scmp.eq.s32.totalorder %s19, 1
    %p105 = por %p103, %p104
    %p107 = scmp.ne.s32.totalorder %s92, %s106
    %p108 = scmp.eq.s32.totalorder %s19, 0
    %p109 = por %p107, %p108
    %s111 = sadd.s32 %s110, 1
    %p114 = scmp.eq.s32.totalorder %s13, 1
    %p115 = scmp.ne.s32.totalorder %s110, %s112
    %p116 = scmp.eq.s32.totalorder %s13, 0
    %p117 = por %p115, %p116
    %p118 = scmp.ne.s32.totalorder %s110, %s112
    %p119 = scmp.eq.s32.totalorder %s18, 1
    %p120 = por %p118, %p119
    %p121 = scmp.ne.s32.totalorder %s112, %s113
    %p122 = scmp.eq.s32.totalorder %s18, 0
    %p123 = por %p121, %p122
    %p124 = scmp.ne.s32.totalorder %s112, %s113
    %p125 = scmp.eq.s32.totalorder %s19, 1
    %p126 = por %p124, %p125
    %p128 = scmp.ne.s32.totalorder %s113, %s127
    %p129 = scmp.eq.s32.totalorder %s19, 0
    %p130 = por %p128, %p129
    %s132 = sadd.s32 %s131, 1
    %p135 = scmp.eq.s32.totalorder %s13, 1
    %p136 = scmp.ne.s32.totalorder %s131, %s133
    %p137 = scmp.eq.s32.totalorder %s13, 0
    %p138 = por %p136, %p137
    %p139 = scmp.ne.s32.totalorder %s131, %s133
    %p140 = scmp.eq.s32.totalorder %s18, 1
    %p141 = por %p139, %p140
    %p142 = scmp.ne.s32.totalorder %s133, %s134
    %p143 = scmp.eq.s32.totalorder %s18, 0
    %p144 = por %p142, %p143
    %p145 = scmp.ne.s32.totalorder %s133, %s134
    %p146 = scmp.eq.s32.totalorder %s19, 1
    %p147 = por %p145, %p146
    %p149 = scmp.ne.s32.totalorder %s134, %s148
    %p150 = scmp.eq.s32.totalorder %s19, 0
    %p151 = por %p149, %p150
    %s153 = sadd.s32 %s152, 1
    %p156 = scmp.eq.s32.totalorder %s13, 1
    %p157 = scmp.ne.s32.totalorder %s152, %s154
    %p158 = scmp.eq.s32.totalorder %s13, 0
    %p159 = por %p157, %p158
    %p160 = scmp.ne.s32.totalorder %s152, %s154
    %p161 = scmp.eq.s32.totalorder %s18, 1
    %p162 = por %p160, %p161
    %p163 = scmp.ne.s32.totalorder %s154, %s155
    %p164 = scmp.eq.s32.totalorder %s18, 0
    %p165 = por %p163, %p164
    %p166 = scmp.ne.s32.totalorder %s154, %s155
    %p167 = scmp.eq.s32.totalorder %s19, 1
    %p168 = por %p166, %p167
    %p170 = scmp.ne.s32.totalorder %s155, %s169
    %p171 = scmp.eq.s32.totalorder %s19, 0
    %p172 = por %p170, %p171
    %s173 = ssub.s32 %s13, %s20
    %p174 = scmp.eq.s32.totalorder %s173, 0
    %s176 = sadd.s32 %s175, 1
    %s177 = scalar_select %p174, %s175, %s176
    %p180 = pneg %p174
    %p181 = scmp.eq.s32.totalorder %s13, 1
    %p182 = por %p180, %p181
    %p183 = scmp.ne.s32.totalorder %s175, %s178
    %p184 = scmp.eq.s32.totalorder %s13, 0
    %p185 = por %p183, %p184
    %p186 = scmp.ne.s32.totalorder %s175, %s178
    %p187 = scmp.eq.s32.totalorder %s18, 1
    %p188 = por %p186, %p187
    %p189 = scmp.ne.s32.totalorder %s178, %s179
    %p190 = scmp.eq.s32.totalorder %s18, 0
    %p191 = por %p189, %p190
    %p192 = scmp.ne.s32.totalorder %s178, %s179
    %p193 = scmp.eq.s32.totalorder %s19, 1
    %p194 = por %p192, %p193
    %p196 = scmp.ne.s32.totalorder %s179, %s195
    %p197 = scmp.eq.s32.totalorder %s19, 0
    %p198 = por %p196, %p197
    %p199 = scmp.le.s32.totalorder 1, %s13
    %p200 = scmp.lt.s32.totalorder %s13, 3
    %p201 = pnand %p199, %p200
    %p202 = pneg %p201
    // Predicated region
    $region9: #{_lambda_.8} parent=5 // pred_check
      _
    $region10: #{_lambda_.8} parent=5 // pred_check_branch
      %204 = sbr.rel (%p201) target = $region12
    $region11: #{_lambda_.8} parent=5 // pred_region
      %s205 = ssub.s32 %s13, 1
      // Predicated region
      $region13: #{_lambda_.8} parent=11 // pred_check
        %p206 = pneg %p60
      $region14: #{_lambda_.8} parent=11 // pred_check_branch
        %208 = sbr.rel (%p206) target = $region16
      $region15: #{_lambda_.8} parent=11 // pred_region
        _
      $region16: #{_lambda_.8} parent=11 // pred_fallthru
        _
      // Predicated region
      $region17: #{_lambda_.8} parent=11 // pred_check
        %p209 = pneg %p81
      $region18: #{_lambda_.8} parent=11 // pred_check_branch
        %211 = sbr.rel (%p209) target = $region20
      $region19: #{_lambda_.8} parent=11 // pred_region
        _
      $region20: #{_lambda_.8} parent=11 // pred_fallthru
        _
      // Predicated region
      $region21: #{_lambda_.8} parent=11 // pred_check
        %p212 = pneg %p102
      $region22: #{_lambda_.8} parent=11 // pred_check_branch
        %214 = sbr.rel (%p212) target = $region24
      $region23: #{_lambda_.8} parent=11 // pred_region
        _
      $region24: #{_lambda_.8} parent=11 // pred_fallthru
        _
      // Predicated region
      $region25: #{_lambda_.8} parent=11 // pred_check
        %p215 = pneg %p123
      $region26: #{_lambda_.8} parent=11 // pred_check_branch
        %217 = sbr.rel (%p215) target = $region28
      $region27: #{_lambda_.8} parent=11 // pred_region
        _
      $region28: #{_lambda_.8} parent=11 // pred_fallthru
        _
      // Predicated region
      $region29: #{_lambda_.8} parent=11 // pred_check
        %p218 = pneg %p144
      $region30: #{_lambda_.8} parent=11 // pred_check_branch
        %220 = sbr.rel (%p218) target = $region32
      $region31: #{_lambda_.8} parent=11 // pred_region
        _
      $region32: #{_lambda_.8} parent=11 // pred_fallthru
        _
      // Predicated region
      $region33: #{_lambda_.8} parent=11 // pred_check
        %p221 = pneg %p165
      $region34: #{_lambda_.8} parent=11 // pred_check_branch
        %223 = sbr.rel (%p221) target = $region36
      $region35: #{_lambda_.8} parent=11 // pred_region
        _
      $region36: #{_lambda_.8} parent=11 // pred_fallthru
        _
    $region12: #{_lambda_.8} parent=5 // pred_fallthru
      _
    %p224 = scmp.lt.s32.totalorder %s13, 2
    // Predicated region
    $region37: #{_lambda_.8} parent=5 // pred_check
      %p225 = pneg %p224
    $region38: #{_lambda_.8} parent=5 // pred_check_branch
      %227 = sbr.rel (%p225) target = $region40
    $region39: #{_lambda_.8} parent=5 // pred_region
      // Predicated region
      $region41: #{_lambda_.8} parent=39 // pred_check
        %p228 = pneg %p33
      $region42: #{_lambda_.8} parent=39 // pred_check_branch
        %230 = sbr.rel (%p228) target = $region44
      $region43: #{_lambda_.8} parent=39 // pred_region
        %p231 = scmp.lt.s32.totalorder %s13, 1
        %s232 = scalar_select %p231, %s13, 1
        %s233 = smul.addr %s232, 8
        %s234 = smul.addr %s233, 4
        %s235 = scalar_lea.vmem %s0, %s234
      $region44: #{_lambda_.8} parent=39 // pred_fallthru
        _
    $region40: #{_lambda_.8} parent=5 // pred_fallthru
      _
    %p236 = scmp.le.s32.totalorder 1, %s13
    %p237 = scmp.lt.s32.totalorder %s13, 3
    %p238 = pnand %p236, %p237
    %p239 = pneg %p238
    // Predicated region
    $region45: #{_lambda_.8} parent=5 // pred_check
      _
    $region46: #{_lambda_.8} parent=5 // pred_check_branch
      %241 = sbr.rel (%p238) target = $region48
    $region47: #{_lambda_.8} parent=5 // pred_region
      %s242 = ssub.s32 %s13, 1
      %p243 = scmp.lt.s32.totalorder %s18, 1
      %s244 = scalar_select %p243, %s18, 1
      %s245 = smul.addr %s244, 8
      %s246 = smul.addr %s245, 4
      %s247 = scalar_lea.vmem %s0, %s246
      %p248 = pneg %p39
      %p249 = pneg %p36
      %p250 = pneg %p60
      %p251 = pneg %p57
      %p252 = pneg %p81
      %p253 = pneg %p78
      %p254 = pneg %p102
      %p255 = pneg %p99
      %p256 = pneg %p123
      %p257 = pneg %p120
      %p258 = pneg %p144
      %p259 = pneg %p141
      %p260 = pneg %p165
      %p261 = pneg %p162
      %p262 = pneg %p191
      %p263 = pneg %p188
      %p264 = scmp.lt.s32.totalorder %s18, 1
      %s265 = scalar_select %p264, %s18, 1
      %s266 = smul.addr %s265, 8
      %s267 = smul.addr %s266, 4
      %s268 = scalar_lea.vmem %s7, %s267
      %p269 = scmp.lt.s32.totalorder %s18, 1
      %s270 = scalar_select %p269, %s18, 1
      %s271 = smul.addr %s270, 8
      %s272 = smul.addr %s271, 4
      %s273 = scalar_lea.vmem %s0, %s272
      %p274 = scmp.lt.s32.totalorder %s18, 1
      %s275 = scalar_select %p274, %s18, 1
      %s276 = smul.addr %s275, 8
      %s277 = smul.addr %s276, 4
      %s278 = scalar_lea.vmem %s7, %s277
      %v280 = vld [vmem:[%s273] sm:$0xf]
      %v281 = vld [vmem:[%s273 + $0x4] sm:$0xf]
      %v282 = vld [vmem:[%s273 + $0x8] sm:$0xf]
      %v283 = vld [vmem:[%s273 + $0xc] sm:$0xf]
      %v284 = vld [vmem:[%s273 + $0x10] sm:$0xf]
      %v285 = vld [vmem:[%s273 + $0x14] sm:$0xf]
      %v286 = vld [vmem:[%s273 + $0x18] sm:$0xf]
      %v287 = vld [vmem:[%s273 + $0x1c] sm:$0xf]
      %v288 = vld [vmem:[%s1] sm:$0xf]
      %v289 = vld [vmem:[%s1 + $0x4] sm:$0xf]
      %v290 = vld [vmem:[%s1 + $0x8] sm:$0xf]
      %v291 = vld [vmem:[%s1 + $0xc] sm:$0xf]
      %v292 = vld [vmem:[%s1 + $0x10] sm:$0xf]
      %v293 = vld [vmem:[%s1 + $0x14] sm:$0xf]
      %v294 = vld [vmem:[%s1 + $0x18] sm:$0xf]
      %v295 = vld [vmem:[%s1 + $0x1c] sm:$0xf]
      %v296 = vld [vmem:[%s1 + $0x20] sm:$0xf]
      %v297 = vld [vmem:[%s1 + $0x24] sm:$0xf]
      %v298 = vld [vmem:[%s1 + $0x28] sm:$0xf]
      %v299 = vld [vmem:[%s1 + $0x2c] sm:$0xf]
      %v300 = vld [vmem:[%s1 + $0x30] sm:$0xf]
      %v301 = vld [vmem:[%s1 + $0x34] sm:$0xf]
      %v302 = vld [vmem:[%s1 + $0x38] sm:$0xf]
      %v303 = vld [vmem:[%s1 + $0x3c] sm:$0xf]
      %v304 = vld [vmem:[%s2] sm:$0x1]
      %v306 = vlaneseq
      %v307 = vshrl.u32 %v306, 7
      %v308 = vsub.s32 0, %v307
      %v309 = vrot.slane %v304, %v308
      %v319 = vunpack.c.l.b16 %v280
      %v320 = vunpack.c.l.b16 %v281
      %v321 = vunpack.c.l.b16 %v282
      %v322 = vunpack.c.l.b16 %v283
      %v323 = vunpack.c.l.b16 %v284
      %v324 = vunpack.c.l.b16 %v285
      %v325 = vunpack.c.l.b16 %v286
      %v326 = vunpack.c.l.b16 %v287
      %v327 = vpack.c.b16 %v320, %v319
      %v328 = vpack.c.b16 %v322, %v321
      %v329 = vpack.c.b16 %v324, %v323
      %v330 = vpack.c.b16 %v326, %v325
      %v351 = vunpack.c.l.b16 %v288
      %v352 = vunpack.c.l.b16 %v289
      %v353 = vunpack.c.l.b16 %v290
      %v354 = vunpack.c.l.b16 %v291
      %v355 = vunpack.c.l.b16 %v292
      %v356 = vunpack.c.l.b16 %v293
      %v357 = vunpack.c.l.b16 %v294
      %v358 = vunpack.c.l.b16 %v295
      %v359 = vunpack.c.l.b16 %v296
      %v360 = vunpack.c.l.b16 %v297
      %v361 = vunpack.c.l.b16 %v298
      %v362 = vunpack.c.l.b16 %v299
      %v363 = vunpack.c.l.b16 %v300
      %v364 = vunpack.c.l.b16 %v301
      %v365 = vunpack.c.l.b16 %v302
      %v366 = vunpack.c.l.b16 %v303
      %v367 = vpack.c.b16 %v352, %v351
      %v368 = vpack.c.b16 %v354, %v353
      %v369 = vpack.c.b16 %v356, %v355
      %v370 = vpack.c.b16 %v358, %v357
      %v371 = vpack.c.b16 %v360, %v359
      %v372 = vpack.c.b16 %v362, %v361
      %v373 = vpack.c.b16 %v364, %v363
      %v374 = vpack.c.b16 %v366, %v365
      %383 = vmatprep.subr.bf16.mxu0 0
      %384 = vmatpush1.bf16.msra.mxu0 %v367
      %385 = vmatprep.subr.bf16.mxu0 0
      %386 = vmatpush1.bf16.msra.mxu0 %v368
      %387 = vmatprep.subr.bf16.mxu0 0
      %388 = vmatpush1.bf16.msra.mxu0 %v369
      %389 = vmatprep.subr.bf16.mxu0 0
      %390 = vmatpush1.bf16.msra.mxu0 %v370
      %391 = vmatprep.subr.bf16.mxu0 0
      %392 = vmatpush1.bf16.msra.mxu0 %v371
      %393 = vmatprep.subr.bf16.mxu0 0
      %394 = vmatpush1.bf16.msra.mxu0 %v372
      %395 = vmatprep.subr.bf16.mxu0 0
      %396 = vmatpush1.bf16.msra.mxu0 %v373
      %397 = vmatprep.subr.bf16.mxu0 0
      %398 = vmatpush1.bf16.msra.mxu0 %v374
      %399 = vmatprep.subr.bf16.mxu0 0
      %400 = vmatpush1.bf16.msra.mxu0 0
      %401 = vmatprep.subr.bf16.mxu0 0
      %402 = vmatpush1.bf16.msra.mxu0 0
      %403 = vmatprep.subr.bf16.mxu0 0
      %404 = vmatpush1.bf16.msra.mxu0 0
      %405 = vmatprep.subr.bf16.mxu0 0
      %406 = vmatpush1.bf16.msra.mxu0 0
      %407 = vmatprep.subr.bf16.mxu0 0
      %408 = vmatpush1.bf16.msra.mxu0 0
      %409 = vmatprep.subr.bf16.mxu0 0
      %410 = vmatpush1.bf16.msra.mxu0 0
      %411 = vmatprep.subr.bf16.mxu0 0
      %412 = vmatpush1.bf16.msra.mxu0 0
      %413 = vmatprep.subr.bf16.mxu0 0
      %414 = vmatpush1.bf16.msra.mxu0 0
      %415 = vmatprep.mubr.bf16.mxu0 0
      %416 = vmatmul.mubr.bf16.gmra.mrb[0].mxu0 %v327
      %v417 = vpop.f32.mrb[0].mxu0
      %v418 = vadd.f32 %v309, %v417
      %v419 = vpop.f32.mrb[0].mxu0
      %v420 = vpop.f32.mrb[0].mxu0
      %v421 = vadd.f32 %v309, %v420
      %v422 = vpop.f32.mrb[0].mxu0
      %423 = vmatprep.mubr.bf16.mxu0 0
      %424 = vmatmul.mubr.bf16.gmra.mrb[0].mxu0 %v328
      %v425 = vpop.f32.mrb[0].mxu0
      %v426 = vadd.f32 %v309, %v425
      %v427 = vpop.f32.mrb[0].mxu0
      %v428 = vpop.f32.mrb[0].mxu0
      %v429 = vadd.f32 %v309, %v428
      %v430 = vpop.f32.mrb[0].mxu0
      %431 = vmatprep.mubr.bf16.mxu0 0
      %432 = vmatmul.mubr.bf16.gmra.mrb[0].mxu0 %v329
      %v433 = vpop.f32.mrb[0].mxu0
      %v434 = vadd.f32 %v309, %v433
      %v435 = vpop.f32.mrb[0].mxu0
      %v436 = vpop.f32.mrb[0].mxu0
      %v437 = vadd.f32 %v309, %v436
      %v438 = vpop.f32.mrb[0].mxu0
      %439 = vmatprep.mubr.bf16.mxu0 0
      %440 = vmatmul.mubr.bf16.gmra.mrb[0].mxu0 %v330
      %v441 = vpop.f32.mrb[0].mxu0
      %v442 = vadd.f32 %v309, %v441
      %v443 = vpop.f32.mrb[0].mxu0
      %v444 = vpop.f32.mrb[0].mxu0
      %v445 = vadd.f32 %v309, %v444
      %v446 = vpop.f32.mrb[0].mxu0
      %447 = vdwg.mxu0
      %v448 = vmax.f32 %v418, 0.0
      %v449 = vmax.f32 %v421, 0.0
      %v450 = vmax.f32 %v426, 0.0
      %v451 = vmax.f32 %v429, 0.0
      %v452 = vmax.f32 %v434, 0.0
      %v453 = vmax.f32 %v437, 0.0
      %v454 = vmax.f32 %v442, 0.0
      %v455 = vmax.f32 %v445, 0.0
      %v456 = vmin.f32 %v448, 6.0
      %v457 = vmin.f32 %v449, 6.0
      %v458 = vmin.f32 %v450, 6.0
      %v459 = vmin.f32 %v451, 6.0
      %v460 = vmin.f32 %v452, 6.0
      %v461 = vmin.f32 %v453, 6.0
      %v462 = vmin.f32 %v454, 6.0
      %v463 = vmin.f32 %v455, 6.0
      %464 = vst [vmem:[#allocation2] sm:$0xf] 0
      %465 = vst [vmem:[#allocation2 + $0x4] sm:$0x1] 0
      %466 = vst [vmem:[#allocation2 + $0x8] sm:$0xf] 0
      %467 = vst [vmem:[#allocation2 + $0xc] sm:$0x1] 0
      %468 = vst [vmem:[#allocation2 + $0x10] sm:$0xf] 0
      %469 = vst [vmem:[#allocation2 + $0x14] sm:$0x1] 0
      %470 = vst [vmem:[#allocation2 + $0x18] sm:$0xf] 0
      %471 = vst [vmem:[#allocation2 + $0x1c] sm:$0x1] 0
      %472 = vst [vmem:[#allocation2 + $0x20] sm:$0xf] 0
      %473 = vst [vmem:[#allocation2 + $0x24] sm:$0x1] 0
      %474 = vst [vmem:[#allocation2 + $0x28] sm:$0xf] 0
      %475 = vst [vmem:[#allocation2 + $0x2c] sm:$0x1] 0
      %476 = vst [vmem:[#allocation2 + $0x30] sm:$0xf] 0
      %477 = vst [vmem:[#allocation2 + $0x34] sm:$0x1] 0
      %478 = vst [vmem:[#allocation2 + $0x38] sm:$0xf] 0
      %479 = vst [vmem:[#allocation2 + $0x3c] sm:$0x1] 0
      %480 = vst [vmem:[#allocation2 + $0x40] sm:$0xf] 0
      %481 = vst [vmem:[#allocation2 + $0x44] sm:$0x1] 0
      %482 = vst [vmem:[#allocation2 + $0x48] sm:$0xf] 0
      %483 = vst [vmem:[#allocation2 + $0x4c] sm:$0x1] 0
      %v484 = vpack.c.bf16 %v456, %v456
      %v485 = vpack.c.bf16 %v457, %v457
      %v486 = vpack.c.bf16 %v458, %v458
      %v487 = vpack.c.bf16 %v459, %v459
      %v488 = vpack.c.bf16 %v460, %v460
      %v489 = vpack.c.bf16 %v461, %v461
      %v490 = vpack.c.bf16 %v462, %v462
      %v491 = vpack.c.bf16 %v463, %v463
      %v500 = vunpack.c.l.b16 %v484
      %v501 = vunpack.c.l.b16 %v485
      %v502 = vunpack.c.l.b16 %v486
      %v503 = vunpack.c.l.b16 %v487
      %v504 = vunpack.c.l.b16 %v488
      %v505 = vunpack.c.l.b16 %v489
      %v506 = vunpack.c.l.b16 %v490
      %v507 = vunpack.c.l.b16 %v491
      %v508 = vpack.c.b16 %v500, %v500
      %v509 = vpack.c.b16 %v501, %v501
      %v510 = vpack.c.b16 %v502, %v502
      %v511 = vpack.c.b16 %v503, %v503
      %v512 = vpack.c.b16 %v504, %v504
      %v513 = vpack.c.b16 %v505, %v505
      %v514 = vpack.c.b16 %v506, %v506
      %v515 = vpack.c.b16 %v507, %v507
      %v517 = vshrl.u32 %v508, 16
      %v519 = vrot.slane %v517, 7
      %v520 = vshll.u32 %v508, 16
      %v522 = vor.u32 %v519, %v520
      %v523 = vrot.slane %v519, 4
      %v525 = vshrl.u32 %v509, 16
      %v527 = vrot.slane %v525, 7
      %v528 = vshll.u32 %v509, 16
      %v530 = vor.u32 %v527, %v528
      %v531 = vrot.slane %v527, 4
      %v533 = vshrl.u32 %v510, 16
      %v535 = vrot.slane %v533, 7
      %v536 = vshll.u32 %v510, 16
      %v538 = vor.u32 %v535, %v536
      %v539 = vrot.slane %v535, 4
      %v541 = vshrl.u32 %v511, 16
      %v543 = vrot.slane %v541, 7
      %v544 = vshll.u32 %v511, 16
      %v546 = vor.u32 %v543, %v544
      %v547 = vrot.slane %v543, 4
      %v549 = vshrl.u32 %v512, 16
      %v551 = vrot.slane %v549, 7
      %v552 = vshll.u32 %v512, 16
      %v554 = vor.u32 %v551, %v552
      %v555 = vrot.slane %v551, 4
      %v557 = vshrl.u32 %v513, 16
      %v559 = vrot.slane %v557, 7
      %v560 = vshll.u32 %v513, 16
      %v562 = vor.u32 %v559, %v560
      %v563 = vrot.slane %v559, 4
      %v565 = vshrl.u32 %v514, 16
      %v567 = vrot.slane %v565, 7
      %v568 = vshll.u32 %v514, 16
      %v570 = vor.u32 %v567, %v568
      %v571 = vrot.slane %v567, 4
      %v573 = vshrl.u32 %v515, 16
      %v575 = vrot.slane %v573, 7
      %v576 = vshll.u32 %v515, 16
      %v578 = vor.u32 %v575, %v576
      %v579 = vrot.slane %v575, 4
      %s596 = scalar_lea.vmem [#allocation2], 8
      %vm597 = vcmask 1043456
      %vm598 = vsmask.f32 7938
      %vm599 = vmand %vm597, %vm598
      %v600 = vld [vmem:[%s596] sm:$0xf]
      %v601 = vsel %vm599, %v522, %v600
      %602 = vst [vmem:[%s596] sm:$0xf] %v601
      %vm603 = vcmask 1040384
      %vm604 = vsmask.f32 256
      %vm605 = vmand %vm603, %vm604
      %v606 = vld [vmem:[%s596 + $0x4] sm:$0x1]
      %v607 = vsel %vm605, %v523, %v606
      %608 = vst [vmem:[%s596 + $0x4] sm:$0x1] %v607
      %v609 = vld [vmem:[%s596 + $0x8] sm:$0xf]
      %v610 = vsel %vm599, %v530, %v609
      %611 = vst [vmem:[%s596 + $0x8] sm:$0xf] %v610
      %v612 = vld [vmem:[%s596 + $0xc] sm:$0x1]
      %v613 = vsel %vm605, %v531, %v612
      %614 = vst [vmem:[%s596 + $0xc] sm:$0x1] %v613
      %v615 = vld [vmem:[%s596 + $0x10] sm:$0xf]
      %v616 = vsel %vm599, %v538, %v615
      %617 = vst [vmem:[%s596 + $0x10] sm:$0xf] %v616
      %v618 = vld [vmem:[%s596 + $0x14] sm:$0x1]
      %v619 = vsel %vm605, %v539, %v618
      %620 = vst [vmem:[%s596 + $0x14] sm:$0x1] %v619
      %v621 = vld [vmem:[%s596 + $0x18] sm:$0xf]
      %v622 = vsel %vm599, %v546, %v621
      %623 = vst [vmem:[%s596 + $0x18] sm:$0xf] %v622
      %v624 = vld [vmem:[%s596 + $0x1c] sm:$0x1]
      %v625 = vsel %vm605, %v547, %v624
      %626 = vst [vmem:[%s596 + $0x1c] sm:$0x1] %v625
      %v627 = vld [vmem:[%s596 + $0x20] sm:$0xf]
      %v628 = vsel %vm599, %v554, %v627
      %629 = vst [vmem:[%s596 + $0x20] sm:$0xf] %v628
      %v630 = vld [vmem:[%s596 + $0x24] sm:$0x1]
      %v631 = vsel %vm605, %v555, %v630
      %632 = vst [vmem:[%s596 + $0x24] sm:$0x1] %v631
      %v633 = vld [vmem:[%s596 + $0x28] sm:$0xf]
      %v634 = vsel %vm599, %v562, %v633
      %635 = vst [vmem:[%s596 + $0x28] sm:$0xf] %v634
      %v636 = vld [vmem:[%s596 + $0x2c] sm:$0x1]
      %v637 = vsel %vm605, %v563, %v636
      %638 = vst [vmem:[%s596 + $0x2c] sm:$0x1] %v637
      %v639 = vld [vmem:[%s596 + $0x30] sm:$0xf]
      %v640 = vsel %vm599, %v570, %v639
      %641 = vst [vmem:[%s596 + $0x30] sm:$0xf] %v640
      %v642 = vld [vmem:[%s596 + $0x34] sm:$0x1]
      %v643 = vsel %vm605, %v571, %v642
      %644 = vst [vmem:[%s596 + $0x34] sm:$0x1] %v643
      %v645 = vld [vmem:[%s596 + $0x38] sm:$0xf]
      %v646 = vsel %vm599, %v578, %v645
      %647 = vst [vmem:[%s596 + $0x38] sm:$0xf] %v646
      %v648 = vld [vmem:[%s596 + $0x3c] sm:$0x1]
      %v649 = vsel %vm605, %v579, %v648
      %650 = vst [vmem:[%s596 + $0x3c] sm:$0x1] %v649
      %v651 = vld [vmem:[%s3] sm:$0xff]
      %v652 = vld [vmem:[%s3 + $0x8] sm:$0x1]
      %v653 = vld [vmem:[#allocation2] sm:$0xf]
      %v654 = vld [vmem:[#allocation2 + $0x8] sm:$0xf]
      %v655 = vld [vmem:[#allocation2 + $0x10] sm:$0xf]
      %v656 = vld [vmem:[#allocation2 + $0x18] sm:$0xf]
      %v657 = vld [vmem:[#allocation2 + $0x20] sm:$0xf]
      %v658 = vld [vmem:[#allocation2 + $0x28] sm:$0xf]
      %v659 = vld [vmem:[#allocation2 + $0x30] sm:$0xf]
      %v660 = vld [vmem:[#allocation2 + $0x38] sm:$0xf]
      %v661 = vunpack.c.l.bf16 %v653
      %v662 = vunpack.c.l.bf16 %v654
      %v663 = vunpack.c.l.bf16 %v655
      %v664 = vunpack.c.l.bf16 %v656
      %v665 = vunpack.c.l.bf16 %v657
      %v666 = vunpack.c.l.bf16 %v658
      %v667 = vunpack.c.l.bf16 %v659
      %v668 = vunpack.c.l.bf16 %v660
      %v669 = vlaneseq
      %v670 = vshrl.u32 %v669, 7
      %v671 = vsub.s32 0, %v670
      %v672 = vrot.slane %v651, %v671
      %v673 = vmul.f32 %v661, %v672
      %v674 = vmul.f32 %v662, %v672
      %v675 = vmul.f32 %v663, %v672
      %v676 = vmul.f32 %v664, %v672
      %v677 = vmul.f32 %v665, %v672
      %v678 = vmul.f32 %v666, %v672
      %v679 = vmul.f32 %v667, %v672
      %v680 = vmul.f32 %v668, %v672
      %v681 = vld [vmem:[#allocation2 + $0x4] sm:$0x1]
      %v682 = vld [vmem:[#allocation2 + $0xc] sm:$0x1]
      %v683 = vld [vmem:[#allocation2 + $0x14] sm:$0x1]
      %v684 = vld [vmem:[#allocation2 + $0x1c] sm:$0x1]
      %v685 = vld [vmem:[#allocation2 + $0x24] sm:$0x1]
      %v686 = vld [vmem:[#allocation2 + $0x2c] sm:$0x1]
      %v687 = vld [vmem:[#allocation2 + $0x34] sm:$0x1]
      %v688 = vld [vmem:[#allocation2 + $0x3c] sm:$0x1]
      %v689 = vunpack.c.l.bf16 %v681
      %v690 = vunpack.c.l.bf16 %v682
      %v691 = vunpack.c.l.bf16 %v683
      %v692 = vunpack.c.l.bf16 %v684
      %v693 = vunpack.c.l.bf16 %v685
      %v694 = vunpack.c.l.bf16 %v686
      %v695 = vunpack.c.l.bf16 %v687
      %v696 = vunpack.c.l.bf16 %v688
      %v697 = vlaneseq
      %v698 = vshrl.u32 %v697, 7
      %v699 = vsub.s32 1, %v698
      %v700 = vrot.slane %v651, %v699
      %v701 = vmul.f32 %v661, %v700
      %v702 = vmul.f32 %v689, %v700
      %v703 = vmul.f32 %v662, %v700
      %v704 = vmul.f32 %v690, %v700
      %v705 = vmul.f32 %v663, %v700
      %v706 = vmul.f32 %v691, %v700
      %v707 = vmul.f32 %v664, %v700
      %v708 = vmul.f32 %v692, %v700
      %v709 = vmul.f32 %v665, %v700
      %v710 = vmul.f32 %v693, %v700
      %v711 = vmul.f32 %v666, %v700
      %v712 = vmul.f32 %v694, %v700
      %v713 = vmul.f32 %v667, %v700
      %v714 = vmul.f32 %v695, %v700
      %v715 = vmul.f32 %v668, %v700
      %v716 = vmul.f32 %v696, %v700
      %vm733 = vcmask 1046528
      %v734 = vrot.slane %v701, 1
      %v735 = vrot.slane %v702, 1
      %v736 = vsel %vm733, %v734, %v735
      %v737 = vrot.slane %v703, 1
      %v738 = vrot.slane %v704, 1
      %v739 = vsel %vm733, %v737, %v738
      %v740 = vrot.slane %v705, 1
      %v741 = vrot.slane %v706, 1
      %v742 = vsel %vm733, %v740, %v741
      %v743 = vrot.slane %v707, 1
      %v744 = vrot.slane %v708, 1
      %v745 = vsel %vm733, %v743, %v744
      %v746 = vrot.slane %v709, 1
      %v747 = vrot.slane %v710, 1
      %v748 = vsel %vm733, %v746, %v747
      %v749 = vrot.slane %v711, 1
      %v750 = vrot.slane %v712, 1
      %v751 = vsel %vm733, %v749, %v750
      %v752 = vrot.slane %v713, 1
      %v753 = vrot.slane %v714, 1
      %v754 = vsel %vm733, %v752, %v753
      %v755 = vrot.slane %v715, 1
      %v756 = vrot.slane %v716, 1
      %v757 = vsel %vm733, %v755, %v756
      %v766 = vadd.f32 %v673, %v736
      %v767 = vadd.f32 %v674, %v739
      %v768 = vadd.f32 %v675, %v742
      %v769 = vadd.f32 %v676, %v745
      %v770 = vadd.f32 %v677, %v748
      %v771 = vadd.f32 %v678, %v751
      %v772 = vadd.f32 %v679, %v754
      %v773 = vadd.f32 %v680, %v757
      %v774 = vld [vmem:[#allocation2] sm:$0xe]
      %v775 = vld [vmem:[#allocation2 + $0x8] sm:$0xe]
      %v776 = vld [vmem:[#allocation2 + $0x10] sm:$0xe]
      %v777 = vld [vmem:[#allocation2 + $0x18] sm:$0xe]
      %v778 = vld [vmem:[#allocation2 + $0x20] sm:$0xe]
      %v779 = vld [vmem:[#allocation2 + $0x28] sm:$0xe]
      %v780 = vld [vmem:[#allocation2 + $0x30] sm:$0xe]
      %v781 = vld [vmem:[#allocation2 + $0x38] sm:$0xe]
      %v782 = vunpack.c.l.bf16 %v774
      %v783 = vunpack.c.l.bf16 %v775
      %v784 = vunpack.c.l.bf16 %v776
      %v785 = vunpack.c.l.bf16 %v777
      %v786 = vunpack.c.l.bf16 %v778
      %v787 = vunpack.c.l.bf16 %v779
      %v788 = vunpack.c.l.bf16 %v780
      %v789 = vunpack.c.l.bf16 %v781
      %v790 = vlaneseq
      %v791 = vshrl.u32 %v790, 7
      %v792 = vsub.s32 2, %v791
      %v793 = vrot.slane %v651, %v792
      %v794 = vmul.f32 %v782, %v793
      %v795 = vmul.f32 %v689, %v793
      %v796 = vmul.f32 %v783, %v793
      %v797 = vmul.f32 %v690, %v793
      %v798 = vmul.f32 %v784, %v793
      %v799 = vmul.f32 %v691, %v793
      %v800 = vmul.f32 %v785, %v793
      %v801 = vmul.f32 %v692, %v793
      %v802 = vmul.f32 %v786, %v793
      %v803 = vmul.f32 %v693, %v793
      %v804 = vmul.f32 %v787, %v793
      %v805 = vmul.f32 %v694, %v793
      %v806 = vmul.f32 %v788, %v793
      %v807 = vmul.f32 %v695, %v793
      %v808 = vmul.f32 %v789, %v793
      %v809 = vmul.f32 %v696, %v793
      %vm826 = vcmask 1045504
      %v827 = vrot.slane %v794, 2
      %v828 = vrot.slane %v795, 2
      %v829 = vsel %vm826, %v827, %v828
      %v830 = vrot.slane %v796, 2
      %v831 = vrot.slane %v797, 2
      %v832 = vsel %vm826, %v830, %v831
      %v833 = vrot.slane %v798, 2
      %v834 = vrot.slane %v799, 2
      %v835 = vsel %vm826, %v833, %v834
      %v836 = vrot.slane %v800, 2
      %v837 = vrot.slane %v801, 2
      %v838 = vsel %vm826, %v836, %v837
      %v839 = vrot.slane %v802, 2
      %v840 = vrot.slane %v803, 2
      %v841 = vsel %vm826, %v839, %v840
      %v842 = vrot.slane %v804, 2
      %v843 = vrot.slane %v805, 2
      %v844 = vsel %vm826, %v842, %v843
      %v845 = vrot.slane %v806, 2
      %v846 = vrot.slane %v807, 2
      %v847 = vsel %vm826, %v845, %v846
      %v848 = vrot.slane %v808, 2
      %v849 = vrot.slane %v809, 2
      %v850 = vsel %vm826, %v848, %v849
      %v859 = vadd.f32 %v766, %v829
      %v860 = vadd.f32 %v767, %v832
      %v861 = vadd.f32 %v768, %v835
      %v862 = vadd.f32 %v769, %v838
      %v863 = vadd.f32 %v770, %v841
      %v864 = vadd.f32 %v771, %v844
      %v865 = vadd.f32 %v772, %v847
      %v866 = vadd.f32 %v773, %v850
      %v867 = vld [vmem:[%s596] sm:$0xf]
      %v868 = vld [vmem:[%s596 + $0x8] sm:$0xf]
      %v869 = vld [vmem:[%s596 + $0x10] sm:$0xf]
      %v870 = vld [vmem:[%s596 + $0x18] sm:$0xf]
      %v871 = vld [vmem:[%s596 + $0x20] sm:$0xf]
      %v872 = vld [vmem:[%s596 + $0x28] sm:$0xf]
      %v873 = vld [vmem:[%s596 + $0x30] sm:$0xf]
      %v874 = vld [vmem:[%s596 + $0x38] sm:$0xf]
      %v875 = vunpack.c.l.bf16 %v867
      %v876 = vunpack.c.l.bf16 %v868
      %v877 = vunpack.c.l.bf16 %v869
      %v878 = vunpack.c.l.bf16 %v870
      %v879 = vunpack.c.l.bf16 %v871
      %v880 = vunpack.c.l.bf16 %v872
      %v881 = vunpack.c.l.bf16 %v873
      %v882 = vunpack.c.l.bf16 %v874
      %v883 = vlaneseq
      %v884 = vshrl.u32 %v883, 7
      %v885 = vsub.s32 3, %v884
      %v886 = vrot.slane %v651, %v885
      %v887 = vmul.f32 %v875, %v886
      %v888 = vmul.f32 %v876, %v886
      %v889 = vmul.f32 %v877, %v886
      %v890 = vmul.f32 %v878, %v886
      %v891 = vmul.f32 %v879, %v886
      %v892 = vmul.f32 %v880, %v886
      %v893 = vmul.f32 %v881, %v886
      %v894 = vmul.f32 %v882, %v886
      %v895 = vadd.f32 %v859, %v887
      %v896 = vadd.f32 %v860, %v888
      %v897 = vadd.f32 %v861, %v889
      %v898 = vadd.f32 %v862, %v890
      %v899 = vadd.f32 %v863, %v891
      %v900 = vadd.f32 %v864, %v892
      %v901 = vadd.f32 %v865, %v893
      %v902 = vadd.f32 %v866, %v894
      %v903 = vld [vmem:[%s596 + $0x4] sm:$0x1]
      %v904 = vld [vmem:[%s596 + $0xc] sm:$0x1]
      %v905 = vld [vmem:[%s596 + $0x14] sm:$0x1]
      %v906 = vld [vmem:[%s596 + $0x1c] sm:$0x1]
      %v907 = vld [vmem:[%s596 + $0x24] sm:$0x1]
      %v908 = vld [vmem:[%s596 + $0x2c] sm:$0x1]
      %v909 = vld [vmem:[%s596 + $0x34] sm:$0x1]
      %v910 = vld [vmem:[%s596 + $0x3c] sm:$0x1]
      %v911 = vunpack.c.l.bf16 %v903
      %v912 = vunpack.c.l.bf16 %v904
      %v913 = vunpack.c.l.bf16 %v905
      %v914 = vunpack.c.l.bf16 %v906
      %v915 = vunpack.c.l.bf16 %v907
      %v916 = vunpack.c.l.bf16 %v908
      %v917 = vunpack.c.l.bf16 %v909
      %v918 = vunpack.c.l.bf16 %v910
      %v919 = vlaneseq
      %v920 = vshrl.u32 %v919, 7
      %v921 = vsub.s32 4, %v920
      %v922 = vrot.slane %v651, %v921
      %v923 = vmul.f32 %v875, %v922
      %v924 = vmul.f32 %v911, %v922
      %v925 = vmul.f32 %v876, %v922
      %v926 = vmul.f32 %v912, %v922
      %v927 = vmul.f32 %v877, %v922
      %v928 = vmul.f32 %v913, %v922
      %v929 = vmul.f32 %v878, %v922
      %v930 = vmul.f32 %v914, %v922
      %v931 = vmul.f32 %v879, %v922
      %v932 = vmul.f32 %v915, %v922
      %v933 = vmul.f32 %v880, %v922
      %v934 = vmul.f32 %v916, %v922
      %v935 = vmul.f32 %v881, %v922
      %v936 = vmul.f32 %v917, %v922
      %v937 = vmul.f32 %v882, %v922
      %v938 = vmul.f32 %v918, %v922
      %v955 = vrot.slane %v923, 1
      %v956 = vrot.slane %v924, 1
      %v957 = vsel %vm733, %v955, %v956
      %v958 = vrot.slane %v925, 1
      %v959 = vrot.slane %v926, 1
      %v960 = vsel %vm733, %v958, %v959
      %v961 = vrot.slane %v927, 1
      %v962 = vrot.slane %v928, 1
      %v963 = vsel %vm733, %v961, %v962
      %v964 = vrot.slane %v929, 1
      %v965 = vrot.slane %v930, 1
      %v966 = vsel %vm733, %v964, %v965
      %v967 = vrot.slane %v931, 1
      %v968 = vrot.slane %v932, 1
      %v969 = vsel %vm733, %v967, %v968
      %v970 = vrot.slane %v933, 1
      %v971 = vrot.slane %v934, 1
      %v972 = vsel %vm733, %v970, %v971
      %v973 = vrot.slane %v935, 1
      %v974 = vrot.slane %v936, 1
      %v975 = vsel %vm733, %v973, %v974
      %v976 = vrot.slane %v937, 1
      %v977 = vrot.slane %v938, 1
      %v978 = vsel %vm733, %v976, %v977
      %v987 = vadd.f32 %v895, %v957
      %v988 = vadd.f32 %v896, %v960
      %v989 = vadd.f32 %v897, %v963
      %v990 = vadd.f32 %v898, %v966
      %v991 = vadd.f32 %v899, %v969
      %v992 = vadd.f32 %v900, %v972
      %v993 = vadd.f32 %v901, %v975
      %v994 = vadd.f32 %v902, %v978
      %v995 = vld [vmem:[%s596] sm:$0xe]
      %v996 = vld [vmem:[%s596 + $0x8] sm:$0xe]
      %v997 = vld [vmem:[%s596 + $0x10] sm:$0xe]
      %v998 = vld [vmem:[%s596 + $0x18] sm:$0xe]
      %v999 = vld [vmem:[%s596 + $0x20] sm:$0xe]
      %v1000 = vld [vmem:[%s596 + $0x28] sm:$0xe]
      %v1001 = vld [vmem:[%s596 + $0x30] sm:$0xe]
      %v1002 = vld [vmem:[%s596 + $0x38] sm:$0xe]
      %v1003 = vunpack.c.l.bf16 %v995
      %v1004 = vunpack.c.l.bf16 %v996
      %v1005 = vunpack.c.l.bf16 %v997
      %v1006 = vunpack.c.l.bf16 %v998
      %v1007 = vunpack.c.l.bf16 %v999
      %v1008 = vunpack.c.l.bf16 %v1000
      %v1009 = vunpack.c.l.bf16 %v1001
      %v1010 = vunpack.c.l.bf16 %v1002
      %v1011 = vlaneseq
      %v1012 = vshrl.u32 %v1011, 7
      %v1013 = vsub.s32 5, %v1012
      %v1014 = vrot.slane %v651, %v1013
      %v1015 = vmul.f32 %v1003, %v1014
      %v1016 = vmul.f32 %v911, %v1014
      %v1017 = vmul.f32 %v1004, %v1014
      %v1018 = vmul.f32 %v912, %v1014
      %v1019 = vmul.f32 %v1005, %v1014
      %v1020 = vmul.f32 %v913, %v1014
      %v1021 = vmul.f32 %v1006, %v1014
      %v1022 = vmul.f32 %v914, %v1014
      %v1023 = vmul.f32 %v1007, %v1014
      %v1024 = vmul.f32 %v915, %v1014
      %v1025 = vmul.f32 %v1008, %v1014
      %v1026 = vmul.f32 %v916, %v1014
      %v1027 = vmul.f32 %v1009, %v1014
      %v1028 = vmul.f32 %v917, %v1014
      %v1029 = vmul.f32 %v1010, %v1014
      %v1030 = vmul.f32 %v918, %v1014
      %v1047 = vrot.slane %v1015, 2
      %v1048 = vrot.slane %v1016, 2
      %v1049 = vsel %vm826, %v1047, %v1048
      %v1050 = vrot.slane %v1017, 2
      %v1051 = vrot.slane %v1018, 2
      %v1052 = vsel %vm826, %v1050, %v1051
      %v1053 = vrot.slane %v1019, 2
      %v1054 = vrot.slane %v1020, 2
      %v1055 = vsel %vm826, %v1053, %v1054
      %v1056 = vrot.slane %v1021, 2
      %v1057 = vrot.slane %v1022, 2
      %v1058 = vsel %vm826, %v1056, %v1057
      %v1059 = vrot.slane %v1023, 2
      %v1060 = vrot.slane %v1024, 2
      %v1061 = vsel %vm826, %v1059, %v1060
      %v1062 = vrot.slane %v1025, 2
      %v1063 = vrot.slane %v1026, 2
      %v1064 = vsel %vm826, %v1062, %v1063
      %v1065 = vrot.slane %v1027, 2
      %v1066 = vrot.slane %v1028, 2
      %v1067 = vsel %vm826, %v1065, %v1066
      %v1068 = vrot.slane %v1029, 2
      %v1069 = vrot.slane %v1030, 2
      %v1070 = vsel %vm826, %v1068, %v1069
      %v1079 = vadd.f32 %v987, %v1049
      %v1080 = vadd.f32 %v988, %v1052
      %v1081 = vadd.f32 %v989, %v1055
      %v1082 = vadd.f32 %v990, %v1058
      %v1083 = vadd.f32 %v991, %v1061
      %v1084 = vadd.f32 %v992, %v1064
      %v1085 = vadd.f32 %v993, %v1067
      %v1086 = vadd.f32 %v994, %v1070
      %s1087 = scalar_lea.vmem [#allocation2], 16
      %v1088 = vld [vmem:[%s1087] sm:$0xf]
      %v1089 = vld [vmem:[%s1087 + $0x8] sm:$0xf]
      %v1090 = vld [vmem:[%s1087 + $0x10] sm:$0xf]
      %v1091 = vld [vmem:[%s1087 + $0x18] sm:$0xf]
      %v1092 = vld [vmem:[%s1087 + $0x20] sm:$0xf]
      %v1093 = vld [vmem:[%s1087 + $0x28] sm:$0xf]
      %v1094 = vld [vmem:[%s1087 + $0x30] sm:$0xf]
      %v1095 = vld [vmem:[%s1087 + $0x38] sm:$0xf]
      %v1096 = vunpack.c.l.bf16 %v1088
      %v1097 = vunpack.c.l.bf16 %v1089
      %v1098 = vunpack.c.l.bf16 %v1090
      %v1099 = vunpack.c.l.bf16 %v1091
      %v1100 = vunpack.c.l.bf16 %v1092
      %v1101 = vunpack.c.l.bf16 %v1093
      %v1102 = vunpack.c.l.bf16 %v1094
      %v1103 = vunpack.c.l.bf16 %v1095
      %v1104 = vlaneseq
      %v1105 = vshrl.u32 %v1104, 7
      %v1106 = vsub.s32 6, %v1105
      %v1107 = vrot.slane %v651, %v1106
      %v1108 = vmul.f32 %v1096, %v1107
      %v1109 = vmul.f32 %v1097, %v1107
      %v1110 = vmul.f32 %v1098, %v1107
      %v1111 = vmul.f32 %v1099, %v1107
      %v1112 = vmul.f32 %v1100, %v1107
      %v1113 = vmul.f32 %v1101, %v1107
      %v1114 = vmul.f32 %v1102, %v1107
      %v1115 = vmul.f32 %v1103, %v1107
      %v1116 = vadd.f32 %v1079, %v1108
      %v1117 = vadd.f32 %v1080, %v1109
      %v1118 = vadd.f32 %v1081, %v1110
      %v1119 = vadd.f32 %v1082, %v1111
      %v1120 = vadd.f32 %v1083, %v1112
      %v1121 = vadd.f32 %v1084, %v1113
      %v1122 = vadd.f32 %v1085, %v1114
      %v1123 = vadd.f32 %v1086, %v1115
      %v1124 = vld [vmem:[%s1087 + $0x4] sm:$0x1]
      %v1125 = vld [vmem:[%s1087 + $0xc] sm:$0x1]
      %v1126 = vld [vmem:[%s1087 + $0x14] sm:$0x1]
      %v1127 = vld [vmem:[%s1087 + $0x1c] sm:$0x1]
      %v1128 = vld [vmem:[%s1087 + $0x24] sm:$0x1]
      %v1129 = vld [vmem:[%s1087 + $0x2c] sm:$0x1]
      %v1130 = vld [vmem:[%s1087 + $0x34] sm:$0x1]
      %v1131 = vld [vmem:[%s1087 + $0x3c] sm:$0x1]
      %v1132 = vunpack.c.l.bf16 %v1124
      %v1133 = vunpack.c.l.bf16 %v1125
      %v1134 = vunpack.c.l.bf16 %v1126
      %v1135 = vunpack.c.l.bf16 %v1127
      %v1136 = vunpack.c.l.bf16 %v1128
      %v1137 = vunpack.c.l.bf16 %v1129
      %v1138 = vunpack.c.l.bf16 %v1130
      %v1139 = vunpack.c.l.bf16 %v1131
      %v1140 = vlaneseq
      %v1141 = vshrl.u32 %v1140, 7
      %v1142 = vsub.s32 7, %v1141
      %v1143 = vrot.slane %v651, %v1142
      %v1144 = vmul.f32 %v1096, %v1143
      %v1145 = vmul.f32 %v1132, %v1143
      %v1146 = vmul.f32 %v1097, %v1143
      %v1147 = vmul.f32 %v1133, %v1143
      %v1148 = vmul.f32 %v1098, %v1143
      %v1149 = vmul.f32 %v1134, %v1143
      %v1150 = vmul.f32 %v1099, %v1143
      %v1151 = vmul.f32 %v1135, %v1143
      %v1152 = vmul.f32 %v1100, %v1143
      %v1153 = vmul.f32 %v1136, %v1143
      %v1154 = vmul.f32 %v1101, %v1143
      %v1155 = vmul.f32 %v1137, %v1143
      %v1156 = vmul.f32 %v1102, %v1143
      %v1157 = vmul.f32 %v1138, %v1143
      %v1158 = vmul.f32 %v1103, %v1143
      %v1159 = vmul.f32 %v1139, %v1143
      %v1176 = vrot.slane %v1144, 1
      %v1177 = vrot.slane %v1145, 1
      %v1178 = vsel %vm733, %v1176, %v1177
      %v1179 = vrot.slane %v1146, 1
      %v1180 = vrot.slane %v1147, 1
      %v1181 = vsel %vm733, %v1179, %v1180
      %v1182 = vrot.slane %v1148, 1
      %v1183 = vrot.slane %v1149, 1
      %v1184 = vsel %vm733, %v1182, %v1183
      %v1185 = vrot.slane %v1150, 1
      %v1186 = vrot.slane %v1151, 1
      %v1187 = vsel %vm733, %v1185, %v1186
      %v1188 = vrot.slane %v1152, 1
      %v1189 = vrot.slane %v1153, 1
      %v1190 = vsel %vm733, %v1188, %v1189
      %v1191 = vrot.slane %v1154, 1
      %v1192 = vrot.slane %v1155, 1
      %v1193 = vsel %vm733, %v1191, %v1192
      %v1194 = vrot.slane %v1156, 1
      %v1195 = vrot.slane %v1157, 1
      %v1196 = vsel %vm733, %v1194, %v1195
      %v1197 = vrot.slane %v1158, 1
      %v1198 = vrot.slane %v1159, 1
      %v1199 = vsel %vm733, %v1197, %v1198
      %v1208 = vadd.f32 %v1116, %v1178
      %v1209 = vadd.f32 %v1117, %v1181
      %v1210 = vadd.f32 %v1118, %v1184
      %v1211 = vadd.f32 %v1119, %v1187
      %v1212 = vadd.f32 %v1120, %v1190
      %v1213 = vadd.f32 %v1121, %v1193
      %v1214 = vadd.f32 %v1122, %v1196
      %v1215 = vadd.f32 %v1123, %v1199
      %v1216 = vld [vmem:[%s1087] sm:$0xe]
      %v1217 = vld [vmem:[%s1087 + $0x8] sm:$0xe]
      %v1218 = vld [vmem:[%s1087 + $0x10] sm:$0xe]
      %v1219 = vld [vmem:[%s1087 + $0x18] sm:$0xe]
      %v1220 = vld [vmem:[%s1087 + $0x20] sm:$0xe]
      %v1221 = vld [vmem:[%s1087 + $0x28] sm:$0xe]
      %v1222 = vld [vmem:[%s1087 + $0x30] sm:$0xe]
      %v1223 = vld [vmem:[%s1087 + $0x38] sm:$0xe]
      %v1224 = vunpack.c.l.bf16 %v1216
      %v1225 = vunpack.c.l.bf16 %v1217
      %v1226 = vunpack.c.l.bf16 %v1218
      %v1227 = vunpack.c.l.bf16 %v1219
      %v1228 = vunpack.c.l.bf16 %v1220
      %v1229 = vunpack.c.l.bf16 %v1221
      %v1230 = vunpack.c.l.bf16 %v1222
      %v1231 = vunpack.c.l.bf16 %v1223
      %v1232 = vlaneseq
      %v1233 = vshrl.u32 %v1232, 7
      %v1234 = vsub.s32 0, %v1233
      %v1235 = vrot.slane %v652, %v1234
      %v1236 = vmul.f32 %v1224, %v1235
      %v1237 = vmul.f32 %v1132, %v1235
      %v1238 = vmul.f32 %v1225, %v1235
      %v1239 = vmul.f32 %v1133, %v1235
      %v1240 = vmul.f32 %v1226, %v1235
      %v1241 = vmul.f32 %v1134, %v1235
      %v1242 = vmul.f32 %v1227, %v1235
      %v1243 = vmul.f32 %v1135, %v1235
      %v1244 = vmul.f32 %v1228, %v1235
      %v1245 = vmul.f32 %v1136, %v1235
      %v1246 = vmul.f32 %v1229, %v1235
      %v1247 = vmul.f32 %v1137, %v1235
      %v1248 = vmul.f32 %v1230, %v1235
      %v1249 = vmul.f32 %v1138, %v1235
      %v1250 = vmul.f32 %v1231, %v1235
      %v1251 = vmul.f32 %v1139, %v1235
      %v1268 = vrot.slane %v1236, 2
      %v1269 = vrot.slane %v1237, 2
      %v1270 = vsel %vm826, %v1268, %v1269
      %v1271 = vrot.slane %v1238, 2
      %v1272 = vrot.slane %v1239, 2
      %v1273 = vsel %vm826, %v1271, %v1272
      %v1274 = vrot.slane %v1240, 2
      %v1275 = vrot.slane %v1241, 2
      %v1276 = vsel %vm826, %v1274, %v1275
      %v1277 = vrot.slane %v1242, 2
      %v1278 = vrot.slane %v1243, 2
      %v1279 = vsel %vm826, %v1277, %v1278
      %v1280 = vrot.slane %v1244, 2
      %v1281 = vrot.slane %v1245, 2
      %v1282 = vsel %vm826, %v1280, %v1281
      %v1283 = vrot.slane %v1246, 2
      %v1284 = vrot.slane %v1247, 2
      %v1285 = vsel %vm826, %v1283, %v1284
      %v1286 = vrot.slane %v1248, 2
      %v1287 = vrot.slane %v1249, 2
      %v1288 = vsel %vm826, %v1286, %v1287
      %v1289 = vrot.slane %v1250, 2
      %v1290 = vrot.slane %v1251, 2
      %v1291 = vsel %vm826, %v1289, %v1290
      %v1300 = vadd.f32 %v1208, %v1270
      %v1301 = vadd.f32 %v1209, %v1273
      %v1302 = vadd.f32 %v1210, %v1276
      %v1303 = vadd.f32 %v1211, %v1279
      %v1304 = vadd.f32 %v1212, %v1282
      %v1305 = vadd.f32 %v1213, %v1285
      %v1306 = vadd.f32 %v1214, %v1288
      %v1307 = vadd.f32 %v1215, %v1291
      %v1308 = vld [vmem:[%s4] sm:$0x1]
      %v1310 = vlaneseq
      %v1311 = vshrl.u32 %v1310, 7
      %v1312 = vsub.s32 0, %v1311
      %v1313 = vrot.slane %v1308, %v1312
      %v1315 = vadd.f32 %v1300, %v1313
      %v1316 = vadd.f32 %v1301, %v1313
      %v1317 = vadd.f32 %v1302, %v1313
      %v1318 = vadd.f32 %v1303, %v1313
      %v1319 = vadd.f32 %v1304, %v1313
      %v1320 = vadd.f32 %v1305, %v1313
      %v1321 = vadd.f32 %v1306, %v1313
      %v1322 = vadd.f32 %v1307, %v1313
      %v1323 = vmax.f32 %v1315, 0.0
      %v1324 = vmax.f32 %v1316, 0.0
      %v1325 = vmax.f32 %v1317, 0.0
      %v1326 = vmax.f32 %v1318, 0.0
      %v1327 = vmax.f32 %v1319, 0.0
      %v1328 = vmax.f32 %v1320, 0.0
      %v1329 = vmax.f32 %v1321, 0.0
      %v1330 = vmax.f32 %v1322, 0.0
      %v1331 = vmin.f32 %v1323, 6.0
      %v1332 = vmin.f32 %v1324, 6.0
      %v1333 = vmin.f32 %v1325, 6.0
      %v1334 = vmin.f32 %v1326, 6.0
      %v1335 = vmin.f32 %v1327, 6.0
      %v1336 = vmin.f32 %v1328, 6.0
      %v1337 = vmin.f32 %v1329, 6.0
      %v1338 = vmin.f32 %v1330, 6.0
      %v1339 = vpack.c.bf16 %v1332, %v1331
      %v1340 = vpack.c.bf16 %v1334, %v1333
      %v1341 = vpack.c.bf16 %v1336, %v1335
      %v1342 = vpack.c.bf16 %v1338, %v1337
      %v1343 = vld [vmem:[%s5] sm:$0xf]
      %v1344 = vld [vmem:[%s5 + $0x4] sm:$0xf]
      %v1345 = vld [vmem:[%s5 + $0x8] sm:$0xf]
      %v1346 = vld [vmem:[%s5 + $0xc] sm:$0xf]
      %v1347 = vld [vmem:[%s5 + $0x10] sm:$0xf]
      %v1348 = vld [vmem:[%s5 + $0x14] sm:$0xf]
      %v1349 = vld [vmem:[%s5 + $0x18] sm:$0xf]
      %v1350 = vld [vmem:[%s5 + $0x1c] sm:$0xf]
      %v1351 = vld [vmem:[%s5 + $0x20] sm:$0xf]
      %v1352 = vld [vmem:[%s5 + $0x24] sm:$0xf]
      %v1353 = vld [vmem:[%s5 + $0x28] sm:$0xf]
      %v1354 = vld [vmem:[%s5 + $0x2c] sm:$0xf]
      %v1355 = vld [vmem:[%s5 + $0x30] sm:$0xf]
      %v1356 = vld [vmem:[%s5 + $0x34] sm:$0xf]
      %v1357 = vld [vmem:[%s5 + $0x38] sm:$0xf]
      %v1358 = vld [vmem:[%s5 + $0x3c] sm:$0xf]
      %v1359 = vld [vmem:[%s6] sm:$0x1]
      %v1361 = vlaneseq
      %v1362 = vshrl.u32 %v1361, 7
      %v1363 = vsub.s32 0, %v1362
      %v1364 = vrot.slane %v1359, %v1363
      %v1382 = vunpack.c.l.b16 %v1343
      %v1383 = vunpack.c.l.b16 %v1344
      %v1384 = vunpack.c.l.b16 %v1345
      %v1385 = vunpack.c.l.b16 %v1346
      %v1386 = vunpack.c.l.b16 %v1347
      %v1387 = vunpack.c.l.b16 %v1348
      %v1388 = vunpack.c.l.b16 %v1349
      %v1389 = vunpack.c.l.b16 %v1350
      %v1390 = vunpack.c.l.b16 %v1351
      %v1391 = vunpack.c.l.b16 %v1352
      %v1392 = vunpack.c.l.b16 %v1353
      %v1393 = vunpack.c.l.b16 %v1354
      %v1394 = vunpack.c.l.b16 %v1355
      %v1395 = vunpack.c.l.b16 %v1356
      %v1396 = vunpack.c.l.b16 %v1357
      %v1397 = vunpack.c.l.b16 %v1358
      %v1398 = vpack.c.b16 %v1383, %v1382
      %v1399 = vpack.c.b16 %v1385, %v1384
      %v1400 = vpack.c.b16 %v1387, %v1386
      %v1401 = vpack.c.b16 %v1389, %v1388
      %v1402 = vpack.c.b16 %v1391, %v1390
      %v1403 = vpack.c.b16 %v1393, %v1392
      %v1404 = vpack.c.b16 %v1395, %v1394
      %v1405 = vpack.c.b16 %v1397, %v1396
      %1414 = vmatprep.subr.bf16.mxu0 0
      %1415 = vmatpush1.bf16.msra.mxu0 %v1398
      %1416 = vmatprep.subr.bf16.mxu0 0
      %1417 = vmatpush1.bf16.msra.mxu0 %v1399
      %1418 = vmatprep.subr.bf16.mxu0 0
      %1419 = vmatpush1.bf16.msra.mxu0 %v1400
      %1420 = vmatprep.subr.bf16.mxu0 0
      %1421 = vmatpush1.bf16.msra.mxu0 %v1401
      %1422 = vmatprep.subr.bf16.mxu0 0
      %1423 = vmatpush1.bf16.msra.mxu0 %v1402
      %1424 = vmatprep.subr.bf16.mxu0 0
      %1425 = vmatpush1.bf16.msra.mxu0 %v1403
      %1426 = vmatprep.subr.bf16.mxu0 0
      %1427 = vmatpush1.bf16.msra.mxu0 %v1404
      %1428 = vmatprep.subr.bf16.mxu0 0
      %1429 = vmatpush1.bf16.msra.mxu0 %v1405
      %1430 = vmatprep.subr.bf16.mxu0 0
      %1431 = vmatpush1.bf16.msra.mxu0 0
      %1432 = vmatprep.subr.bf16.mxu0 0
      %1433 = vmatpush1.bf16.msra.mxu0 0
      %1434 = vmatprep.subr.bf16.mxu0 0
      %1435 = vmatpush1.bf16.msra.mxu0 0
      %1436 = vmatprep.subr.bf16.mxu0 0
      %1437 = vmatpush1.bf16.msra.mxu0 0
      %1438 = vmatprep.subr.bf16.mxu0 0
      %1439 = vmatpush1.bf16.msra.mxu0 0
      %1440 = vmatprep.subr.bf16.mxu0 0
      %1441 = vmatpush1.bf16.msra.mxu0 0
      %1442 = vmatprep.subr.bf16.mxu0 0
      %1443 = vmatpush1.bf16.msra.mxu0 0
      %1444 = vmatprep.subr.bf16.mxu0 0
      %1445 = vmatpush1.bf16.msra.mxu0 0
      %1446 = vmatprep.mubr.bf16.mxu0 0
      %1447 = vmatmul.mubr.bf16.gmra.mrb[0].mxu0 %v1339
      %v1448 = vpop.f32.mrb[0].mxu0
      %v1449 = vadd.f32 %v1364, %v1448
      %v1450 = vpop.f32.mrb[0].mxu0
      %v1451 = vpop.f32.mrb[0].mxu0
      %v1452 = vadd.f32 %v1364, %v1451
      %v1453 = vpop.f32.mrb[0].mxu0
      %1454 = vmatprep.mubr.bf16.mxu0 0
      %1455 = vmatmul.mubr.bf16.gmra.mrb[0].mxu0 %v1340
      %v1456 = vpop.f32.mrb[0].mxu0
      %v1457 = vadd.f32 %v1364, %v1456
      %v1458 = vpop.f32.mrb[0].mxu0
      %v1459 = vpop.f32.mrb[0].mxu0
      %v1460 = vadd.f32 %v1364, %v1459
      %v1461 = vpop.f32.mrb[0].mxu0
      %1462 = vmatprep.mubr.bf16.mxu0 0
      %1463 = vmatmul.mubr.bf16.gmra.mrb[0].mxu0 %v1341
      %v1464 = vpop.f32.mrb[0].mxu0
      %v1465 = vadd.f32 %v1364, %v1464
      %v1466 = vpop.f32.mrb[0].mxu0
      %v1467 = vpop.f32.mrb[0].mxu0
      %v1468 = vadd.f32 %v1364, %v1467
      %v1469 = vpop.f32.mrb[0].mxu0
      %1470 = vmatprep.mubr.bf16.mxu0 0
      %1471 = vmatmul.mubr.bf16.gmra.mrb[0].mxu0 %v1342
      %v1472 = vpop.f32.mrb[0].mxu0
      %v1473 = vadd.f32 %v1364, %v1472
      %v1474 = vpop.f32.mrb[0].mxu0
      %v1475 = vpop.f32.mrb[0].mxu0
      %v1476 = vadd.f32 %v1364, %v1475
      %v1477 = vpop.f32.mrb[0].mxu0
      %1478 = vdwg.mxu0
      %v1479 = vunpack.c.l.bf16 %v280
      %v1480 = vunpack.c.l.bf16 %v281
      %v1481 = vunpack.c.l.bf16 %v282
      %v1482 = vunpack.c.l.bf16 %v283
      %v1483 = vunpack.c.l.bf16 %v284
      %v1484 = vunpack.c.l.bf16 %v285
      %v1485 = vunpack.c.l.bf16 %v286
      %v1486 = vunpack.c.l.bf16 %v287
      %v1487 = vadd.f32 %v1449, %v1479
      %v1488 = vadd.f32 %v1452, %v1480
      %v1489 = vadd.f32 %v1457, %v1481
      %v1490 = vadd.f32 %v1460, %v1482
      %v1491 = vadd.f32 %v1465, %v1483
      %v1492 = vadd.f32 %v1468, %v1484
      %v1493 = vadd.f32 %v1473, %v1485
      %v1494 = vadd.f32 %v1476, %v1486
      %v1495 = vpack.c.bf16 %v1487, %v1487
      %v1496 = vpack.c.bf16 %v1488, %v1488
      %v1497 = vpack.c.bf16 %v1489, %v1489
      %v1498 = vpack.c.bf16 %v1490, %v1490
      %v1499 = vpack.c.bf16 %v1491, %v1491
      %v1500 = vpack.c.bf16 %v1492, %v1492
      %v1501 = vpack.c.bf16 %v1493, %v1493
      %v1502 = vpack.c.bf16 %v1494, %v1494
      %1503 = vst [vmem:[%s278] sm:$0xf] %v1495
      %1504 = vst [vmem:[%s278 + $0x4] sm:$0xf] %v1496
      %1505 = vst [vmem:[%s278 + $0x8] sm:$0xf] %v1497
      %1506 = vst [vmem:[%s278 + $0xc] sm:$0xf] %v1498
      %1507 = vst [vmem:[%s278 + $0x10] sm:$0xf] %v1499
      %1508 = vst [vmem:[%s278 + $0x14] sm:$0xf] %v1500
      %1509 = vst [vmem:[%s278 + $0x18] sm:$0xf] %v1501
      %1510 = vst [vmem:[%s278 + $0x1c] sm:$0xf] %v1502
      %p1511 = scmp.lt.s32.totalorder %s18, 1
      %s1512 = scalar_select %p1511, %s18, 1
      %s1513 = smul.addr %s1512, 8
      %s1514 = smul.addr %s1513, 4
      %s1515 = scalar_lea.vmem %s7, %s1514
      // Predicated region
      $region49: #{_lambda_.8} parent=47 // pred_check
        %p1516 = pneg %p188
      $region50: #{_lambda_.8} parent=47 // pred_check_branch
        %1518 = sbr.rel (%p1516) target = $region52
      $region51: #{_lambda_.8} parent=47 // pred_region
        _
      $region52: #{_lambda_.8} parent=47 // pred_fallthru
        _
    $region48: #{_lambda_.8} parent=5 // pred_fallthru
      _
    %p1519 = scmp.le.s32.totalorder 2, %s13
    // Predicated region
    $region53: #{_lambda_.8} parent=5 // pred_check
      %p1520 = pneg %p1519
    $region54: #{_lambda_.8} parent=5 // pred_check_branch
      %1522 = sbr.rel (%p1520) target = $region56
    $region55: #{_lambda_.8} parent=5 // pred_region
      %s1523 = ssub.s32 %s13, 2
      // Predicated region
      $region57: #{_lambda_.8} parent=55 // pred_check
        %p1524 = pneg %p194
      $region58: #{_lambda_.8} parent=55 // pred_check_branch
        %1526 = sbr.rel (%p1524) target = $region60
      $region59: #{_lambda_.8} parent=55 // pred_region
        %p1527 = scmp.lt.s32.totalorder %s19, 1
        %s1528 = scalar_select %p1527, %s19, 1
        %s1529 = smul.addr %s1528, 8
        %s1530 = smul.addr %s1529, 4
        %s1531 = scalar_lea.vmem %s7, %s1530
      $region60: #{_lambda_.8} parent=55 // pred_fallthru
        _
    $region56: #{_lambda_.8} parent=5 // pred_fallthru
      _
  $region6: #{_lambda_.8} parent=0 // loop_footer
    %s17 = sadd.s32 1, %s13
  $region7: #{_lambda_.8} parent=0 // loop_footer_branch
    %12 = sbr.rel target = $region3
  $region8: #{_lambda_.8} parent=0 // loop_exit
    _

// kernel: _lambda_.11
$region0: #{_lambda_.11}
  #allocation0 [shape = 'u32[]', space=smem, size = 0x4, offset = 0x4, fixed_abs, tag = 'smem constant byte address 0x4 - core index']
  #allocation1 [shape = 'u32[144,128]{1,0:T(1,128)}', space=vmem, size = 0x12000, scoped, tag = 'internal scratch']
  #allocation2 [shape = 'bf16[6,6,128]{2,1,0:T(8,128)(2,1)}', space=vmem, size = 0x3000, scoped, tag = 'scratch operand']
  %s0 = inlined_call_operand.vmem [shape: bf16[2,4,4,128], index: 0, kind: input, shape index: {}]
  %s1 = inlined_call_operand.vmem [shape: bf16[128,128], index: 1, kind: input, shape index: {}]
  %s2 = inlined_call_operand.vmem [shape: f32[1,128], index: 2, kind: input, shape index: {}, may-alias: {2,4,6}]
  %s3 = inlined_call_operand.vmem [shape: f32[9,128], index: 3, kind: input, shape index: {}]
  %s4 = inlined_call_operand.vmem [shape: f32[1,128], index: 4, kind: input, shape index: {}, may-alias: {2,4,6}]
  %s5 = inlined_call_operand.vmem [shape: bf16[128,128], index: 5, kind: input, shape index: {}]
  %s6 = inlined_call_operand.vmem [shape: f32[1,128], index: 6, kind: input, shape index: {}, may-alias: {2,4,6}]
  %s7 = inlined_call_operand.vmem [shape: bf16[2,2,2,128], index: 7, kind: output, shape index: {}]
  %s8 = sld [smem:[#allocation0]]
  $region61: #{_lambda_.11} parent=0
    _
  %s10 = ssub.s32 1, %s8
  %s11 = scalar_select 0, %s10, %s8
  loop: start=0, step=1, limit=4
  $region2: #{_lambda_.11} parent=0 // loop_pre_header
    _
  $region3: #{_lambda_.11} parent=0 // loop_header
    %s13 = sphi 0, %s17
    %p14 = scmp.ge.s32.totalorder %s13, 4
    %s23 = sphi 0, %s25
    %s26 = sphi 0, %s23
    %s27 = sphi 0, %s26
    %s43 = sphi 0, %s27
    %s47 = sphi 0, %s47
    %s49 = sphi 0, %s47
    %s50 = sphi 0, %s49
    %s64 = sphi 0, %s50
    %s68 = sphi 0, %s68
    %s70 = sphi 0, %s68
    %s71 = sphi 0, %s70
    %s85 = sphi 0, %s71
    %s89 = sphi 0, %s89
    %s91 = sphi 0, %s89
    %s92 = sphi 0, %s91
    %s106 = sphi 0, %s92
    %s110 = sphi 0, %s110
    %s112 = sphi 0, %s110
    %s113 = sphi 0, %s112
    %s127 = sphi 0, %s113
    %s131 = sphi 0, %s131
    %s133 = sphi 0, %s131
    %s134 = sphi 0, %s133
    %s148 = sphi 0, %s134
    %s152 = sphi 0, %s152
    %s154 = sphi 0, %s152
    %s155 = sphi 0, %s154
    %s169 = sphi 0, %s155
    %s175 = sphi 0, %s177
    %s178 = sphi 0, %s175
    %s179 = sphi 0, %s178
    %s195 = sphi 0, %s179
  $region4: #{_lambda_.11} parent=0 // loop_header_branch
    %16 = sbr.rel (%p14) target = $region8
  $region5: #{_lambda_.11} parent=0 // loop_body
    %s18 = ssub.s32 %s13, 1
    %s19 = ssub.s32 %s13, 2
    %s20 = sadd.s32 %s13, 1
    %s21 = ssub.s32 %s13, %s20
    %p22 = scmp.eq.s32.totalorder %s21, 0
    %s24 = sadd.s32 %s23, 1
    %s25 = scalar_select %p22, %s23, %s24
    %p28 = pneg %p22
    %p29 = scmp.eq.s32.totalorder %s13, 1
    %p30 = por %p28, %p29
    %p31 = scmp.ne.s32.totalorder %s23, %s26
    %p32 = scmp.eq.s32.totalorder %s13, 0
    %p33 = por %p31, %p32
    %p34 = scmp.ne.s32.totalorder %s23, %s26
    %p35 = scmp.eq.s32.totalorder %s18, 1
    %p36 = por %p34, %p35
    %p37 = scmp.ne.s32.totalorder %s26, %s27
    %p38 = scmp.eq.s32.totalorder %s18, 0
    %p39 = por %p37, %p38
    %p40 = scmp.ne.s32.totalorder %s26, %s27
    %p41 = scmp.eq.s32.totalorder %s19, 1
    %p42 = por %p40, %p41
    %p44 = scmp.ne.s32.totalorder %s27, %s43
    %p45 = scmp.eq.s32.totalorder %s19, 0
    %p46 = por %p44, %p45
    %s48 = sadd.s32 %s47, 1
    %p51 = scmp.eq.s32.totalorder %s13, 1
    %p52 = scmp.ne.s32.totalorder %s47, %s49
    %p53 = scmp.eq.s32.totalorder %s13, 0
    %p54 = por %p52, %p53
    %p55 = scmp.ne.s32.totalorder %s47, %s49
    %p56 = scmp.eq.s32.totalorder %s18, 1
    %p57 = por %p55, %p56
    %p58 = scmp.ne.s32.totalorder %s49, %s50
    %p59 = scmp.eq.s32.totalorder %s18, 0
    %p60 = por %p58, %p59
    %p61 = scmp.ne.s32.totalorder %s49, %s50
    %p62 = scmp.eq.s32.totalorder %s19, 1
    %p63 = por %p61, %p62
    %p65 = scmp.ne.s32.totalorder %s50, %s64
    %p66 = scmp.eq.s32.totalorder %s19, 0
    %p67 = por %p65, %p66
    %s69 = sadd.s32 %s68, 1
    %p72 = scmp.eq.s32.totalorder %s13, 1
    %p73 = scmp.ne.s32.totalorder %s68, %s70
    %p74 = scmp.eq.s32.totalorder %s13, 0
    %p75 = por %p73, %p74
    %p76 = scmp.ne.s32.totalorder %s68, %s70
    %p77 = scmp.eq.s32.totalorder %s18, 1
    %p78 = por %p76, %p77
    %p79 = scmp.ne.s32.totalorder %s70, %s71
    %p80 = scmp.eq.s32.totalorder %s18, 0
    %p81 = por %p79, %p80
    %p82 = scmp.ne.s32.totalorder %s70, %s71
    %p83 = scmp.eq.s32.totalorder %s19, 1
    %p84 = por %p82, %p83
    %p86 = scmp.ne.s32.totalorder %s71, %s85
    %p87 = scmp.eq.s32.totalorder %s19, 0
    %p88 = por %p86, %p87
    %s90 = sadd.s32 %s89, 1
    %p93 = scmp.eq.s32.totalorder %s13, 1
    %p94 = scmp.ne.s32.totalorder %s89, %s91
    %p95 = scmp.eq.s32.totalorder %s13, 0
    %p96 = por %p94, %p95
    %p97 = scmp.ne.s32.totalorder %s89, %s91
    %p98 = scmp.eq.s32.totalorder %s18, 1
    %p99 = por %p97, %p98
    %p100 = scmp.ne.s32.totalorder %s91, %s92
    %p101 = scmp.eq.s32.totalorder %s18, 0
    %p102 = por %p100, %p101
    %p103 = scmp.ne.s32.totalorder %s91, %s92
    %p104 = scmp.eq.s32.totalorder %s19, 1
    %p105 = por %p103, %p104
    %p107 = scmp.ne.s32.totalorder %s92, %s106
    %p108 = scmp.eq.s32.totalorder %s19, 0
    %p109 = por %p107, %p108
    %s111 = sadd.s32 %s110, 1
    %p114 = scmp.eq.s32.totalorder %s13, 1
    %p115 = scmp.ne.s32.totalorder %s110, %s112
    %p116 = scmp.eq.s32.totalorder %s13, 0
    %p117 = por %p115, %p116
    %p118 = scmp.ne.s32.totalorder %s110, %s112
    %p119 = scmp.eq.s32.totalorder %s18, 1
    %p120 = por %p118, %p119
    %p121 = scmp.ne.s32.totalorder %s112, %s113
    %p122 = scmp.eq.s32.totalorder %s18, 0
    %p123 = por %p121, %p122
    %p124 = scmp.ne.s32.totalorder %s112, %s113
    %p125 = scmp.eq.s32.totalorder %s19, 1
    %p126 = por %p124, %p125
    %p128 = scmp.ne.s32.totalorder %s113, %s127
    %p129 = scmp.eq.s32.totalorder %s19, 0
    %p130 = por %p128, %p129
    %s132 = sadd.s32 %s131, 1
    %p135 = scmp.eq.s32.totalorder %s13, 1
    %p136 = scmp.ne.s32.totalorder %s131, %s133
    %p137 = scmp.eq.s32.totalorder %s13, 0
    %p138 = por %p136, %p137
    %p139 = scmp.ne.s32.totalorder %s131, %s133
    %p140 = scmp.eq.s32.totalorder %s18, 1
    %p141 = por %p139, %p140
    %p142 = scmp.ne.s32.totalorder %s133, %s134
    %p143 = scmp.eq.s32.totalorder %s18, 0
    %p144 = por %p142, %p143
    %p145 = scmp.ne.s32.totalorder %s133, %s134
    %p146 = scmp.eq.s32.totalorder %s19, 1
    %p147 = por %p145, %p146
    %p149 = scmp.ne.s32.totalorder %s134, %s148
    %p150 = scmp.eq.s32.totalorder %s19, 0
    %p151 = por %p149, %p150
    %s153 = sadd.s32 %s152, 1
    %p156 = scmp.eq.s32.totalorder %s13, 1
    %p157 = scmp.ne.s32.totalorder %s152, %s154
    %p158 = scmp.eq.s32.totalorder %s13, 0
    %p159 = por %p157, %p158
    %p160 = scmp.ne.s32.totalorder %s152, %s154
    %p161 = scmp.eq.s32.totalorder %s18, 1
    %p162 = por %p160, %p161
    %p163 = scmp.ne.s32.totalorder %s154, %s155
    %p164 = scmp.eq.s32.totalorder %s18, 0
    %p165 = por %p163, %p164
    %p166 = scmp.ne.s32.totalorder %s154, %s155
    %p167 = scmp.eq.s32.totalorder %s19, 1
    %p168 = por %p166, %p167
    %p170 = scmp.ne.s32.totalorder %s155, %s169
    %p171 = scmp.eq.s32.totalorder %s19, 0
    %p172 = por %p170, %p171
    %s173 = ssub.s32 %s13, %s20
    %p174 = scmp.eq.s32.totalorder %s173, 0
    %s176 = sadd.s32 %s175, 1
    %s177 = scalar_select %p174, %s175, %s176
    %p180 = pneg %p174
    %p181 = scmp.eq.s32.totalorder %s13, 1
    %p182 = por %p180, %p181
    %p183 = scmp.ne.s32.totalorder %s175, %s178
    %p184 = scmp.eq.s32.totalorder %s13, 0
    %p185 = por %p183, %p184
    %p186 = scmp.ne.s32.totalorder %s175, %s178
    %p187 = scmp.eq.s32.totalorder %s18, 1
    %p188 = por %p186, %p187
    %p189 = scmp.ne.s32.totalorder %s178, %s179
    %p190 = scmp.eq.s32.totalorder %s18, 0
    %p191 = por %p189, %p190
    %p192 = scmp.ne.s32.totalorder %s178, %s179
    %p193 = scmp.eq.s32.totalorder %s19, 1
    %p194 = por %p192, %p193
    %p196 = scmp.ne.s32.totalorder %s179, %s195
    %p197 = scmp.eq.s32.totalorder %s19, 0
    %p198 = por %p196, %p197
    %p199 = scmp.le.s32.totalorder 1, %s13
    %p200 = scmp.lt.s32.totalorder %s13, 3
    %p201 = pnand %p199, %p200
    %p202 = pneg %p201
    // Predicated region
    $region9: #{_lambda_.11} parent=5 // pred_check
      _
    $region10: #{_lambda_.11} parent=5 // pred_check_branch
      %204 = sbr.rel (%p201) target = $region12
    $region11: #{_lambda_.11} parent=5 // pred_region
      %s205 = ssub.s32 %s13, 1
      // Predicated region
      $region13: #{_lambda_.11} parent=11 // pred_check
        %p206 = pneg %p60
      $region14: #{_lambda_.11} parent=11 // pred_check_branch
        %208 = sbr.rel (%p206) target = $region16
      $region15: #{_lambda_.11} parent=11 // pred_region
        _
      $region16: #{_lambda_.11} parent=11 // pred_fallthru
        _
      // Predicated region
      $region17: #{_lambda_.11} parent=11 // pred_check
        %p209 = pneg %p81
      $region18: #{_lambda_.11} parent=11 // pred_check_branch
        %211 = sbr.rel (%p209) target = $region20
      $region19: #{_lambda_.11} parent=11 // pred_region
        _
      $region20: #{_lambda_.11} parent=11 // pred_fallthru
        _
      // Predicated region
      $region21: #{_lambda_.11} parent=11 // pred_check
        %p212 = pneg %p102
      $region22: #{_lambda_.11} parent=11 // pred_check_branch
        %214 = sbr.rel (%p212) target = $region24
      $region23: #{_lambda_.11} parent=11 // pred_region
        _
      $region24: #{_lambda_.11} parent=11 // pred_fallthru
        _
      // Predicated region
      $region25: #{_lambda_.11} parent=11 // pred_check
        %p215 = pneg %p123
      $region26: #{_lambda_.11} parent=11 // pred_check_branch
        %217 = sbr.rel (%p215) target = $region28
      $region27: #{_lambda_.11} parent=11 // pred_region
        _
      $region28: #{_lambda_.11} parent=11 // pred_fallthru
        _
      // Predicated region
      $region29: #{_lambda_.11} parent=11 // pred_check
        %p218 = pneg %p144
      $region30: #{_lambda_.11} parent=11 // pred_check_branch
        %220 = sbr.rel (%p218) target = $region32
      $region31: #{_lambda_.11} parent=11 // pred_region
        _
      $region32: #{_lambda_.11} parent=11 // pred_fallthru
        _
      // Predicated region
      $region33: #{_lambda_.11} parent=11 // pred_check
        %p221 = pneg %p165
      $region34: #{_lambda_.11} parent=11 // pred_check_branch
        %223 = sbr.rel (%p221) target = $region36
      $region35: #{_lambda_.11} parent=11 // pred_region
        _
      $region36: #{_lambda_.11} parent=11 // pred_fallthru
        _
    $region12: #{_lambda_.11} parent=5 // pred_fallthru
      _
    %p224 = scmp.lt.s32.totalorder %s13, 2
    // Predicated region
    $region37: #{_lambda_.11} parent=5 // pred_check
      %p225 = pneg %p224
    $region38: #{_lambda_.11} parent=5 // pred_check_branch
      %227 = sbr.rel (%p225) target = $region40
    $region39: #{_lambda_.11} parent=5 // pred_region
      // Predicated region
      $region41: #{_lambda_.11} parent=39 // pred_check
        %p228 = pneg %p33
      $region42: #{_lambda_.11} parent=39 // pred_check_branch
        %230 = sbr.rel (%p228) target = $region44
      $region43: #{_lambda_.11} parent=39 // pred_region
        %p231 = scmp.lt.s32.totalorder %s13, 1
        %s232 = scalar_select %p231, %s13, 1
        %s233 = smul.addr %s232, 4
        %s234 = smul.addr %s233, 2
        %s235 = scalar_lea.vmem %s0, %s234
      $region44: #{_lambda_.11} parent=39 // pred_fallthru
        _
    $region40: #{_lambda_.11} parent=5 // pred_fallthru
      _
    %p236 = scmp.le.s32.totalorder 1, %s13
    %p237 = scmp.lt.s32.totalorder %s13, 3
    %p238 = pnand %p236, %p237
    %p239 = pneg %p238
    // Predicated region
    $region45: #{_lambda_.11} parent=5 // pred_check
      _
    $region46: #{_lambda_.11} parent=5 // pred_check_branch
      %241 = sbr.rel (%p238) target = $region48
    $region47: #{_lambda_.11} parent=5 // pred_region
      %s242 = ssub.s32 %s13, 1
      %p243 = scmp.lt.s32.totalorder %s18, 1
      %s244 = scalar_select %p243, %s18, 1
      %s245 = smul.addr %s244, 4
      %s246 = smul.addr %s245, 2
      %s247 = scalar_lea.vmem %s0, %s246
      %p248 = pneg %p39
      %p249 = pneg %p36
      %p250 = pneg %p60
      %p251 = pneg %p57
      %p252 = pneg %p81
      %p253 = pneg %p78
      %p254 = pneg %p102
      %p255 = pneg %p99
      %p256 = pneg %p123
      %p257 = pneg %p120
      %p258 = pneg %p144
      %p259 = pneg %p141
      %p260 = pneg %p165
      %p261 = pneg %p162
      %p262 = pneg %p191
      %p263 = pneg %p188
      %p264 = scmp.lt.s32.totalorder %s18, 1
      %s265 = scalar_select %p264, %s18, 1
      %s266 = smul.addr %s265, 2
      %s267 = scalar_lea.vmem %s7, %s266
      %p268 = scmp.lt.s32.totalorder %s18, 1
      %s269 = scalar_select %p268, %s18, 1
      %s270 = smul.addr %s269, 4
      %s271 = smul.addr %s270, 2
      %s272 = scalar_lea.vmem %s0, %s271
      %p273 = scmp.lt.s32.totalorder %s18, 1
      %s274 = scalar_select %p273, %s18, 1
      %s275 = smul.addr %s274, 2
      %s276 = scalar_lea.vmem %s7, %s275
      %v278 = vld [vmem:[%s272] sm:$0x3]
      %v279 = vld [vmem:[%s272 + $0x2] sm:$0x3]
      %v280 = vld [vmem:[%s272 + $0x4] sm:$0x3]
      %v281 = vld [vmem:[%s272 + $0x6] sm:$0x3]
      %v282 = vld [vmem:[%s1] sm:$0xf]
      %v283 = vld [vmem:[%s1 + $0x4] sm:$0xf]
      %v284 = vld [vmem:[%s1 + $0x8] sm:$0xf]
      %v285 = vld [vmem:[%s1 + $0xc] sm:$0xf]
      %v286 = vld [vmem:[%s1 + $0x10] sm:$0xf]
      %v287 = vld [vmem:[%s1 + $0x14] sm:$0xf]
      %v288 = vld [vmem:[%s1 + $0x18] sm:$0xf]
      %v289 = vld [vmem:[%s1 + $0x1c] sm:$0xf]
      %v290 = vld [vmem:[%s1 + $0x20] sm:$0xf]
      %v291 = vld [vmem:[%s1 + $0x24] sm:$0xf]
      %v292 = vld [vmem:[%s1 + $0x28] sm:$0xf]
      %v293 = vld [vmem:[%s1 + $0x2c] sm:$0xf]
      %v294 = vld [vmem:[%s1 + $0x30] sm:$0xf]
      %v295 = vld [vmem:[%s1 + $0x34] sm:$0xf]
      %v296 = vld [vmem:[%s1 + $0x38] sm:$0xf]
      %v297 = vld [vmem:[%s1 + $0x3c] sm:$0xf]
      %v298 = vld [vmem:[%s2] sm:$0x1]
      %v300 = vlaneseq
      %v301 = vshrl.u32 %v300, 7
      %v302 = vsub.s32 0, %v301
      %v303 = vrot.slane %v298, %v302
      %v309 = vcombine.low %v278, %v279
      %v310 = vcombine.low %v280, %v281
      %v312 = vunpack.c.l.s4 1983009808
      %v313 = vunpack.c.0.s8 %v312
      %v314 = vlaneseq
      %v315 = vshrl.u32 %v314, 7
      %v316 = vsub.s32 %v313, %v315
      %v317 = vrot.slane %v309, %v316
      %v319 = vunpack.c.l.s4 1983009808
      %v320 = vunpack.c.0.s8 %v319
      %v321 = vlaneseq
      %v322 = vshrl.u32 %v321, 7
      %v323 = vsub.s32 %v320, %v322
      %v324 = vrot.slane %v310, %v323
      %v325 = vcombine.low %v317, %v324
      %v343 = vunpack.c.l.b16 %v282
      %v344 = vunpack.c.l.b16 %v283
      %v345 = vunpack.c.l.b16 %v284
      %v346 = vunpack.c.l.b16 %v285
      %v347 = vunpack.c.l.b16 %v286
      %v348 = vunpack.c.l.b16 %v287
      %v349 = vunpack.c.l.b16 %v288
      %v350 = vunpack.c.l.b16 %v289
      %v351 = vunpack.c.l.b16 %v290
      %v352 = vunpack.c.l.b16 %v291
      %v353 = vunpack.c.l.b16 %v292
      %v354 = vunpack.c.l.b16 %v293
      %v355 = vunpack.c.l.b16 %v294
      %v356 = vunpack.c.l.b16 %v295
      %v357 = vunpack.c.l.b16 %v296
      %v358 = vunpack.c.l.b16 %v297
      %v359 = vpack.c.b16 %v344, %v343
      %v360 = vpack.c.b16 %v346, %v345
      %v361 = vpack.c.b16 %v348, %v347
      %v362 = vpack.c.b16 %v350, %v349
      %v363 = vpack.c.b16 %v352, %v351
      %v364 = vpack.c.b16 %v354, %v353
      %v365 = vpack.c.b16 %v356, %v355
      %v366 = vpack.c.b16 %v358, %v357
      %375 = vmatprep.subr.bf16.mxu0 0
      %376 = vmatpush1.bf16.msra.mxu0 %v359
      %377 = vmatprep.subr.bf16.mxu0 0
      %378 = vmatpush1.bf16.msra.mxu0 %v360
      %379 = vmatprep.subr.bf16.mxu0 0
      %380 = vmatpush1.bf16.msra.mxu0 %v361
      %381 = vmatprep.subr.bf16.mxu0 0
      %382 = vmatpush1.bf16.msra.mxu0 %v362
      %383 = vmatprep.subr.bf16.mxu0 0
      %384 = vmatpush1.bf16.msra.mxu0 %v363
      %385 = vmatprep.subr.bf16.mxu0 0
      %386 = vmatpush1.bf16.msra.mxu0 %v364
      %387 = vmatprep.subr.bf16.mxu0 0
      %388 = vmatpush1.bf16.msra.mxu0 %v365
      %389 = vmatprep.subr.bf16.mxu0 0
      %390 = vmatpush1.bf16.msra.mxu0 %v366
      %391 = vmatprep.subr.bf16.mxu0 0
      %392 = vmatpush1.bf16.msra.mxu0 0
      %393 = vmatprep.subr.bf16.mxu0 0
      %394 = vmatpush1.bf16.msra.mxu0 0
      %395 = vmatprep.subr.bf16.mxu0 0
      %396 = vmatpush1.bf16.msra.mxu0 0
      %397 = vmatprep.subr.bf16.mxu0 0
      %398 = vmatpush1.bf16.msra.mxu0 0
      %399 = vmatprep.subr.bf16.mxu0 0
      %400 = vmatpush1.bf16.msra.mxu0 0
      %401 = vmatprep.subr.bf16.mxu0 0
      %402 = vmatpush1.bf16.msra.mxu0 0
      %403 = vmatprep.subr.bf16.mxu0 0
      %404 = vmatpush1.bf16.msra.mxu0 0
      %405 = vmatprep.subr.bf16.mxu0 0
      %406 = vmatpush1.bf16.msra.mxu0 0
      %407 = vmatprep.mubr.bf16.mxu0 0
      %408 = vmatmul.mubr.bf16.gmra.mrb[0].mxu0 %v325
      %v409 = vpop.f32.mrb[0].mxu0
      %v410 = vadd.f32 %v303, %v409
      %v411 = vpop.f32.mrb[0].mxu0
      %v412 = vpop.f32.mrb[0].mxu0
      %v413 = vadd.f32 %v303, %v412
      %v414 = vpop.f32.mrb[0].mxu0
      %415 = vdwg.mxu0
      %v416 = vmax.f32 %v410, 0.0
      %v417 = vmax.f32 %v413, 0.0
      %v418 = vmin.f32 %v416, 6.0
      %v419 = vmin.f32 %v417, 6.0
      %420 = vst [vmem:[#allocation2] sm:$0x7] 0
      %421 = vst [vmem:[#allocation2 + $0x4] sm:$0x7] 0
      %422 = vst [vmem:[#allocation2 + $0x8] sm:$0x7] 0
      %423 = vst [vmem:[#allocation2 + $0xc] sm:$0x7] 0
      %424 = vst [vmem:[#allocation2 + $0x10] sm:$0x7] 0
      %425 = vst [vmem:[#allocation2 + $0x14] sm:$0x7] 0
      %v428 = vcombine.high %v418, %v418
      %v429 = vcombine.high %v419, %v419
      %v432 = vpack.c.bf16 %v418, %v418
      %v433 = vpack.c.bf16 %v428, %v428
      %v434 = vpack.c.bf16 %v419, %v419
      %v435 = vpack.c.bf16 %v429, %v429
      %v440 = vunpack.c.l.b16 %v432
      %v441 = vunpack.c.l.b16 %v433
      %v442 = vunpack.c.l.b16 %v434
      %v443 = vunpack.c.l.b16 %v435
      %v444 = vpack.c.b16 %v440, %v440
      %v445 = vpack.c.b16 %v441, %v441
      %v446 = vpack.c.b16 %v442, %v442
      %v447 = vpack.c.b16 %v443, %v443
      %v449 = vshrl.u32 %v444, 16
      %v451 = vrot.slane %v449, 7
      %v452 = vshll.u32 %v444, 16
      %v454 = vor.u32 %v451, %v452
      %v456 = vshrl.u32 %v445, 16
      %v458 = vrot.slane %v456, 7
      %v459 = vshll.u32 %v445, 16
      %v461 = vor.u32 %v458, %v459
      %v463 = vshrl.u32 %v446, 16
      %v465 = vrot.slane %v463, 7
      %v466 = vshll.u32 %v446, 16
      %v468 = vor.u32 %v465, %v466
      %v470 = vshrl.u32 %v447, 16
      %v472 = vrot.slane %v470, 7
      %v473 = vshll.u32 %v447, 16
      %v475 = vor.u32 %v472, %v473
      %s480 = scalar_lea.vmem [#allocation2], 4
      %vm481 = vcmask 1042432
      %vm482 = vsmask.f32 2306
      %vm483 = vmand %vm481, %vm482
      %v484 = vld [vmem:[%s480] sm:$0x7]
      %v485 = vsel %vm483, %v454, %v484
      %486 = vst [vmem:[%s480] sm:$0x7] %v485
      %v487 = vld [vmem:[%s480 + $0x4] sm:$0x7]
      %v488 = vsel %vm483, %v461, %v487
      %489 = vst [vmem:[%s480 + $0x4] sm:$0x7] %v488
      %v490 = vld [vmem:[%s480 + $0x8] sm:$0x7]
      %v491 = vsel %vm483, %v468, %v490
      %492 = vst [vmem:[%s480 + $0x8] sm:$0x7] %v491
      %v493 = vld [vmem:[%s480 + $0xc] sm:$0x7]
      %v494 = vsel %vm483, %v475, %v493
      %495 = vst [vmem:[%s480 + $0xc] sm:$0x7] %v494
      %v496 = vld [vmem:[%s3] sm:$0xff]
      %v497 = vld [vmem:[%s3 + $0x8] sm:$0x1]
      %v498 = vld [vmem:[#allocation2] sm:$0x3]
      %v499 = vld [vmem:[#allocation2 + $0x8] sm:$0x3]
      %v500 = vunpack.c.l.bf16 %v498
      %v501 = vunpack.c.l.bf16 %v499
      %v502 = vlaneseq
      %v503 = vshrl.u32 %v502, 7
      %v504 = vsub.s32 0, %v503
      %v505 = vrot.slane %v496, %v504
      %v506 = vmul.f32 %v500, %v505
      %v507 = vmul.f32 %v501, %v505
      %v508 = vld [vmem:[#allocation2] sm:$0x7]
      %v509 = vld [vmem:[#allocation2 + $0x8] sm:$0x7]
      %v510 = vunpack.c.l.bf16 %v508
      %v511 = vunpack.c.l.bf16 %v509
      %v512 = vlaneseq
      %v513 = vshrl.u32 %v512, 7
      %v514 = vsub.s32 1, %v513
      %v515 = vrot.slane %v496, %v514
      %v516 = vmul.f32 %v510, %v515
      %v517 = vmul.f32 %v511, %v515
      %v520 = vrot.slane %v516, 1
      %v521 = vrot.slane %v517, 1
      %v524 = vadd.f32 %v506, %v520
      %v525 = vadd.f32 %v507, %v521
      %v526 = vld [vmem:[#allocation2] sm:$0x6]
      %v527 = vld [vmem:[#allocation2 + $0x8] sm:$0x6]
      %v528 = vunpack.c.l.bf16 %v526
      %v529 = vunpack.c.l.bf16 %v527
      %v530 = vlaneseq
      %v531 = vshrl.u32 %v530, 7
      %v532 = vsub.s32 2, %v531
      %v533 = vrot.slane %v496, %v532
      %v534 = vmul.f32 %v528, %v533
      %v535 = vmul.f32 %v529, %v533
      %v538 = vrot.slane %v534, 2
      %v539 = vrot.slane %v535, 2
      %v542 = vadd.f32 %v524, %v538
      %v543 = vadd.f32 %v525, %v539
      %v544 = vld [vmem:[%s480] sm:$0x3]
      %v545 = vld [vmem:[%s480 + $0x8] sm:$0x3]
      %v546 = vunpack.c.l.bf16 %v544
      %v547 = vunpack.c.l.bf16 %v545
      %v548 = vlaneseq
      %v549 = vshrl.u32 %v548, 7
      %v550 = vsub.s32 3, %v549
      %v551 = vrot.slane %v496, %v550
      %v552 = vmul.f32 %v546, %v551
      %v553 = vmul.f32 %v547, %v551
      %v554 = vadd.f32 %v542, %v552
      %v555 = vadd.f32 %v543, %v553
      %v556 = vld [vmem:[%s480] sm:$0x7]
      %v557 = vld [vmem:[%s480 + $0x8] sm:$0x7]
      %v558 = vunpack.c.l.bf16 %v556
      %v559 = vunpack.c.l.bf16 %v557
      %v560 = vlaneseq
      %v561 = vshrl.u32 %v560, 7
      %v562 = vsub.s32 4, %v561
      %v563 = vrot.slane %v496, %v562
      %v564 = vmul.f32 %v558, %v563
      %v565 = vmul.f32 %v559, %v563
      %v568 = vrot.slane %v564, 1
      %v569 = vrot.slane %v565, 1
      %v572 = vadd.f32 %v554, %v568
      %v573 = vadd.f32 %v555, %v569
      %v574 = vld [vmem:[%s480] sm:$0x6]
      %v575 = vld [vmem:[%s480 + $0x8] sm:$0x6]
      %v576 = vunpack.c.l.bf16 %v574
      %v577 = vunpack.c.l.bf16 %v575
      %v578 = vlaneseq
      %v579 = vshrl.u32 %v578, 7
      %v580 = vsub.s32 5, %v579
      %v581 = vrot.slane %v496, %v580
      %v582 = vmul.f32 %v576, %v581
      %v583 = vmul.f32 %v577, %v581
      %v586 = vrot.slane %v582, 2
      %v587 = vrot.slane %v583, 2
      %v590 = vadd.f32 %v572, %v586
      %v591 = vadd.f32 %v573, %v587
      %s592 = scalar_lea.vmem [#allocation2], 8
      %v593 = vld [vmem:[%s592] sm:$0x3]
      %v594 = vld [vmem:[%s592 + $0x8] sm:$0x3]
      %v595 = vunpack.c.l.bf16 %v593
      %v596 = vunpack.c.l.bf16 %v594
      %v597 = vlaneseq
      %v598 = vshrl.u32 %v597, 7
      %v599 = vsub.s32 6, %v598
      %v600 = vrot.slane %v496, %v599
      %v601 = vmul.f32 %v595, %v600
      %v602 = vmul.f32 %v596, %v600
      %v603 = vadd.f32 %v590, %v601
      %v604 = vadd.f32 %v591, %v602
      %v605 = vld [vmem:[%s592] sm:$0x7]
      %v606 = vld [vmem:[%s592 + $0x8] sm:$0x7]
      %v607 = vunpack.c.l.bf16 %v605
      %v608 = vunpack.c.l.bf16 %v606
      %v609 = vlaneseq
      %v610 = vshrl.u32 %v609, 7
      %v611 = vsub.s32 7, %v610
      %v612 = vrot.slane %v496, %v611
      %v613 = vmul.f32 %v607, %v612
      %v614 = vmul.f32 %v608, %v612
      %v617 = vrot.slane %v613, 1
      %v618 = vrot.slane %v614, 1
      %v621 = vadd.f32 %v603, %v617
      %v622 = vadd.f32 %v604, %v618
      %v623 = vld [vmem:[%s592] sm:$0x6]
      %v624 = vld [vmem:[%s592 + $0x8] sm:$0x6]
      %v625 = vunpack.c.l.bf16 %v623
      %v626 = vunpack.c.l.bf16 %v624
      %v627 = vlaneseq
      %v628 = vshrl.u32 %v627, 7
      %v629 = vsub.s32 0, %v628
      %v630 = vrot.slane %v497, %v629
      %v631 = vmul.f32 %v625, %v630
      %v632 = vmul.f32 %v626, %v630
      %v635 = vrot.slane %v631, 2
      %v636 = vrot.slane %v632, 2
      %v639 = vadd.f32 %v621, %v635
      %v640 = vadd.f32 %v622, %v636
      %v641 = vld [vmem:[%s4] sm:$0x1]
      %v643 = vlaneseq
      %v644 = vshrl.u32 %v643, 7
      %v645 = vsub.s32 0, %v644
      %v646 = vrot.slane %v641, %v645
      %v648 = vadd.f32 %v639, %v646
      %v649 = vadd.f32 %v640, %v646
      %v650 = vmax.f32 %v648, 0.0
      %v651 = vmax.f32 %v649, 0.0
      %v652 = vmin.f32 %v650, 6.0
      %v653 = vmin.f32 %v651, 6.0
      %v657 = vunpack.c.l.s4 1983009808
      %v658 = vunpack.c.0.s8 %v657
      %v659 = vlaneseq
      %v660 = vshrl.u32 %v659, 7
      %v661 = vsub.s32 %v658, %v660
      %v662 = vrot.slane %v652, %v661
      %v663 = vcombine.high %v662, %v662
      %v665 = vunpack.c.l.s4 1983009808
      %v666 = vunpack.c.0.s8 %v665
      %v667 = vlaneseq
      %v668 = vshrl.u32 %v667, 7
      %v669 = vsub.s32 %v666, %v668
      %v670 = vrot.slane %v653, %v669
      %v671 = vcombine.high %v670, %v670
      %v676 = vpack.c.bf16 %v662, %v662
      %v677 = vpack.c.bf16 %v663, %v663
      %v678 = vpack.c.bf16 %v670, %v670
      %v679 = vpack.c.bf16 %v671, %v671
      %v680 = vld [vmem:[%s5] sm:$0xf]
      %v681 = vld [vmem:[%s5 + $0x4] sm:$0xf]
      %v682 = vld [vmem:[%s5 + $0x8] sm:$0xf]
      %v683 = vld [vmem:[%s5 + $0xc] sm:$0xf]
      %v684 = vld [vmem:[%s5 + $0x10] sm:$0xf]
      %v685 = vld [vmem:[%s5 + $0x14] sm:$0xf]
      %v686 = vld [vmem:[%s5 + $0x18] sm:$0xf]
      %v687 = vld [vmem:[%s5 + $0x1c] sm:$0xf]
      %v688 = vld [vmem:[%s5 + $0x20] sm:$0xf]
      %v689 = vld [vmem:[%s5 + $0x24] sm:$0xf]
      %v690 = vld [vmem:[%s5 + $0x28] sm:$0xf]
      %v691 = vld [vmem:[%s5 + $0x2c] sm:$0xf]
      %v692 = vld [vmem:[%s5 + $0x30] sm:$0xf]
      %v693 = vld [vmem:[%s5 + $0x34] sm:$0xf]
      %v694 = vld [vmem:[%s5 + $0x38] sm:$0xf]
      %v695 = vld [vmem:[%s5 + $0x3c] sm:$0xf]
      %v696 = vld [vmem:[%s6] sm:$0x1]
      %v698 = vlaneseq
      %v699 = vshrl.u32 %v698, 7
      %v700 = vsub.s32 0, %v699
      %v701 = vrot.slane %v696, %v700
      %v707 = vunpack.c.l.b16 %v676
      %v708 = vunpack.c.l.b16 %v677
      %v709 = vunpack.c.l.b16 %v678
      %v710 = vunpack.c.l.b16 %v679
      %v711 = vrot.slane %v708, 7
      %vm712 = vcmask 1041409
      %v713 = vsel %vm712, %v711, %v707
      %v714 = vrot.slane %v709, 6
      %vm715 = vcmask 1042434
      %v716 = vsel %vm715, %v714, %v713
      %v717 = vrot.slane %v710, 5
      %vm718 = vcmask 1043459
      %v719 = vsel %vm718, %v717, %v716
      %v720 = vpack.c.b16 %v719, %v719
      %v738 = vunpack.c.l.b16 %v680
      %v739 = vunpack.c.l.b16 %v681
      %v740 = vunpack.c.l.b16 %v682
      %v741 = vunpack.c.l.b16 %v683
      %v742 = vunpack.c.l.b16 %v684
      %v743 = vunpack.c.l.b16 %v685
      %v744 = vunpack.c.l.b16 %v686
      %v745 = vunpack.c.l.b16 %v687
      %v746 = vunpack.c.l.b16 %v688
      %v747 = vunpack.c.l.b16 %v689
      %v748 = vunpack.c.l.b16 %v690
      %v749 = vunpack.c.l.b16 %v691
      %v750 = vunpack.c.l.b16 %v692
      %v751 = vunpack.c.l.b16 %v693
      %v752 = vunpack.c.l.b16 %v694
      %v753 = vunpack.c.l.b16 %v695
      %v754 = vpack.c.b16 %v739, %v738
      %v755 = vpack.c.b16 %v741, %v740
      %v756 = vpack.c.b16 %v743, %v742
      %v757 = vpack.c.b16 %v745, %v744
      %v758 = vpack.c.b16 %v747, %v746
      %v759 = vpack.c.b16 %v749, %v748
      %v760 = vpack.c.b16 %v751, %v750
      %v761 = vpack.c.b16 %v753, %v752
      %770 = vmatprep.subr.bf16.mxu0 0
      %771 = vmatpush1.bf16.msra.mxu0 %v754
      %772 = vmatprep.subr.bf16.mxu0 0
      %773 = vmatpush1.bf16.msra.mxu0 %v755
      %774 = vmatprep.subr.bf16.mxu0 0
      %775 = vmatpush1.bf16.msra.mxu0 %v756
      %776 = vmatprep.subr.bf16.mxu0 0
      %777 = vmatpush1.bf16.msra.mxu0 %v757
      %778 = vmatprep.subr.bf16.mxu0 0
      %779 = vmatpush1.bf16.msra.mxu0 %v758
      %780 = vmatprep.subr.bf16.mxu0 0
      %781 = vmatpush1.bf16.msra.mxu0 %v759
      %782 = vmatprep.subr.bf16.mxu0 0
      %783 = vmatpush1.bf16.msra.mxu0 %v760
      %784 = vmatprep.subr.bf16.mxu0 0
      %785 = vmatpush1.bf16.msra.mxu0 %v761
      %786 = vmatprep.subr.bf16.mxu0 0
      %787 = vmatpush1.bf16.msra.mxu0 0
      %788 = vmatprep.subr.bf16.mxu0 0
      %789 = vmatpush1.bf16.msra.mxu0 0
      %790 = vmatprep.subr.bf16.mxu0 0
      %791 = vmatpush1.bf16.msra.mxu0 0
      %792 = vmatprep.subr.bf16.mxu0 0
      %793 = vmatpush1.bf16.msra.mxu0 0
      %794 = vmatprep.subr.bf16.mxu0 0
      %795 = vmatpush1.bf16.msra.mxu0 0
      %796 = vmatprep.subr.bf16.mxu0 0
      %797 = vmatpush1.bf16.msra.mxu0 0
      %798 = vmatprep.subr.bf16.mxu0 0
      %799 = vmatpush1.bf16.msra.mxu0 0
      %800 = vmatprep.subr.bf16.mxu0 0
      %801 = vmatpush1.bf16.msra.mxu0 0
      %802 = vmatprep.mubr.bf16.mxu0 0
      %803 = vmatmul.mubr.bf16.gmra.mrb[0].mxu0 %v720
      %v804 = vpop.f32.mrb[0].mxu0
      %v805 = vadd.f32 %v701, %v804
      %v806 = vpop.f32.mrb[0].mxu0
      %v807 = vpop.f32.mrb[0].mxu0
      %v808 = vpop.f32.mrb[0].mxu0
      %809 = vdwg.mxu0
      %v812 = vunpack.c.l.s4 1983009808
      %v813 = vunpack.c.0.s8 %v812
      %v814 = vlaneseq
      %v815 = vshrl.u32 %v814, 7
      %v816 = vsub.s32 %v813, %v815
      %v817 = vrot.slane %v805, %v816
      %v818 = vcombine.high %v817, %v817
      %v821 = vpack.c.bf16 %v817, %v817
      %v822 = vpack.c.bf16 %v818, %v818
      %823 = vst [vmem:[%s276] sm:$0x1] %v821
      %824 = vst [vmem:[%s276 + $0x1] sm:$0x1] %v822
      %p825 = scmp.lt.s32.totalorder %s18, 1
      %s826 = scalar_select %p825, %s18, 1
      %s827 = smul.addr %s826, 2
      %s828 = scalar_lea.vmem %s7, %s827
      // Predicated region
      $region49: #{_lambda_.11} parent=47 // pred_check
        %p829 = pneg %p188
      $region50: #{_lambda_.11} parent=47 // pred_check_branch
        %831 = sbr.rel (%p829) target = $region52
      $region51: #{_lambda_.11} parent=47 // pred_region
        _
      $region52: #{_lambda_.11} parent=47 // pred_fallthru
        _
    $region48: #{_lambda_.11} parent=5 // pred_fallthru
      _
    %p832 = scmp.le.s32.totalorder 2, %s13
    // Predicated region
    $region53: #{_lambda_.11} parent=5 // pred_check
      %p833 = pneg %p832
    $region54: #{_lambda_.11} parent=5 // pred_check_branch
      %835 = sbr.rel (%p833) target = $region56
    $region55: #{_lambda_.11} parent=5 // pred_region
      %s836 = ssub.s32 %s13, 2
      // Predicated region
      $region57: #{_lambda_.11} parent=55 // pred_check
        %p837 = pneg %p194
      $region58: #{_lambda_.11} parent=55 // pred_check_branch
        %839 = sbr.rel (%p837) target = $region60
      $region59: #{_lambda_.11} parent=55 // pred_region
        %p840 = scmp.lt.s32.totalorder %s19, 1
        %s841 = scalar_select %p840, %s19, 1
        %s842 = smul.addr %s841, 2
        %s843 = scalar_lea.vmem %s7, %s842
      $region60: #{_lambda_.11} parent=55 // pred_fallthru
        _
    $region56: #{_lambda_.11} parent=5 // pred_fallthru
      _
  $region6: #{_lambda_.11} parent=0 // loop_footer
    %s17 = sadd.s32 1, %s13
  $region7: #{_lambda_.11} parent=0 // loop_footer_branch
    %12 = sbr.rel target = $region3
  $region8: #{_lambda_.11} parent=0 // loop_exit
    _

// kernel: _lambda_.13
$region0: #{_lambda_.13}
  #allocation0 [shape = 'u32[]', space=smem, size = 0x4, offset = 0x4, fixed_abs, tag = 'smem constant byte address 0x4 - core index']
  #allocation1 [shape = 'u32[144,128]{1,0:T(1,128)}', space=vmem, size = 0x12000, scoped, tag = 'internal scratch']
  %s0 = inlined_call_operand.vmem [shape: bf16[2,2,2,128], index: 0, kind: input, shape index: {}]
  %s1 = inlined_call_operand.vmem [shape: bf16[128,128], index: 1, kind: input, shape index: {}]
  %s2 = inlined_call_operand.vmem [shape: f32[1,128], index: 2, kind: input, shape index: {}, may-alias: {2,4}]
  %s3 = inlined_call_operand.vmem [shape: bf16[128,128], index: 3, kind: input, shape index: {}]
  %s4 = inlined_call_operand.vmem [shape: f32[1,128], index: 4, kind: input, shape index: {}, may-alias: {2,4}]
  %s5 = inlined_call_operand.vmem [shape: f32[2,8,128], index: 5, kind: output, shape index: {}]
  %s6 = sld [smem:[#allocation0]]
  $region53: #{_lambda_.13} parent=0
    _
  %s8 = ssub.s32 1, %s6
  %s9 = scalar_select 0, %s8, %s6
  loop: start=0, step=1, limit=4
  $region2: #{_lambda_.13} parent=0 // loop_pre_header
    _
  $region3: #{_lambda_.13} parent=0 // loop_header
    %s11 = sphi 0, %s15
    %p12 = scmp.ge.s32.totalorder %s11, 4
    %s21 = sphi 0, %s23
    %s24 = sphi 0, %s21
    %s25 = sphi 0, %s24
    %s41 = sphi 0, %s25
    %s45 = sphi 0, %s45
    %s47 = sphi 0, %s45
    %s48 = sphi 0, %s47
    %s62 = sphi 0, %s48
    %s66 = sphi 0, %s66
    %s68 = sphi 0, %s66
    %s69 = sphi 0, %s68
    %s83 = sphi 0, %s69
    %s87 = sphi 0, %s87
    %s89 = sphi 0, %s87
    %s90 = sphi 0, %s89
    %s104 = sphi 0, %s90
    %s108 = sphi 0, %s108
    %s110 = sphi 0, %s108
    %s111 = sphi 0, %s110
    %s125 = sphi 0, %s111
    %s131 = sphi 0, %s133
    %s134 = sphi 0, %s131
    %s135 = sphi 0, %s134
    %s151 = sphi 0, %s135
  $region4: #{_lambda_.13} parent=0 // loop_header_branch
    %14 = sbr.rel (%p12) target = $region8
  $region5: #{_lambda_.13} parent=0 // loop_body
    %s16 = ssub.s32 %s11, 1
    %s17 = ssub.s32 %s11, 2
    %s18 = sadd.s32 %s11, 1
    %s19 = ssub.s32 %s11, %s18
    %p20 = scmp.eq.s32.totalorder %s19, 0
    %s22 = sadd.s32 %s21, 1
    %s23 = scalar_select %p20, %s21, %s22
    %p26 = pneg %p20
    %p27 = scmp.eq.s32.totalorder %s11, 1
    %p28 = por %p26, %p27
    %p29 = scmp.ne.s32.totalorder %s21, %s24
    %p30 = scmp.eq.s32.totalorder %s11, 0
    %p31 = por %p29, %p30
    %p32 = scmp.ne.s32.totalorder %s21, %s24
    %p33 = scmp.eq.s32.totalorder %s16, 1
    %p34 = por %p32, %p33
    %p35 = scmp.ne.s32.totalorder %s24, %s25
    %p36 = scmp.eq.s32.totalorder %s16, 0
    %p37 = por %p35, %p36
    %p38 = scmp.ne.s32.totalorder %s24, %s25
    %p39 = scmp.eq.s32.totalorder %s17, 1
    %p40 = por %p38, %p39
    %p42 = scmp.ne.s32.totalorder %s25, %s41
    %p43 = scmp.eq.s32.totalorder %s17, 0
    %p44 = por %p42, %p43
    %s46 = sadd.s32 %s45, 1
    %p49 = scmp.eq.s32.totalorder %s11, 1
    %p50 = scmp.ne.s32.totalorder %s45, %s47
    %p51 = scmp.eq.s32.totalorder %s11, 0
    %p52 = por %p50, %p51
    %p53 = scmp.ne.s32.totalorder %s45, %s47
    %p54 = scmp.eq.s32.totalorder %s16, 1
    %p55 = por %p53, %p54
    %p56 = scmp.ne.s32.totalorder %s47, %s48
    %p57 = scmp.eq.s32.totalorder %s16, 0
    %p58 = por %p56, %p57
    %p59 = scmp.ne.s32.totalorder %s47, %s48
    %p60 = scmp.eq.s32.totalorder %s17, 1
    %p61 = por %p59, %p60
    %p63 = scmp.ne.s32.totalorder %s48, %s62
    %p64 = scmp.eq.s32.totalorder %s17, 0
    %p65 = por %p63, %p64
    %s67 = sadd.s32 %s66, 1
    %p70 = scmp.eq.s32.totalorder %s11, 1
    %p71 = scmp.ne.s32.totalorder %s66, %s68
    %p72 = scmp.eq.s32.totalorder %s11, 0
    %p73 = por %p71, %p72
    %p74 = scmp.ne.s32.totalorder %s66, %s68
    %p75 = scmp.eq.s32.totalorder %s16, 1
    %p76 = por %p74, %p75
    %p77 = scmp.ne.s32.totalorder %s68, %s69
    %p78 = scmp.eq.s32.totalorder %s16, 0
    %p79 = por %p77, %p78
    %p80 = scmp.ne.s32.totalorder %s68, %s69
    %p81 = scmp.eq.s32.totalorder %s17, 1
    %p82 = por %p80, %p81
    %p84 = scmp.ne.s32.totalorder %s69, %s83
    %p85 = scmp.eq.s32.totalorder %s17, 0
    %p86 = por %p84, %p85
    %s88 = sadd.s32 %s87, 1
    %p91 = scmp.eq.s32.totalorder %s11, 1
    %p92 = scmp.ne.s32.totalorder %s87, %s89
    %p93 = scmp.eq.s32.totalorder %s11, 0
    %p94 = por %p92, %p93
    %p95 = scmp.ne.s32.totalorder %s87, %s89
    %p96 = scmp.eq.s32.totalorder %s16, 1
    %p97 = por %p95, %p96
    %p98 = scmp.ne.s32.totalorder %s89, %s90
    %p99 = scmp.eq.s32.totalorder %s16, 0
    %p100 = por %p98, %p99
    %p101 = scmp.ne.s32.totalorder %s89, %s90
    %p102 = scmp.eq.s32.totalorder %s17, 1
    %p103 = por %p101, %p102
    %p105 = scmp.ne.s32.totalorder %s90, %s104
    %p106 = scmp.eq.s32.totalorder %s17, 0
    %p107 = por %p105, %p106
    %s109 = sadd.s32 %s108, 1
    %p112 = scmp.eq.s32.totalorder %s11, 1
    %p113 = scmp.ne.s32.totalorder %s108, %s110
    %p114 = scmp.eq.s32.totalorder %s11, 0
    %p115 = por %p113, %p114
    %p116 = scmp.ne.s32.totalorder %s108, %s110
    %p117 = scmp.eq.s32.totalorder %s16, 1
    %p118 = por %p116, %p117
    %p119 = scmp.ne.s32.totalorder %s110, %s111
    %p120 = scmp.eq.s32.totalorder %s16, 0
    %p121 = por %p119, %p120
    %p122 = scmp.ne.s32.totalorder %s110, %s111
    %p123 = scmp.eq.s32.totalorder %s17, 1
    %p124 = por %p122, %p123
    %p126 = scmp.ne.s32.totalorder %s111, %s125
    %p127 = scmp.eq.s32.totalorder %s17, 0
    %p128 = por %p126, %p127
    %s129 = ssub.s32 %s11, %s18
    %p130 = scmp.eq.s32.totalorder %s129, 0
    %s132 = sadd.s32 %s131, 1
    %s133 = scalar_select %p130, %s131, %s132
    %p136 = pneg %p130
    %p137 = scmp.eq.s32.totalorder %s11, 1
    %p138 = por %p136, %p137
    %p139 = scmp.ne.s32.totalorder %s131, %s134
    %p140 = scmp.eq.s32.totalorder %s11, 0
    %p141 = por %p139, %p140
    %p142 = scmp.ne.s32.totalorder %s131, %s134
    %p143 = scmp.eq.s32.totalorder %s16, 1
    %p144 = por %p142, %p143
    %p145 = scmp.ne.s32.totalorder %s134, %s135
    %p146 = scmp.eq.s32.totalorder %s16, 0
    %p147 = por %p145, %p146
    %p148 = scmp.ne.s32.totalorder %s134, %s135
    %p149 = scmp.eq.s32.totalorder %s17, 1
    %p150 = por %p148, %p149
    %p152 = scmp.ne.s32.totalorder %s135, %s151
    %p153 = scmp.eq.s32.totalorder %s17, 0
    %p154 = por %p152, %p153
    %p155 = scmp.le.s32.totalorder 1, %s11
    %p156 = scmp.lt.s32.totalorder %s11, 3
    %p157 = pnand %p155, %p156
    %p158 = pneg %p157
    // Predicated region
    $region9: #{_lambda_.13} parent=5 // pred_check
      _
    $region10: #{_lambda_.13} parent=5 // pred_check_branch
      %160 = sbr.rel (%p157) target = $region12
    $region11: #{_lambda_.13} parent=5 // pred_region
      %s161 = ssub.s32 %s11, 1
      // Predicated region
      $region13: #{_lambda_.13} parent=11 // pred_check
        %p162 = pneg %p58
      $region14: #{_lambda_.13} parent=11 // pred_check_branch
        %164 = sbr.rel (%p162) target = $region16
      $region15: #{_lambda_.13} parent=11 // pred_region
        _
      $region16: #{_lambda_.13} parent=11 // pred_fallthru
        _
      // Predicated region
      $region17: #{_lambda_.13} parent=11 // pred_check
        %p165 = pneg %p79
      $region18: #{_lambda_.13} parent=11 // pred_check_branch
        %167 = sbr.rel (%p165) target = $region20
      $region19: #{_lambda_.13} parent=11 // pred_region
        _
      $region20: #{_lambda_.13} parent=11 // pred_fallthru
        _
      // Predicated region
      $region21: #{_lambda_.13} parent=11 // pred_check
        %p168 = pneg %p100
      $region22: #{_lambda_.13} parent=11 // pred_check_branch
        %170 = sbr.rel (%p168) target = $region24
      $region23: #{_lambda_.13} parent=11 // pred_region
        _
      $region24: #{_lambda_.13} parent=11 // pred_fallthru
        _
      // Predicated region
      $region25: #{_lambda_.13} parent=11 // pred_check
        %p171 = pneg %p121
      $region26: #{_lambda_.13} parent=11 // pred_check_branch
        %173 = sbr.rel (%p171) target = $region28
      $region27: #{_lambda_.13} parent=11 // pred_region
        _
      $region28: #{_lambda_.13} parent=11 // pred_fallthru
        _
    $region12: #{_lambda_.13} parent=5 // pred_fallthru
      _
    %p174 = scmp.lt.s32.totalorder %s11, 2
    // Predicated region
    $region29: #{_lambda_.13} parent=5 // pred_check
      %p175 = pneg %p174
    $region30: #{_lambda_.13} parent=5 // pred_check_branch
      %177 = sbr.rel (%p175) target = $region32
    $region31: #{_lambda_.13} parent=5 // pred_region
      // Predicated region
      $region33: #{_lambda_.13} parent=31 // pred_check
        %p178 = pneg %p31
      $region34: #{_lambda_.13} parent=31 // pred_check_branch
        %180 = sbr.rel (%p178) target = $region36
      $region35: #{_lambda_.13} parent=31 // pred_region
        %p181 = scmp.lt.s32.totalorder %s11, 1
        %s182 = scalar_select %p181, %s11, 1
        %s183 = smul.addr %s182, 2
        %s184 = scalar_lea.vmem %s0, %s183
      $region36: #{_lambda_.13} parent=31 // pred_fallthru
        _
    $region32: #{_lambda_.13} parent=5 // pred_fallthru
      _
    %p185 = scmp.le.s32.totalorder 1, %s11
    %p186 = scmp.lt.s32.totalorder %s11, 3
    %p187 = pnand %p185, %p186
    %p188 = pneg %p187
    // Predicated region
    $region37: #{_lambda_.13} parent=5 // pred_check
      _
    $region38: #{_lambda_.13} parent=5 // pred_check_branch
      %190 = sbr.rel (%p187) target = $region40
    $region39: #{_lambda_.13} parent=5 // pred_region
      %s191 = ssub.s32 %s11, 1
      %p192 = scmp.lt.s32.totalorder %s16, 1
      %s193 = scalar_select %p192, %s16, 1
      %s194 = smul.addr %s193, 2
      %s195 = scalar_lea.vmem %s0, %s194
      %p196 = pneg %p37
      %p197 = pneg %p34
      %p198 = pneg %p58
      %p199 = pneg %p55
      %p200 = pneg %p79
      %p201 = pneg %p76
      %p202 = pneg %p100
      %p203 = pneg %p97
      %p204 = pneg %p121
      %p205 = pneg %p118
      %p206 = pneg %p147
      %p207 = pneg %p144
      %p208 = scmp.lt.s32.totalorder %s16, 1
      %s209 = scalar_select %p208, %s16, 1
      %s210 = smul.addr %s209, 8
      %s211 = scalar_lea.vmem %s5, %s210
      %p212 = scmp.lt.s32.totalorder %s16, 1
      %s213 = scalar_select %p212, %s16, 1
      %s214 = smul.addr %s213, 2
      %s215 = scalar_lea.vmem %s0, %s214
      %p216 = scmp.lt.s32.totalorder %s16, 1
      %s217 = scalar_select %p216, %s16, 1
      %s218 = smul.addr %s217, 8
      %s219 = scalar_lea.vmem %s5, %s218
      %v221 = vld [vmem:[%s215] sm:$0x1]
      %v222 = vld [vmem:[%s215 + $0x1] sm:$0x1]
      %v223 = vld [vmem:[%s1] sm:$0xf]
      %v224 = vld [vmem:[%s1 + $0x4] sm:$0xf]
      %v225 = vld [vmem:[%s1 + $0x8] sm:$0xf]
      %v226 = vld [vmem:[%s1 + $0xc] sm:$0xf]
      %v227 = vld [vmem:[%s1 + $0x10] sm:$0xf]
      %v228 = vld [vmem:[%s1 + $0x14] sm:$0xf]
      %v229 = vld [vmem:[%s1 + $0x18] sm:$0xf]
      %v230 = vld [vmem:[%s1 + $0x1c] sm:$0xf]
      %v231 = vld [vmem:[%s1 + $0x20] sm:$0xf]
      %v232 = vld [vmem:[%s1 + $0x24] sm:$0xf]
      %v233 = vld [vmem:[%s1 + $0x28] sm:$0xf]
      %v234 = vld [vmem:[%s1 + $0x2c] sm:$0xf]
      %v235 = vld [vmem:[%s1 + $0x30] sm:$0xf]
      %v236 = vld [vmem:[%s1 + $0x34] sm:$0xf]
      %v237 = vld [vmem:[%s1 + $0x38] sm:$0xf]
      %v238 = vld [vmem:[%s1 + $0x3c] sm:$0xf]
      %v239 = vld [vmem:[%s2] sm:$0x1]
      %v241 = vlaneseq
      %v242 = vshrl.u32 %v241, 7
      %v243 = vsub.s32 0, %v242
      %v244 = vrot.slane %v239, %v243
      %v248 = vcombine.low %v221, %v222
      %v250 = vunpack.c.l.s4 1966171168
      %v251 = vunpack.c.0.s8 %v250
      %v252 = vlaneseq
      %v253 = vshrl.u32 %v252, 7
      %v254 = vsub.s32 %v251, %v253
      %v255 = vrot.slane %v248, %v254
      %v257 = vunpack.c.l.s4 1966171168
      %v258 = vunpack.c.0.s8 %v257
      %v259 = vlaneseq
      %v260 = vshrl.u32 %v259, 7
      %v261 = vsub.s32 %v258, %v260
      %v262 = vrot.slane %v255, %v261
      %v280 = vunpack.c.l.b16 %v223
      %v281 = vunpack.c.l.b16 %v224
      %v282 = vunpack.c.l.b16 %v225
      %v283 = vunpack.c.l.b16 %v226
      %v284 = vunpack.c.l.b16 %v227
      %v285 = vunpack.c.l.b16 %v228
      %v286 = vunpack.c.l.b16 %v229
      %v287 = vunpack.c.l.b16 %v230
      %v288 = vunpack.c.l.b16 %v231
      %v289 = vunpack.c.l.b16 %v232
      %v290 = vunpack.c.l.b16 %v233
      %v291 = vunpack.c.l.b16 %v234
      %v292 = vunpack.c.l.b16 %v235
      %v293 = vunpack.c.l.b16 %v236
      %v294 = vunpack.c.l.b16 %v237
      %v295 = vunpack.c.l.b16 %v238
      %v296 = vpack.c.b16 %v281, %v280
      %v297 = vpack.c.b16 %v283, %v282
      %v298 = vpack.c.b16 %v285, %v284
      %v299 = vpack.c.b16 %v287, %v286
      %v300 = vpack.c.b16 %v289, %v288
      %v301 = vpack.c.b16 %v291, %v290
      %v302 = vpack.c.b16 %v293, %v292
      %v303 = vpack.c.b16 %v295, %v294
      %312 = vmatprep.subr.bf16.mxu0 0
      %313 = vmatpush1.bf16.msra.mxu0 %v296
      %314 = vmatprep.subr.bf16.mxu0 0
      %315 = vmatpush1.bf16.msra.mxu0 %v297
      %316 = vmatprep.subr.bf16.mxu0 0
      %317 = vmatpush1.bf16.msra.mxu0 %v298
      %318 = vmatprep.subr.bf16.mxu0 0
      %319 = vmatpush1.bf16.msra.mxu0 %v299
      %320 = vmatprep.subr.bf16.mxu0 0
      %321 = vmatpush1.bf16.msra.mxu0 %v300
      %322 = vmatprep.subr.bf16.mxu0 0
      %323 = vmatpush1.bf16.msra.mxu0 %v301
      %324 = vmatprep.subr.bf16.mxu0 0
      %325 = vmatpush1.bf16.msra.mxu0 %v302
      %326 = vmatprep.subr.bf16.mxu0 0
      %327 = vmatpush1.bf16.msra.mxu0 %v303
      %328 = vmatprep.subr.bf16.mxu0 0
      %329 = vmatpush1.bf16.msra.mxu0 0
      %330 = vmatprep.subr.bf16.mxu0 0
      %331 = vmatpush1.bf16.msra.mxu0 0
      %332 = vmatprep.subr.bf16.mxu0 0
      %333 = vmatpush1.bf16.msra.mxu0 0
      %334 = vmatprep.subr.bf16.mxu0 0
      %335 = vmatpush1.bf16.msra.mxu0 0
      %336 = vmatprep.subr.bf16.mxu0 0
      %337 = vmatpush1.bf16.msra.mxu0 0
      %338 = vmatprep.subr.bf16.mxu0 0
      %339 = vmatpush1.bf16.msra.mxu0 0
      %340 = vmatprep.subr.bf16.mxu0 0
      %341 = vmatpush1.bf16.msra.mxu0 0
      %342 = vmatprep.subr.bf16.mxu0 0
      %343 = vmatpush1.bf16.msra.mxu0 0
      %344 = vmatprep.mubr.bf16.mxu0 0
      %345 = vmatmul.mubr.bf16.gmra.mrb[0].mxu0 %v262
      %v346 = vpop.f32.mrb[0].mxu0
      %v347 = vadd.f32 %v244, %v346
      %v348 = vpop.f32.mrb[0].mxu0
      %v349 = vpop.f32.mrb[0].mxu0
      %v350 = vpop.f32.mrb[0].mxu0
      %351 = vdwg.mxu0
      %v352 = vmax.f32 %v347, 0.0
      %v353 = vmin.f32 %v352, 6.0
      %vm354 = vcmask 1043456
      %v355 = vsel %vm354, %v353, 0.0
      %v356 = vrot.slane %v355, 4
      %v357 = vadd.f32 %v355, %v356
      %v358 = vrot.slane %v357, 2
      %v359 = vadd.f32 %v357, %v358
      %v360 = vrot.slane %v359, 1
      %v361 = vadd.f32 %v359, %v360
      %v362 = vmul.f32 %v361, 0.25
      %v363 = vpack.c.bf16 %v362, %v362
      %v364 = vld [vmem:[%s3] sm:$0xf]
      %v365 = vld [vmem:[%s3 + $0x4] sm:$0xf]
      %v366 = vld [vmem:[%s3 + $0x8] sm:$0xf]
      %v367 = vld [vmem:[%s3 + $0xc] sm:$0xf]
      %v368 = vld [vmem:[%s3 + $0x10] sm:$0xf]
      %v369 = vld [vmem:[%s3 + $0x14] sm:$0xf]
      %v370 = vld [vmem:[%s3 + $0x18] sm:$0xf]
      %v371 = vld [vmem:[%s3 + $0x1c] sm:$0xf]
      %v372 = vld [vmem:[%s3 + $0x20] sm:$0xf]
      %v373 = vld [vmem:[%s3 + $0x24] sm:$0xf]
      %v374 = vld [vmem:[%s3 + $0x28] sm:$0xf]
      %v375 = vld [vmem:[%s3 + $0x2c] sm:$0xf]
      %v376 = vld [vmem:[%s3 + $0x30] sm:$0xf]
      %v377 = vld [vmem:[%s3 + $0x34] sm:$0xf]
      %v378 = vld [vmem:[%s3 + $0x38] sm:$0xf]
      %v379 = vld [vmem:[%s3 + $0x3c] sm:$0xf]
      %v380 = vld [vmem:[%s4] sm:$0x1]
      %v397 = vunpack.c.l.b16 %v364
      %v398 = vunpack.c.l.b16 %v365
      %v399 = vunpack.c.l.b16 %v366
      %v400 = vunpack.c.l.b16 %v367
      %v401 = vunpack.c.l.b16 %v368
      %v402 = vunpack.c.l.b16 %v369
      %v403 = vunpack.c.l.b16 %v370
      %v404 = vunpack.c.l.b16 %v371
      %v405 = vunpack.c.l.b16 %v372
      %v406 = vunpack.c.l.b16 %v373
      %v407 = vunpack.c.l.b16 %v374
      %v408 = vunpack.c.l.b16 %v375
      %v409 = vunpack.c.l.b16 %v376
      %v410 = vunpack.c.l.b16 %v377
      %v411 = vunpack.c.l.b16 %v378
      %v412 = vunpack.c.l.b16 %v379
      %v413 = vpack.c.b16 %v398, %v397
      %v414 = vpack.c.b16 %v400, %v399
      %v415 = vpack.c.b16 %v402, %v401
      %v416 = vpack.c.b16 %v404, %v403
      %v417 = vpack.c.b16 %v406, %v405
      %v418 = vpack.c.b16 %v408, %v407
      %v419 = vpack.c.b16 %v410, %v409
      %v420 = vpack.c.b16 %v412, %v411
      %429 = vmatprep.subr.bf16.mxu0 0
      %430 = vmatpush1.bf16.msra.mxu0 %v413
      %431 = vmatprep.subr.bf16.mxu0 0
      %432 = vmatpush1.bf16.msra.mxu0 %v414
      %433 = vmatprep.subr.bf16.mxu0 0
      %434 = vmatpush1.bf16.msra.mxu0 %v415
      %435 = vmatprep.subr.bf16.mxu0 0
      %436 = vmatpush1.bf16.msra.mxu0 %v416
      %437 = vmatprep.subr.bf16.mxu0 0
      %438 = vmatpush1.bf16.msra.mxu0 %v417
      %439 = vmatprep.subr.bf16.mxu0 0
      %440 = vmatpush1.bf16.msra.mxu0 %v418
      %441 = vmatprep.subr.bf16.mxu0 0
      %442 = vmatpush1.bf16.msra.mxu0 %v419
      %443 = vmatprep.subr.bf16.mxu0 0
      %444 = vmatpush1.bf16.msra.mxu0 %v420
      %445 = vmatprep.subr.bf16.mxu0 0
      %446 = vmatpush1.bf16.msra.mxu0 0
      %447 = vmatprep.subr.bf16.mxu0 0
      %448 = vmatpush1.bf16.msra.mxu0 0
      %449 = vmatprep.subr.bf16.mxu0 0
      %450 = vmatpush1.bf16.msra.mxu0 0
      %451 = vmatprep.subr.bf16.mxu0 0
      %452 = vmatpush1.bf16.msra.mxu0 0
      %453 = vmatprep.subr.bf16.mxu0 0
      %454 = vmatpush1.bf16.msra.mxu0 0
      %455 = vmatprep.subr.bf16.mxu0 0
      %456 = vmatpush1.bf16.msra.mxu0 0
      %457 = vmatprep.subr.bf16.mxu0 0
      %458 = vmatpush1.bf16.msra.mxu0 0
      %459 = vmatprep.subr.bf16.mxu0 0
      %460 = vmatpush1.bf16.msra.mxu0 0
      %461 = vmatprep.mubr.bf16.mxu0 0
      %462 = vmatmul.mubr.bf16.gmra.mrb[0].mxu0 %v363
      %v463 = vpop.f32.mrb[0].mxu0
      %v464 = vadd.f32 %v380, %v463
      %v465 = vpop.f32.mrb[0].mxu0
      %v466 = vpop.f32.mrb[0].mxu0
      %v467 = vpop.f32.mrb[0].mxu0
      %468 = vdwg.mxu0
      %v469 = vlaneseq
      %v470 = vshrl.u32 %v469, 7
      %v471 = vsub.s32 0, %v470
      %v472 = vrot.slane %v464, %v471
      %473 = vst [vmem:[%s219] sm:$0xff] %v472
      %p474 = scmp.lt.s32.totalorder %s16, 1
      %s475 = scalar_select %p474, %s16, 1
      %s476 = smul.addr %s475, 8
      %s477 = scalar_lea.vmem %s5, %s476
      // Predicated region
      $region41: #{_lambda_.13} parent=39 // pred_check
        %p478 = pneg %p144
      $region42: #{_lambda_.13} parent=39 // pred_check_branch
        %480 = sbr.rel (%p478) target = $region44
      $region43: #{_lambda_.13} parent=39 // pred_region
        _
      $region44: #{_lambda_.13} parent=39 // pred_fallthru
        _
    $region40: #{_lambda_.13} parent=5 // pred_fallthru
      _
    %p481 = scmp.le.s32.totalorder 2, %s11
    // Predicated region
    $region45: #{_lambda_.13} parent=5 // pred_check
      %p482 = pneg %p481
    $region46: #{_lambda_.13} parent=5 // pred_check_branch
      %484 = sbr.rel (%p482) target = $region48
    $region47: #{_lambda_.13} parent=5 // pred_region
      %s485 = ssub.s32 %s11, 2
      // Predicated region
      $region49: #{_lambda_.13} parent=47 // pred_check
        %p486 = pneg %p150
      $region50: #{_lambda_.13} parent=47 // pred_check_branch
        %488 = sbr.rel (%p486) target = $region52
      $region51: #{_lambda_.13} parent=47 // pred_region
        %p489 = scmp.lt.s32.totalorder %s17, 1
        %s490 = scalar_select %p489, %s17, 1
        %s491 = smul.addr %s490, 8
        %s492 = scalar_lea.vmem %s5, %s491
      $region52: #{_lambda_.13} parent=47 // pred_fallthru
        _
    $region48: #{_lambda_.13} parent=5 // pred_fallthru
      _
  $region6: #{_lambda_.13} parent=0 // loop_footer
    %s15 = sadd.s32 1, %s11
  $region7: #{_lambda_.13} parent=0 // loop_footer_branch
    %10 = sbr.rel target = $region3
  $region8: #{_lambda_.13} parent=0 // loop_exit
    _

// kernel: _lambda_.12
$region0: #{_lambda_.12}
  #allocation0 [shape = 'u32[]', space=smem, size = 0x4, offset = 0x4, fixed_abs, tag = 'smem constant byte address 0x4 - core index']
  #allocation1 [shape = 'u32[144,128]{1,0:T(1,128)}', space=vmem, size = 0x12000, scoped, tag = 'internal scratch']
  #allocation2 [shape = 'bf16[4,4,256]{2,1,0:T(4,128)(2,1)}', space=vmem, size = 0x2000, scoped, tag = 'scratch operand']
  %s0 = inlined_call_operand.vmem [shape: bf16[2,2,2,128], index: 0, kind: input, shape index: {}]
  %s1 = inlined_call_operand.vmem [shape: bf16[128,256], index: 1, kind: input, shape index: {}]
  %s2 = inlined_call_operand.vmem [shape: f32[1,256], index: 2, kind: input, shape index: {}, may-alias: {2,4}]
  %s3 = inlined_call_operand.vmem [shape: f32[9,256], index: 3, kind: input, shape index: {}]
  %s4 = inlined_call_operand.vmem [shape: f32[1,256], index: 4, kind: input, shape index: {}, may-alias: {2,4}]
  %s5 = inlined_call_operand.vmem [shape: bf16[256,128], index: 5, kind: input, shape index: {}]
  %s6 = inlined_call_operand.vmem [shape: f32[1,128], index: 6, kind: input, shape index: {}]
  %s7 = inlined_call_operand.vmem [shape: bf16[2,2,2,128], index: 7, kind: output, shape index: {}]
  %s8 = sld [smem:[#allocation0]]
  $region61: #{_lambda_.12} parent=0
    _
  %s10 = ssub.s32 1, %s8
  %s11 = scalar_select 0, %s10, %s8
  loop: start=0, step=1, limit=4
  $region2: #{_lambda_.12} parent=0 // loop_pre_header
    _
  $region3: #{_lambda_.12} parent=0 // loop_header
    %s13 = sphi 0, %s17
    %p14 = scmp.ge.s32.totalorder %s13, 4
    %s23 = sphi 0, %s25
    %s26 = sphi 0, %s23
    %s27 = sphi 0, %s26
    %s43 = sphi 0, %s27
    %s47 = sphi 0, %s47
    %s49 = sphi 0, %s47
    %s50 = sphi 0, %s49
    %s64 = sphi 0, %s50
    %s68 = sphi 0, %s68
    %s70 = sphi 0, %s68
    %s71 = sphi 0, %s70
    %s85 = sphi 0, %s71
    %s89 = sphi 0, %s89
    %s91 = sphi 0, %s89
    %s92 = sphi 0, %s91
    %s106 = sphi 0, %s92
    %s110 = sphi 0, %s110
    %s112 = sphi 0, %s110
    %s113 = sphi 0, %s112
    %s127 = sphi 0, %s113
    %s131 = sphi 0, %s131
    %s133 = sphi 0, %s131
    %s134 = sphi 0, %s133
    %s148 = sphi 0, %s134
    %s152 = sphi 0, %s152
    %s154 = sphi 0, %s152
    %s155 = sphi 0, %s154
    %s169 = sphi 0, %s155
    %s175 = sphi 0, %s177
    %s178 = sphi 0, %s175
    %s179 = sphi 0, %s178
    %s195 = sphi 0, %s179
  $region4: #{_lambda_.12} parent=0 // loop_header_branch
    %16 = sbr.rel (%p14) target = $region8
  $region5: #{_lambda_.12} parent=0 // loop_body
    %s18 = ssub.s32 %s13, 1
    %s19 = ssub.s32 %s13, 2
    %s20 = sadd.s32 %s13, 1
    %s21 = ssub.s32 %s13, %s20
    %p22 = scmp.eq.s32.totalorder %s21, 0
    %s24 = sadd.s32 %s23, 1
    %s25 = scalar_select %p22, %s23, %s24
    %p28 = pneg %p22
    %p29 = scmp.eq.s32.totalorder %s13, 1
    %p30 = por %p28, %p29
    %p31 = scmp.ne.s32.totalorder %s23, %s26
    %p32 = scmp.eq.s32.totalorder %s13, 0
    %p33 = por %p31, %p32
    %p34 = scmp.ne.s32.totalorder %s23, %s26
    %p35 = scmp.eq.s32.totalorder %s18, 1
    %p36 = por %p34, %p35
    %p37 = scmp.ne.s32.totalorder %s26, %s27
    %p38 = scmp.eq.s32.totalorder %s18, 0
    %p39 = por %p37, %p38
    %p40 = scmp.ne.s32.totalorder %s26, %s27
    %p41 = scmp.eq.s32.totalorder %s19, 1
    %p42 = por %p40, %p41
    %p44 = scmp.ne.s32.totalorder %s27, %s43
    %p45 = scmp.eq.s32.totalorder %s19, 0
    %p46 = por %p44, %p45
    %s48 = sadd.s32 %s47, 1
    %p51 = scmp.eq.s32.totalorder %s13, 1
    %p52 = scmp.ne.s32.totalorder %s47, %s49
    %p53 = scmp.eq.s32.totalorder %s13, 0
    %p54 = por %p52, %p53
    %p55 = scmp.ne.s32.totalorder %s47, %s49
    %p56 = scmp.eq.s32.totalorder %s18, 1
    %p57 = por %p55, %p56
    %p58 = scmp.ne.s32.totalorder %s49, %s50
    %p59 = scmp.eq.s32.totalorder %s18, 0
    %p60 = por %p58, %p59
    %p61 = scmp.ne.s32.totalorder %s49, %s50
    %p62 = scmp.eq.s32.totalorder %s19, 1
    %p63 = por %p61, %p62
    %p65 = scmp.ne.s32.totalorder %s50, %s64
    %p66 = scmp.eq.s32.totalorder %s19, 0
    %p67 = por %p65, %p66
    %s69 = sadd.s32 %s68, 1
    %p72 = scmp.eq.s32.totalorder %s13, 1
    %p73 = scmp.ne.s32.totalorder %s68, %s70
    %p74 = scmp.eq.s32.totalorder %s13, 0
    %p75 = por %p73, %p74
    %p76 = scmp.ne.s32.totalorder %s68, %s70
    %p77 = scmp.eq.s32.totalorder %s18, 1
    %p78 = por %p76, %p77
    %p79 = scmp.ne.s32.totalorder %s70, %s71
    %p80 = scmp.eq.s32.totalorder %s18, 0
    %p81 = por %p79, %p80
    %p82 = scmp.ne.s32.totalorder %s70, %s71
    %p83 = scmp.eq.s32.totalorder %s19, 1
    %p84 = por %p82, %p83
    %p86 = scmp.ne.s32.totalorder %s71, %s85
    %p87 = scmp.eq.s32.totalorder %s19, 0
    %p88 = por %p86, %p87
    %s90 = sadd.s32 %s89, 1
    %p93 = scmp.eq.s32.totalorder %s13, 1
    %p94 = scmp.ne.s32.totalorder %s89, %s91
    %p95 = scmp.eq.s32.totalorder %s13, 0
    %p96 = por %p94, %p95
    %p97 = scmp.ne.s32.totalorder %s89, %s91
    %p98 = scmp.eq.s32.totalorder %s18, 1
    %p99 = por %p97, %p98
    %p100 = scmp.ne.s32.totalorder %s91, %s92
    %p101 = scmp.eq.s32.totalorder %s18, 0
    %p102 = por %p100, %p101
    %p103 = scmp.ne.s32.totalorder %s91, %s92
    %p104 = scmp.eq.s32.totalorder %s19, 1
    %p105 = por %p103, %p104
    %p107 = scmp.ne.s32.totalorder %s92, %s106
    %p108 = scmp.eq.s32.totalorder %s19, 0
    %p109 = por %p107, %p108
    %s111 = sadd.s32 %s110, 1
    %p114 = scmp.eq.s32.totalorder %s13, 1
    %p115 = scmp.ne.s32.totalorder %s110, %s112
    %p116 = scmp.eq.s32.totalorder %s13, 0
    %p117 = por %p115, %p116
    %p118 = scmp.ne.s32.totalorder %s110, %s112
    %p119 = scmp.eq.s32.totalorder %s18, 1
    %p120 = por %p118, %p119
    %p121 = scmp.ne.s32.totalorder %s112, %s113
    %p122 = scmp.eq.s32.totalorder %s18, 0
    %p123 = por %p121, %p122
    %p124 = scmp.ne.s32.totalorder %s112, %s113
    %p125 = scmp.eq.s32.totalorder %s19, 1
    %p126 = por %p124, %p125
    %p128 = scmp.ne.s32.totalorder %s113, %s127
    %p129 = scmp.eq.s32.totalorder %s19, 0
    %p130 = por %p128, %p129
    %s132 = sadd.s32 %s131, 1
    %p135 = scmp.eq.s32.totalorder %s13, 1
    %p136 = scmp.ne.s32.totalorder %s131, %s133
    %p137 = scmp.eq.s32.totalorder %s13, 0
    %p138 = por %p136, %p137
    %p139 = scmp.ne.s32.totalorder %s131, %s133
    %p140 = scmp.eq.s32.totalorder %s18, 1
    %p141 = por %p139, %p140
    %p142 = scmp.ne.s32.totalorder %s133, %s134
    %p143 = scmp.eq.s32.totalorder %s18, 0
    %p144 = por %p142, %p143
    %p145 = scmp.ne.s32.totalorder %s133, %s134
    %p146 = scmp.eq.s32.totalorder %s19, 1
    %p147 = por %p145, %p146
    %p149 = scmp.ne.s32.totalorder %s134, %s148
    %p150 = scmp.eq.s32.totalorder %s19, 0
    %p151 = por %p149, %p150
    %s153 = sadd.s32 %s152, 1
    %p156 = scmp.eq.s32.totalorder %s13, 1
    %p157 = scmp.ne.s32.totalorder %s152, %s154
    %p158 = scmp.eq.s32.totalorder %s13, 0
    %p159 = por %p157, %p158
    %p160 = scmp.ne.s32.totalorder %s152, %s154
    %p161 = scmp.eq.s32.totalorder %s18, 1
    %p162 = por %p160, %p161
    %p163 = scmp.ne.s32.totalorder %s154, %s155
    %p164 = scmp.eq.s32.totalorder %s18, 0
    %p165 = por %p163, %p164
    %p166 = scmp.ne.s32.totalorder %s154, %s155
    %p167 = scmp.eq.s32.totalorder %s19, 1
    %p168 = por %p166, %p167
    %p170 = scmp.ne.s32.totalorder %s155, %s169
    %p171 = scmp.eq.s32.totalorder %s19, 0
    %p172 = por %p170, %p171
    %s173 = ssub.s32 %s13, %s20
    %p174 = scmp.eq.s32.totalorder %s173, 0
    %s176 = sadd.s32 %s175, 1
    %s177 = scalar_select %p174, %s175, %s176
    %p180 = pneg %p174
    %p181 = scmp.eq.s32.totalorder %s13, 1
    %p182 = por %p180, %p181
    %p183 = scmp.ne.s32.totalorder %s175, %s178
    %p184 = scmp.eq.s32.totalorder %s13, 0
    %p185 = por %p183, %p184
    %p186 = scmp.ne.s32.totalorder %s175, %s178
    %p187 = scmp.eq.s32.totalorder %s18, 1
    %p188 = por %p186, %p187
    %p189 = scmp.ne.s32.totalorder %s178, %s179
    %p190 = scmp.eq.s32.totalorder %s18, 0
    %p191 = por %p189, %p190
    %p192 = scmp.ne.s32.totalorder %s178, %s179
    %p193 = scmp.eq.s32.totalorder %s19, 1
    %p194 = por %p192, %p193
    %p196 = scmp.ne.s32.totalorder %s179, %s195
    %p197 = scmp.eq.s32.totalorder %s19, 0
    %p198 = por %p196, %p197
    %p199 = scmp.le.s32.totalorder 1, %s13
    %p200 = scmp.lt.s32.totalorder %s13, 3
    %p201 = pnand %p199, %p200
    %p202 = pneg %p201
    // Predicated region
    $region9: #{_lambda_.12} parent=5 // pred_check
      _
    $region10: #{_lambda_.12} parent=5 // pred_check_branch
      %204 = sbr.rel (%p201) target = $region12
    $region11: #{_lambda_.12} parent=5 // pred_region
      %s205 = ssub.s32 %s13, 1
      // Predicated region
      $region13: #{_lambda_.12} parent=11 // pred_check
        %p206 = pneg %p60
      $region14: #{_lambda_.12} parent=11 // pred_check_branch
        %208 = sbr.rel (%p206) target = $region16
      $region15: #{_lambda_.12} parent=11 // pred_region
        _
      $region16: #{_lambda_.12} parent=11 // pred_fallthru
        _
      // Predicated region
      $region17: #{_lambda_.12} parent=11 // pred_check
        %p209 = pneg %p81
      $region18: #{_lambda_.12} parent=11 // pred_check_branch
        %211 = sbr.rel (%p209) target = $region20
      $region19: #{_lambda_.12} parent=11 // pred_region
        _
      $region20: #{_lambda_.12} parent=11 // pred_fallthru
        _
      // Predicated region
      $region21: #{_lambda_.12} parent=11 // pred_check
        %p212 = pneg %p102
      $region22: #{_lambda_.12} parent=11 // pred_check_branch
        %214 = sbr.rel (%p212) target = $region24
      $region23: #{_lambda_.12} parent=11 // pred_region
        _
      $region24: #{_lambda_.12} parent=11 // pred_fallthru
        _
      // Predicated region
      $region25: #{_lambda_.12} parent=11 // pred_check
        %p215 = pneg %p123
      $region26: #{_lambda_.12} parent=11 // pred_check_branch
        %217 = sbr.rel (%p215) target = $region28
      $region27: #{_lambda_.12} parent=11 // pred_region
        _
      $region28: #{_lambda_.12} parent=11 // pred_fallthru
        _
      // Predicated region
      $region29: #{_lambda_.12} parent=11 // pred_check
        %p218 = pneg %p144
      $region30: #{_lambda_.12} parent=11 // pred_check_branch
        %220 = sbr.rel (%p218) target = $region32
      $region31: #{_lambda_.12} parent=11 // pred_region
        _
      $region32: #{_lambda_.12} parent=11 // pred_fallthru
        _
      // Predicated region
      $region33: #{_lambda_.12} parent=11 // pred_check
        %p221 = pneg %p165
      $region34: #{_lambda_.12} parent=11 // pred_check_branch
        %223 = sbr.rel (%p221) target = $region36
      $region35: #{_lambda_.12} parent=11 // pred_region
        _
      $region36: #{_lambda_.12} parent=11 // pred_fallthru
        _
    $region12: #{_lambda_.12} parent=5 // pred_fallthru
      _
    %p224 = scmp.lt.s32.totalorder %s13, 2
    // Predicated region
    $region37: #{_lambda_.12} parent=5 // pred_check
      %p225 = pneg %p224
    $region38: #{_lambda_.12} parent=5 // pred_check_branch
      %227 = sbr.rel (%p225) target = $region40
    $region39: #{_lambda_.12} parent=5 // pred_region
      // Predicated region
      $region41: #{_lambda_.12} parent=39 // pred_check
        %p228 = pneg %p33
      $region42: #{_lambda_.12} parent=39 // pred_check_branch
        %230 = sbr.rel (%p228) target = $region44
      $region43: #{_lambda_.12} parent=39 // pred_region
        %p231 = scmp.lt.s32.totalorder %s13, 1
        %s232 = scalar_select %p231, %s13, 1
        %s233 = smul.addr %s232, 2
        %s234 = scalar_lea.vmem %s0, %s233
      $region44: #{_lambda_.12} parent=39 // pred_fallthru
        _
    $region40: #{_lambda_.12} parent=5 // pred_fallthru
      _
    %p235 = scmp.le.s32.totalorder 1, %s13
    %p236 = scmp.lt.s32.totalorder %s13, 3
    %p237 = pnand %p235, %p236
    %p238 = pneg %p237
    // Predicated region
    $region45: #{_lambda_.12} parent=5 // pred_check
      _
    $region46: #{_lambda_.12} parent=5 // pred_check_branch
      %240 = sbr.rel (%p237) target = $region48
    $region47: #{_lambda_.12} parent=5 // pred_region
      %s241 = ssub.s32 %s13, 1
      %p242 = scmp.lt.s32.totalorder %s18, 1
      %s243 = scalar_select %p242, %s18, 1
      %s244 = smul.addr %s243, 2
      %s245 = scalar_lea.vmem %s0, %s244
      %p246 = pneg %p39
      %p247 = pneg %p36
      %p248 = pneg %p60
      %p249 = pneg %p57
      %p250 = pneg %p81
      %p251 = pneg %p78
      %p252 = pneg %p102
      %p253 = pneg %p99
      %p254 = pneg %p123
      %p255 = pneg %p120
      %p256 = pneg %p144
      %p257 = pneg %p141
      %p258 = pneg %p165
      %p259 = pneg %p162
      %p260 = pneg %p191
      %p261 = pneg %p188
      %p262 = scmp.lt.s32.totalorder %s18, 1
      %s263 = scalar_select %p262, %s18, 1
      %s264 = smul.addr %s263, 2
      %s265 = scalar_lea.vmem %s7, %s264
      %p266 = scmp.lt.s32.totalorder %s18, 1
      %s267 = scalar_select %p266, %s18, 1
      %s268 = smul.addr %s267, 2
      %s269 = scalar_lea.vmem %s0, %s268
      %p270 = scmp.lt.s32.totalorder %s18, 1
      %s271 = scalar_select %p270, %s18, 1
      %s272 = smul.addr %s271, 2
      %s273 = scalar_lea.vmem %s7, %s272
      %v275 = vld [vmem:[%s269] sm:$0x1]
      %v276 = vld [vmem:[%s269 + $0x1] sm:$0x1]
      %v277 = vld [vmem:[%s1] sm:$0xff]
      %v278 = vld [vmem:[%s1 + $0x8] sm:$0xff]
      %v279 = vld [vmem:[%s1 + $0x10] sm:$0xff]
      %v280 = vld [vmem:[%s1 + $0x18] sm:$0xff]
      %v281 = vld [vmem:[%s1 + $0x20] sm:$0xff]
      %v282 = vld [vmem:[%s1 + $0x28] sm:$0xff]
      %v283 = vld [vmem:[%s1 + $0x30] sm:$0xff]
      %v284 = vld [vmem:[%s1 + $0x38] sm:$0xff]
      %v285 = vld [vmem:[%s1 + $0x40] sm:$0xff]
      %v286 = vld [vmem:[%s1 + $0x48] sm:$0xff]
      %v287 = vld [vmem:[%s1 + $0x50] sm:$0xff]
      %v288 = vld [vmem:[%s1 + $0x58] sm:$0xff]
      %v289 = vld [vmem:[%s1 + $0x60] sm:$0xff]
      %v290 = vld [vmem:[%s1 + $0x68] sm:$0xff]
      %v291 = vld [vmem:[%s1 + $0x70] sm:$0xff]
      %v292 = vld [vmem:[%s1 + $0x78] sm:$0xff]
      %v293 = vld [vmem:[%s2] sm:$0x3]
      %v295 = vlaneseq
      %v296 = vshrl.u32 %v295, 7
      %v297 = vsub.s32 0, %v296
      %v298 = vrot.slane %v293, %v297
      %v299 = vlaneseq
      %v300 = vshrl.u32 %v299, 7
      %v301 = vsub.s32 1, %v300
      %v302 = vrot.slane %v293, %v301
      %v307 = vcombine.low %v275, %v276
      %v309 = vunpack.c.l.s4 1966171168
      %v310 = vunpack.c.0.s8 %v309
      %v311 = vlaneseq
      %v312 = vshrl.u32 %v311, 7
      %v313 = vsub.s32 %v310, %v312
      %v314 = vrot.slane %v307, %v313
      %v316 = vunpack.c.l.s4 1966171168
      %v317 = vunpack.c.0.s8 %v316
      %v318 = vlaneseq
      %v319 = vshrl.u32 %v318, 7
      %v320 = vsub.s32 %v317, %v319
      %v321 = vrot.slane %v314, %v320
      %v339 = vunpack.c.l.b16 %v277
      %v340 = vunpack.c.h.b16 %v277
      %v341 = vunpack.c.l.b16 %v278
      %v342 = vunpack.c.h.b16 %v278
      %v343 = vunpack.c.l.b16 %v279
      %v344 = vunpack.c.h.b16 %v279
      %v345 = vunpack.c.l.b16 %v280
      %v346 = vunpack.c.h.b16 %v280
      %v347 = vunpack.c.l.b16 %v281
      %v348 = vunpack.c.h.b16 %v281
      %v349 = vunpack.c.l.b16 %v282
      %v350 = vunpack.c.h.b16 %v282
      %v351 = vunpack.c.l.b16 %v283
      %v352 = vunpack.c.h.b16 %v283
      %v353 = vunpack.c.l.b16 %v284
      %v354 = vunpack.c.h.b16 %v284
      %v355 = vunpack.c.l.b16 %v285
      %v356 = vunpack.c.h.b16 %v285
      %v357 = vunpack.c.l.b16 %v286
      %v358 = vunpack.c.h.b16 %v286
      %v359 = vunpack.c.l.b16 %v287
      %v360 = vunpack.c.h.b16 %v287
      %v361 = vunpack.c.l.b16 %v288
      %v362 = vunpack.c.h.b16 %v288
      %v363 = vunpack.c.l.b16 %v289
      %v364 = vunpack.c.h.b16 %v289
      %v365 = vunpack.c.l.b16 %v290
      %v366 = vunpack.c.h.b16 %v290
      %v367 = vunpack.c.l.b16 %v291
      %v368 = vunpack.c.h.b16 %v291
      %v369 = vunpack.c.l.b16 %v292
      %v370 = vunpack.c.h.b16 %v292
      %v371 = vpack.c.b16 %v341, %v339
      %v372 = vpack.c.b16 %v342, %v340
      %v373 = vpack.c.b16 %v345, %v343
      %v374 = vpack.c.b16 %v346, %v344
      %v375 = vpack.c.b16 %v349, %v347
      %v376 = vpack.c.b16 %v350, %v348
      %v377 = vpack.c.b16 %v353, %v351
      %v378 = vpack.c.b16 %v354, %v352
      %v379 = vpack.c.b16 %v357, %v355
      %v380 = vpack.c.b16 %v358, %v356
      %v381 = vpack.c.b16 %v361, %v359
      %v382 = vpack.c.b16 %v362, %v360
      %v383 = vpack.c.b16 %v365, %v363
      %v384 = vpack.c.b16 %v366, %v364
      %v385 = vpack.c.b16 %v369, %v367
      %v386 = vpack.c.b16 %v370, %v368
      %403 = vmatprep.subr.bf16.mxu0 %v372
      %404 = vmatpush1.bf16.msra.mxu0 %v371
      %405 = vmatprep.subr.bf16.mxu0 %v374
      %406 = vmatpush1.bf16.msra.mxu0 %v373
      %407 = vmatprep.subr.bf16.mxu0 %v376
      %408 = vmatpush1.bf16.msra.mxu0 %v375
      %409 = vmatprep.subr.bf16.mxu0 %v378
      %410 = vmatpush1.bf16.msra.mxu0 %v377
      %411 = vmatprep.subr.bf16.mxu0 %v380
      %412 = vmatpush1.bf16.msra.mxu0 %v379
      %413 = vmatprep.subr.bf16.mxu0 %v382
      %414 = vmatpush1.bf16.msra.mxu0 %v381
      %415 = vmatprep.subr.bf16.mxu0 %v384
      %416 = vmatpush1.bf16.msra.mxu0 %v383
      %417 = vmatprep.subr.bf16.mxu0 %v386
      %418 = vmatpush1.bf16.msra.mxu0 %v385
      %419 = vmatprep.subr.bf16.mxu0 0
      %420 = vmatpush1.bf16.msra.mxu0 0
      %421 = vmatprep.subr.bf16.mxu0 0
      %422 = vmatpush1.bf16.msra.mxu0 0
      %423 = vmatprep.subr.bf16.mxu0 0
      %424 = vmatpush1.bf16.msra.mxu0 0
      %425 = vmatprep.subr.bf16.mxu0 0
      %426 = vmatpush1.bf16.msra.mxu0 0
      %427 = vmatprep.subr.bf16.mxu0 0
      %428 = vmatpush1.bf16.msra.mxu0 0
      %429 = vmatprep.subr.bf16.mxu0 0
      %430 = vmatpush1.bf16.msra.mxu0 0
      %431 = vmatprep.subr.bf16.mxu0 0
      %432 = vmatpush1.bf16.msra.mxu0 0
      %433 = vmatprep.subr.bf16.mxu0 0
      %434 = vmatpush1.bf16.msra.mxu0 0
      %435 = vmatprep.mubr.bf16.mxu0 0
      %436 = vmatmul.mubr.bf16.gmra.mrb[0].mxu0 %v321
      %v437 = vpop.f32.mrb[0].mxu0
      %v438 = vadd.f32 %v298, %v437
      %v439 = vpop.f32.mrb[0].mxu0
      %v440 = vadd.f32 %v302, %v439
      %v441 = vpop.f32.mrb[0].mxu0
      %v442 = vpop.f32.mrb[0].mxu0
      %443 = vdwg.mxu0
      %v444 = vmax.f32 %v438, 0.0
      %v445 = vmax.f32 %v440, 0.0
      %v446 = vmin.f32 %v444, 6.0
      %v447 = vmin.f32 %v445, 6.0
      %448 = vst [vmem:[#allocation2] sm:$0xf] 0
      %449 = vst [vmem:[#allocation2 + $0x4] sm:$0xf] 0
      %450 = vst [vmem:[#allocation2 + $0x8] sm:$0xf] 0
      %451 = vst [vmem:[#allocation2 + $0xc] sm:$0xf] 0
      %v454 = vcombine.low %v446, %v447
      %v456 = vunpack.c.l.s4 1983009808
      %v457 = vunpack.c.0.s8 %v456
      %v458 = vlaneseq
      %v459 = vshrl.u32 %v458, 7
      %v460 = vsub.s32 %v457, %v459
      %v461 = vrot.slane %v454, %v460
      %v462 = vcombine.high %v461, %v461
      %v464 = vunpack.c.l.s4 1983009808
      %v465 = vunpack.c.0.s8 %v464
      %v466 = vlaneseq
      %v467 = vshrl.u32 %v466, 7
      %v468 = vsub.s32 %v465, %v467
      %v469 = vrot.slane %v461, %v468
      %v470 = vcombine.high %v469, %v469
      %v472 = vunpack.c.l.s4 1983009808
      %v473 = vunpack.c.0.s8 %v472
      %v474 = vlaneseq
      %v475 = vshrl.u32 %v474, 7
      %v476 = vsub.s32 %v473, %v475
      %v477 = vrot.slane %v462, %v476
      %v478 = vcombine.high %v477, %v477
      %v483 = vpack.c.bf16 %v469, %v469
      %v484 = vpack.c.bf16 %v470, %v470
      %v485 = vpack.c.bf16 %v477, %v477
      %v486 = vpack.c.bf16 %v478, %v478
      %v491 = vcombine.low %v483, %v484
      %v493 = vunpack.c.l.s4 1983009808
      %v494 = vunpack.c.0.s8 %v493
      %v495 = vlaneseq
      %v496 = vshrl.u32 %v495, 7
      %v497 = vsub.s32 %v494, %v496
      %v498 = vrot.slane %v491, %v497
      %v499 = vcombine.low %v485, %v486
      %v501 = vunpack.c.l.s4 1983009808
      %v502 = vunpack.c.0.s8 %v501
      %v503 = vlaneseq
      %v504 = vshrl.u32 %v503, 7
      %v505 = vsub.s32 %v502, %v504
      %v506 = vrot.slane %v499, %v505
      %v508 = vshrl.u32 %v498, 16
      %v510 = vrot.slane %v508, 7
      %v511 = vshll.u32 %v498, 16
      %v513 = vor.u32 %v510, %v511
      %v515 = vshrl.u32 %v506, 16
      %v517 = vrot.slane %v515, 7
      %v518 = vshll.u32 %v506, 16
      %v520 = vor.u32 %v517, %v518
      %s523 = scalar_lea.vmem [#allocation2], 4
      %vm524 = vcmask 1041408
      %vm525 = vsmask.f32 1282
      %vm526 = vmand %vm524, %vm525
      %vm527 = vcmask 1043458
      %vm528 = vsmask.f32 3338
      %vm529 = vmand %vm527, %vm528
      %vm530 = vmor %vm529, %vm526
      %v531 = vld [vmem:[%s523] sm:$0xf]
      %v532 = vsel %vm530, %v513, %v531
      %533 = vst [vmem:[%s523] sm:$0xf] %v532
      %v534 = vld [vmem:[%s523 + $0x4] sm:$0xf]
      %v535 = vsel %vm530, %v520, %v534
      %536 = vst [vmem:[%s523 + $0x4] sm:$0xf] %v535
      %v537 = vld [vmem:[%s3] sm:$0xff]
      %v538 = vld [vmem:[%s3 + $0x8] sm:$0xff]
      %v539 = vld [vmem:[%s3 + $0x10] sm:$0x1]
      %v540 = vld [vmem:[%s3 + $0x18] sm:$0x1]
      %v541 = vld [vmem:[#allocation2] sm:$0x5]
      %v542 = vld [vmem:[#allocation2 + $0x4] sm:$0x5]
      %v543 = vunpack.c.l.bf16 %v541
      %v544 = vunpack.c.l.bf16 %v542
      %v545 = vlaneseq
      %v546 = vshrl.u32 %v545, 7
      %v547 = vsub.s32 0, %v546
      %v548 = vrot.slane %v537, %v547
      %v549 = vlaneseq
      %v550 = vshrl.u32 %v549, 7
      %v551 = vsub.s32 0, %v550
      %v552 = vrot.slane %v538, %v551
      %v555 = vcombine.low %v548, %v552
      %v557 = vmul.f32 %v543, %v555
      %v558 = vmul.f32 %v544, %v555
      %v559 = vld [vmem:[#allocation2] sm:$0xf]
      %v560 = vld [vmem:[#allocation2 + $0x4] sm:$0xf]
      %v561 = vunpack.c.l.bf16 %v559
      %v562 = vunpack.c.l.bf16 %v560
      %v563 = vlaneseq
      %v564 = vshrl.u32 %v563, 7
      %v565 = vsub.s32 1, %v564
      %v566 = vrot.slane %v537, %v565
      %v567 = vlaneseq
      %v568 = vshrl.u32 %v567, 7
      %v569 = vsub.s32 1, %v568
      %v570 = vrot.slane %v538, %v569
      %v573 = vcombine.low %v566, %v570
      %v574 = vrot.slane %v573, 7
      %v576 = vmul.f32 %v561, %v574
      %v577 = vmul.f32 %v562, %v574
      %v580 = vrot.slane %v576, 5
      %v581 = vrot.slane %v580, 4
      %v582 = vrot.slane %v577, 5
      %v583 = vrot.slane %v582, 4
      %v586 = vadd.f32 %v557, %v581
      %v587 = vadd.f32 %v558, %v583
      %v588 = vld [vmem:[#allocation2] sm:$0xa]
      %v589 = vld [vmem:[#allocation2 + $0x4] sm:$0xa]
      %v590 = vunpack.c.l.bf16 %v588
      %v591 = vunpack.c.l.bf16 %v589
      %v592 = vlaneseq
      %v593 = vshrl.u32 %v592, 7
      %v594 = vsub.s32 2, %v593
      %v595 = vrot.slane %v537, %v594
      %v596 = vlaneseq
      %v597 = vshrl.u32 %v596, 7
      %v598 = vsub.s32 2, %v597
      %v599 = vrot.slane %v538, %v598
      %v602 = vcombine.low %v595, %v599
      %v603 = vrot.slane %v602, 6
      %v605 = vmul.f32 %v590, %v603
      %v606 = vmul.f32 %v591, %v603
      %v609 = vrot.slane %v605, 6
      %v610 = vrot.slane %v609, 4
      %v611 = vrot.slane %v606, 6
      %v612 = vrot.slane %v611, 4
      %v615 = vadd.f32 %v586, %v610
      %v616 = vadd.f32 %v587, %v612
      %v617 = vld [vmem:[%s523] sm:$0x5]
      %v618 = vld [vmem:[%s523 + $0x4] sm:$0x5]
      %v619 = vunpack.c.l.bf16 %v617
      %v620 = vunpack.c.l.bf16 %v618
      %v621 = vlaneseq
      %v622 = vshrl.u32 %v621, 7
      %v623 = vsub.s32 3, %v622
      %v624 = vrot.slane %v537, %v623
      %v625 = vlaneseq
      %v626 = vshrl.u32 %v625, 7
      %v627 = vsub.s32 3, %v626
      %v628 = vrot.slane %v538, %v627
      %v631 = vcombine.low %v624, %v628
      %v633 = vmul.f32 %v619, %v631
      %v634 = vmul.f32 %v620, %v631
      %v635 = vadd.f32 %v615, %v633
      %v636 = vadd.f32 %v616, %v634
      %v637 = vld [vmem:[%s523] sm:$0xf]
      %v638 = vld [vmem:[%s523 + $0x4] sm:$0xf]
      %v639 = vunpack.c.l.bf16 %v637
      %v640 = vunpack.c.l.bf16 %v638
      %v641 = vlaneseq
      %v642 = vshrl.u32 %v641, 7
      %v643 = vsub.s32 4, %v642
      %v644 = vrot.slane %v537, %v643
      %v645 = vlaneseq
      %v646 = vshrl.u32 %v645, 7
      %v647 = vsub.s32 4, %v646
      %v648 = vrot.slane %v538, %v647
      %v651 = vcombine.low %v644, %v648
      %v652 = vrot.slane %v651, 7
      %v654 = vmul.f32 %v639, %v652
      %v655 = vmul.f32 %v640, %v652
      %v658 = vrot.slane %v654, 5
      %v659 = vrot.slane %v658, 4
      %v660 = vrot.slane %v655, 5
      %v661 = vrot.slane %v660, 4
      %v664 = vadd.f32 %v635, %v659
      %v665 = vadd.f32 %v636, %v661
      %v666 = vld [vmem:[%s523] sm:$0xa]
      %v667 = vld [vmem:[%s523 + $0x4] sm:$0xa]
      %v668 = vunpack.c.l.bf16 %v666
      %v669 = vunpack.c.l.bf16 %v667
      %v670 = vlaneseq
      %v671 = vshrl.u32 %v670, 7
      %v672 = vsub.s32 5, %v671
      %v673 = vrot.slane %v537, %v672
      %v674 = vlaneseq
      %v675 = vshrl.u32 %v674, 7
      %v676 = vsub.s32 5, %v675
      %v677 = vrot.slane %v538, %v676
      %v680 = vcombine.low %v673, %v677
      %v681 = vrot.slane %v680, 6
      %v683 = vmul.f32 %v668, %v681
      %v684 = vmul.f32 %v669, %v681
      %v687 = vrot.slane %v683, 6
      %v688 = vrot.slane %v687, 4
      %v689 = vrot.slane %v684, 6
      %v690 = vrot.slane %v689, 4
      %v693 = vadd.f32 %v664, %v688
      %v694 = vadd.f32 %v665, %v690
      %s695 = scalar_lea.vmem [#allocation2], 8
      %v696 = vld [vmem:[%s695] sm:$0x5]
      %v697 = vld [vmem:[%s695 + $0x4] sm:$0x5]
      %v698 = vunpack.c.l.bf16 %v696
      %v699 = vunpack.c.l.bf16 %v697
      %v700 = vlaneseq
      %v701 = vshrl.u32 %v700, 7
      %v702 = vsub.s32 6, %v701
      %v703 = vrot.slane %v537, %v702
      %v704 = vlaneseq
      %v705 = vshrl.u32 %v704, 7
      %v706 = vsub.s32 6, %v705
      %v707 = vrot.slane %v538, %v706
      %v710 = vcombine.low %v703, %v707
      %v712 = vmul.f32 %v698, %v710
      %v713 = vmul.f32 %v699, %v710
      %v714 = vadd.f32 %v693, %v712
      %v715 = vadd.f32 %v694, %v713
      %v716 = vld [vmem:[%s695] sm:$0xf]
      %v717 = vld [vmem:[%s695 + $0x4] sm:$0xf]
      %v718 = vunpack.c.l.bf16 %v716
      %v719 = vunpack.c.l.bf16 %v717
      %v720 = vlaneseq
      %v721 = vshrl.u32 %v720, 7
      %v722 = vsub.s32 7, %v721
      %v723 = vrot.slane %v537, %v722
      %v724 = vlaneseq
      %v725 = vshrl.u32 %v724, 7
      %v726 = vsub.s32 7, %v725
      %v727 = vrot.slane %v538, %v726
      %v730 = vcombine.low %v723, %v727
      %v731 = vrot.slane %v730, 7
      %v733 = vmul.f32 %v718, %v731
      %v734 = vmul.f32 %v719, %v731
      %v737 = vrot.slane %v733, 5
      %v738 = vrot.slane %v737, 4
      %v739 = vrot.slane %v734, 5
      %v740 = vrot.slane %v739, 4
      %v743 = vadd.f32 %v714, %v738
      %v744 = vadd.f32 %v715, %v740
      %v745 = vld [vmem:[%s695] sm:$0xa]
      %v746 = vld [vmem:[%s695 + $0x4] sm:$0xa]
      %v747 = vunpack.c.l.bf16 %v745
      %v748 = vunpack.c.l.bf16 %v746
      %v749 = vlaneseq
      %v750 = vshrl.u32 %v749, 7
      %v751 = vsub.s32 0, %v750
      %v752 = vrot.slane %v539, %v751
      %v753 = vlaneseq
      %v754 = vshrl.u32 %v753, 7
      %v755 = vsub.s32 0, %v754
      %v756 = vrot.slane %v540, %v755
      %v759 = vcombine.low %v752, %v756
      %v760 = vrot.slane %v759, 6
      %v762 = vmul.f32 %v747, %v760
      %v763 = vmul.f32 %v748, %v760
      %v766 = vrot.slane %v762, 6
      %v767 = vrot.slane %v766, 4
      %v768 = vrot.slane %v763, 6
      %v769 = vrot.slane %v768, 4
      %v772 = vadd.f32 %v743, %v767
      %v773 = vadd.f32 %v744, %v769
      %v774 = vld [vmem:[%s4] sm:$0x3]
      %v776 = vlaneseq
      %v777 = vshrl.u32 %v776, 7
      %v778 = vsub.s32 0, %v777
      %v779 = vrot.slane %v774, %v778
      %v780 = vlaneseq
      %v781 = vshrl.u32 %v780, 7
      %v782 = vsub.s32 1, %v781
      %v783 = vrot.slane %v774, %v782
      %v784 = vcombine.low %v779, %v783
      %v786 = vadd.f32 %v772, %v784
      %v787 = vadd.f32 %v773, %v784
      %v788 = vmax.f32 %v786, 0.0
      %v789 = vmax.f32 %v787, 0.0
      %v790 = vmin.f32 %v788, 6.0
      %v791 = vmin.f32 %v789, 6.0
      %v795 = vunpack.c.l.s4 1983009808
      %v796 = vunpack.c.0.s8 %v795
      %v797 = vlaneseq
      %v798 = vshrl.u32 %v797, 7
      %v799 = vsub.s32 %v796, %v798
      %v800 = vrot.slane %v790, %v799
      %v802 = vunpack.c.l.s4 1983009808
      %v803 = vunpack.c.0.s8 %v802
      %v804 = vlaneseq
      %v805 = vshrl.u32 %v804, 7
      %v806 = vsub.s32 %v803, %v805
      %v807 = vrot.slane %v791, %v806
      %v808 = vcombine.low %v800, %v807
      %v810 = vunpack.c.l.s4 1983009808
      %v811 = vunpack.c.0.s8 %v810
      %v812 = vlaneseq
      %v813 = vshrl.u32 %v812, 7
      %v814 = vsub.s32 %v811, %v813
      %v815 = vrot.slane %v808, %v814
      %v816 = vcombine.high %v815, %v815
      %v819 = vpack.c.bf16 %v815, %v815
      %v820 = vpack.c.bf16 %v816, %v816
      %v821 = vld [vmem:[%s5] sm:$0xf]
      %v822 = vld [vmem:[%s5 + $0x4] sm:$0xf]
      %v823 = vld [vmem:[%s5 + $0x8] sm:$0xf]
      %v824 = vld [vmem:[%s5 + $0xc] sm:$0xf]
      %v825 = vld [vmem:[%s5 + $0x10] sm:$0xf]
      %v826 = vld [vmem:[%s5 + $0x14] sm:$0xf]
      %v827 = vld [vmem:[%s5 + $0x18] sm:$0xf]
      %v828 = vld [vmem:[%s5 + $0x1c] sm:$0xf]
      %v829 = vld [vmem:[%s5 + $0x20] sm:$0xf]
      %v830 = vld [vmem:[%s5 + $0x24] sm:$0xf]
      %v831 = vld [vmem:[%s5 + $0x28] sm:$0xf]
      %v832 = vld [vmem:[%s5 + $0x2c] sm:$0xf]
      %v833 = vld [vmem:[%s5 + $0x30] sm:$0xf]
      %v834 = vld [vmem:[%s5 + $0x34] sm:$0xf]
      %v835 = vld [vmem:[%s5 + $0x38] sm:$0xf]
      %v836 = vld [vmem:[%s5 + $0x3c] sm:$0xf]
      %v837 = vld [vmem:[%s5 + $0x40] sm:$0xf]
      %v838 = vld [vmem:[%s5 + $0x44] sm:$0xf]
      %v839 = vld [vmem:[%s5 + $0x48] sm:$0xf]
      %v840 = vld [vmem:[%s5 + $0x4c] sm:$0xf]
      %v841 = vld [vmem:[%s5 + $0x50] sm:$0xf]
      %v842 = vld [vmem:[%s5 + $0x54] sm:$0xf]
      %v843 = vld [vmem:[%s5 + $0x58] sm:$0xf]
      %v844 = vld [vmem:[%s5 + $0x5c] sm:$0xf]
      %v845 = vld [vmem:[%s5 + $0x60] sm:$0xf]
      %v846 = vld [vmem:[%s5 + $0x64] sm:$0xf]
      %v847 = vld [vmem:[%s5 + $0x68] sm:$0xf]
      %v848 = vld [vmem:[%s5 + $0x6c] sm:$0xf]
      %v849 = vld [vmem:[%s5 + $0x70] sm:$0xf]
      %v850 = vld [vmem:[%s5 + $0x74] sm:$0xf]
      %v851 = vld [vmem:[%s5 + $0x78] sm:$0xf]
      %v852 = vld [vmem:[%s5 + $0x7c] sm:$0xf]
      %v853 = vld [vmem:[%s6] sm:$0x1]
      %v855 = vlaneseq
      %v856 = vshrl.u32 %v855, 7
      %v857 = vsub.s32 0, %v856
      %v858 = vrot.slane %v853, %v857
      %v892 = vunpack.c.l.b16 %v821
      %v893 = vunpack.c.l.b16 %v822
      %v894 = vunpack.c.l.b16 %v823
      %v895 = vunpack.c.l.b16 %v824
      %v896 = vunpack.c.l.b16 %v825
      %v897 = vunpack.c.l.b16 %v826
      %v898 = vunpack.c.l.b16 %v827
      %v899 = vunpack.c.l.b16 %v828
      %v900 = vunpack.c.l.b16 %v829
      %v901 = vunpack.c.l.b16 %v830
      %v902 = vunpack.c.l.b16 %v831
      %v903 = vunpack.c.l.b16 %v832
      %v904 = vunpack.c.l.b16 %v833
      %v905 = vunpack.c.l.b16 %v834
      %v906 = vunpack.c.l.b16 %v835
      %v907 = vunpack.c.l.b16 %v836
      %v908 = vunpack.c.l.b16 %v837
      %v909 = vunpack.c.l.b16 %v838
      %v910 = vunpack.c.l.b16 %v839
      %v911 = vunpack.c.l.b16 %v840
      %v912 = vunpack.c.l.b16 %v841
      %v913 = vunpack.c.l.b16 %v842
      %v914 = vunpack.c.l.b16 %v843
      %v915 = vunpack.c.l.b16 %v844
      %v916 = vunpack.c.l.b16 %v845
      %v917 = vunpack.c.l.b16 %v846
      %v918 = vunpack.c.l.b16 %v847
      %v919 = vunpack.c.l.b16 %v848
      %v920 = vunpack.c.l.b16 %v849
      %v921 = vunpack.c.l.b16 %v850
      %v922 = vunpack.c.l.b16 %v851
      %v923 = vunpack.c.l.b16 %v852
      %v924 = vpack.c.b16 %v893, %v892
      %v925 = vpack.c.b16 %v895, %v894
      %v926 = vpack.c.b16 %v897, %v896
      %v927 = vpack.c.b16 %v899, %v898
      %v928 = vpack.c.b16 %v901, %v900
      %v929 = vpack.c.b16 %v903, %v902
      %v930 = vpack.c.b16 %v905, %v904
      %v931 = vpack.c.b16 %v907, %v906
      %v932 = vpack.c.b16 %v909, %v908
      %v933 = vpack.c.b16 %v911, %v910
      %v934 = vpack.c.b16 %v913, %v912
      %v935 = vpack.c.b16 %v915, %v914
      %v936 = vpack.c.b16 %v917, %v916
      %v937 = vpack.c.b16 %v919, %v918
      %v938 = vpack.c.b16 %v921, %v920
      %v939 = vpack.c.b16 %v923, %v922
      %956 = vmatprep.subr.bf16.mxu0 0
      %957 = vmatpush1.bf16.msra.mxu0 %v924
      %958 = vmatprep.subr.bf16.mxu0 0
      %959 = vmatpush1.bf16.msra.mxu0 %v925
      %960 = vmatprep.subr.bf16.mxu0 0
      %961 = vmatpush1.bf16.msra.mxu0 %v926
      %962 = vmatprep.subr.bf16.mxu0 0
      %963 = vmatpush1.bf16.msra.mxu0 %v927
      %964 = vmatprep.subr.bf16.mxu0 0
      %965 = vmatpush1.bf16.msra.mxu0 %v928
      %966 = vmatprep.subr.bf16.mxu0 0
      %967 = vmatpush1.bf16.msra.mxu0 %v929
      %968 = vmatprep.subr.bf16.mxu0 0
      %969 = vmatpush1.bf16.msra.mxu0 %v930
      %970 = vmatprep.subr.bf16.mxu0 0
      %971 = vmatpush1.bf16.msra.mxu0 %v931
      %972 = vmatprep.subr.bf16.mxu0 0
      %973 = vmatpush1.bf16.msra.mxu0 %v932
      %974 = vmatprep.subr.bf16.mxu0 0
      %975 = vmatpush1.bf16.msra.mxu0 %v933
      %976 = vmatprep.subr.bf16.mxu0 0
      %977 = vmatpush1.bf16.msra.mxu0 %v934
      %978 = vmatprep.subr.bf16.mxu0 0
      %979 = vmatpush1.bf16.msra.mxu0 %v935
      %980 = vmatprep.subr.bf16.mxu0 0
      %981 = vmatpush1.bf16.msra.mxu0 %v936
      %982 = vmatprep.subr.bf16.mxu0 0
      %983 = vmatpush1.bf16.msra.mxu0 %v937
      %984 = vmatprep.subr.bf16.mxu0 0
      %985 = vmatpush1.bf16.msra.mxu0 %v938
      %986 = vmatprep.subr.bf16.mxu0 0
      %987 = vmatpush1.bf16.msra.mxu0 %v939
      %988 = vmatprep.mubr.bf16.mxu0 %v820
      %989 = vmatmul.mubr.bf16.gmra.mrb[0].mxu0 %v819
      %v990 = vpop.f32.mrb[0].mxu0
      %v991 = vadd.f32 %v858, %v990
      %v992 = vpop.f32.mrb[0].mxu0
      %v993 = vpop.f32.mrb[0].mxu0
      %v994 = vpop.f32.mrb[0].mxu0
      %995 = vdwg.mxu0
      %v996 = vunpack.c.l.bf16 %v275
      %v997 = vunpack.c.l.bf16 %v276
      %v1000 = vcombine.low %v996, %v997
      %v1002 = vunpack.c.l.s4 1983009808
      %v1003 = vunpack.c.0.s8 %v1002
      %v1004 = vlaneseq
      %v1005 = vshrl.u32 %v1004, 7
      %v1006 = vsub.s32 %v1003, %v1005
      %v1007 = vrot.slane %v1000, %v1006
      %v1009 = vadd.f32 %v991, %v1007
      %v1012 = vunpack.c.l.s4 1983009808
      %v1013 = vunpack.c.0.s8 %v1012
      %v1014 = vlaneseq
      %v1015 = vshrl.u32 %v1014, 7
      %v1016 = vsub.s32 %v1013, %v1015
      %v1017 = vrot.slane %v1009, %v1016
      %v1018 = vcombine.high %v1017, %v1017
      %v1021 = vpack.c.bf16 %v1017, %v1017
      %v1022 = vpack.c.bf16 %v1018, %v1018
      %1023 = vst [vmem:[%s273] sm:$0x1] %v1021
      %1024 = vst [vmem:[%s273 + $0x1] sm:$0x1] %v1022
      %p1025 = scmp.lt.s32.totalorder %s18, 1
      %s1026 = scalar_select %p1025, %s18, 1
      %s1027 = smul.addr %s1026, 2
      %s1028 = scalar_lea.vmem %s7, %s1027
      // Predicated region
      $region49: #{_lambda_.12} parent=47 // pred_check
        %p1029 = pneg %p188
      $region50: #{_lambda_.12} parent=47 // pred_check_branch
        %1031 = sbr.rel (%p1029) target = $region52
      $region51: #{_lambda_.12} parent=47 // pred_region
        _
      $region52: #{_lambda_.12} parent=47 // pred_fallthru
        _
    $region48: #{_lambda_.12} parent=5 // pred_fallthru
      _
    %p1032 = scmp.le.s32.totalorder 2, %s13
    // Predicated region
    $region53: #{_lambda_.12} parent=5 // pred_check
      %p1033 = pneg %p1032
    $region54: #{_lambda_.12} parent=5 // pred_check_branch
      %1035 = sbr.rel (%p1033) target = $region56
    $region55: #{_lambda_.12} parent=5 // pred_region
      %s1036 = ssub.s32 %s13, 2
      // Predicated region
      $region57: #{_lambda_.12} parent=55 // pred_check
        %p1037 = pneg %p194
      $region58: #{_lambda_.12} parent=55 // pred_check_branch
        %1039 = sbr.rel (%p1037) target = $region60
      $region59: #{_lambda_.12} parent=55 // pred_region
        %p1040 = scmp.lt.s32.totalorder %s19, 1
        %s1041 = scalar_select %p1040, %s19, 1
        %s1042 = smul.addr %s1041, 2
        %s1043 = scalar_lea.vmem %s7, %s1042
      $region60: #{_lambda_.12} parent=55 // pred_fallthru
        _
    $region56: #{_lambda_.12} parent=5 // pred_fallthru
      _
  $region6: #{_lambda_.12} parent=0 // loop_footer
    %s17 = sadd.s32 1, %s13
  $region7: #{_lambda_.12} parent=0 // loop_footer_branch
    %12 = sbr.rel target = $region3
  $region8: #{_lambda_.12} parent=0 // loop_exit
    _

</llo_original>
